<compile_context>
chip_gen: v7x
topology: tpu7x:2x2x1
jax: 0.10.0
libtpu: 0.0.40
codegen_flags: <defaults>
</compile_context>

<pallas_src>
import functools

import jax
import jax.numpy as jnp
import numpy as np
from jax.experimental import pallas as pl
from jax.experimental.pallas import tpu as pltpu


def _round_up(x, m):
    return ((x + m - 1) // m) * m


def _convlstm_step_kernel(x_ref, w1_ref, b1_ref, wg_ref, bg_ref, mask_ref, out_ref,
                          yh_pad, c_st, h_st, *,
                          n_tiles, tile, wp2, c_out, lead, store_off):
    """One time step: y = relu(conv3x3(x)); (h, c) = ConvLSTM([y | h_prev], c_prev)."""
    t = pl.program_id(1)
    c2 = 2 * c_out                       # width of one [y | h] section of the fused gate operand

    @pl.when(t == 0)
    def _init():
        yh_pad[...] = jnp.zeros_like(yh_pad)
        c_st[...] = jnp.zeros_like(c_st)
        h_st[...] = jnp.zeros_like(h_st)

    def for_each_tile(body):
        if n_tiles <= 16:
            # Fully unrolled: static slice offsets + full scheduling visibility across tiles.
            for ti in range(n_tiles):
                body(ti * tile)
        else:
            # Large frames fall back to a rolled loop (row-band grid split would be next step).
            @pl.loop(0, n_tiles)
            def _(ti):
                body(pl.multiple_of(ti * tile, 16))

    # ---- phase A: conv1 = 3 dy-shifted matmuls (dx fused along K = 3*C_in) + bias + ReLU,
    #      then publish [y | h_prev] into the three dx lane-sections of the gate operand. ----
    def conv1_tile(r0):
        acc = jnp.broadcast_to(b1_ref[...], (tile, c_out))         # bias-initialised accumulator
        for dy in range(3):
            a = x_ref[0, 0, pl.ds(r0 + dy * wp2, tile), :]         # (tile, 3*C_in) bf16
            acc = acc + jnp.dot(a, w1_ref[dy], preferred_element_type=jnp.float32)
        y = jnp.maximum(acc, 0.0) * mask_ref[pl.ds(r0, tile), :]
        yh = jnp.concatenate([y, h_st[pl.ds(r0, tile), :]], axis=-1).astype(yh_pad.dtype)
        yh_pad[pl.ds(r0 + store_off + 1, tile), 0:c2] = yh         # dx = -1 section
        yh_pad[pl.ds(r0 + store_off,     tile), c2:2 * c2] = yh    # dx =  0 section (16-aligned)
        yh_pad[pl.ds(r0 + store_off - 1, tile), 2 * c2:3 * c2] = yh  # dx = +1 section

    for_each_tile(conv1_tile)

    # ---- phase B: ConvLSTM gates = 3 dy-shifted matmuls with K = 6*C_out over the fused buffer.
    last_t = pl.num_programs(1) - 1

    def lstm_tile(r0):
        gacc = jnp.broadcast_to(bg_ref[...], (tile, 4 * c_out))    # bias-initialised accumulator
        for dy in range(3):
            z = yh_pad[pl.ds(r0 + lead + dy * wp2, tile), :]       # (tile, 6*C_out) bf16
            gacc = gacc + jnp.dot(z, wg_ref[dy], preferred_element_type=jnp.float32)

        sg = jax.nn.sigmoid(gacc[:, 0:3 * c_out])                  # one EUP pass for i/f/o gates
        in_g = sg[:, 0 * c_out:1 * c_out]
        rem_g = sg[:, 1 * c_out:2 * c_out]
        out_g = sg[:, 2 * c_out:3 * c_out]
        cel_g = jnp.tanh(gacc[:, 3 * c_out:4 * c_out])

        m = mask_ref[pl.ds(r0, tile), :]
        c_new = rem_g * c_st[pl.ds(r0, tile), :] + in_g * cel_g    # c is pointwise: no mask needed
        h_new = out_g * jnp.tanh(c_new) * m                        # h feeds the conv: keep masked
        c_st[pl.ds(r0, tile), :] = c_new
        h_st[pl.ds(r0, tile), :] = h_new       # safe: h_prev was already captured into yh_pad

        @pl.when(t == last_t)
        def _():
            out_ref[0, pl.ds(r0, tile), :] = h_new                 # output written once, last step

    for_each_tile(lstm_tile)


def make_stage_params(key, c_in, c_out):
    """Deterministic synthetic parameters (shapes match RecurrentConvLayer/ConvLSTM)."""
    k1, k2, k3, k4 = jax.random.split(key, 4)
    w1 = jax.random.normal(k1, (3, 3, c_in, c_out), jnp.float32) / np.sqrt(9 * c_in)
    b1 = jax.random.normal(k2, (c_out,), jnp.float32) * 0.05
    wg = jax.random.normal(k3, (3, 3, 2 * c_out, 4 * c_out), jnp.float32) / np.sqrt(9 * 2 * c_out)
    bg = jax.random.normal(k4, (4 * c_out,), jnp.float32) * 0.05
    return dict(w1=w1, b1=b1, wg=wg, bg=bg)


def lstm_encoder_forward(f_evt_rec, stage_params, stage_idx, reverse=False):
    """Pallas forward of LSTMEncoder.forward(f_evt_rec, stage_idx, reverse)."""
    p = stage_params[stage_idx]
    w1, b1, wg, bg = p["w1"], p["b1"], p["wg"], p["bg"]
    B, T, c_in, H, W = f_evt_rec.shape
    c_out = w1.shape[-1]

    # ---- flat padded-frame geometry (per batch element) ----
    hp = H + 2
    wp2 = _round_up(W + 2, 8)                  # padded row stride, sublane aligned
    n_b = hp * wp2                             # flat rows covering one padded frame
    n_tiles = max(1, -(-n_b // 144))           # ~144-row tiles: fused LHS + f32 gate acc fit vregs
    tile = _round_up(-(-n_b // n_tiles), 16)   # 16-multiple -> bf16 publishes stay pair-aligned
    n_rows = tile * n_tiles

    lead = (-wp2) % 16 or 16                   # makes store_off a multiple of 16
    store_off = wp2 + lead                     # row offset of the center (dx=0) publish in yh_pad
    buf_rows = n_rows + 2 * wp2 + 2 * lead     # fused gate-operand buffer rows (border stays zero)
    rows_x = n_rows + 2 * wp2                  # conv1 operand rows (covers the +2*wp2 dy reads)

    # ---- glue: (B,T,Cin,H,W) -> time-major dx-fused conv1 operand on the flat padded layout.
    # xf[flat row py*wp2 + px, :] = [xp[py, px-1] | xp[py, px] | xp[py, px+1]]  (K = 3*C_in)
    x = jnp.transpose(f_evt_rec, (1, 0, 3, 4, 2)).astype(jnp.float32)      # (T,B,H,W,Cin)
    xp = jnp.pad(x, ((0, 0), (0, 0), (1, 1), (1, 1), (0, 0)))              # (T,B,H+2,W+2,Cin)
    xf = jnp.concatenate([xp[:, :, :, dx:dx + W, :] for dx in range(3)], axis=-1)
    xf = jnp.pad(xf, ((0, 0), (0, 0), (0, 0), (1, wp2 - W - 1), (0, 0)))   # (T,B,hp,wp2,3Cin)
    xf = xf.reshape(T, B, n_b, 3 * c_in)
    xf = jnp.pad(xf, ((0, 0), (0, 0), (0, rows_x - n_b), (0, 0))).astype(jnp.bfloat16)

    # interior-row mask, pre-broadcast to c_out lanes (no per-step broadcasts in the kernel)
    rows = np.arange(n_rows)
    yy, xx = rows // wp2, rows % wp2
    interior = (rows < n_b) & (yy < H) & (xx >= 1) & (xx <= W)
    mask = jnp.asarray(np.repeat(interior[:, None], c_out, axis=1).astype(np.float32))

    # weights: per-dy dx-fused conv1 weights (K=3*C_in) and gate weights (K=6*C_out), bf16 for MXU
    w1f = w1.reshape(3, 3 * c_in, c_out).astype(jnp.bfloat16)
    wgr = wg.reshape(3, 3 * 2 * c_out, 4 * c_out).astype(jnp.bfloat16)
    b1r = b1.reshape(1, c_out).astype(jnp.float32)
    bgr = bg.reshape(1, 4 * c_out).astype(jnp.float32)

    kernel = functools.partial(
        _convlstm_step_kernel, n_tiles=n_tiles, tile=tile, wp2=wp2,
        c_out=c_out, lead=lead, store_off=store_off)
    if reverse:
        x_map = lambda b, t: (T - 1 - t, b, 0, 0)
    else:
        x_map = lambda b, t: (t, b, 0, 0)

    out = pl.pallas_call(
        kernel,
        out_shape=jax.ShapeDtypeStruct((B, n_rows, c_out), jnp.float32),
        grid_spec=pltpu.PrefetchScalarGridSpec(
            num_scalar_prefetch=0,
            grid=(B, T),                                   # batch parallel, time sequential
            in_specs=[
                pl.BlockSpec((1, 1, rows_x, 3 * c_in), x_map),
                pl.BlockSpec((3, 3 * c_in, c_out), lambda b, t: (0, 0, 0)),
                pl.BlockSpec((1, c_out), lambda b, t: (0, 0)),
                pl.BlockSpec((3, 6 * c_out, 4 * c_out), lambda b, t: (0, 0, 0)),
                pl.BlockSpec((1, 4 * c_out), lambda b, t: (0, 0)),
                pl.BlockSpec((n_rows, c_out), lambda b, t: (0, 0)),
            ],
            out_specs=pl.BlockSpec((1, n_rows, c_out), lambda b, t: (b, 0, 0)),
            scratch_shapes=[
                pltpu.VMEM((buf_rows, 6 * c_out), jnp.bfloat16),   # dx-fused padded [y | h_prev]
                pltpu.VMEM((n_rows, c_out), jnp.float32),          # cell state (f32)
                pltpu.VMEM((n_rows, c_out), jnp.float32),          # hidden state (f32)
            ],
        ),
        compiler_params=pltpu.CompilerParams(
            dimension_semantics=("parallel", "arbitrary")),
    )(xf, w1f, b1r, wgr, bgr, mask)

    h = out[:, :n_b, :].reshape(B, hp, wp2, c_out)[:, :H, 1:W + 1, :]
    return jnp.transpose(h, (0, 3, 1, 2))                             # (B, C_out, H, W)


def _ref_forward(f_evt_rec, p, reverse=False):
    """Pure-JAX reference (matches the PyTorch forward semantics)."""
    w1, b1, wg, bg = p["w1"], p["b1"], p["wg"], p["bg"]
    B, T, c_in, H, W = f_evt_rec.shape
    c_out = w1.shape[-1]
    dn = ("NCHW", "HWIO", "NCHW")
    h = jnp.zeros((B, c_out, H, W), jnp.float32)
    c = jnp.zeros_like(h)
    order = range(T - 1, -1, -1) if reverse else range(T)
    for t in order:
        xt = f_evt_rec[:, t].astype(jnp.float32)
        y = jax.lax.conv_general_dilated(xt, w1, (1, 1), "SAME", dimension_numbers=dn)
        y = jnp.maximum(y + b1[None, :, None, None], 0.0)
        stacked = jnp.concatenate([y, h], axis=1)
        g = jax.lax.conv_general_dilated(stacked, wg, (1, 1), "SAME", dimension_numbers=dn)
        g = g + bg[None, :, None, None]
        in_g = jax.nn.sigmoid(g[:, 0 * c_out:1 * c_out])
        rem_g = jax.nn.sigmoid(g[:, 1 * c_out:2 * c_out])
        out_g = jax.nn.sigmoid(g[:, 2 * c_out:3 * c_out])
        cel_g = jnp.tanh(g[:, 3 * c_out:4 * c_out])
        c = rem_g * c + in_g * cel_g
        h = out_g * jnp.tanh(c)
    return h


if __name__ == "__main__":
    key = jax.random.PRNGKey(0)
    B, T, H, W = 2, 6, 16, 16
    evt_rec_num_channels = [4, 8]          # model_evt_rec.unetflow.merge_c (synthetic)
    efnet_wf, efnet_depth = 32, 2          # efnet.wf, efnet.depth (synthetic)
    num_stages = min(2, efnet_depth)

    k_in, k_p = jax.random.split(key)
    stage_params = []
    kp = k_p
    for i in range(num_stages):
        kp, ks = jax.random.split(kp)
        stage_params.append(make_stage_params(ks, evt_rec_num_channels[i],
                                              (2 ** i * efnet_wf) // 2))

    stage_idx = 0
    x = jax.random.normal(k_in, (B, T, evt_rec_num_channels[stage_idx], H, W), jnp.float32)

    out = jax.block_until_ready(lstm_encoder_forward(x, stage_params, stage_idx, reverse=False))
    ref = _ref_forward(x, stage_params[stage_idx], reverse=False)
    assert out.shape == ref.shape == (B, (2 ** stage_idx * efnet_wf) // 2, H, W)
    np.testing.assert_allclose(np.asarray(out), np.asarray(ref), rtol=3e-2, atol=3e-2)

    out_r = jax.block_until_ready(lstm_encoder_forward(x, stage_params, stage_idx, reverse=True))
    ref_r = _ref_forward(x, stage_params[stage_idx], reverse=True)
    np.testing.assert_allclose(np.asarray(out_r), np.asarray(ref_r), rtol=3e-2, atol=3e-2)

    print("KERNEL_OK")
</pallas_src>

<mosaic_0001>
module attributes {stable_mosaic.version = 11 : i64} {
  func.func @_convlstm_step_kernel(%arg0: i32, %arg1: i32, %arg2: memref<1x1x480x12xbf16, #tpu.memory_space<vmem>>, %arg3: memref<3x12x16xbf16, #tpu.memory_space<vmem>>, %arg4: memref<1x16xf32, #tpu.memory_space<vmem>>, %arg5: memref<3x96x64xbf16, #tpu.memory_space<vmem>>, %arg6: memref<1x64xf32, #tpu.memory_space<vmem>>, %arg7: memref<432x16xf32, #tpu.memory_space<vmem>>, %arg8: memref<1x432x16xf32, #tpu.memory_space<vmem>>, %arg9: memref<496x96xbf16, #tpu.memory_space<vmem>>, %arg10: memref<432x16xf32, #tpu.memory_space<vmem>>, %arg11: memref<432x16xf32, #tpu.memory_space<vmem>>) attributes {dimension_semantics = [#tpu.dimension_semantics<parallel>, #tpu.dimension_semantics<arbitrary>], iteration_bounds = array<i64: 2, 6>, scalar_prefetch = 0 : i64, scratch_operands = 3 : i64, tpu.core_type = #tpu.core_type<tc>, window_params = [{transform_indices = @transform_0, window_bounds = array<i64: 1, 1, 480, 12>}, {pipeline_mode = #tpu.pipeline_mode<synchronous>, transform_indices = @transform_1, window_bounds = array<i64: 3, 12, 16>}, {pipeline_mode = #tpu.pipeline_mode<synchronous>, transform_indices = @transform_2, window_bounds = array<i64: 1, 16>}, {pipeline_mode = #tpu.pipeline_mode<synchronous>, transform_indices = @transform_3, window_bounds = array<i64: 3, 96, 64>}, {pipeline_mode = #tpu.pipeline_mode<synchronous>, transform_indices = @transform_4, window_bounds = array<i64: 1, 64>}, {pipeline_mode = #tpu.pipeline_mode<synchronous>, transform_indices = @transform_5, window_bounds = array<i64: 432, 16>}, {transform_indices = @transform_6, window_bounds = array<i64: 1, 432, 16>}]} {
    %c0_i32 = arith.constant 0 : i32
    %0 = arith.cmpi eq, %arg1, %c0_i32 : i32
    %1 = arith.extui %0 : i1 to i32
    %c0_i32_0 = arith.constant 0 : i32
    %2 = arith.cmpi ne, %1, %c0_i32_0 : i32
    scf.if %2 {
      %cst_176 = arith.constant 0.000000e+00 : bf16
      %222 = vector.broadcast %cst_176 : bf16 to vector<496x96xbf16>
      %c0_177 = arith.constant 0 : index
      %c0_178 = arith.constant 0 : index
      %223 = vector.load %arg9[%c0_177, %c0_178] : memref<496x96xbf16, #tpu.memory_space<vmem>>, vector<496x96xbf16>
      tpu.vector_store %arg9[%c0_177, %c0_178], %222 {strides = array<i32>} : memref<496x96xbf16, #tpu.memory_space<vmem>>, vector<496x96xbf16>,
      %cst_179 = arith.constant 0.000000e+00 : f32
      %224 = vector.broadcast %cst_179 : f32 to vector<432x16xf32>
      %c0_180 = arith.constant 0 : index
      %c0_181 = arith.constant 0 : index
      %225 = vector.load %arg10[%c0_180, %c0_181] : memref<432x16xf32, #tpu.memory_space<vmem>>, vector<432x16xf32>
      tpu.vector_store %arg10[%c0_180, %c0_181], %224 {strides = array<i32>} : memref<432x16xf32, #tpu.memory_space<vmem>>, vector<432x16xf32>,
      %cst_182 = arith.constant 0.000000e+00 : f32
      %226 = vector.broadcast %cst_182 : f32 to vector<432x16xf32>
      %c0_183 = arith.constant 0 : index
      %c0_184 = arith.constant 0 : index
      %227 = vector.load %arg11[%c0_183, %c0_184] : memref<432x16xf32, #tpu.memory_space<vmem>>, vector<432x16xf32>
      tpu.vector_store %arg11[%c0_183, %c0_184], %226 {strides = array<i32>} : memref<432x16xf32, #tpu.memory_space<vmem>>, vector<432x16xf32>,
    } else {
    }
    %c0 = arith.constant 0 : index
    %c0_1 = arith.constant 0 : index
    %3 = vector.load %arg4[%c0, %c0_1] : memref<1x16xf32, #tpu.memory_space<vmem>>, vector<1x16xf32>
    %4 = vector.shape_cast %3 : vector<1x16xf32> to vector<1x16xf32>
    %5 = vector.broadcast %4 : vector<1x16xf32> to vector<144x16xf32>
    %c0_2 = arith.constant 0 : index
    %c0_3 = arith.constant 0 : index
    %c0_4 = arith.constant 0 : index
    %c0_5 = arith.constant 0 : index
    %6 = vector.load %arg2[%c0_2, %c0_3, %c0_4, %c0_5] : memref<1x1x480x12xbf16, #tpu.memory_space<vmem>>, vector<1x1x144x12xbf16>
    %7 = vector.shape_cast %6 : vector<1x1x144x12xbf16> to vector<144x12xbf16>
    %c0_6 = arith.constant 0 : index
    %c0_7 = arith.constant 0 : index
    %c0_8 = arith.constant 0 : index
    %8 = vector.load %arg3[%c0_6, %c0_7, %c0_8] : memref<3x12x16xbf16, #tpu.memory_space<vmem>>, vector<1x12x16xbf16>
    %9 = vector.shape_cast %8 : vector<1x12x16xbf16> to vector<12x16xbf16>
    %cst = arith.constant dense<0.000000e+00> : vector<144x16xf32>
    %10 = tpu.matmul %7, %9, %cst {dimension_numbers = #tpu.dot_dimension_numbers<[1], [0], [0], [1], [0, 0, 1, 1], [], []>} : vector<144x12xbf16>, vector<12x16xbf16>, vector<144x16xf32> -> vector<144x16xf32>
    %11 = arith.addf %5, %10 : vector<144x16xf32>
    %c0_9 = arith.constant 0 : index
    %c0_10 = arith.constant 0 : index
    %c24 = arith.constant 24 : index
    %c0_11 = arith.constant 0 : index
    %12 = vector.load %arg2[%c0_9, %c0_10, %c24, %c0_11] : memref<1x1x480x12xbf16, #tpu.memory_space<vmem>>, vector<1x1x144x12xbf16>
    %13 = vector.shape_cast %12 : vector<1x1x144x12xbf16> to vector<144x12xbf16>
    %c1 = arith.constant 1 : index
    %c0_12 = arith.constant 0 : index
    %c0_13 = arith.constant 0 : index
    %14 = vector.load %arg3[%c1, %c0_12, %c0_13] : memref<3x12x16xbf16, #tpu.memory_space<vmem>>, vector<1x12x16xbf16>
    %15 = vector.shape_cast %14 : vector<1x12x16xbf16> to vector<12x16xbf16>
    %cst_14 = arith.constant dense<0.000000e+00> : vector<144x16xf32>
    %16 = tpu.matmul %13, %15, %cst_14 {dimension_numbers = #tpu.dot_dimension_numbers<[1], [0], [0], [1], [0, 0, 1, 1], [], []>} : vector<144x12xbf16>, vector<12x16xbf16>, vector<144x16xf32> -> vector<144x16xf32>
    %17 = arith.addf %11, %16 : vector<144x16xf32>
    %c0_15 = arith.constant 0 : index
    %c0_16 = arith.constant 0 : index
    %c48 = arith.constant 48 : index
    %c0_17 = arith.constant 0 : index
    %18 = vector.load %arg2[%c0_15, %c0_16, %c48, %c0_17] : memref<1x1x480x12xbf16, #tpu.memory_space<vmem>>, vector<1x1x144x12xbf16>
    %19 = vector.shape_cast %18 : vector<1x1x144x12xbf16> to vector<144x12xbf16>
    %c2 = arith.constant 2 : index
    %c0_18 = arith.constant 0 : index
    %c0_19 = arith.constant 0 : index
    %20 = vector.load %arg3[%c2, %c0_18, %c0_19] : memref<3x12x16xbf16, #tpu.memory_space<vmem>>, vector<1x12x16xbf16>
    %21 = vector.shape_cast %20 : vector<1x12x16xbf16> to vector<12x16xbf16>
    %cst_20 = arith.constant dense<0.000000e+00> : vector<144x16xf32>
    %22 = tpu.matmul %19, %21, %cst_20 {dimension_numbers = #tpu.dot_dimension_numbers<[1], [0], [0], [1], [0, 0, 1, 1], [], []>} : vector<144x12xbf16>, vector<12x16xbf16>, vector<144x16xf32> -> vector<144x16xf32>
    %23 = arith.addf %17, %22 : vector<144x16xf32>
    %cst_21 = arith.constant 0.000000e+00 : f32
    %24 = vector.broadcast %cst_21 : f32 to vector<144x16xf32>
    %25 = arith.maximumf %23, %24 : vector<144x16xf32>
    %c0_22 = arith.constant 0 : index
    %c0_23 = arith.constant 0 : index
    %26 = vector.load %arg7[%c0_22, %c0_23] : memref<432x16xf32, #tpu.memory_space<vmem>>, vector<144x16xf32>
    %27 = arith.mulf %25, %26 : vector<144x16xf32>
    %c0_24 = arith.constant 0 : index
    %c0_25 = arith.constant 0 : index
    %28 = vector.load %arg11[%c0_24, %c0_25] : memref<432x16xf32, #tpu.memory_space<vmem>>, vector<144x16xf32>
    %29 = tpu.concatenate %27, %28 in 1 : vector<144x16xf32>, vector<144x16xf32> -> vector<144x32xf32>
    %30 = arith.truncf %29 : vector<144x32xf32> to vector<144x32xbf16>
    %c33 = arith.constant 33 : index
    %c0_26 = arith.constant 0 : index
    %31 = vector.load %arg9[%c33, %c0_26] : memref<496x96xbf16, #tpu.memory_space<vmem>>, vector<144x32xbf16>
    tpu.vector_store %arg9[%c33, %c0_26], %30 {strides = array<i32>} : memref<496x96xbf16, #tpu.memory_space<vmem>>, vector<144x32xbf16>,
    %c32 = arith.constant 32 : index
    %c32_27 = arith.constant 32 : index
    %32 = vector.load %arg9[%c32, %c32_27] : memref<496x96xbf16, #tpu.memory_space<vmem>>, vector<144x32xbf16>
    tpu.vector_store %arg9[%c32, %c32_27], %30 {strides = array<i32>} : memref<496x96xbf16, #tpu.memory_space<vmem>>, vector<144x32xbf16>,
    %c31 = arith.constant 31 : index
    %c64 = arith.constant 64 : index
    %33 = vector.load %arg9[%c31, %c64] : memref<496x96xbf16, #tpu.memory_space<vmem>>, vector<144x32xbf16>
    tpu.vector_store %arg9[%c31, %c64], %30 {strides = array<i32>} : memref<496x96xbf16, #tpu.memory_space<vmem>>, vector<144x32xbf16>,
    %c0_28 = arith.constant 0 : index
    %c0_29 = arith.constant 0 : index
    %34 = vector.load %arg4[%c0_28, %c0_29] : memref<1x16xf32, #tpu.memory_space<vmem>>, vector<1x16xf32>
    %35 = vector.shape_cast %34 : vector<1x16xf32> to vector<1x16xf32>
    %36 = vector.broadcast %35 : vector<1x16xf32> to vector<144x16xf32>
    %c0_30 = arith.constant 0 : index
    %c0_31 = arith.constant 0 : index
    %c144 = arith.constant 144 : index
    %c0_32 = arith.constant 0 : index
    %37 = vector.load %arg2[%c0_30, %c0_31, %c144, %c0_32] : memref<1x1x480x12xbf16, #tpu.memory_space<vmem>>, vector<1x1x144x12xbf16>
    %38 = vector.shape_cast %37 : vector<1x1x144x12xbf16> to vector<144x12xbf16>
    %c0_33 = arith.constant 0 : index
    %c0_34 = arith.constant 0 : index
    %c0_35 = arith.constant 0 : index
    %39 = vector.load %arg3[%c0_33, %c0_34, %c0_35] : memref<3x12x16xbf16, #tpu.memory_space<vmem>>, vector<1x12x16xbf16>
    %40 = vector.shape_cast %39 : vector<1x12x16xbf16> to vector<12x16xbf16>
    %cst_36 = arith.constant dense<0.000000e+00> : vector<144x16xf32>
    %41 = tpu.matmul %38, %40, %cst_36 {dimension_numbers = #tpu.dot_dimension_numbers<[1], [0], [0], [1], [0, 0, 1, 1], [], []>} : vector<144x12xbf16>, vector<12x16xbf16>, vector<144x16xf32> -> vector<144x16xf32>
    %42 = arith.addf %36, %41 : vector<144x16xf32>
    %c0_37 = arith.constant 0 : index
    %c0_38 = arith.constant 0 : index
    %c168 = arith.constant 168 : index
    %c0_39 = arith.constant 0 : index
    %43 = vector.load %arg2[%c0_37, %c0_38, %c168, %c0_39] : memref<1x1x480x12xbf16, #tpu.memory_space<vmem>>, vector<1x1x144x12xbf16>
    %44 = vector.shape_cast %43 : vector<1x1x144x12xbf16> to vector<144x12xbf16>
    %c1_40 = arith.constant 1 : index
    %c0_41 = arith.constant 0 : index
    %c0_42 = arith.constant 0 : index
    %45 = vector.load %arg3[%c1_40, %c0_41, %c0_42] : memref<3x12x16xbf16, #tpu.memory_space<vmem>>, vector<1x12x16xbf16>
    %46 = vector.shape_cast %45 : vector<1x12x16xbf16> to vector<12x16xbf16>
    %cst_43 = arith.constant dense<0.000000e+00> : vector<144x16xf32>
    %47 = tpu.matmul %44, %46, %cst_43 {dimension_numbers = #tpu.dot_dimension_numbers<[1], [0], [0], [1], [0, 0, 1, 1], [], []>} : vector<144x12xbf16>, vector<12x16xbf16>, vector<144x16xf32> -> vector<144x16xf32>
    %48 = arith.addf %42, %47 : vector<144x16xf32>
    %c0_44 = arith.constant 0 : index
    %c0_45 = arith.constant 0 : index
    %c192 = arith.constant 192 : index
    %c0_46 = arith.constant 0 : index
    %49 = vector.load %arg2[%c0_44, %c0_45, %c192, %c0_46] : memref<1x1x480x12xbf16, #tpu.memory_space<vmem>>, vector<1x1x144x12xbf16>
    %50 = vector.shape_cast %49 : vector<1x1x144x12xbf16> to vector<144x12xbf16>
    %c2_47 = arith.constant 2 : index
    %c0_48 = arith.constant 0 : index
    %c0_49 = arith.constant 0 : index
    %51 = vector.load %arg3[%c2_47, %c0_48, %c0_49] : memref<3x12x16xbf16, #tpu.memory_space<vmem>>, vector<1x12x16xbf16>
    %52 = vector.shape_cast %51 : vector<1x12x16xbf16> to vector<12x16xbf16>
    %cst_50 = arith.constant dense<0.000000e+00> : vector<144x16xf32>
    %53 = tpu.matmul %50, %52, %cst_50 {dimension_numbers = #tpu.dot_dimension_numbers<[1], [0], [0], [1], [0, 0, 1, 1], [], []>} : vector<144x12xbf16>, vector<12x16xbf16>, vector<144x16xf32> -> vector<144x16xf32>
    %54 = arith.addf %48, %53 : vector<144x16xf32>
    %cst_51 = arith.constant 0.000000e+00 : f32
    %55 = vector.broadcast %cst_51 : f32 to vector<144x16xf32>
    %56 = arith.maximumf %54, %55 : vector<144x16xf32>
    %c144_52 = arith.constant 144 : index
    %c0_53 = arith.constant 0 : index
    %57 = vector.load %arg7[%c144_52, %c0_53] : memref<432x16xf32, #tpu.memory_space<vmem>>, vector<144x16xf32>
    %58 = arith.mulf %56, %57 : vector<144x16xf32>
    %c144_54 = arith.constant 144 : index
    %c0_55 = arith.constant 0 : index
    %59 = vector.load %arg11[%c144_54, %c0_55] : memref<432x16xf32, #tpu.memory_space<vmem>>, vector<144x16xf32>
    %60 = tpu.concatenate %58, %59 in 1 : vector<144x16xf32>, vector<144x16xf32> -> vector<144x32xf32>
    %61 = arith.truncf %60 : vector<144x32xf32> to vector<144x32xbf16>
    %c177 = arith.constant 177 : index
    %c0_56 = arith.constant 0 : index
    %62 = vector.load %arg9[%c177, %c0_56] : memref<496x96xbf16, #tpu.memory_space<vmem>>, vector<144x32xbf16>
    tpu.vector_store %arg9[%c177, %c0_56], %61 {strides = array<i32>} : memref<496x96xbf16, #tpu.memory_space<vmem>>, vector<144x32xbf16>,
    %c176 = arith.constant 176 : index
    %c32_57 = arith.constant 32 : index
    %63 = vector.load %arg9[%c176, %c32_57] : memref<496x96xbf16, #tpu.memory_space<vmem>>, vector<144x32xbf16>
    tpu.vector_store %arg9[%c176, %c32_57], %61 {strides = array<i32>} : memref<496x96xbf16, #tpu.memory_space<vmem>>, vector<144x32xbf16>,
    %c175 = arith.constant 175 : index
    %c64_58 = arith.constant 64 : index
    %64 = vector.load %arg9[%c175, %c64_58] : memref<496x96xbf16, #tpu.memory_space<vmem>>, vector<144x32xbf16>
    tpu.vector_store %arg9[%c175, %c64_58], %61 {strides = array<i32>} : memref<496x96xbf16, #tpu.memory_space<vmem>>, vector<144x32xbf16>,
    %c0_59 = arith.constant 0 : index
    %c0_60 = arith.constant 0 : index
    %65 = vector.load %arg4[%c0_59, %c0_60] : memref<1x16xf32, #tpu.memory_space<vmem>>, vector<1x16xf32>
    %66 = vector.shape_cast %65 : vector<1x16xf32> to vector<1x16xf32>
    %67 = vector.broadcast %66 : vector<1x16xf32> to vector<144x16xf32>
    %c0_61 = arith.constant 0 : index
    %c0_62 = arith.constant 0 : index
    %c288 = arith.constant 288 : index
    %c0_63 = arith.constant 0 : index
    %68 = vector.load %arg2[%c0_61, %c0_62, %c288, %c0_63] : memref<1x1x480x12xbf16, #tpu.memory_space<vmem>>, vector<1x1x144x12xbf16>
    %69 = vector.shape_cast %68 : vector<1x1x144x12xbf16> to vector<144x12xbf16>
    %c0_64 = arith.constant 0 : index
    %c0_65 = arith.constant 0 : index
    %c0_66 = arith.constant 0 : index
    %70 = vector.load %arg3[%c0_64, %c0_65, %c0_66] : memref<3x12x16xbf16, #tpu.memory_space<vmem>>, vector<1x12x16xbf16>
    %71 = vector.shape_cast %70 : vector<1x12x16xbf16> to vector<12x16xbf16>
    %cst_67 = arith.constant dense<0.000000e+00> : vector<144x16xf32>
    %72 = tpu.matmul %69, %71, %cst_67 {dimension_numbers = #tpu.dot_dimension_numbers<[1], [0], [0], [1], [0, 0, 1, 1], [], []>} : vector<144x12xbf16>, vector<12x16xbf16>, vector<144x16xf32> -> vector<144x16xf32>
    %73 = arith.addf %67, %72 : vector<144x16xf32>
    %c0_68 = arith.constant 0 : index
    %c0_69 = arith.constant 0 : index
    %c312 = arith.constant 312 : index
    %c0_70 = arith.constant 0 : index
    %74 = vector.load %arg2[%c0_68, %c0_69, %c312, %c0_70] : memref<1x1x480x12xbf16, #tpu.memory_space<vmem>>, vector<1x1x144x12xbf16>
    %75 = vector.shape_cast %74 : vector<1x1x144x12xbf16> to vector<144x12xbf16>
    %c1_71 = arith.constant 1 : index
    %c0_72 = arith.constant 0 : index
    %c0_73 = arith.constant 0 : index
    %76 = vector.load %arg3[%c1_71, %c0_72, %c0_73] : memref<3x12x16xbf16, #tpu.memory_space<vmem>>, vector<1x12x16xbf16>
    %77 = vector.shape_cast %76 : vector<1x12x16xbf16> to vector<12x16xbf16>
    %cst_74 = arith.constant dense<0.000000e+00> : vector<144x16xf32>
    %78 = tpu.matmul %75, %77, %cst_74 {dimension_numbers = #tpu.dot_dimension_numbers<[1], [0], [0], [1], [0, 0, 1, 1], [], []>} : vector<144x12xbf16>, vector<12x16xbf16>, vector<144x16xf32> -> vector<144x16xf32>
    %79 = arith.addf %73, %78 : vector<144x16xf32>
    %c0_75 = arith.constant 0 : index
    %c0_76 = arith.constant 0 : index
    %c336 = arith.constant 336 : index
    %c0_77 = arith.constant 0 : index
    %80 = vector.load %arg2[%c0_75, %c0_76, %c336, %c0_77] : memref<1x1x480x12xbf16, #tpu.memory_space<vmem>>, vector<1x1x144x12xbf16>
    %81 = vector.shape_cast %80 : vector<1x1x144x12xbf16> to vector<144x12xbf16>
    %c2_78 = arith.constant 2 : index
    %c0_79 = arith.constant 0 : index
    %c0_80 = arith.constant 0 : index
    %82 = vector.load %arg3[%c2_78, %c0_79, %c0_80] : memref<3x12x16xbf16, #tpu.memory_space<vmem>>, vector<1x12x16xbf16>
    %83 = vector.shape_cast %82 : vector<1x12x16xbf16> to vector<12x16xbf16>
    %cst_81 = arith.constant dense<0.000000e+00> : vector<144x16xf32>
    %84 = tpu.matmul %81, %83, %cst_81 {dimension_numbers = #tpu.dot_dimension_numbers<[1], [0], [0], [1], [0, 0, 1, 1], [], []>} : vector<144x12xbf16>, vector<12x16xbf16>, vector<144x16xf32> -> vector<144x16xf32>
    %85 = arith.addf %79, %84 : vector<144x16xf32>
    %cst_82 = arith.constant 0.000000e+00 : f32
    %86 = vector.broadcast %cst_82 : f32 to vector<144x16xf32>
    %87 = arith.maximumf %85, %86 : vector<144x16xf32>
    %c288_83 = arith.constant 288 : index
    %c0_84 = arith.constant 0 : index
    %88 = vector.load %arg7[%c288_83, %c0_84] : memref<432x16xf32, #tpu.memory_space<vmem>>, vector<144x16xf32>
    %89 = arith.mulf %87, %88 : vector<144x16xf32>
    %c288_85 = arith.constant 288 : index
    %c0_86 = arith.constant 0 : index
    %90 = vector.load %arg11[%c288_85, %c0_86] : memref<432x16xf32, #tpu.memory_space<vmem>>, vector<144x16xf32>
    %91 = tpu.concatenate %89, %90 in 1 : vector<144x16xf32>, vector<144x16xf32> -> vector<144x32xf32>
    %92 = arith.truncf %91 : vector<144x32xf32> to vector<144x32xbf16>
    %c321 = arith.constant 321 : index
    %c0_87 = arith.constant 0 : index
    %93 = vector.load %arg9[%c321, %c0_87] : memref<496x96xbf16, #tpu.memory_space<vmem>>, vector<144x32xbf16>
    tpu.vector_store %arg9[%c321, %c0_87], %92 {strides = array<i32>} : memref<496x96xbf16, #tpu.memory_space<vmem>>, vector<144x32xbf16>,
    %c320 = arith.constant 320 : index
    %c32_88 = arith.constant 32 : index
    %94 = vector.load %arg9[%c320, %c32_88] : memref<496x96xbf16, #tpu.memory_space<vmem>>, vector<144x32xbf16>
    tpu.vector_store %arg9[%c320, %c32_88], %92 {strides = array<i32>} : memref<496x96xbf16, #tpu.memory_space<vmem>>, vector<144x32xbf16>,
    %c319 = arith.constant 319 : index
    %c64_89 = arith.constant 64 : index
    %95 = vector.load %arg9[%c319, %c64_89] : memref<496x96xbf16, #tpu.memory_space<vmem>>, vector<144x32xbf16>
    tpu.vector_store %arg9[%c319, %c64_89], %92 {strides = array<i32>} : memref<496x96xbf16, #tpu.memory_space<vmem>>, vector<144x32xbf16>,
    %c0_90 = arith.constant 0 : index
    %c0_91 = arith.constant 0 : index
    %96 = vector.load %arg6[%c0_90, %c0_91] : memref<1x64xf32, #tpu.memory_space<vmem>>, vector<1x64xf32>
    %97 = vector.shape_cast %96 : vector<1x64xf32> to vector<1x64xf32>
    %98 = vector.broadcast %97 : vector<1x64xf32> to vector<144x64xf32>
    %c8 = arith.constant 8 : index
    %c0_92 = arith.constant 0 : index
    %99 = vector.load %arg9[%c8, %c0_92] : memref<496x96xbf16, #tpu.memory_space<vmem>>, vector<144x96xbf16>
    %c0_93 = arith.constant 0 : index
    %c0_94 = arith.constant 0 : index
    %c0_95 = arith.constant 0 : index
    %100 = vector.load %arg5[%c0_93, %c0_94, %c0_95] : memref<3x96x64xbf16, #tpu.memory_space<vmem>>, vector<1x96x64xbf16>
    %101 = vector.shape_cast %100 : vector<1x96x64xbf16> to vector<96x64xbf16>
    %cst_96 = arith.constant dense<0.000000e+00> : vector<144x64xf32>
    %102 = tpu.matmul %99, %101, %cst_96 {dimension_numbers = #tpu.dot_dimension_numbers<[1], [0], [0], [1], [0, 0, 1, 1], [], []>} : vector<144x96xbf16>, vector<96x64xbf16>, vector<144x64xf32> -> vector<144x64xf32>
    %103 = arith.addf %98, %102 : vector<144x64xf32>
    %c32_97 = arith.constant 32 : index
    %c0_98 = arith.constant 0 : index
    %104 = vector.load %arg9[%c32_97, %c0_98] : memref<496x96xbf16, #tpu.memory_space<vmem>>, vector<144x96xbf16>
    %c1_99 = arith.constant 1 : index
    %c0_100 = arith.constant 0 : index
    %c0_101 = arith.constant 0 : index
    %105 = vector.load %arg5[%c1_99, %c0_100, %c0_101] : memref<3x96x64xbf16, #tpu.memory_space<vmem>>, vector<1x96x64xbf16>
    %106 = vector.shape_cast %105 : vector<1x96x64xbf16> to vector<96x64xbf16>
    %cst_102 = arith.constant dense<0.000000e+00> : vector<144x64xf32>
    %107 = tpu.matmul %104, %106, %cst_102 {dimension_numbers = #tpu.dot_dimension_numbers<[1], [0], [0], [1], [0, 0, 1, 1], [], []>} : vector<144x96xbf16>, vector<96x64xbf16>, vector<144x64xf32> -> vector<144x64xf32>
    %108 = arith.addf %103, %107 : vector<144x64xf32>
    %c56 = arith.constant 56 : index
    %c0_103 = arith.constant 0 : index
    %109 = vector.load %arg9[%c56, %c0_103] : memref<496x96xbf16, #tpu.memory_space<vmem>>, vector<144x96xbf16>
    %c2_104 = arith.constant 2 : index
    %c0_105 = arith.constant 0 : index
    %c0_106 = arith.constant 0 : index
    %110 = vector.load %arg5[%c2_104, %c0_105, %c0_106] : memref<3x96x64xbf16, #tpu.memory_space<vmem>>, vector<1x96x64xbf16>
    %111 = vector.shape_cast %110 : vector<1x96x64xbf16> to vector<96x64xbf16>
    %cst_107 = arith.constant dense<0.000000e+00> : vector<144x64xf32>
    %112 = tpu.matmul %109, %111, %cst_107 {dimension_numbers = #tpu.dot_dimension_numbers<[1], [0], [0], [1], [0, 0, 1, 1], [], []>} : vector<144x96xbf16>, vector<96x64xbf16>, vector<144x64xf32> -> vector<144x64xf32>
    %113 = arith.addf %108, %112 : vector<144x64xf32>
    %114 = vector.extract_strided_slice %113 {offsets = [0, 0], sizes = [144, 48], strides = [1, 1]} : vector<144x64xf32> to vector<144x48xf32>
    %115 = arith.negf %114 : vector<144x48xf32>
    %116 = math.exp %115 : vector<144x48xf32>
    %cst_108 = arith.constant 1.000000e+00 : f32
    %117 = vector.broadcast %cst_108 : f32 to vector<144x48xf32>
    %118 = arith.addf %117, %116 : vector<144x48xf32>
    %119 = arith.divf %117, %118 : vector<144x48xf32>
    %120 = vector.extract_strided_slice %119 {offsets = [0, 0], sizes = [144, 16], strides = [1, 1]} : vector<144x48xf32> to vector<144x16xf32>
    %121 = vector.extract_strided_slice %119 {offsets = [0, 16], sizes = [144, 16], strides = [1, 1]} : vector<144x48xf32> to vector<144x16xf32>
    %122 = vector.extract_strided_slice %119 {offsets = [0, 32], sizes = [144, 16], strides = [1, 1]} : vector<144x48xf32> to vector<144x16xf32>
    %123 = vector.extract_strided_slice %113 {offsets = [0, 48], sizes = [144, 16], strides = [1, 1]} : vector<144x64xf32> to vector<144x16xf32>
    %124 = math.tanh %123 : vector<144x16xf32>
    %c0_109 = arith.constant 0 : index
    %c0_110 = arith.constant 0 : index
    %125 = vector.load %arg7[%c0_109, %c0_110] : memref<432x16xf32, #tpu.memory_space<vmem>>, vector<144x16xf32>
    %c0_111 = arith.constant 0 : index
    %c0_112 = arith.constant 0 : index
    %126 = vector.load %arg10[%c0_111, %c0_112] : memref<432x16xf32, #tpu.memory_space<vmem>>, vector<144x16xf32>
    %127 = arith.mulf %121, %126 : vector<144x16xf32>
    %128 = arith.mulf %120, %124 : vector<144x16xf32>
    %129 = arith.addf %127, %128 : vector<144x16xf32>
    %130 = math.tanh %129 : vector<144x16xf32>
    %131 = arith.mulf %122, %130 : vector<144x16xf32>
    %132 = arith.mulf %131, %125 : vector<144x16xf32>
    %c0_113 = arith.constant 0 : index
    %c0_114 = arith.constant 0 : index
    %133 = vector.load %arg10[%c0_113, %c0_114] : memref<432x16xf32, #tpu.memory_space<vmem>>, vector<144x16xf32>
    tpu.vector_store %arg10[%c0_113, %c0_114], %129 {strides = array<i32>} : memref<432x16xf32, #tpu.memory_space<vmem>>, vector<144x16xf32>,
    %c0_115 = arith.constant 0 : index
    %c0_116 = arith.constant 0 : index
    %134 = vector.load %arg11[%c0_115, %c0_116] : memref<432x16xf32, #tpu.memory_space<vmem>>, vector<144x16xf32>
    tpu.vector_store %arg11[%c0_115, %c0_116], %132 {strides = array<i32>} : memref<432x16xf32, #tpu.memory_space<vmem>>, vector<144x16xf32>,
    %c5_i32 = arith.constant 5 : i32
    %135 = arith.cmpi eq, %arg1, %c5_i32 : i32
    %136 = arith.extui %135 : i1 to i32
    %c0_i32_117 = arith.constant 0 : i32
    %137 = arith.cmpi ne, %136, %c0_i32_117 : i32
    scf.if %137 {
      %c0_176 = arith.constant 0 : index
      %c0_177 = arith.constant 0 : index
      %c0_178 = arith.constant 0 : index
      %222 = vector.load %arg8[%c0_176, %c0_177, %c0_178] : memref<1x432x16xf32, #tpu.memory_space<vmem>>, vector<1x144x16xf32>
      %223 = vector.shape_cast %222 : vector<1x144x16xf32> to vector<144x16xf32>
      %224 = vector.shape_cast %132 : vector<144x16xf32> to vector<1x144x16xf32>
      tpu.vector_store %arg8[%c0_176, %c0_177, %c0_178], %224 {strides = array<i32>} : memref<1x432x16xf32, #tpu.memory_space<vmem>>, vector<1x144x16xf32>,
    } else {
    }
    %c0_118 = arith.constant 0 : index
    %c0_119 = arith.constant 0 : index
    %138 = vector.load %arg6[%c0_118, %c0_119] : memref<1x64xf32, #tpu.memory_space<vmem>>, vector<1x64xf32>
    %139 = vector.shape_cast %138 : vector<1x64xf32> to vector<1x64xf32>
    %140 = vector.broadcast %139 : vector<1x64xf32> to vector<144x64xf32>
    %c152 = arith.constant 152 : index
    %c0_120 = arith.constant 0 : index
    %141 = vector.load %arg9[%c152, %c0_120] : memref<496x96xbf16, #tpu.memory_space<vmem>>, vector<144x96xbf16>
    %c0_121 = arith.constant 0 : index
    %c0_122 = arith.constant 0 : index
    %c0_123 = arith.constant 0 : index
    %142 = vector.load %arg5[%c0_121, %c0_122, %c0_123] : memref<3x96x64xbf16, #tpu.memory_space<vmem>>, vector<1x96x64xbf16>
    %143 = vector.shape_cast %142 : vector<1x96x64xbf16> to vector<96x64xbf16>
    %cst_124 = arith.constant dense<0.000000e+00> : vector<144x64xf32>
    %144 = tpu.matmul %141, %143, %cst_124 {dimension_numbers = #tpu.dot_dimension_numbers<[1], [0], [0], [1], [0, 0, 1, 1], [], []>} : vector<144x96xbf16>, vector<96x64xbf16>, vector<144x64xf32> -> vector<144x64xf32>
    %145 = arith.addf %140, %144 : vector<144x64xf32>
    %c176_125 = arith.constant 176 : index
    %c0_126 = arith.constant 0 : index
    %146 = vector.load %arg9[%c176_125, %c0_126] : memref<496x96xbf16, #tpu.memory_space<vmem>>, vector<144x96xbf16>
    %c1_127 = arith.constant 1 : index
    %c0_128 = arith.constant 0 : index
    %c0_129 = arith.constant 0 : index
    %147 = vector.load %arg5[%c1_127, %c0_128, %c0_129] : memref<3x96x64xbf16, #tpu.memory_space<vmem>>, vector<1x96x64xbf16>
    %148 = vector.shape_cast %147 : vector<1x96x64xbf16> to vector<96x64xbf16>
    %cst_130 = arith.constant dense<0.000000e+00> : vector<144x64xf32>
    %149 = tpu.matmul %146, %148, %cst_130 {dimension_numbers = #tpu.dot_dimension_numbers<[1], [0], [0], [1], [0, 0, 1, 1], [], []>} : vector<144x96xbf16>, vector<96x64xbf16>, vector<144x64xf32> -> vector<144x64xf32>
    %150 = arith.addf %145, %149 : vector<144x64xf32>
    %c200 = arith.constant 200 : index
    %c0_131 = arith.constant 0 : index
    %151 = vector.load %arg9[%c200, %c0_131] : memref<496x96xbf16, #tpu.memory_space<vmem>>, vector<144x96xbf16>
    %c2_132 = arith.constant 2 : index
    %c0_133 = arith.constant 0 : index
    %c0_134 = arith.constant 0 : index
    %152 = vector.load %arg5[%c2_132, %c0_133, %c0_134] : memref<3x96x64xbf16, #tpu.memory_space<vmem>>, vector<1x96x64xbf16>
    %153 = vector.shape_cast %152 : vector<1x96x64xbf16> to vector<96x64xbf16>
    %cst_135 = arith.constant dense<0.000000e+00> : vector<144x64xf32>
    %154 = tpu.matmul %151, %153, %cst_135 {dimension_numbers = #tpu.dot_dimension_numbers<[1], [0], [0], [1], [0, 0, 1, 1], [], []>} : vector<144x96xbf16>, vector<96x64xbf16>, vector<144x64xf32> -> vector<144x64xf32>
    %155 = arith.addf %150, %154 : vector<144x64xf32>
    %156 = vector.extract_strided_slice %155 {offsets = [0, 0], sizes = [144, 48], strides = [1, 1]} : vector<144x64xf32> to vector<144x48xf32>
    %157 = arith.negf %156 : vector<144x48xf32>
    %158 = math.exp %157 : vector<144x48xf32>
    %cst_136 = arith.constant 1.000000e+00 : f32
    %159 = vector.broadcast %cst_136 : f32 to vector<144x48xf32>
    %160 = arith.addf %159, %158 : vector<144x48xf32>
    %161 = arith.divf %159, %160 : vector<144x48xf32>
    %162 = vector.extract_strided_slice %161 {offsets = [0, 0], sizes = [144, 16], strides = [1, 1]} : vector<144x48xf32> to vector<144x16xf32>
    %163 = vector.extract_strided_slice %161 {offsets = [0, 16], sizes = [144, 16], strides = [1, 1]} : vector<144x48xf32> to vector<144x16xf32>
    %164 = vector.extract_strided_slice %161 {offsets = [0, 32], sizes = [144, 16], strides = [1, 1]} : vector<144x48xf32> to vector<144x16xf32>
    %165 = vector.extract_strided_slice %155 {offsets = [0, 48], sizes = [144, 16], strides = [1, 1]} : vector<144x64xf32> to vector<144x16xf32>
    %166 = math.tanh %165 : vector<144x16xf32>
    %c144_137 = arith.constant 144 : index
    %c0_138 = arith.constant 0 : index
    %167 = vector.load %arg7[%c144_137, %c0_138] : memref<432x16xf32, #tpu.memory_space<vmem>>, vector<144x16xf32>
    %c144_139 = arith.constant 144 : index
    %c0_140 = arith.constant 0 : index
    %168 = vector.load %arg10[%c144_139, %c0_140] : memref<432x16xf32, #tpu.memory_space<vmem>>, vector<144x16xf32>
    %169 = arith.mulf %163, %168 : vector<144x16xf32>
    %170 = arith.mulf %162, %166 : vector<144x16xf32>
    %171 = arith.addf %169, %170 : vector<144x16xf32>
    %172 = math.tanh %171 : vector<144x16xf32>
    %173 = arith.mulf %164, %172 : vector<144x16xf32>
    %174 = arith.mulf %173, %167 : vector<144x16xf32>
    %c144_141 = arith.constant 144 : index
    %c0_142 = arith.constant 0 : index
    %175 = vector.load %arg10[%c144_141, %c0_142] : memref<432x16xf32, #tpu.memory_space<vmem>>, vector<144x16xf32>
    tpu.vector_store %arg10[%c144_141, %c0_142], %171 {strides = array<i32>} : memref<432x16xf32, #tpu.memory_space<vmem>>, vector<144x16xf32>,
    %c144_143 = arith.constant 144 : index
    %c0_144 = arith.constant 0 : index
    %176 = vector.load %arg11[%c144_143, %c0_144] : memref<432x16xf32, #tpu.memory_space<vmem>>, vector<144x16xf32>
    tpu.vector_store %arg11[%c144_143, %c0_144], %174 {strides = array<i32>} : memref<432x16xf32, #tpu.memory_space<vmem>>, vector<144x16xf32>,
    %c5_i32_145 = arith.constant 5 : i32
    %177 = arith.cmpi eq, %arg1, %c5_i32_145 : i32
    %178 = arith.extui %177 : i1 to i32
    %c0_i32_146 = arith.constant 0 : i32
    %179 = arith.cmpi ne, %178, %c0_i32_146 : i32
    scf.if %179 {
      %c0_176 = arith.constant 0 : index
      %c144_177 = arith.constant 144 : index
      %c0_178 = arith.constant 0 : index
      %222 = vector.load %arg8[%c0_176, %c144_177, %c0_178] : memref<1x432x16xf32, #tpu.memory_space<vmem>>, vector<1x144x16xf32>
      %223 = vector.shape_cast %222 : vector<1x144x16xf32> to vector<144x16xf32>
      %224 = vector.shape_cast %174 : vector<144x16xf32> to vector<1x144x16xf32>
      tpu.vector_store %arg8[%c0_176, %c144_177, %c0_178], %224 {strides = array<i32>} : memref<1x432x16xf32, #tpu.memory_space<vmem>>, vector<1x144x16xf32>,
    } else {
    }
    %c0_147 = arith.constant 0 : index
    %c0_148 = arith.constant 0 : index
    %180 = vector.load %arg6[%c0_147, %c0_148] : memref<1x64xf32, #tpu.memory_space<vmem>>, vector<1x64xf32>
    %181 = vector.shape_cast %180 : vector<1x64xf32> to vector<1x64xf32>
    %182 = vector.broadcast %181 : vector<1x64xf32> to vector<144x64xf32>
    %c296 = arith.constant 296 : index
    %c0_149 = arith.constant 0 : index
    %183 = vector.load %arg9[%c296, %c0_149] : memref<496x96xbf16, #tpu.memory_space<vmem>>, vector<144x96xbf16>
    %c0_150 = arith.constant 0 : index
    %c0_151 = arith.constant 0 : index
    %c0_152 = arith.constant 0 : index
    %184 = vector.load %arg5[%c0_150, %c0_151, %c0_152] : memref<3x96x64xbf16, #tpu.memory_space<vmem>>, vector<1x96x64xbf16>
    %185 = vector.shape_cast %184 : vector<1x96x64xbf16> to vector<96x64xbf16>
    %cst_153 = arith.constant dense<0.000000e+00> : vector<144x64xf32>
    %186 = tpu.matmul %183, %185, %cst_153 {dimension_numbers = #tpu.dot_dimension_numbers<[1], [0], [0], [1], [0, 0, 1, 1], [], []>} : vector<144x96xbf16>, vector<96x64xbf16>, vector<144x64xf32> -> vector<144x64xf32>
    %187 = arith.addf %182, %186 : vector<144x64xf32>
    %c320_154 = arith.constant 320 : index
    %c0_155 = arith.constant 0 : index
    %188 = vector.load %arg9[%c320_154, %c0_155] : memref<496x96xbf16, #tpu.memory_space<vmem>>, vector<144x96xbf16>
    %c1_156 = arith.constant 1 : index
    %c0_157 = arith.constant 0 : index
    %c0_158 = arith.constant 0 : index
    %189 = vector.load %arg5[%c1_156, %c0_157, %c0_158] : memref<3x96x64xbf16, #tpu.memory_space<vmem>>, vector<1x96x64xbf16>
    %190 = vector.shape_cast %189 : vector<1x96x64xbf16> to vector<96x64xbf16>
    %cst_159 = arith.constant dense<0.000000e+00> : vector<144x64xf32>
    %191 = tpu.matmul %188, %190, %cst_159 {dimension_numbers = #tpu.dot_dimension_numbers<[1], [0], [0], [1], [0, 0, 1, 1], [], []>} : vector<144x96xbf16>, vector<96x64xbf16>, vector<144x64xf32> -> vector<144x64xf32>
    %192 = arith.addf %187, %191 : vector<144x64xf32>
    %c344 = arith.constant 344 : index
    %c0_160 = arith.constant 0 : index
    %193 = vector.load %arg9[%c344, %c0_160] : memref<496x96xbf16, #tpu.memory_space<vmem>>, vector<144x96xbf16>
    %c2_161 = arith.constant 2 : index
    %c0_162 = arith.constant 0 : index
    %c0_163 = arith.constant 0 : index
    %194 = vector.load %arg5[%c2_161, %c0_162, %c0_163] : memref<3x96x64xbf16, #tpu.memory_space<vmem>>, vector<1x96x64xbf16>
    %195 = vector.shape_cast %194 : vector<1x96x64xbf16> to vector<96x64xbf16>
    %cst_164 = arith.constant dense<0.000000e+00> : vector<144x64xf32>
    %196 = tpu.matmul %193, %195, %cst_164 {dimension_numbers = #tpu.dot_dimension_numbers<[1], [0], [0], [1], [0, 0, 1, 1], [], []>} : vector<144x96xbf16>, vector<96x64xbf16>, vector<144x64xf32> -> vector<144x64xf32>
    %197 = arith.addf %192, %196 : vector<144x64xf32>
    %198 = vector.extract_strided_slice %197 {offsets = [0, 0], sizes = [144, 48], strides = [1, 1]} : vector<144x64xf32> to vector<144x48xf32>
    %199 = arith.negf %198 : vector<144x48xf32>
    %200 = math.exp %199 : vector<144x48xf32>
    %cst_165 = arith.constant 1.000000e+00 : f32
    %201 = vector.broadcast %cst_165 : f32 to vector<144x48xf32>
    %202 = arith.addf %201, %200 : vector<144x48xf32>
    %203 = arith.divf %201, %202 : vector<144x48xf32>
    %204 = vector.extract_strided_slice %203 {offsets = [0, 0], sizes = [144, 16], strides = [1, 1]} : vector<144x48xf32> to vector<144x16xf32>
    %205 = vector.extract_strided_slice %203 {offsets = [0, 16], sizes = [144, 16], strides = [1, 1]} : vector<144x48xf32> to vector<144x16xf32>
    %206 = vector.extract_strided_slice %203 {offsets = [0, 32], sizes = [144, 16], strides = [1, 1]} : vector<144x48xf32> to vector<144x16xf32>
    %207 = vector.extract_strided_slice %197 {offsets = [0, 48], sizes = [144, 16], strides = [1, 1]} : vector<144x64xf32> to vector<144x16xf32>
    %208 = math.tanh %207 : vector<144x16xf32>
    %c288_166 = arith.constant 288 : index
    %c0_167 = arith.constant 0 : index
    %209 = vector.load %arg7[%c288_166, %c0_167] : memref<432x16xf32, #tpu.memory_space<vmem>>, vector<144x16xf32>
    %c288_168 = arith.constant 288 : index
    %c0_169 = arith.constant 0 : index
    %210 = vector.load %arg10[%c288_168, %c0_169] : memref<432x16xf32, #tpu.memory_space<vmem>>, vector<144x16xf32>
    %211 = arith.mulf %205, %210 : vector<144x16xf32>
    %212 = arith.mulf %204, %208 : vector<144x16xf32>
    %213 = arith.addf %211, %212 : vector<144x16xf32>
    %214 = math.tanh %213 : vector<144x16xf32>
    %215 = arith.mulf %206, %214 : vector<144x16xf32>
    %216 = arith.mulf %215, %209 : vector<144x16xf32>
    %c288_170 = arith.constant 288 : index
    %c0_171 = arith.constant 0 : index
    %217 = vector.load %arg10[%c288_170, %c0_171] : memref<432x16xf32, #tpu.memory_space<vmem>>, vector<144x16xf32>
    tpu.vector_store %arg10[%c288_170, %c0_171], %213 {strides = array<i32>} : memref<432x16xf32, #tpu.memory_space<vmem>>, vector<144x16xf32>,
    %c288_172 = arith.constant 288 : index
    %c0_173 = arith.constant 0 : index
    %218 = vector.load %arg11[%c288_172, %c0_173] : memref<432x16xf32, #tpu.memory_space<vmem>>, vector<144x16xf32>
    tpu.vector_store %arg11[%c288_172, %c0_173], %216 {strides = array<i32>} : memref<432x16xf32, #tpu.memory_space<vmem>>, vector<144x16xf32>,
    %c5_i32_174 = arith.constant 5 : i32
    %219 = arith.cmpi eq, %arg1, %c5_i32_174 : i32
    %220 = arith.extui %219 : i1 to i32
    %c0_i32_175 = arith.constant 0 : i32
    %221 = arith.cmpi ne, %220, %c0_i32_175 : i32
    scf.if %221 {
      %c0_176 = arith.constant 0 : index
      %c288_177 = arith.constant 288 : index
      %c0_178 = arith.constant 0 : index
      %222 = vector.load %arg8[%c0_176, %c288_177, %c0_178] : memref<1x432x16xf32, #tpu.memory_space<vmem>>, vector<1x144x16xf32>
      %223 = vector.shape_cast %222 : vector<1x144x16xf32> to vector<144x16xf32>
      %224 = vector.shape_cast %216 : vector<144x16xf32> to vector<1x144x16xf32>
      tpu.vector_store %arg8[%c0_176, %c288_177, %c0_178], %224 {strides = array<i32>} : memref<1x432x16xf32, #tpu.memory_space<vmem>>, vector<1x144x16xf32>,
    } else {
    }
    return
  }
  func.func @transform_0(%arg0: i32, %arg1: i32) -> (i32, i32, i32, i32) {
    %c0_i32 = arith.constant 0 : i32
    %c0_i32_0 = arith.constant 0 : i32
    %c0_i32_1 = arith.constant 0 : i32
    return %arg1, %arg0, %c0_i32, %c0_i32_0 : i32, i32, i32, i32
  }
  func.func @transform_1(%arg0: i32, %arg1: i32) -> (i32, i32, i32) {
    %c0_i32 = arith.constant 0 : i32
    %c0_i32_0 = arith.constant 0 : i32
    %c0_i32_1 = arith.constant 0 : i32
    %c0_i32_2 = arith.constant 0 : i32
    return %c0_i32, %c0_i32_0, %c0_i32_1 : i32, i32, i32
  }
  func.func @transform_2(%arg0: i32, %arg1: i32) -> (i32, i32) {
    %c0_i32 = arith.constant 0 : i32
    %c0_i32_0 = arith.constant 0 : i32
    %c0_i32_1 = arith.constant 0 : i32
    return %c0_i32, %c0_i32_0 : i32, i32
  }
  func.func @transform_3(%arg0: i32, %arg1: i32) -> (i32, i32, i32) {
    %c0_i32 = arith.constant 0 : i32
    %c0_i32_0 = arith.constant 0 : i32
    %c0_i32_1 = arith.constant 0 : i32
    %c0_i32_2 = arith.constant 0 : i32
    return %c0_i32, %c0_i32_0, %c0_i32_1 : i32, i32, i32
  }
  func.func @transform_4(%arg0: i32, %arg1: i32) -> (i32, i32) {
    %c0_i32 = arith.constant 0 : i32
    %c0_i32_0 = arith.constant 0 : i32
    %c0_i32_1 = arith.constant 0 : i32
    return %c0_i32, %c0_i32_0 : i32, i32
  }
  func.func @transform_5(%arg0: i32, %arg1: i32) -> (i32, i32) {
    %c0_i32 = arith.constant 0 : i32
    %c0_i32_0 = arith.constant 0 : i32
    %c0_i32_1 = arith.constant 0 : i32
    return %c0_i32, %c0_i32_0 : i32, i32
  }
  func.func @transform_6(%arg0: i32, %arg1: i32) -> (i32, i32, i32) {
    %c0_i32 = arith.constant 0 : i32
    %c0_i32_0 = arith.constant 0 : i32
    %c0_i32_1 = arith.constant 0 : i32
    return %arg0, %c0_i32, %c0_i32_0 : i32, i32, i32
  }
}

</mosaic_0001>

<llo_original>
// kernel: tpu_custom_call.1
$region0: #{tpu_custom_call.1}
  #allocation0 [shape = 'u32[]', space=smem, size = 0x4, offset = 0x4, fixed_abs, tag = 'smem constant byte address 0x4 - core index']
  #allocation1 [shape = 'u32[144,128]{1,0:T(1,128)}', space=vmem, size = 0x12000, scoped, tag = 'internal scratch']
  #allocation2 [shape = 'bf16[496,96]{1,0:T(16,128)(2,1)}', space=vmem, size = 0x1f000, scoped, tag = 'scratch operand']
  #allocation3 [shape = 'f32[432,16]{1,0:T(8,128)}', space=vmem, size = 0x36000, scoped, tag = 'scratch operand']
  #allocation4 [shape = 'f32[432,16]{1,0:T(8,128)}', space=vmem, size = 0x36000, scoped, tag = 'scratch operand']
  %s0 = inlined_call_operand.vmem [shape: bf16[6,2,480,12], index: 0, kind: input, shape index: {}]
  %s1 = inlined_call_operand.vmem [shape: bf16[3,12,16], index: 1, kind: input, shape index: {}]
  %s2 = inlined_call_operand.vmem [shape: f32[1,16], index: 2, kind: input, shape index: {}]
  %s3 = inlined_call_operand.vmem [shape: bf16[3,96,64], index: 3, kind: input, shape index: {}]
  %s4 = inlined_call_operand.vmem [shape: f32[1,64], index: 4, kind: input, shape index: {}]
  %s5 = inlined_call_operand.vmem [shape: f32[432,16], index: 5, kind: input, shape index: {}]
  %s6 = inlined_call_operand.vmem [shape: f32[2,432,16], index: 6, kind: output, shape index: {}]
  %s7 = sld [smem:[#allocation0]]
  $region73: #{tpu_custom_call.1} parent=0
    _
  %s9 = ssub.s32 1, %s7
  %s10 = scalar_select 0, %s9, %s7
  loop: start=0, step=1, limit=14
  $region2: #{tpu_custom_call.1} parent=0 // loop_pre_header
    _
  $region3: #{tpu_custom_call.1} parent=0 // loop_header
    %s12 = sphi 0, %s16
    %p13 = scmp.ge.s32.totalorder %s12, 14
    %s19 = sphi 0, %s31
    %s20 = sphi 0, %s27
    %s21 = sphi 0, %s19
    %s22 = sphi 0, %s20
    %s23 = sphi 0, %s21
    %s24 = sphi 0, %s22
    %s36 = sphi 0, %s38
    %s39 = sphi 0, %s36
    %s40 = sphi 0, %s39
    %s56 = sphi 0, %s40
    %s60 = sphi 0, %s60
    %s62 = sphi 0, %s60
    %s63 = sphi 0, %s62
    %s77 = sphi 0, %s63
    %s81 = sphi 0, %s81
    %s83 = sphi 0, %s81
    %s84 = sphi 0, %s83
    %s98 = sphi 0, %s84
    %s102 = sphi 0, %s102
    %s104 = sphi 0, %s102
    %s105 = sphi 0, %s104
    %s119 = sphi 0, %s105
    %s123 = sphi 0, %s123
    %s125 = sphi 0, %s123
    %s126 = sphi 0, %s125
    %s140 = sphi 0, %s126
    %s144 = sphi 0, %s144
    %s146 = sphi 0, %s144
    %s147 = sphi 0, %s146
    %s161 = sphi 0, %s147
    %s167 = sphi 0, %s169
    %s170 = sphi 0, %s167
    %s171 = sphi 0, %s170
    %s187 = sphi 0, %s171
  $region4: #{tpu_custom_call.1} parent=0 // loop_header_branch
    %15 = sbr.rel (%p13) target = $region8
  $region5: #{tpu_custom_call.1} parent=0 // loop_body
    %s17 = ssub.s32 %s12, 1
    %s18 = ssub.s32 %s12, 2
    %s25 = sadd.s32 1, %s20
    %p26 = scmp.ge.s32.totalorder %s25, 6
    %s27 = scalar_select %p26, 0, %s25
    %s28 = sadd.s32 1, %s19
    %s29 = scalar_select %p26, %s28, %s19
    %p30 = scmp.ge.s32.totalorder %s29, 2
    %s31 = scalar_select %p30, 0, %s29
    %s32 = ssub.s32 %s20, %s27
    %s33 = ssub.s32 %s19, %s31
    %s34 = sor.u32 %s32, %s33
    %p35 = scmp.eq.s32.totalorder %s34, 0
    %s37 = sadd.s32 %s36, 1
    %s38 = scalar_select %p35, %s36, %s37
    %p41 = pneg %p35
    %p42 = scmp.eq.s32.totalorder %s12, 11
    %p43 = por %p41, %p42
    %p44 = scmp.ne.s32.totalorder %s36, %s39
    %p45 = scmp.eq.s32.totalorder %s12, 0
    %p46 = por %p44, %p45
    %p47 = scmp.ne.s32.totalorder %s36, %s39
    %p48 = scmp.eq.s32.totalorder %s17, 11
    %p49 = por %p47, %p48
    %p50 = scmp.ne.s32.totalorder %s39, %s40
    %p51 = scmp.eq.s32.totalorder %s17, 0
    %p52 = por %p50, %p51
    %p53 = scmp.ne.s32.totalorder %s39, %s40
    %p54 = scmp.eq.s32.totalorder %s18, 11
    %p55 = por %p53, %p54
    %p57 = scmp.ne.s32.totalorder %s40, %s56
    %p58 = scmp.eq.s32.totalorder %s18, 0
    %p59 = por %p57, %p58
    %s61 = sadd.s32 %s60, 1
    %p64 = scmp.eq.s32.totalorder %s12, 11
    %p65 = scmp.ne.s32.totalorder %s60, %s62
    %p66 = scmp.eq.s32.totalorder %s12, 0
    %p67 = por %p65, %p66
    %p68 = scmp.ne.s32.totalorder %s60, %s62
    %p69 = scmp.eq.s32.totalorder %s17, 11
    %p70 = por %p68, %p69
    %p71 = scmp.ne.s32.totalorder %s62, %s63
    %p72 = scmp.eq.s32.totalorder %s17, 0
    %p73 = por %p71, %p72
    %p74 = scmp.ne.s32.totalorder %s62, %s63
    %p75 = scmp.eq.s32.totalorder %s18, 11
    %p76 = por %p74, %p75
    %p78 = scmp.ne.s32.totalorder %s63, %s77
    %p79 = scmp.eq.s32.totalorder %s18, 0
    %p80 = por %p78, %p79
    %s82 = sadd.s32 %s81, 1
    %p85 = scmp.eq.s32.totalorder %s12, 11
    %p86 = scmp.ne.s32.totalorder %s81, %s83
    %p87 = scmp.eq.s32.totalorder %s12, 0
    %p88 = por %p86, %p87
    %p89 = scmp.ne.s32.totalorder %s81, %s83
    %p90 = scmp.eq.s32.totalorder %s17, 11
    %p91 = por %p89, %p90
    %p92 = scmp.ne.s32.totalorder %s83, %s84
    %p93 = scmp.eq.s32.totalorder %s17, 0
    %p94 = por %p92, %p93
    %p95 = scmp.ne.s32.totalorder %s83, %s84
    %p96 = scmp.eq.s32.totalorder %s18, 11
    %p97 = por %p95, %p96
    %p99 = scmp.ne.s32.totalorder %s84, %s98
    %p100 = scmp.eq.s32.totalorder %s18, 0
    %p101 = por %p99, %p100
    %s103 = sadd.s32 %s102, 1
    %p106 = scmp.eq.s32.totalorder %s12, 11
    %p107 = scmp.ne.s32.totalorder %s102, %s104
    %p108 = scmp.eq.s32.totalorder %s12, 0
    %p109 = por %p107, %p108
    %p110 = scmp.ne.s32.totalorder %s102, %s104
    %p111 = scmp.eq.s32.totalorder %s17, 11
    %p112 = por %p110, %p111
    %p113 = scmp.ne.s32.totalorder %s104, %s105
    %p114 = scmp.eq.s32.totalorder %s17, 0
    %p115 = por %p113, %p114
    %p116 = scmp.ne.s32.totalorder %s104, %s105
    %p117 = scmp.eq.s32.totalorder %s18, 11
    %p118 = por %p116, %p117
    %p120 = scmp.ne.s32.totalorder %s105, %s119
    %p121 = scmp.eq.s32.totalorder %s18, 0
    %p122 = por %p120, %p121
    %s124 = sadd.s32 %s123, 1
    %p127 = scmp.eq.s32.totalorder %s12, 11
    %p128 = scmp.ne.s32.totalorder %s123, %s125
    %p129 = scmp.eq.s32.totalorder %s12, 0
    %p130 = por %p128, %p129
    %p131 = scmp.ne.s32.totalorder %s123, %s125
    %p132 = scmp.eq.s32.totalorder %s17, 11
    %p133 = por %p131, %p132
    %p134 = scmp.ne.s32.totalorder %s125, %s126
    %p135 = scmp.eq.s32.totalorder %s17, 0
    %p136 = por %p134, %p135
    %p137 = scmp.ne.s32.totalorder %s125, %s126
    %p138 = scmp.eq.s32.totalorder %s18, 11
    %p139 = por %p137, %p138
    %p141 = scmp.ne.s32.totalorder %s126, %s140
    %p142 = scmp.eq.s32.totalorder %s18, 0
    %p143 = por %p141, %p142
    %s145 = sadd.s32 %s144, 1
    %p148 = scmp.eq.s32.totalorder %s12, 11
    %p149 = scmp.ne.s32.totalorder %s144, %s146
    %p150 = scmp.eq.s32.totalorder %s12, 0
    %p151 = por %p149, %p150
    %p152 = scmp.ne.s32.totalorder %s144, %s146
    %p153 = scmp.eq.s32.totalorder %s17, 11
    %p154 = por %p152, %p153
    %p155 = scmp.ne.s32.totalorder %s146, %s147
    %p156 = scmp.eq.s32.totalorder %s17, 0
    %p157 = por %p155, %p156
    %p158 = scmp.ne.s32.totalorder %s146, %s147
    %p159 = scmp.eq.s32.totalorder %s18, 11
    %p160 = por %p158, %p159
    %p162 = scmp.ne.s32.totalorder %s147, %s161
    %p163 = scmp.eq.s32.totalorder %s18, 0
    %p164 = por %p162, %p163
    %s165 = ssub.s32 %s19, %s31
    %p166 = scmp.eq.s32.totalorder %s165, 0
    %s168 = sadd.s32 %s167, 1
    %s169 = scalar_select %p166, %s167, %s168
    %p172 = pneg %p166
    %p173 = scmp.eq.s32.totalorder %s12, 11
    %p174 = por %p172, %p173
    %p175 = scmp.ne.s32.totalorder %s167, %s170
    %p176 = scmp.eq.s32.totalorder %s12, 0
    %p177 = por %p175, %p176
    %p178 = scmp.ne.s32.totalorder %s167, %s170
    %p179 = scmp.eq.s32.totalorder %s17, 11
    %p180 = por %p178, %p179
    %p181 = scmp.ne.s32.totalorder %s170, %s171
    %p182 = scmp.eq.s32.totalorder %s17, 0
    %p183 = por %p181, %p182
    %p184 = scmp.ne.s32.totalorder %s170, %s171
    %p185 = scmp.eq.s32.totalorder %s18, 11
    %p186 = por %p184, %p185
    %p188 = scmp.ne.s32.totalorder %s171, %s187
    %p189 = scmp.eq.s32.totalorder %s18, 0
    %p190 = por %p188, %p189
    %p191 = scmp.le.s32.totalorder 1, %s12
    %p192 = scmp.lt.s32.totalorder %s12, 13
    %p193 = pnand %p191, %p192
    %p194 = pneg %p193
    // Predicated region
    $region9: #{tpu_custom_call.1} parent=5 // pred_check
      _
    $region10: #{tpu_custom_call.1} parent=5 // pred_check_branch
      %196 = sbr.rel (%p193) target = $region12
    $region11: #{tpu_custom_call.1} parent=5 // pred_region
      %s197 = ssub.s32 %s12, 1
      // Predicated region
      $region13: #{tpu_custom_call.1} parent=11 // pred_check
        %p198 = pneg %p73
      $region14: #{tpu_custom_call.1} parent=11 // pred_check_branch
        %200 = sbr.rel (%p198) target = $region16
      $region15: #{tpu_custom_call.1} parent=11 // pred_region
        _
      $region16: #{tpu_custom_call.1} parent=11 // pred_fallthru
        _
      // Predicated region
      $region17: #{tpu_custom_call.1} parent=11 // pred_check
        %p201 = pneg %p94
      $region18: #{tpu_custom_call.1} parent=11 // pred_check_branch
        %203 = sbr.rel (%p201) target = $region20
      $region19: #{tpu_custom_call.1} parent=11 // pred_region
        _
      $region20: #{tpu_custom_call.1} parent=11 // pred_fallthru
        _
      // Predicated region
      $region21: #{tpu_custom_call.1} parent=11 // pred_check
        %p204 = pneg %p115
      $region22: #{tpu_custom_call.1} parent=11 // pred_check_branch
        %206 = sbr.rel (%p204) target = $region24
      $region23: #{tpu_custom_call.1} parent=11 // pred_region
        _
      $region24: #{tpu_custom_call.1} parent=11 // pred_fallthru
        _
      // Predicated region
      $region25: #{tpu_custom_call.1} parent=11 // pred_check
        %p207 = pneg %p136
      $region26: #{tpu_custom_call.1} parent=11 // pred_check_branch
        %209 = sbr.rel (%p207) target = $region28
      $region27: #{tpu_custom_call.1} parent=11 // pred_region
        _
      $region28: #{tpu_custom_call.1} parent=11 // pred_fallthru
        _
      // Predicated region
      $region29: #{tpu_custom_call.1} parent=11 // pred_check
        %p210 = pneg %p157
      $region30: #{tpu_custom_call.1} parent=11 // pred_check_branch
        %212 = sbr.rel (%p210) target = $region32
      $region31: #{tpu_custom_call.1} parent=11 // pred_region
        _
      $region32: #{tpu_custom_call.1} parent=11 // pred_fallthru
        _
    $region12: #{tpu_custom_call.1} parent=5 // pred_fallthru
      _
    %p213 = scmp.lt.s32.totalorder %s12, 12
    // Predicated region
    $region33: #{tpu_custom_call.1} parent=5 // pred_check
      %p214 = pneg %p213
    $region34: #{tpu_custom_call.1} parent=5 // pred_check_branch
      %216 = sbr.rel (%p214) target = $region36
    $region35: #{tpu_custom_call.1} parent=5 // pred_region
      // Predicated region
      $region37: #{tpu_custom_call.1} parent=35 // pred_check
        %p217 = pneg %p46
      $region38: #{tpu_custom_call.1} parent=35 // pred_check_branch
        %219 = sbr.rel (%p217) target = $region40
      $region39: #{tpu_custom_call.1} parent=35 // pred_region
        %p220 = scmp.lt.s32.totalorder %s20, 5
        %s221 = scalar_select %p220, %s20, 5
        %p222 = scmp.lt.s32.totalorder %s19, 1
        %s223 = scalar_select %p222, %s19, 1
        %s224 = smul.addr %s223, 60
        %s225 = smul.addr %s221, 120
        %s226 = sadd.s32 %s224, %s225
        %s227 = smul.addr %s226, 4
        %s228 = scalar_lea.vmem %s0, %s227
      $region40: #{tpu_custom_call.1} parent=35 // pred_fallthru
        _
    $region36: #{tpu_custom_call.1} parent=5 // pred_fallthru
      _
    %p229 = scmp.le.s32.totalorder 1, %s12
    %p230 = scmp.lt.s32.totalorder %s12, 13
    %p231 = pnand %p229, %p230
    %p232 = pneg %p231
    // Predicated region
    $region41: #{tpu_custom_call.1} parent=5 // pred_check
      _
    $region42: #{tpu_custom_call.1} parent=5 // pred_check_branch
      %234 = sbr.rel (%p231) target = $region44
    $region43: #{tpu_custom_call.1} parent=5 // pred_region
      %s235 = ssub.s32 %s12, 1
      %p236 = scmp.lt.s32.totalorder %s22, 5
      %s237 = scalar_select %p236, %s22, 5
      %p238 = scmp.lt.s32.totalorder %s21, 1
      %s239 = scalar_select %p238, %s21, 1
      %s240 = smul.addr %s239, 60
      %s241 = smul.addr %s237, 120
      %s242 = sadd.s32 %s240, %s241
      %s243 = smul.addr %s242, 4
      %s244 = scalar_lea.vmem %s0, %s243
      %p245 = pneg %p52
      %p246 = pneg %p49
      %p247 = pneg %p73
      %p248 = pneg %p70
      %p249 = pneg %p94
      %p250 = pneg %p91
      %p251 = pneg %p115
      %p252 = pneg %p112
      %p253 = pneg %p136
      %p254 = pneg %p133
      %p255 = pneg %p157
      %p256 = pneg %p154
      %p257 = pneg %p183
      %p258 = pneg %p180
      %p259 = scmp.lt.s32.totalorder %s21, 1
      %s260 = scalar_select %p259, %s21, 1
      %s261 = smul.addr %s260, 54
      %s262 = smul.addr %s261, 8
      %s263 = scalar_lea.vmem %s6, %s262
      %p264 = scmp.lt.s32.totalorder %s22, 5
      %s265 = scalar_select %p264, %s22, 5
      %p266 = scmp.lt.s32.totalorder %s21, 1
      %s267 = scalar_select %p266, %s21, 1
      %s268 = smul.addr %s267, 60
      %s269 = smul.addr %s265, 120
      %s270 = sadd.s32 %s268, %s269
      %s271 = smul.addr %s270, 4
      %s272 = scalar_lea.vmem %s0, %s271
      %p273 = scmp.lt.s32.totalorder %s21, 1
      %s274 = scalar_select %p273, %s21, 1
      %s275 = smul.addr %s274, 54
      %s276 = smul.addr %s275, 8
      %s277 = scalar_lea.vmem %s6, %s276
      %p279 = scmp.eq.s32.totalorder %s22, 0
      // Predicated region
      $region45: #{tpu_custom_call.1} parent=43 // pred_check
        %p280 = pneg %p279
      $region46: #{tpu_custom_call.1} parent=43 // pred_check_branch
        %282 = sbr.rel (%p280) target = $region48
      $region47: #{tpu_custom_call.1} parent=43 // pred_region
        %vm283 = vcmask 785408
        %284 = vst.msk [vmem:[#allocation2] sm:$0xff] %vm283, 0
        %285 = vst.msk [vmem:[#allocation2 + $0x8] sm:$0xff] %vm283, 0
        %286 = vst.msk [vmem:[#allocation2 + $0x10] sm:$0xff] %vm283, 0
        %287 = vst.msk [vmem:[#allocation2 + $0x18] sm:$0xff] %vm283, 0
        %288 = vst.msk [vmem:[#allocation2 + $0x20] sm:$0xff] %vm283, 0
        %289 = vst.msk [vmem:[#allocation2 + $0x28] sm:$0xff] %vm283, 0
        %290 = vst.msk [vmem:[#allocation2 + $0x30] sm:$0xff] %vm283, 0
        %291 = vst.msk [vmem:[#allocation2 + $0x38] sm:$0xff] %vm283, 0
        %292 = vst.msk [vmem:[#allocation2 + $0x40] sm:$0xff] %vm283, 0
        %293 = vst.msk [vmem:[#allocation2 + $0x48] sm:$0xff] %vm283, 0
        %294 = vst.msk [vmem:[#allocation2 + $0x50] sm:$0xff] %vm283, 0
        %295 = vst.msk [vmem:[#allocation2 + $0x58] sm:$0xff] %vm283, 0
        %296 = vst.msk [vmem:[#allocation2 + $0x60] sm:$0xff] %vm283, 0
        %297 = vst.msk [vmem:[#allocation2 + $0x68] sm:$0xff] %vm283, 0
        %298 = vst.msk [vmem:[#allocation2 + $0x70] sm:$0xff] %vm283, 0
        %299 = vst.msk [vmem:[#allocation2 + $0x78] sm:$0xff] %vm283, 0
        %300 = vst.msk [vmem:[#allocation2 + $0x80] sm:$0xff] %vm283, 0
        %301 = vst.msk [vmem:[#allocation2 + $0x88] sm:$0xff] %vm283, 0
        %302 = vst.msk [vmem:[#allocation2 + $0x90] sm:$0xff] %vm283, 0
        %303 = vst.msk [vmem:[#allocation2 + $0x98] sm:$0xff] %vm283, 0
        %304 = vst.msk [vmem:[#allocation2 + $0xa0] sm:$0xff] %vm283, 0
        %305 = vst.msk [vmem:[#allocation2 + $0xa8] sm:$0xff] %vm283, 0
        %306 = vst.msk [vmem:[#allocation2 + $0xb0] sm:$0xff] %vm283, 0
        %307 = vst.msk [vmem:[#allocation2 + $0xb8] sm:$0xff] %vm283, 0
        %308 = vst.msk [vmem:[#allocation2 + $0xc0] sm:$0xff] %vm283, 0
        %309 = vst.msk [vmem:[#allocation2 + $0xc8] sm:$0xff] %vm283, 0
        %310 = vst.msk [vmem:[#allocation2 + $0xd0] sm:$0xff] %vm283, 0
        %311 = vst.msk [vmem:[#allocation2 + $0xd8] sm:$0xff] %vm283, 0
        %312 = vst.msk [vmem:[#allocation2 + $0xe0] sm:$0xff] %vm283, 0
        %313 = vst.msk [vmem:[#allocation2 + $0xe8] sm:$0xff] %vm283, 0
        %314 = vst.msk [vmem:[#allocation2 + $0xf0] sm:$0xff] %vm283, 0
        %vm315 = vcmask 130048
        %316 = vst.msk [vmem:[#allocation3] sm:$0xff] %vm315, 0.0
        %317 = vst.msk [vmem:[#allocation3 + $0x8] sm:$0xff] %vm315, 0.0
        %318 = vst.msk [vmem:[#allocation3 + $0x10] sm:$0xff] %vm315, 0.0
        %319 = vst.msk [vmem:[#allocation3 + $0x18] sm:$0xff] %vm315, 0.0
        %320 = vst.msk [vmem:[#allocation3 + $0x20] sm:$0xff] %vm315, 0.0
        %321 = vst.msk [vmem:[#allocation3 + $0x28] sm:$0xff] %vm315, 0.0
        %322 = vst.msk [vmem:[#allocation3 + $0x30] sm:$0xff] %vm315, 0.0
        %323 = vst.msk [vmem:[#allocation3 + $0x38] sm:$0xff] %vm315, 0.0
        %324 = vst.msk [vmem:[#allocation3 + $0x40] sm:$0xff] %vm315, 0.0
        %325 = vst.msk [vmem:[#allocation3 + $0x48] sm:$0xff] %vm315, 0.0
        %326 = vst.msk [vmem:[#allocation3 + $0x50] sm:$0xff] %vm315, 0.0
        %327 = vst.msk [vmem:[#allocation3 + $0x58] sm:$0xff] %vm315, 0.0
        %328 = vst.msk [vmem:[#allocation3 + $0x60] sm:$0xff] %vm315, 0.0
        %329 = vst.msk [vmem:[#allocation3 + $0x68] sm:$0xff] %vm315, 0.0
        %330 = vst.msk [vmem:[#allocation3 + $0x70] sm:$0xff] %vm315, 0.0
        %331 = vst.msk [vmem:[#allocation3 + $0x78] sm:$0xff] %vm315, 0.0
        %332 = vst.msk [vmem:[#allocation3 + $0x80] sm:$0xff] %vm315, 0.0
        %333 = vst.msk [vmem:[#allocation3 + $0x88] sm:$0xff] %vm315, 0.0
        %334 = vst.msk [vmem:[#allocation3 + $0x90] sm:$0xff] %vm315, 0.0
        %335 = vst.msk [vmem:[#allocation3 + $0x98] sm:$0xff] %vm315, 0.0
        %336 = vst.msk [vmem:[#allocation3 + $0xa0] sm:$0xff] %vm315, 0.0
        %337 = vst.msk [vmem:[#allocation3 + $0xa8] sm:$0xff] %vm315, 0.0
        %338 = vst.msk [vmem:[#allocation3 + $0xb0] sm:$0xff] %vm315, 0.0
        %339 = vst.msk [vmem:[#allocation3 + $0xb8] sm:$0xff] %vm315, 0.0
        %340 = vst.msk [vmem:[#allocation3 + $0xc0] sm:$0xff] %vm315, 0.0
        %341 = vst.msk [vmem:[#allocation3 + $0xc8] sm:$0xff] %vm315, 0.0
        %342 = vst.msk [vmem:[#allocation3 + $0xd0] sm:$0xff] %vm315, 0.0
        %343 = vst.msk [vmem:[#allocation3 + $0xd8] sm:$0xff] %vm315, 0.0
        %344 = vst.msk [vmem:[#allocation3 + $0xe0] sm:$0xff] %vm315, 0.0
        %345 = vst.msk [vmem:[#allocation3 + $0xe8] sm:$0xff] %vm315, 0.0
        %346 = vst.msk [vmem:[#allocation3 + $0xf0] sm:$0xff] %vm315, 0.0
        %347 = vst.msk [vmem:[#allocation3 + $0xf8] sm:$0xff] %vm315, 0.0
        %348 = vst.msk [vmem:[#allocation3 + $0x100] sm:$0xff] %vm315, 0.0
        %349 = vst.msk [vmem:[#allocation3 + $0x108] sm:$0xff] %vm315, 0.0
        %350 = vst.msk [vmem:[#allocation3 + $0x110] sm:$0xff] %vm315, 0.0
        %351 = vst.msk [vmem:[#allocation3 + $0x118] sm:$0xff] %vm315, 0.0
        %352 = vst.msk [vmem:[#allocation3 + $0x120] sm:$0xff] %vm315, 0.0
        %353 = vst.msk [vmem:[#allocation3 + $0x128] sm:$0xff] %vm315, 0.0
        %354 = vst.msk [vmem:[#allocation3 + $0x130] sm:$0xff] %vm315, 0.0
        %355 = vst.msk [vmem:[#allocation3 + $0x138] sm:$0xff] %vm315, 0.0
        %356 = vst.msk [vmem:[#allocation3 + $0x140] sm:$0xff] %vm315, 0.0
        %357 = vst.msk [vmem:[#allocation3 + $0x148] sm:$0xff] %vm315, 0.0
        %358 = vst.msk [vmem:[#allocation3 + $0x150] sm:$0xff] %vm315, 0.0
        %359 = vst.msk [vmem:[#allocation3 + $0x158] sm:$0xff] %vm315, 0.0
        %360 = vst.msk [vmem:[#allocation3 + $0x160] sm:$0xff] %vm315, 0.0
        %361 = vst.msk [vmem:[#allocation3 + $0x168] sm:$0xff] %vm315, 0.0
        %362 = vst.msk [vmem:[#allocation3 + $0x170] sm:$0xff] %vm315, 0.0
        %363 = vst.msk [vmem:[#allocation3 + $0x178] sm:$0xff] %vm315, 0.0
        %364 = vst.msk [vmem:[#allocation3 + $0x180] sm:$0xff] %vm315, 0.0
        %365 = vst.msk [vmem:[#allocation3 + $0x188] sm:$0xff] %vm315, 0.0
        %366 = vst.msk [vmem:[#allocation3 + $0x190] sm:$0xff] %vm315, 0.0
        %367 = vst.msk [vmem:[#allocation3 + $0x198] sm:$0xff] %vm315, 0.0
        %368 = vst.msk [vmem:[#allocation3 + $0x1a0] sm:$0xff] %vm315, 0.0
        %369 = vst.msk [vmem:[#allocation3 + $0x1a8] sm:$0xff] %vm315, 0.0
        %370 = vst.msk [vmem:[#allocation4] sm:$0xff] %vm315, 0.0
        %371 = vst.msk [vmem:[#allocation4 + $0x8] sm:$0xff] %vm315, 0.0
        %372 = vst.msk [vmem:[#allocation4 + $0x10] sm:$0xff] %vm315, 0.0
        %373 = vst.msk [vmem:[#allocation4 + $0x18] sm:$0xff] %vm315, 0.0
        %374 = vst.msk [vmem:[#allocation4 + $0x20] sm:$0xff] %vm315, 0.0
        %375 = vst.msk [vmem:[#allocation4 + $0x28] sm:$0xff] %vm315, 0.0
        %376 = vst.msk [vmem:[#allocation4 + $0x30] sm:$0xff] %vm315, 0.0
        %377 = vst.msk [vmem:[#allocation4 + $0x38] sm:$0xff] %vm315, 0.0
        %378 = vst.msk [vmem:[#allocation4 + $0x40] sm:$0xff] %vm315, 0.0
        %379 = vst.msk [vmem:[#allocation4 + $0x48] sm:$0xff] %vm315, 0.0
        %380 = vst.msk [vmem:[#allocation4 + $0x50] sm:$0xff] %vm315, 0.0
        %381 = vst.msk [vmem:[#allocation4 + $0x58] sm:$0xff] %vm315, 0.0
        %382 = vst.msk [vmem:[#allocation4 + $0x60] sm:$0xff] %vm315, 0.0
        %383 = vst.msk [vmem:[#allocation4 + $0x68] sm:$0xff] %vm315, 0.0
        %384 = vst.msk [vmem:[#allocation4 + $0x70] sm:$0xff] %vm315, 0.0
        %385 = vst.msk [vmem:[#allocation4 + $0x78] sm:$0xff] %vm315, 0.0
        %386 = vst.msk [vmem:[#allocation4 + $0x80] sm:$0xff] %vm315, 0.0
        %387 = vst.msk [vmem:[#allocation4 + $0x88] sm:$0xff] %vm315, 0.0
        %388 = vst.msk [vmem:[#allocation4 + $0x90] sm:$0xff] %vm315, 0.0
        %389 = vst.msk [vmem:[#allocation4 + $0x98] sm:$0xff] %vm315, 0.0
        %390 = vst.msk [vmem:[#allocation4 + $0xa0] sm:$0xff] %vm315, 0.0
        %391 = vst.msk [vmem:[#allocation4 + $0xa8] sm:$0xff] %vm315, 0.0
        %392 = vst.msk [vmem:[#allocation4 + $0xb0] sm:$0xff] %vm315, 0.0
        %393 = vst.msk [vmem:[#allocation4 + $0xb8] sm:$0xff] %vm315, 0.0
        %394 = vst.msk [vmem:[#allocation4 + $0xc0] sm:$0xff] %vm315, 0.0
        %395 = vst.msk [vmem:[#allocation4 + $0xc8] sm:$0xff] %vm315, 0.0
        %396 = vst.msk [vmem:[#allocation4 + $0xd0] sm:$0xff] %vm315, 0.0
        %397 = vst.msk [vmem:[#allocation4 + $0xd8] sm:$0xff] %vm315, 0.0
        %398 = vst.msk [vmem:[#allocation4 + $0xe0] sm:$0xff] %vm315, 0.0
        %399 = vst.msk [vmem:[#allocation4 + $0xe8] sm:$0xff] %vm315, 0.0
        %400 = vst.msk [vmem:[#allocation4 + $0xf0] sm:$0xff] %vm315, 0.0
        %401 = vst.msk [vmem:[#allocation4 + $0xf8] sm:$0xff] %vm315, 0.0
        %402 = vst.msk [vmem:[#allocation4 + $0x100] sm:$0xff] %vm315, 0.0
        %403 = vst.msk [vmem:[#allocation4 + $0x108] sm:$0xff] %vm315, 0.0
        %404 = vst.msk [vmem:[#allocation4 + $0x110] sm:$0xff] %vm315, 0.0
        %405 = vst.msk [vmem:[#allocation4 + $0x118] sm:$0xff] %vm315, 0.0
        %406 = vst.msk [vmem:[#allocation4 + $0x120] sm:$0xff] %vm315, 0.0
        %407 = vst.msk [vmem:[#allocation4 + $0x128] sm:$0xff] %vm315, 0.0
        %408 = vst.msk [vmem:[#allocation4 + $0x130] sm:$0xff] %vm315, 0.0
        %409 = vst.msk [vmem:[#allocation4 + $0x138] sm:$0xff] %vm315, 0.0
        %410 = vst.msk [vmem:[#allocation4 + $0x140] sm:$0xff] %vm315, 0.0
        %411 = vst.msk [vmem:[#allocation4 + $0x148] sm:$0xff] %vm315, 0.0
        %412 = vst.msk [vmem:[#allocation4 + $0x150] sm:$0xff] %vm315, 0.0
        %413 = vst.msk [vmem:[#allocation4 + $0x158] sm:$0xff] %vm315, 0.0
        %414 = vst.msk [vmem:[#allocation4 + $0x160] sm:$0xff] %vm315, 0.0
        %415 = vst.msk [vmem:[#allocation4 + $0x168] sm:$0xff] %vm315, 0.0
        %416 = vst.msk [vmem:[#allocation4 + $0x170] sm:$0xff] %vm315, 0.0
        %417 = vst.msk [vmem:[#allocation4 + $0x178] sm:$0xff] %vm315, 0.0
        %418 = vst.msk [vmem:[#allocation4 + $0x180] sm:$0xff] %vm315, 0.0
        %419 = vst.msk [vmem:[#allocation4 + $0x188] sm:$0xff] %vm315, 0.0
        %420 = vst.msk [vmem:[#allocation4 + $0x190] sm:$0xff] %vm315, 0.0
        %421 = vst.msk [vmem:[#allocation4 + $0x198] sm:$0xff] %vm315, 0.0
        %422 = vst.msk [vmem:[#allocation4 + $0x1a0] sm:$0xff] %vm315, 0.0
        %423 = vst.msk [vmem:[#allocation4 + $0x1a8] sm:$0xff] %vm315, 0.0
      $region48: #{tpu_custom_call.1} parent=43 // pred_fallthru
        _
      %v424 = vld [vmem:[%s2] sm:$0x1]
      %v426 = vlaneseq
      %v427 = vshrl.u32 %v426, 7
      %v428 = vsub.s32 0, %v427
      %v429 = vrot.slane %v424, %v428
      %v431 = vld [vmem:[%s272] sm:$0xf]
      %v432 = vld [vmem:[%s272 + $0x4] sm:$0xf]
      %v433 = vld [vmem:[%s272 + $0x8] sm:$0xf]
      %v434 = vld [vmem:[%s272 + $0xc] sm:$0xf]
      %v435 = vld [vmem:[%s272 + $0x10] sm:$0xf]
      %v436 = vld [vmem:[%s272 + $0x14] sm:$0xf]
      %v437 = vld [vmem:[%s272 + $0x18] sm:$0xf]
      %v438 = vld [vmem:[%s272 + $0x1c] sm:$0xf]
      %v439 = vld [vmem:[%s272 + $0x20] sm:$0xf]
      %v440 = vld [vmem:[%s272 + $0x24] sm:$0xf]
      %v441 = vld [vmem:[%s272 + $0x28] sm:$0xf]
      %v442 = vld [vmem:[%s272 + $0x2c] sm:$0xf]
      %v443 = vld [vmem:[%s272 + $0x30] sm:$0xf]
      %v444 = vld [vmem:[%s272 + $0x34] sm:$0xf]
      %v445 = vld [vmem:[%s272 + $0x38] sm:$0xf]
      %v446 = vld [vmem:[%s272 + $0x3c] sm:$0xf]
      %v447 = vld [vmem:[%s272 + $0x40] sm:$0xf]
      %v448 = vld [vmem:[%s272 + $0x44] sm:$0xf]
      %v449 = vld [vmem:[%s1] sm:$0xf]
      %v450 = vld [vmem:[%s1 + $0x4] sm:$0x3]
      %v469 = vunpack.c.l.b16 %v431
      %v470 = vunpack.c.l.b16 %v432
      %v471 = vunpack.c.l.b16 %v433
      %v472 = vunpack.c.l.b16 %v434
      %v473 = vunpack.c.l.b16 %v435
      %v474 = vunpack.c.l.b16 %v436
      %v475 = vunpack.c.l.b16 %v437
      %v476 = vunpack.c.l.b16 %v438
      %v477 = vunpack.c.l.b16 %v439
      %v478 = vunpack.c.l.b16 %v440
      %v479 = vunpack.c.l.b16 %v441
      %v480 = vunpack.c.l.b16 %v442
      %v481 = vunpack.c.l.b16 %v443
      %v482 = vunpack.c.l.b16 %v444
      %v483 = vunpack.c.l.b16 %v445
      %v484 = vunpack.c.l.b16 %v446
      %v485 = vunpack.c.l.b16 %v447
      %v486 = vunpack.c.l.b16 %v448
      %v487 = vpack.c.b16 %v470, %v469
      %v488 = vpack.c.b16 %v472, %v471
      %v489 = vpack.c.b16 %v474, %v473
      %v490 = vpack.c.b16 %v476, %v475
      %v491 = vpack.c.b16 %v478, %v477
      %v492 = vpack.c.b16 %v480, %v479
      %v493 = vpack.c.b16 %v482, %v481
      %v494 = vpack.c.b16 %v484, %v483
      %v495 = vpack.c.b16 %v486, %v485
      %v498 = vunpack.c.l.b16 %v449
      %v499 = vunpack.c.l.b16 %v450
      %v500 = vpack.c.b16 %v499, %v498
      %vm501 = vcmask 97280
      %v503 = vsel %vm501, %v487, 0
      %v506 = vsel %vm501, %v488, 0
      %v509 = vsel %vm501, %v489, 0
      %v512 = vsel %vm501, %v490, 0
      %v515 = vsel %vm501, %v491, 0
      %v518 = vsel %vm501, %v492, 0
      %v521 = vsel %vm501, %v493, 0
      %v524 = vsel %vm501, %v494, 0
      %v527 = vsel %vm501, %v495, 0
      %vm529 = vcmask 1045504
      %v531 = vsel %vm529, %v500, 0
      %533 = vmatprep.subr.bf16.mxu0 0
      %534 = vmatpush1.bf16.msra.mxu0 %v531
      %535 = vmatprep.subr.bf16.mxu0 0
      %536 = vmatpush1.bf16.msra.mxu0 0
      %537 = vmatprep.subr.bf16.mxu0 0
      %538 = vmatpush1.bf16.msra.mxu0 0
      %539 = vmatprep.subr.bf16.mxu0 0
      %540 = vmatpush1.bf16.msra.mxu0 0
      %541 = vmatprep.subr.bf16.mxu0 0
      %542 = vmatpush1.bf16.msra.mxu0 0
      %543 = vmatprep.subr.bf16.mxu0 0
      %544 = vmatpush1.bf16.msra.mxu0 0
      %545 = vmatprep.subr.bf16.mxu0 0
      %546 = vmatpush1.bf16.msra.mxu0 0
      %547 = vmatprep.subr.bf16.mxu0 0
      %548 = vmatpush1.bf16.msra.mxu0 0
      %549 = vmatprep.subr.bf16.mxu0 0
      %550 = vmatpush1.bf16.msra.mxu0 0
      %551 = vmatprep.subr.bf16.mxu0 0
      %552 = vmatpush1.bf16.msra.mxu0 0
      %553 = vmatprep.subr.bf16.mxu0 0
      %554 = vmatpush1.bf16.msra.mxu0 0
      %555 = vmatprep.subr.bf16.mxu0 0
      %556 = vmatpush1.bf16.msra.mxu0 0
      %557 = vmatprep.subr.bf16.mxu0 0
      %558 = vmatpush1.bf16.msra.mxu0 0
      %559 = vmatprep.subr.bf16.mxu0 0
      %560 = vmatpush1.bf16.msra.mxu0 0
      %561 = vmatprep.subr.bf16.mxu0 0
      %562 = vmatpush1.bf16.msra.mxu0 0
      %563 = vmatprep.subr.bf16.mxu0 0
      %564 = vmatpush1.bf16.msra.mxu0 0
      %565 = vmatprep.mubr.bf16.mxu0 0
      %566 = vmatmul.mubr.bf16.gmra.mrb[0].mxu0 %v503
      %v567 = vpop.f32.mrb[0].mxu0
      %v568 = vadd.f32 0.0, %v567
      %v569 = vpop.f32.mrb[0].mxu0
      %v570 = vpop.f32.mrb[0].mxu0
      %v571 = vadd.f32 0.0, %v570
      %v572 = vpop.f32.mrb[0].mxu0
      %573 = vmatprep.mubr.bf16.mxu0 0
      %574 = vmatmul.mubr.bf16.gmra.mrb[0].mxu0 %v506
      %v575 = vpop.f32.mrb[0].mxu0
      %v576 = vadd.f32 0.0, %v575
      %v577 = vpop.f32.mrb[0].mxu0
      %v578 = vpop.f32.mrb[0].mxu0
      %v579 = vadd.f32 0.0, %v578
      %v580 = vpop.f32.mrb[0].mxu0
      %581 = vmatprep.mubr.bf16.mxu0 0
      %582 = vmatmul.mubr.bf16.gmra.mrb[0].mxu0 %v509
      %v583 = vpop.f32.mrb[0].mxu0
      %v584 = vadd.f32 0.0, %v583
      %v585 = vpop.f32.mrb[0].mxu0
      %v586 = vpop.f32.mrb[0].mxu0
      %v587 = vadd.f32 0.0, %v586
      %v588 = vpop.f32.mrb[0].mxu0
      %589 = vmatprep.mubr.bf16.mxu0 0
      %590 = vmatmul.mubr.bf16.gmra.mrb[0].mxu0 %v512
      %v591 = vpop.f32.mrb[0].mxu0
      %v592 = vadd.f32 0.0, %v591
      %v593 = vpop.f32.mrb[0].mxu0
      %v594 = vpop.f32.mrb[0].mxu0
      %v595 = vadd.f32 0.0, %v594
      %v596 = vpop.f32.mrb[0].mxu0
      %597 = vmatprep.mubr.bf16.mxu0 0
      %598 = vmatmul.mubr.bf16.gmra.mrb[0].mxu0 %v515
      %v599 = vpop.f32.mrb[0].mxu0
      %v600 = vadd.f32 0.0, %v599
      %v601 = vpop.f32.mrb[0].mxu0
      %v602 = vpop.f32.mrb[0].mxu0
      %v603 = vadd.f32 0.0, %v602
      %v604 = vpop.f32.mrb[0].mxu0
      %605 = vmatprep.mubr.bf16.mxu0 0
      %606 = vmatmul.mubr.bf16.gmra.mrb[0].mxu0 %v518
      %v607 = vpop.f32.mrb[0].mxu0
      %v608 = vadd.f32 0.0, %v607
      %v609 = vpop.f32.mrb[0].mxu0
      %v610 = vpop.f32.mrb[0].mxu0
      %v611 = vadd.f32 0.0, %v610
      %v612 = vpop.f32.mrb[0].mxu0
      %613 = vmatprep.mubr.bf16.mxu0 0
      %614 = vmatmul.mubr.bf16.gmra.mrb[0].mxu0 %v521
      %v615 = vpop.f32.mrb[0].mxu0
      %v616 = vadd.f32 0.0, %v615
      %v617 = vpop.f32.mrb[0].mxu0
      %v618 = vpop.f32.mrb[0].mxu0
      %v619 = vadd.f32 0.0, %v618
      %v620 = vpop.f32.mrb[0].mxu0
      %621 = vmatprep.mubr.bf16.mxu0 0
      %622 = vmatmul.mubr.bf16.gmra.mrb[0].mxu0 %v524
      %v623 = vpop.f32.mrb[0].mxu0
      %v624 = vadd.f32 0.0, %v623
      %v625 = vpop.f32.mrb[0].mxu0
      %v626 = vpop.f32.mrb[0].mxu0
      %v627 = vadd.f32 0.0, %v626
      %v628 = vpop.f32.mrb[0].mxu0
      %629 = vmatprep.mubr.bf16.mxu0 0
      %630 = vmatmul.mubr.bf16.gmra.mrb[0].mxu0 %v527
      %v631 = vpop.f32.mrb[0].mxu0
      %v632 = vadd.f32 0.0, %v631
      %v633 = vpop.f32.mrb[0].mxu0
      %v634 = vpop.f32.mrb[0].mxu0
      %v635 = vadd.f32 0.0, %v634
      %v636 = vpop.f32.mrb[0].mxu0
      %637 = vdwg.mxu0
      %v638 = vadd.f32 %v429, %v568
      %v639 = vadd.f32 %v429, %v571
      %v640 = vadd.f32 %v429, %v576
      %v641 = vadd.f32 %v429, %v579
      %v642 = vadd.f32 %v429, %v584
      %v643 = vadd.f32 %v429, %v587
      %v644 = vadd.f32 %v429, %v592
      %v645 = vadd.f32 %v429, %v595
      %v646 = vadd.f32 %v429, %v600
      %v647 = vadd.f32 %v429, %v603
      %v648 = vadd.f32 %v429, %v608
      %v649 = vadd.f32 %v429, %v611
      %v650 = vadd.f32 %v429, %v616
      %v651 = vadd.f32 %v429, %v619
      %v652 = vadd.f32 %v429, %v624
      %v653 = vadd.f32 %v429, %v627
      %v654 = vadd.f32 %v429, %v632
      %v655 = vadd.f32 %v429, %v635
      %v656 = vld [vmem:[%s272 + $0xc] sm:$0xf]
      %v657 = vld [vmem:[%s272 + $0x10] sm:$0xf]
      %v658 = vld [vmem:[%s272 + $0x14] sm:$0xf]
      %v659 = vld [vmem:[%s272 + $0x18] sm:$0xf]
      %v660 = vld [vmem:[%s272 + $0x1c] sm:$0xf]
      %v661 = vld [vmem:[%s272 + $0x20] sm:$0xf]
      %v662 = vld [vmem:[%s272 + $0x24] sm:$0xf]
      %v663 = vld [vmem:[%s272 + $0x28] sm:$0xf]
      %v664 = vld [vmem:[%s272 + $0x2c] sm:$0xf]
      %v665 = vld [vmem:[%s272 + $0x30] sm:$0xf]
      %v666 = vld [vmem:[%s272 + $0x34] sm:$0xf]
      %v667 = vld [vmem:[%s272 + $0x38] sm:$0xf]
      %v668 = vld [vmem:[%s272 + $0x3c] sm:$0xf]
      %v669 = vld [vmem:[%s272 + $0x40] sm:$0xf]
      %v670 = vld [vmem:[%s272 + $0x44] sm:$0xf]
      %v671 = vld [vmem:[%s272 + $0x48] sm:$0xf]
      %v672 = vld [vmem:[%s272 + $0x4c] sm:$0xf]
      %v673 = vld [vmem:[%s272 + $0x50] sm:$0xf]
      %s674 = scalar_lea.vmem %s1, 8
      %v675 = vld [vmem:[%s674] sm:$0xf]
      %v676 = vld [vmem:[%s674 + $0x4] sm:$0x3]
      %v695 = vunpack.c.l.b16 %v656
      %v696 = vunpack.c.l.b16 %v657
      %v697 = vunpack.c.l.b16 %v658
      %v698 = vunpack.c.l.b16 %v659
      %v699 = vunpack.c.l.b16 %v660
      %v700 = vunpack.c.l.b16 %v661
      %v701 = vunpack.c.l.b16 %v662
      %v702 = vunpack.c.l.b16 %v663
      %v703 = vunpack.c.l.b16 %v664
      %v704 = vunpack.c.l.b16 %v665
      %v705 = vunpack.c.l.b16 %v666
      %v706 = vunpack.c.l.b16 %v667
      %v707 = vunpack.c.l.b16 %v668
      %v708 = vunpack.c.l.b16 %v669
      %v709 = vunpack.c.l.b16 %v670
      %v710 = vunpack.c.l.b16 %v671
      %v711 = vunpack.c.l.b16 %v672
      %v712 = vunpack.c.l.b16 %v673
      %v713 = vpack.c.b16 %v696, %v695
      %v714 = vpack.c.b16 %v698, %v697
      %v715 = vpack.c.b16 %v700, %v699
      %v716 = vpack.c.b16 %v702, %v701
      %v717 = vpack.c.b16 %v704, %v703
      %v718 = vpack.c.b16 %v706, %v705
      %v719 = vpack.c.b16 %v708, %v707
      %v720 = vpack.c.b16 %v710, %v709
      %v721 = vpack.c.b16 %v712, %v711
      %v724 = vunpack.c.l.b16 %v675
      %v725 = vunpack.c.l.b16 %v676
      %v726 = vpack.c.b16 %v725, %v724
      %v728 = vsel %vm501, %v713, 0
      %v731 = vsel %vm501, %v714, 0
      %v734 = vsel %vm501, %v715, 0
      %v737 = vsel %vm501, %v716, 0
      %v740 = vsel %vm501, %v717, 0
      %v743 = vsel %vm501, %v718, 0
      %v746 = vsel %vm501, %v719, 0
      %v749 = vsel %vm501, %v720, 0
      %v752 = vsel %vm501, %v721, 0
      %v755 = vsel %vm529, %v726, 0
      %757 = vmatprep.subr.bf16.mxu0 0
      %758 = vmatpush1.bf16.msra.mxu0 %v755
      %759 = vmatprep.subr.bf16.mxu0 0
      %760 = vmatpush1.bf16.msra.mxu0 0
      %761 = vmatprep.subr.bf16.mxu0 0
      %762 = vmatpush1.bf16.msra.mxu0 0
      %763 = vmatprep.subr.bf16.mxu0 0
      %764 = vmatpush1.bf16.msra.mxu0 0
      %765 = vmatprep.subr.bf16.mxu0 0
      %766 = vmatpush1.bf16.msra.mxu0 0
      %767 = vmatprep.subr.bf16.mxu0 0
      %768 = vmatpush1.bf16.msra.mxu0 0
      %769 = vmatprep.subr.bf16.mxu0 0
      %770 = vmatpush1.bf16.msra.mxu0 0
      %771 = vmatprep.subr.bf16.mxu0 0
      %772 = vmatpush1.bf16.msra.mxu0 0
      %773 = vmatprep.subr.bf16.mxu0 0
      %774 = vmatpush1.bf16.msra.mxu0 0
      %775 = vmatprep.subr.bf16.mxu0 0
      %776 = vmatpush1.bf16.msra.mxu0 0
      %777 = vmatprep.subr.bf16.mxu0 0
      %778 = vmatpush1.bf16.msra.mxu0 0
      %779 = vmatprep.subr.bf16.mxu0 0
      %780 = vmatpush1.bf16.msra.mxu0 0
      %781 = vmatprep.subr.bf16.mxu0 0
      %782 = vmatpush1.bf16.msra.mxu0 0
      %783 = vmatprep.subr.bf16.mxu0 0
      %784 = vmatpush1.bf16.msra.mxu0 0
      %785 = vmatprep.subr.bf16.mxu0 0
      %786 = vmatpush1.bf16.msra.mxu0 0
      %787 = vmatprep.subr.bf16.mxu0 0
      %788 = vmatpush1.bf16.msra.mxu0 0
      %789 = vmatprep.mubr.bf16.mxu0 0
      %790 = vmatmul.mubr.bf16.gmra.mrb[0].mxu0 %v728
      %v791 = vpop.f32.mrb[0].mxu0
      %v792 = vadd.f32 0.0, %v791
      %v793 = vpop.f32.mrb[0].mxu0
      %v794 = vpop.f32.mrb[0].mxu0
      %v795 = vadd.f32 0.0, %v794
      %v796 = vpop.f32.mrb[0].mxu0
      %797 = vmatprep.mubr.bf16.mxu0 0
      %798 = vmatmul.mubr.bf16.gmra.mrb[0].mxu0 %v731
      %v799 = vpop.f32.mrb[0].mxu0
      %v800 = vadd.f32 0.0, %v799
      %v801 = vpop.f32.mrb[0].mxu0
      %v802 = vpop.f32.mrb[0].mxu0
      %v803 = vadd.f32 0.0, %v802
      %v804 = vpop.f32.mrb[0].mxu0
      %805 = vmatprep.mubr.bf16.mxu0 0
      %806 = vmatmul.mubr.bf16.gmra.mrb[0].mxu0 %v734
      %v807 = vpop.f32.mrb[0].mxu0
      %v808 = vadd.f32 0.0, %v807
      %v809 = vpop.f32.mrb[0].mxu0
      %v810 = vpop.f32.mrb[0].mxu0
      %v811 = vadd.f32 0.0, %v810
      %v812 = vpop.f32.mrb[0].mxu0
      %813 = vmatprep.mubr.bf16.mxu0 0
      %814 = vmatmul.mubr.bf16.gmra.mrb[0].mxu0 %v737
      %v815 = vpop.f32.mrb[0].mxu0
      %v816 = vadd.f32 0.0, %v815
      %v817 = vpop.f32.mrb[0].mxu0
      %v818 = vpop.f32.mrb[0].mxu0
      %v819 = vadd.f32 0.0, %v818
      %v820 = vpop.f32.mrb[0].mxu0
      %821 = vmatprep.mubr.bf16.mxu0 0
      %822 = vmatmul.mubr.bf16.gmra.mrb[0].mxu0 %v740
      %v823 = vpop.f32.mrb[0].mxu0
      %v824 = vadd.f32 0.0, %v823
      %v825 = vpop.f32.mrb[0].mxu0
      %v826 = vpop.f32.mrb[0].mxu0
      %v827 = vadd.f32 0.0, %v826
      %v828 = vpop.f32.mrb[0].mxu0
      %829 = vmatprep.mubr.bf16.mxu0 0
      %830 = vmatmul.mubr.bf16.gmra.mrb[0].mxu0 %v743
      %v831 = vpop.f32.mrb[0].mxu0
      %v832 = vadd.f32 0.0, %v831
      %v833 = vpop.f32.mrb[0].mxu0
      %v834 = vpop.f32.mrb[0].mxu0
      %v835 = vadd.f32 0.0, %v834
      %v836 = vpop.f32.mrb[0].mxu0
      %837 = vmatprep.mubr.bf16.mxu0 0
      %838 = vmatmul.mubr.bf16.gmra.mrb[0].mxu0 %v746
      %v839 = vpop.f32.mrb[0].mxu0
      %v840 = vadd.f32 0.0, %v839
      %v841 = vpop.f32.mrb[0].mxu0
      %v842 = vpop.f32.mrb[0].mxu0
      %v843 = vadd.f32 0.0, %v842
      %v844 = vpop.f32.mrb[0].mxu0
      %845 = vmatprep.mubr.bf16.mxu0 0
      %846 = vmatmul.mubr.bf16.gmra.mrb[0].mxu0 %v749
      %v847 = vpop.f32.mrb[0].mxu0
      %v848 = vadd.f32 0.0, %v847
      %v849 = vpop.f32.mrb[0].mxu0
      %v850 = vpop.f32.mrb[0].mxu0
      %v851 = vadd.f32 0.0, %v850
      %v852 = vpop.f32.mrb[0].mxu0
      %853 = vmatprep.mubr.bf16.mxu0 0
      %854 = vmatmul.mubr.bf16.gmra.mrb[0].mxu0 %v752
      %v855 = vpop.f32.mrb[0].mxu0
      %v856 = vadd.f32 0.0, %v855
      %v857 = vpop.f32.mrb[0].mxu0
      %v858 = vpop.f32.mrb[0].mxu0
      %v859 = vadd.f32 0.0, %v858
      %v860 = vpop.f32.mrb[0].mxu0
      %861 = vdwg.mxu0
      %v862 = vadd.f32 %v638, %v792
      %v863 = vadd.f32 %v639, %v795
      %v864 = vadd.f32 %v640, %v800
      %v865 = vadd.f32 %v641, %v803
      %v866 = vadd.f32 %v642, %v808
      %v867 = vadd.f32 %v643, %v811
      %v868 = vadd.f32 %v644, %v816
      %v869 = vadd.f32 %v645, %v819
      %v870 = vadd.f32 %v646, %v824
      %v871 = vadd.f32 %v647, %v827
      %v872 = vadd.f32 %v648, %v832
      %v873 = vadd.f32 %v649, %v835
      %v874 = vadd.f32 %v650, %v840
      %v875 = vadd.f32 %v651, %v843
      %v876 = vadd.f32 %v652, %v848
      %v877 = vadd.f32 %v653, %v851
      %v878 = vadd.f32 %v654, %v856
      %v879 = vadd.f32 %v655, %v859
      %v880 = vld [vmem:[%s272 + $0x18] sm:$0xf]
      %v881 = vld [vmem:[%s272 + $0x1c] sm:$0xf]
      %v882 = vld [vmem:[%s272 + $0x20] sm:$0xf]
      %v883 = vld [vmem:[%s272 + $0x24] sm:$0xf]
      %v884 = vld [vmem:[%s272 + $0x28] sm:$0xf]
      %v885 = vld [vmem:[%s272 + $0x2c] sm:$0xf]
      %v886 = vld [vmem:[%s272 + $0x30] sm:$0xf]
      %v887 = vld [vmem:[%s272 + $0x34] sm:$0xf]
      %v888 = vld [vmem:[%s272 + $0x38] sm:$0xf]
      %v889 = vld [vmem:[%s272 + $0x3c] sm:$0xf]
      %v890 = vld [vmem:[%s272 + $0x40] sm:$0xf]
      %v891 = vld [vmem:[%s272 + $0x44] sm:$0xf]
      %v892 = vld [vmem:[%s272 + $0x48] sm:$0xf]
      %v893 = vld [vmem:[%s272 + $0x4c] sm:$0xf]
      %v894 = vld [vmem:[%s272 + $0x50] sm:$0xf]
      %v895 = vld [vmem:[%s272 + $0x54] sm:$0xf]
      %v896 = vld [vmem:[%s272 + $0x58] sm:$0xf]
      %v897 = vld [vmem:[%s272 + $0x5c] sm:$0xf]
      %s898 = scalar_lea.vmem %s1, 16
      %v899 = vld [vmem:[%s898] sm:$0xf]
      %v900 = vld [vmem:[%s898 + $0x4] sm:$0x3]
      %v919 = vunpack.c.l.b16 %v880
      %v920 = vunpack.c.l.b16 %v881
      %v921 = vunpack.c.l.b16 %v882
      %v922 = vunpack.c.l.b16 %v883
      %v923 = vunpack.c.l.b16 %v884
      %v924 = vunpack.c.l.b16 %v885
      %v925 = vunpack.c.l.b16 %v886
      %v926 = vunpack.c.l.b16 %v887
      %v927 = vunpack.c.l.b16 %v888
      %v928 = vunpack.c.l.b16 %v889
      %v929 = vunpack.c.l.b16 %v890
      %v930 = vunpack.c.l.b16 %v891
      %v931 = vunpack.c.l.b16 %v892
      %v932 = vunpack.c.l.b16 %v893
      %v933 = vunpack.c.l.b16 %v894
      %v934 = vunpack.c.l.b16 %v895
      %v935 = vunpack.c.l.b16 %v896
      %v936 = vunpack.c.l.b16 %v897
      %v937 = vpack.c.b16 %v920, %v919
      %v938 = vpack.c.b16 %v922, %v921
      %v939 = vpack.c.b16 %v924, %v923
      %v940 = vpack.c.b16 %v926, %v925
      %v941 = vpack.c.b16 %v928, %v927
      %v942 = vpack.c.b16 %v930, %v929
      %v943 = vpack.c.b16 %v932, %v931
      %v944 = vpack.c.b16 %v934, %v933
      %v945 = vpack.c.b16 %v936, %v935
      %v948 = vunpack.c.l.b16 %v899
      %v949 = vunpack.c.l.b16 %v900
      %v950 = vpack.c.b16 %v949, %v948
      %v952 = vsel %vm501, %v937, 0
      %v955 = vsel %vm501, %v938, 0
      %v958 = vsel %vm501, %v939, 0
      %v961 = vsel %vm501, %v940, 0
      %v964 = vsel %vm501, %v941, 0
      %v967 = vsel %vm501, %v942, 0
      %v970 = vsel %vm501, %v943, 0
      %v973 = vsel %vm501, %v944, 0
      %v976 = vsel %vm501, %v945, 0
      %v979 = vsel %vm529, %v950, 0
      %981 = vmatprep.subr.bf16.mxu0 0
      %982 = vmatpush1.bf16.msra.mxu0 %v979
      %983 = vmatprep.subr.bf16.mxu0 0
      %984 = vmatpush1.bf16.msra.mxu0 0
      %985 = vmatprep.subr.bf16.mxu0 0
      %986 = vmatpush1.bf16.msra.mxu0 0
      %987 = vmatprep.subr.bf16.mxu0 0
      %988 = vmatpush1.bf16.msra.mxu0 0
      %989 = vmatprep.subr.bf16.mxu0 0
      %990 = vmatpush1.bf16.msra.mxu0 0
      %991 = vmatprep.subr.bf16.mxu0 0
      %992 = vmatpush1.bf16.msra.mxu0 0
      %993 = vmatprep.subr.bf16.mxu0 0
      %994 = vmatpush1.bf16.msra.mxu0 0
      %995 = vmatprep.subr.bf16.mxu0 0
      %996 = vmatpush1.bf16.msra.mxu0 0
      %997 = vmatprep.subr.bf16.mxu0 0
      %998 = vmatpush1.bf16.msra.mxu0 0
      %999 = vmatprep.subr.bf16.mxu0 0
      %1000 = vmatpush1.bf16.msra.mxu0 0
      %1001 = vmatprep.subr.bf16.mxu0 0
      %1002 = vmatpush1.bf16.msra.mxu0 0
      %1003 = vmatprep.subr.bf16.mxu0 0
      %1004 = vmatpush1.bf16.msra.mxu0 0
      %1005 = vmatprep.subr.bf16.mxu0 0
      %1006 = vmatpush1.bf16.msra.mxu0 0
      %1007 = vmatprep.subr.bf16.mxu0 0
      %1008 = vmatpush1.bf16.msra.mxu0 0
      %1009 = vmatprep.subr.bf16.mxu0 0
      %1010 = vmatpush1.bf16.msra.mxu0 0
      %1011 = vmatprep.subr.bf16.mxu0 0
      %1012 = vmatpush1.bf16.msra.mxu0 0
      %1013 = vmatprep.mubr.bf16.mxu0 0
      %1014 = vmatmul.mubr.bf16.gmra.mrb[0].mxu0 %v952
      %v1015 = vpop.f32.mrb[0].mxu0
      %v1016 = vadd.f32 0.0, %v1015
      %v1017 = vpop.f32.mrb[0].mxu0
      %v1018 = vpop.f32.mrb[0].mxu0
      %v1019 = vadd.f32 0.0, %v1018
      %v1020 = vpop.f32.mrb[0].mxu0
      %1021 = vmatprep.mubr.bf16.mxu0 0
      %1022 = vmatmul.mubr.bf16.gmra.mrb[0].mxu0 %v955
      %v1023 = vpop.f32.mrb[0].mxu0
      %v1024 = vadd.f32 0.0, %v1023
      %v1025 = vpop.f32.mrb[0].mxu0
      %v1026 = vpop.f32.mrb[0].mxu0
      %v1027 = vadd.f32 0.0, %v1026
      %v1028 = vpop.f32.mrb[0].mxu0
      %1029 = vmatprep.mubr.bf16.mxu0 0
      %1030 = vmatmul.mubr.bf16.gmra.mrb[0].mxu0 %v958
      %v1031 = vpop.f32.mrb[0].mxu0
      %v1032 = vadd.f32 0.0, %v1031
      %v1033 = vpop.f32.mrb[0].mxu0
      %v1034 = vpop.f32.mrb[0].mxu0
      %v1035 = vadd.f32 0.0, %v1034
      %v1036 = vpop.f32.mrb[0].mxu0
      %1037 = vmatprep.mubr.bf16.mxu0 0
      %1038 = vmatmul.mubr.bf16.gmra.mrb[0].mxu0 %v961
      %v1039 = vpop.f32.mrb[0].mxu0
      %v1040 = vadd.f32 0.0, %v1039
      %v1041 = vpop.f32.mrb[0].mxu0
      %v1042 = vpop.f32.mrb[0].mxu0
      %v1043 = vadd.f32 0.0, %v1042
      %v1044 = vpop.f32.mrb[0].mxu0
      %1045 = vmatprep.mubr.bf16.mxu0 0
      %1046 = vmatmul.mubr.bf16.gmra.mrb[0].mxu0 %v964
      %v1047 = vpop.f32.mrb[0].mxu0
      %v1048 = vadd.f32 0.0, %v1047
      %v1049 = vpop.f32.mrb[0].mxu0
      %v1050 = vpop.f32.mrb[0].mxu0
      %v1051 = vadd.f32 0.0, %v1050
      %v1052 = vpop.f32.mrb[0].mxu0
      %1053 = vmatprep.mubr.bf16.mxu0 0
      %1054 = vmatmul.mubr.bf16.gmra.mrb[0].mxu0 %v967
      %v1055 = vpop.f32.mrb[0].mxu0
      %v1056 = vadd.f32 0.0, %v1055
      %v1057 = vpop.f32.mrb[0].mxu0
      %v1058 = vpop.f32.mrb[0].mxu0
      %v1059 = vadd.f32 0.0, %v1058
      %v1060 = vpop.f32.mrb[0].mxu0
      %1061 = vmatprep.mubr.bf16.mxu0 0
      %1062 = vmatmul.mubr.bf16.gmra.mrb[0].mxu0 %v970
      %v1063 = vpop.f32.mrb[0].mxu0
      %v1064 = vadd.f32 0.0, %v1063
      %v1065 = vpop.f32.mrb[0].mxu0
      %v1066 = vpop.f32.mrb[0].mxu0
      %v1067 = vadd.f32 0.0, %v1066
      %v1068 = vpop.f32.mrb[0].mxu0
      %1069 = vmatprep.mubr.bf16.mxu0 0
      %1070 = vmatmul.mubr.bf16.gmra.mrb[0].mxu0 %v973
      %v1071 = vpop.f32.mrb[0].mxu0
      %v1072 = vadd.f32 0.0, %v1071
      %v1073 = vpop.f32.mrb[0].mxu0
      %v1074 = vpop.f32.mrb[0].mxu0
      %v1075 = vadd.f32 0.0, %v1074
      %v1076 = vpop.f32.mrb[0].mxu0
      %1077 = vmatprep.mubr.bf16.mxu0 0
      %1078 = vmatmul.mubr.bf16.gmra.mrb[0].mxu0 %v976
      %v1079 = vpop.f32.mrb[0].mxu0
      %v1080 = vadd.f32 0.0, %v1079
      %v1081 = vpop.f32.mrb[0].mxu0
      %v1082 = vpop.f32.mrb[0].mxu0
      %v1083 = vadd.f32 0.0, %v1082
      %v1084 = vpop.f32.mrb[0].mxu0
      %1085 = vdwg.mxu0
      %v1086 = vadd.f32 %v862, %v1016
      %v1087 = vadd.f32 %v863, %v1019
      %v1088 = vadd.f32 %v864, %v1024
      %v1089 = vadd.f32 %v865, %v1027
      %v1090 = vadd.f32 %v866, %v1032
      %v1091 = vadd.f32 %v867, %v1035
      %v1092 = vadd.f32 %v868, %v1040
      %v1093 = vadd.f32 %v869, %v1043
      %v1094 = vadd.f32 %v870, %v1048
      %v1095 = vadd.f32 %v871, %v1051
      %v1096 = vadd.f32 %v872, %v1056
      %v1097 = vadd.f32 %v873, %v1059
      %v1098 = vadd.f32 %v874, %v1064
      %v1099 = vadd.f32 %v875, %v1067
      %v1100 = vadd.f32 %v876, %v1072
      %v1101 = vadd.f32 %v877, %v1075
      %v1102 = vadd.f32 %v878, %v1080
      %v1103 = vadd.f32 %v879, %v1083
      %v1104 = vmax.f32 %v1086, 0.0
      %v1105 = vmax.f32 %v1087, 0.0
      %v1106 = vmax.f32 %v1088, 0.0
      %v1107 = vmax.f32 %v1089, 0.0
      %v1108 = vmax.f32 %v1090, 0.0
      %v1109 = vmax.f32 %v1091, 0.0
      %v1110 = vmax.f32 %v1092, 0.0
      %v1111 = vmax.f32 %v1093, 0.0
      %v1112 = vmax.f32 %v1094, 0.0
      %v1113 = vmax.f32 %v1095, 0.0
      %v1114 = vmax.f32 %v1096, 0.0
      %v1115 = vmax.f32 %v1097, 0.0
      %v1116 = vmax.f32 %v1098, 0.0
      %v1117 = vmax.f32 %v1099, 0.0
      %v1118 = vmax.f32 %v1100, 0.0
      %v1119 = vmax.f32 %v1101, 0.0
      %v1120 = vmax.f32 %v1102, 0.0
      %v1121 = vmax.f32 %v1103, 0.0
      %v1122 = vld [vmem:[%s5] sm:$0xff]
      %v1123 = vld [vmem:[%s5 + $0x8] sm:$0xff]
      %v1124 = vld [vmem:[%s5 + $0x10] sm:$0xff]
      %v1125 = vld [vmem:[%s5 + $0x18] sm:$0xff]
      %v1126 = vld [vmem:[%s5 + $0x20] sm:$0xff]
      %v1127 = vld [vmem:[%s5 + $0x28] sm:$0xff]
      %v1128 = vld [vmem:[%s5 + $0x30] sm:$0xff]
      %v1129 = vld [vmem:[%s5 + $0x38] sm:$0xff]
      %v1130 = vld [vmem:[%s5 + $0x40] sm:$0xff]
      %v1131 = vld [vmem:[%s5 + $0x48] sm:$0xff]
      %v1132 = vld [vmem:[%s5 + $0x50] sm:$0xff]
      %v1133 = vld [vmem:[%s5 + $0x58] sm:$0xff]
      %v1134 = vld [vmem:[%s5 + $0x60] sm:$0xff]
      %v1135 = vld [vmem:[%s5 + $0x68] sm:$0xff]
      %v1136 = vld [vmem:[%s5 + $0x70] sm:$0xff]
      %v1137 = vld [vmem:[%s5 + $0x78] sm:$0xff]
      %v1138 = vld [vmem:[%s5 + $0x80] sm:$0xff]
      %v1139 = vld [vmem:[%s5 + $0x88] sm:$0xff]
      %v1140 = vmul.f32 %v1104, %v1122
      %v1141 = vmul.f32 %v1105, %v1123
      %v1142 = vmul.f32 %v1106, %v1124
      %v1143 = vmul.f32 %v1107, %v1125
      %v1144 = vmul.f32 %v1108, %v1126
      %v1145 = vmul.f32 %v1109, %v1127
      %v1146 = vmul.f32 %v1110, %v1128
      %v1147 = vmul.f32 %v1111, %v1129
      %v1148 = vmul.f32 %v1112, %v1130
      %v1149 = vmul.f32 %v1113, %v1131
      %v1150 = vmul.f32 %v1114, %v1132
      %v1151 = vmul.f32 %v1115, %v1133
      %v1152 = vmul.f32 %v1116, %v1134
      %v1153 = vmul.f32 %v1117, %v1135
      %v1154 = vmul.f32 %v1118, %v1136
      %v1155 = vmul.f32 %v1119, %v1137
      %v1156 = vmul.f32 %v1120, %v1138
      %v1157 = vmul.f32 %v1121, %v1139
      %v1158 = vld [vmem:[#allocation4] sm:$0xff]
      %v1159 = vld [vmem:[#allocation4 + $0x8] sm:$0xff]
      %v1160 = vld [vmem:[#allocation4 + $0x10] sm:$0xff]
      %v1161 = vld [vmem:[#allocation4 + $0x18] sm:$0xff]
      %v1162 = vld [vmem:[#allocation4 + $0x20] sm:$0xff]
      %v1163 = vld [vmem:[#allocation4 + $0x28] sm:$0xff]
      %v1164 = vld [vmem:[#allocation4 + $0x30] sm:$0xff]
      %v1165 = vld [vmem:[#allocation4 + $0x38] sm:$0xff]
      %v1166 = vld [vmem:[#allocation4 + $0x40] sm:$0xff]
      %v1167 = vld [vmem:[#allocation4 + $0x48] sm:$0xff]
      %v1168 = vld [vmem:[#allocation4 + $0x50] sm:$0xff]
      %v1169 = vld [vmem:[#allocation4 + $0x58] sm:$0xff]
      %v1170 = vld [vmem:[#allocation4 + $0x60] sm:$0xff]
      %v1171 = vld [vmem:[#allocation4 + $0x68] sm:$0xff]
      %v1172 = vld [vmem:[#allocation4 + $0x70] sm:$0xff]
      %v1173 = vld [vmem:[#allocation4 + $0x78] sm:$0xff]
      %v1174 = vld [vmem:[#allocation4 + $0x80] sm:$0xff]
      %v1175 = vld [vmem:[#allocation4 + $0x88] sm:$0xff]
      %1194 = vrot.lane.b32.xlu0 %v1158, 16
      %v1195 = vpop.permute.xlu0 %1194
      %1196 = vrot.lane.b32.xlu0 %v1159, 16
      %v1197 = vpop.permute.xlu0 %1196
      %1198 = vrot.lane.b32.xlu0 %v1160, 16
      %v1199 = vpop.permute.xlu0 %1198
      %1200 = vrot.lane.b32.xlu0 %v1161, 16
      %v1201 = vpop.permute.xlu0 %1200
      %1202 = vrot.lane.b32.xlu0 %v1162, 16
      %v1203 = vpop.permute.xlu0 %1202
      %1204 = vrot.lane.b32.xlu0 %v1163, 16
      %v1205 = vpop.permute.xlu0 %1204
      %1206 = vrot.lane.b32.xlu0 %v1164, 16
      %v1207 = vpop.permute.xlu0 %1206
      %1208 = vrot.lane.b32.xlu0 %v1165, 16
      %v1209 = vpop.permute.xlu0 %1208
      %1210 = vrot.lane.b32.xlu0 %v1166, 16
      %v1211 = vpop.permute.xlu0 %1210
      %1212 = vrot.lane.b32.xlu0 %v1167, 16
      %v1213 = vpop.permute.xlu0 %1212
      %1214 = vrot.lane.b32.xlu0 %v1168, 16
      %v1215 = vpop.permute.xlu0 %1214
      %1216 = vrot.lane.b32.xlu0 %v1169, 16
      %v1217 = vpop.permute.xlu0 %1216
      %1218 = vrot.lane.b32.xlu0 %v1170, 16
      %v1219 = vpop.permute.xlu0 %1218
      %1220 = vrot.lane.b32.xlu0 %v1171, 16
      %v1221 = vpop.permute.xlu0 %1220
      %1222 = vrot.lane.b32.xlu0 %v1172, 16
      %v1223 = vpop.permute.xlu0 %1222
      %1224 = vrot.lane.b32.xlu0 %v1173, 16
      %v1225 = vpop.permute.xlu0 %1224
      %1226 = vrot.lane.b32.xlu0 %v1174, 16
      %v1227 = vpop.permute.xlu0 %1226
      %1228 = vrot.lane.b32.xlu0 %v1175, 16
      %v1229 = vpop.permute.xlu0 %1228
      %vm1248 = vcmask 130048
      %v1249 = vsel %vm1248, %v1140, %v1195
      %v1250 = vsel %vm1248, %v1141, %v1197
      %v1251 = vsel %vm1248, %v1142, %v1199
      %v1252 = vsel %vm1248, %v1143, %v1201
      %v1253 = vsel %vm1248, %v1144, %v1203
      %v1254 = vsel %vm1248, %v1145, %v1205
      %v1255 = vsel %vm1248, %v1146, %v1207
      %v1256 = vsel %vm1248, %v1147, %v1209
      %v1257 = vsel %vm1248, %v1148, %v1211
      %v1258 = vsel %vm1248, %v1149, %v1213
      %v1259 = vsel %vm1248, %v1150, %v1215
      %v1260 = vsel %vm1248, %v1151, %v1217
      %v1261 = vsel %vm1248, %v1152, %v1219
      %v1262 = vsel %vm1248, %v1153, %v1221
      %v1263 = vsel %vm1248, %v1154, %v1223
      %v1264 = vsel %vm1248, %v1155, %v1225
      %v1265 = vsel %vm1248, %v1156, %v1227
      %v1266 = vsel %vm1248, %v1157, %v1229
      %v1267 = vpack.c.bf16 %v1250, %v1249
      %v1268 = vpack.c.bf16 %v1252, %v1251
      %v1269 = vpack.c.bf16 %v1254, %v1253
      %v1270 = vpack.c.bf16 %v1256, %v1255
      %v1271 = vpack.c.bf16 %v1258, %v1257
      %v1272 = vpack.c.bf16 %v1260, %v1259
      %v1273 = vpack.c.bf16 %v1262, %v1261
      %v1274 = vpack.c.bf16 %v1264, %v1263
      %v1275 = vpack.c.bf16 %v1266, %v1265
      %vm1276 = vsmask.f32 256
      %v1278 = vshrl.u32 %v1267, 16
      %v1280 = vrot.slane %v1278, 7
      %v1281 = vshll.u32 %v1267, 16
      %v1283 = vor.u32 %v1280, %v1281
      %v1285 = vshrl.u32 %v1268, 16
      %v1287 = vrot.slane %v1285, 7
      %v1288 = vshll.u32 %v1268, 16
      %v1290 = vor.u32 %v1287, %v1288
      %v1291 = vsel %vm1276, %v1280, %v1290
      %v1293 = vshrl.u32 %v1269, 16
      %v1295 = vrot.slane %v1293, 7
      %v1296 = vshll.u32 %v1269, 16
      %v1298 = vor.u32 %v1295, %v1296
      %v1299 = vsel %vm1276, %v1287, %v1298
      %v1301 = vshrl.u32 %v1270, 16
      %v1303 = vrot.slane %v1301, 7
      %v1304 = vshll.u32 %v1270, 16
      %v1306 = vor.u32 %v1303, %v1304
      %v1307 = vsel %vm1276, %v1295, %v1306
      %v1309 = vshrl.u32 %v1271, 16
      %v1311 = vrot.slane %v1309, 7
      %v1312 = vshll.u32 %v1271, 16
      %v1314 = vor.u32 %v1311, %v1312
      %v1315 = vsel %vm1276, %v1303, %v1314
      %v1317 = vshrl.u32 %v1272, 16
      %v1319 = vrot.slane %v1317, 7
      %v1320 = vshll.u32 %v1272, 16
      %v1322 = vor.u32 %v1319, %v1320
      %v1323 = vsel %vm1276, %v1311, %v1322
      %v1325 = vshrl.u32 %v1273, 16
      %v1327 = vrot.slane %v1325, 7
      %v1328 = vshll.u32 %v1273, 16
      %v1330 = vor.u32 %v1327, %v1328
      %v1331 = vsel %vm1276, %v1319, %v1330
      %v1333 = vshrl.u32 %v1274, 16
      %v1335 = vrot.slane %v1333, 7
      %v1336 = vshll.u32 %v1274, 16
      %v1338 = vor.u32 %v1335, %v1336
      %v1339 = vsel %vm1276, %v1327, %v1338
      %v1341 = vshrl.u32 %v1275, 16
      %v1343 = vrot.slane %v1341, 7
      %v1344 = vshll.u32 %v1275, 16
      %v1346 = vor.u32 %v1343, %v1344
      %v1347 = vsel %vm1276, %v1335, %v1346
      %vm1358 = vcmask 261120
      %vm1359 = vsmask.f32 7938
      %vm1360 = vmand %vm1358, %vm1359
      %v1361 = vld [vmem:[#allocation2 + $0x10] sm:$0xff]
      %v1362 = vsel %vm1360, %v1283, %v1361
      %1363 = vst [vmem:[#allocation2 + $0x10] sm:$0xff] %v1362
      %vm1364 = vcmask 261120
      %1365 = vst.msk [vmem:[#allocation2 + $0x18] sm:$0xff] %vm1364, %v1291
      %1366 = vst.msk [vmem:[#allocation2 + $0x20] sm:$0xff] %vm1364, %v1299
      %1367 = vst.msk [vmem:[#allocation2 + $0x28] sm:$0xff] %vm1364, %v1307
      %1368 = vst.msk [vmem:[#allocation2 + $0x30] sm:$0xff] %vm1364, %v1315
      %1369 = vst.msk [vmem:[#allocation2 + $0x38] sm:$0xff] %vm1364, %v1323
      %1370 = vst.msk [vmem:[#allocation2 + $0x40] sm:$0xff] %vm1364, %v1331
      %1371 = vst.msk [vmem:[#allocation2 + $0x48] sm:$0xff] %vm1364, %v1339
      %1372 = vst.msk [vmem:[#allocation2 + $0x50] sm:$0xff] %vm1364, %v1347
      %vm1373 = vcmask 253952
      %vm1374 = vmand %vm1373, %vm1276
      %v1375 = vld [vmem:[#allocation2 + $0x58] sm:$0x1]
      %v1376 = vsel %vm1374, %v1343, %v1375
      %1377 = vst [vmem:[#allocation2 + $0x58] sm:$0x1] %v1376
      %1387 = vrot.lane.b32.xlu0 %v1267, 32
      %v1388 = vpop.permute.xlu0 %1387
      %1389 = vrot.lane.b32.xlu0 %v1268, 32
      %v1390 = vpop.permute.xlu0 %1389
      %1391 = vrot.lane.b32.xlu0 %v1269, 32
      %v1392 = vpop.permute.xlu0 %1391
      %1393 = vrot.lane.b32.xlu0 %v1270, 32
      %v1394 = vpop.permute.xlu0 %1393
      %1395 = vrot.lane.b32.xlu0 %v1271, 32
      %v1396 = vpop.permute.xlu0 %1395
      %1397 = vrot.lane.b32.xlu0 %v1272, 32
      %v1398 = vpop.permute.xlu0 %1397
      %1399 = vrot.lane.b32.xlu0 %v1273, 32
      %v1400 = vpop.permute.xlu0 %1399
      %1401 = vrot.lane.b32.xlu0 %v1274, 32
      %v1402 = vpop.permute.xlu0 %1401
      %1403 = vrot.lane.b32.xlu0 %v1275, 32
      %v1404 = vpop.permute.xlu0 %1403
      %vm1414 = vcmask 523520
      %1415 = vst.msk [vmem:[#allocation2 + $0x10] sm:$0xff] %vm1414, %v1388
      %1416 = vst.msk [vmem:[#allocation2 + $0x18] sm:$0xff] %vm1414, %v1390
      %1417 = vst.msk [vmem:[#allocation2 + $0x20] sm:$0xff] %vm1414, %v1392
      %1418 = vst.msk [vmem:[#allocation2 + $0x28] sm:$0xff] %vm1414, %v1394
      %1419 = vst.msk [vmem:[#allocation2 + $0x30] sm:$0xff] %vm1414, %v1396
      %1420 = vst.msk [vmem:[#allocation2 + $0x38] sm:$0xff] %vm1414, %v1398
      %1421 = vst.msk [vmem:[#allocation2 + $0x40] sm:$0xff] %vm1414, %v1400
      %1422 = vst.msk [vmem:[#allocation2 + $0x48] sm:$0xff] %vm1414, %v1402
      %1423 = vst.msk [vmem:[#allocation2 + $0x50] sm:$0xff] %vm1414, %v1404
      %vm1424 = vsmask.f32 7424
      %v1425 = vrot.slane %v1281, 1
      %v1426 = vor.u32 %v1278, %v1425
      %v1427 = vrot.slane %v1288, 1
      %v1428 = vsel %vm1424, %v1426, %v1427
      %v1429 = vor.u32 %v1285, %v1427
      %v1430 = vrot.slane %v1296, 1
      %v1431 = vsel %vm1424, %v1429, %v1430
      %v1432 = vor.u32 %v1293, %v1430
      %v1433 = vrot.slane %v1304, 1
      %v1434 = vsel %vm1424, %v1432, %v1433
      %v1435 = vor.u32 %v1301, %v1433
      %v1436 = vrot.slane %v1312, 1
      %v1437 = vsel %vm1424, %v1435, %v1436
      %v1438 = vor.u32 %v1309, %v1436
      %v1439 = vrot.slane %v1320, 1
      %v1440 = vsel %vm1424, %v1438, %v1439
      %v1441 = vor.u32 %v1317, %v1439
      %v1442 = vrot.slane %v1328, 1
      %v1443 = vsel %vm1424, %v1441, %v1442
      %v1444 = vor.u32 %v1325, %v1442
      %v1445 = vrot.slane %v1336, 1
      %v1446 = vsel %vm1424, %v1444, %v1445
      %v1447 = vor.u32 %v1333, %v1445
      %v1448 = vrot.slane %v1344, 1
      %v1449 = vsel %vm1424, %v1447, %v1448
      %v1450 = vor.u32 %v1341, %v1448
      %1451 = vrot.lane.b32.xlu0 %v1425, 64
      %v1452 = vpop.permute.xlu0 %1451
      %1453 = vrot.lane.b32.xlu0 %v1428, 64
      %v1454 = vpop.permute.xlu0 %1453
      %1455 = vrot.lane.b32.xlu0 %v1431, 64
      %v1456 = vpop.permute.xlu0 %1455
      %1457 = vrot.lane.b32.xlu0 %v1434, 64
      %v1458 = vpop.permute.xlu0 %1457
      %1459 = vrot.lane.b32.xlu0 %v1437, 64
      %v1460 = vpop.permute.xlu0 %1459
      %1461 = vrot.lane.b32.xlu0 %v1440, 64
      %v1462 = vpop.permute.xlu0 %1461
      %1463 = vrot.lane.b32.xlu0 %v1443, 64
      %v1464 = vpop.permute.xlu0 %1463
      %1465 = vrot.lane.b32.xlu0 %v1446, 64
      %v1466 = vpop.permute.xlu0 %1465
      %1467 = vrot.lane.b32.xlu0 %v1449, 64
      %v1468 = vpop.permute.xlu0 %1467
      %1469 = vrot.lane.b32.xlu0 %v1450, 64
      %v1470 = vpop.permute.xlu0 %1469
      %vm1481 = vcmask 785927
      %vm1482 = vsmask.f32 7966
      %vm1483 = vmand %vm1481, %vm1482
      %v1484 = vld [vmem:[#allocation2 + $0x8] sm:$0x80]
      %v1485 = vsel %vm1483, %v1452, %v1484
      %1486 = vst [vmem:[#allocation2 + $0x8] sm:$0x80] %v1485
      %vm1487 = vcmask 785920
      %1488 = vst.msk [vmem:[#allocation2 + $0x10] sm:$0xff] %vm1487, %v1454
      %1489 = vst.msk [vmem:[#allocation2 + $0x18] sm:$0xff] %vm1487, %v1456
      %1490 = vst.msk [vmem:[#allocation2 + $0x20] sm:$0xff] %vm1487, %v1458
      %1491 = vst.msk [vmem:[#allocation2 + $0x28] sm:$0xff] %vm1487, %v1460
      %1492 = vst.msk [vmem:[#allocation2 + $0x30] sm:$0xff] %vm1487, %v1462
      %1493 = vst.msk [vmem:[#allocation2 + $0x38] sm:$0xff] %vm1487, %v1464
      %1494 = vst.msk [vmem:[#allocation2 + $0x40] sm:$0xff] %vm1487, %v1466
      %1495 = vst.msk [vmem:[#allocation2 + $0x48] sm:$0xff] %vm1487, %v1468
      %vm1496 = vcmask 785920
      %vm1497 = vmand %vm1496, %vm1424
      %v1498 = vld [vmem:[#allocation2 + $0x50] sm:$0xff]
      %v1499 = vsel %vm1497, %v1470, %v1498
      %1500 = vst [vmem:[#allocation2 + $0x50] sm:$0xff] %v1499
      %v1501 = vld [vmem:[%s2] sm:$0x1]
      %v1503 = vlaneseq
      %v1504 = vshrl.u32 %v1503, 7
      %v1505 = vsub.s32 0, %v1504
      %v1506 = vrot.slane %v1501, %v1505
      %v1508 = vld [vmem:[%s272 + $0x48] sm:$0xf]
      %v1509 = vld [vmem:[%s272 + $0x4c] sm:$0xf]
      %v1510 = vld [vmem:[%s272 + $0x50] sm:$0xf]
      %v1511 = vld [vmem:[%s272 + $0x54] sm:$0xf]
      %v1512 = vld [vmem:[%s272 + $0x58] sm:$0xf]
      %v1513 = vld [vmem:[%s272 + $0x5c] sm:$0xf]
      %v1514 = vld [vmem:[%s272 + $0x60] sm:$0xf]
      %v1515 = vld [vmem:[%s272 + $0x64] sm:$0xf]
      %v1516 = vld [vmem:[%s272 + $0x68] sm:$0xf]
      %v1517 = vld [vmem:[%s272 + $0x6c] sm:$0xf]
      %v1518 = vld [vmem:[%s272 + $0x70] sm:$0xf]
      %v1519 = vld [vmem:[%s272 + $0x74] sm:$0xf]
      %v1520 = vld [vmem:[%s272 + $0x78] sm:$0xf]
      %v1521 = vld [vmem:[%s272 + $0x7c] sm:$0xf]
      %v1522 = vld [vmem:[%s272 + $0x80] sm:$0xf]
      %v1523 = vld [vmem:[%s272 + $0x84] sm:$0xf]
      %v1524 = vld [vmem:[%s272 + $0x88] sm:$0xf]
      %v1525 = vld [vmem:[%s272 + $0x8c] sm:$0xf]
      %v1526 = vld [vmem:[%s1] sm:$0xf]
      %v1527 = vld [vmem:[%s1 + $0x4] sm:$0x3]
      %v1546 = vunpack.c.l.b16 %v1508
      %v1547 = vunpack.c.l.b16 %v1509
      %v1548 = vunpack.c.l.b16 %v1510
      %v1549 = vunpack.c.l.b16 %v1511
      %v1550 = vunpack.c.l.b16 %v1512
      %v1551 = vunpack.c.l.b16 %v1513
      %v1552 = vunpack.c.l.b16 %v1514
      %v1553 = vunpack.c.l.b16 %v1515
      %v1554 = vunpack.c.l.b16 %v1516
      %v1555 = vunpack.c.l.b16 %v1517
      %v1556 = vunpack.c.l.b16 %v1518
      %v1557 = vunpack.c.l.b16 %v1519
      %v1558 = vunpack.c.l.b16 %v1520
      %v1559 = vunpack.c.l.b16 %v1521
      %v1560 = vunpack.c.l.b16 %v1522
      %v1561 = vunpack.c.l.b16 %v1523
      %v1562 = vunpack.c.l.b16 %v1524
      %v1563 = vunpack.c.l.b16 %v1525
      %v1564 = vpack.c.b16 %v1547, %v1546
      %v1565 = vpack.c.b16 %v1549, %v1548
      %v1566 = vpack.c.b16 %v1551, %v1550
      %v1567 = vpack.c.b16 %v1553, %v1552
      %v1568 = vpack.c.b16 %v1555, %v1554
      %v1569 = vpack.c.b16 %v1557, %v1556
      %v1570 = vpack.c.b16 %v1559, %v1558
      %v1571 = vpack.c.b16 %v1561, %v1560
      %v1572 = vpack.c.b16 %v1563, %v1562
      %v1575 = vunpack.c.l.b16 %v1526
      %v1576 = vunpack.c.l.b16 %v1527
      %v1577 = vpack.c.b16 %v1576, %v1575
      %v1579 = vsel %vm501, %v1564, 0
      %v1582 = vsel %vm501, %v1565, 0
      %v1585 = vsel %vm501, %v1566, 0
      %v1588 = vsel %vm501, %v1567, 0
      %v1591 = vsel %vm501, %v1568, 0
      %v1594 = vsel %vm501, %v1569, 0
      %v1597 = vsel %vm501, %v1570, 0
      %v1600 = vsel %vm501, %v1571, 0
      %v1603 = vsel %vm501, %v1572, 0
      %v1606 = vsel %vm529, %v1577, 0
      %1608 = vmatprep.subr.bf16.mxu0 0
      %1609 = vmatpush1.bf16.msra.mxu0 %v1606
      %1610 = vmatprep.subr.bf16.mxu0 0
      %1611 = vmatpush1.bf16.msra.mxu0 0
      %1612 = vmatprep.subr.bf16.mxu0 0
      %1613 = vmatpush1.bf16.msra.mxu0 0
      %1614 = vmatprep.subr.bf16.mxu0 0
      %1615 = vmatpush1.bf16.msra.mxu0 0
      %1616 = vmatprep.subr.bf16.mxu0 0
      %1617 = vmatpush1.bf16.msra.mxu0 0
      %1618 = vmatprep.subr.bf16.mxu0 0
      %1619 = vmatpush1.bf16.msra.mxu0 0
      %1620 = vmatprep.subr.bf16.mxu0 0
      %1621 = vmatpush1.bf16.msra.mxu0 0
      %1622 = vmatprep.subr.bf16.mxu0 0
      %1623 = vmatpush1.bf16.msra.mxu0 0
      %1624 = vmatprep.subr.bf16.mxu0 0
      %1625 = vmatpush1.bf16.msra.mxu0 0
      %1626 = vmatprep.subr.bf16.mxu0 0
      %1627 = vmatpush1.bf16.msra.mxu0 0
      %1628 = vmatprep.subr.bf16.mxu0 0
      %1629 = vmatpush1.bf16.msra.mxu0 0
      %1630 = vmatprep.subr.bf16.mxu0 0
      %1631 = vmatpush1.bf16.msra.mxu0 0
      %1632 = vmatprep.subr.bf16.mxu0 0
      %1633 = vmatpush1.bf16.msra.mxu0 0
      %1634 = vmatprep.subr.bf16.mxu0 0
      %1635 = vmatpush1.bf16.msra.mxu0 0
      %1636 = vmatprep.subr.bf16.mxu0 0
      %1637 = vmatpush1.bf16.msra.mxu0 0
      %1638 = vmatprep.subr.bf16.mxu0 0
      %1639 = vmatpush1.bf16.msra.mxu0 0
      %1640 = vmatprep.mubr.bf16.mxu0 0
      %1641 = vmatmul.mubr.bf16.gmra.mrb[0].mxu0 %v1579
      %v1642 = vpop.f32.mrb[0].mxu0
      %v1643 = vadd.f32 0.0, %v1642
      %v1644 = vpop.f32.mrb[0].mxu0
      %v1645 = vpop.f32.mrb[0].mxu0
      %v1646 = vadd.f32 0.0, %v1645
      %v1647 = vpop.f32.mrb[0].mxu0
      %1648 = vmatprep.mubr.bf16.mxu0 0
      %1649 = vmatmul.mubr.bf16.gmra.mrb[0].mxu0 %v1582
      %v1650 = vpop.f32.mrb[0].mxu0
      %v1651 = vadd.f32 0.0, %v1650
      %v1652 = vpop.f32.mrb[0].mxu0
      %v1653 = vpop.f32.mrb[0].mxu0
      %v1654 = vadd.f32 0.0, %v1653
      %v1655 = vpop.f32.mrb[0].mxu0
      %1656 = vmatprep.mubr.bf16.mxu0 0
      %1657 = vmatmul.mubr.bf16.gmra.mrb[0].mxu0 %v1585
      %v1658 = vpop.f32.mrb[0].mxu0
      %v1659 = vadd.f32 0.0, %v1658
      %v1660 = vpop.f32.mrb[0].mxu0
      %v1661 = vpop.f32.mrb[0].mxu0
      %v1662 = vadd.f32 0.0, %v1661
      %v1663 = vpop.f32.mrb[0].mxu0
      %1664 = vmatprep.mubr.bf16.mxu0 0
      %1665 = vmatmul.mubr.bf16.gmra.mrb[0].mxu0 %v1588
      %v1666 = vpop.f32.mrb[0].mxu0
      %v1667 = vadd.f32 0.0, %v1666
      %v1668 = vpop.f32.mrb[0].mxu0
      %v1669 = vpop.f32.mrb[0].mxu0
      %v1670 = vadd.f32 0.0, %v1669
      %v1671 = vpop.f32.mrb[0].mxu0
      %1672 = vmatprep.mubr.bf16.mxu0 0
      %1673 = vmatmul.mubr.bf16.gmra.mrb[0].mxu0 %v1591
      %v1674 = vpop.f32.mrb[0].mxu0
      %v1675 = vadd.f32 0.0, %v1674
      %v1676 = vpop.f32.mrb[0].mxu0
      %v1677 = vpop.f32.mrb[0].mxu0
      %v1678 = vadd.f32 0.0, %v1677
      %v1679 = vpop.f32.mrb[0].mxu0
      %1680 = vmatprep.mubr.bf16.mxu0 0
      %1681 = vmatmul.mubr.bf16.gmra.mrb[0].mxu0 %v1594
      %v1682 = vpop.f32.mrb[0].mxu0
      %v1683 = vadd.f32 0.0, %v1682
      %v1684 = vpop.f32.mrb[0].mxu0
      %v1685 = vpop.f32.mrb[0].mxu0
      %v1686 = vadd.f32 0.0, %v1685
      %v1687 = vpop.f32.mrb[0].mxu0
      %1688 = vmatprep.mubr.bf16.mxu0 0
      %1689 = vmatmul.mubr.bf16.gmra.mrb[0].mxu0 %v1597
      %v1690 = vpop.f32.mrb[0].mxu0
      %v1691 = vadd.f32 0.0, %v1690
      %v1692 = vpop.f32.mrb[0].mxu0
      %v1693 = vpop.f32.mrb[0].mxu0
      %v1694 = vadd.f32 0.0, %v1693
      %v1695 = vpop.f32.mrb[0].mxu0
      %1696 = vmatprep.mubr.bf16.mxu0 0
      %1697 = vmatmul.mubr.bf16.gmra.mrb[0].mxu0 %v1600
      %v1698 = vpop.f32.mrb[0].mxu0
      %v1699 = vadd.f32 0.0, %v1698
      %v1700 = vpop.f32.mrb[0].mxu0
      %v1701 = vpop.f32.mrb[0].mxu0
      %v1702 = vadd.f32 0.0, %v1701
      %v1703 = vpop.f32.mrb[0].mxu0
      %1704 = vmatprep.mubr.bf16.mxu0 0
      %1705 = vmatmul.mubr.bf16.gmra.mrb[0].mxu0 %v1603
      %v1706 = vpop.f32.mrb[0].mxu0
      %v1707 = vadd.f32 0.0, %v1706
      %v1708 = vpop.f32.mrb[0].mxu0
      %v1709 = vpop.f32.mrb[0].mxu0
      %v1710 = vadd.f32 0.0, %v1709
      %v1711 = vpop.f32.mrb[0].mxu0
      %1712 = vdwg.mxu0
      %v1713 = vadd.f32 %v1506, %v1643
      %v1714 = vadd.f32 %v1506, %v1646
      %v1715 = vadd.f32 %v1506, %v1651
      %v1716 = vadd.f32 %v1506, %v1654
      %v1717 = vadd.f32 %v1506, %v1659
      %v1718 = vadd.f32 %v1506, %v1662
      %v1719 = vadd.f32 %v1506, %v1667
      %v1720 = vadd.f32 %v1506, %v1670
      %v1721 = vadd.f32 %v1506, %v1675
      %v1722 = vadd.f32 %v1506, %v1678
      %v1723 = vadd.f32 %v1506, %v1683
      %v1724 = vadd.f32 %v1506, %v1686
      %v1725 = vadd.f32 %v1506, %v1691
      %v1726 = vadd.f32 %v1506, %v1694
      %v1727 = vadd.f32 %v1506, %v1699
      %v1728 = vadd.f32 %v1506, %v1702
      %v1729 = vadd.f32 %v1506, %v1707
      %v1730 = vadd.f32 %v1506, %v1710
      %v1731 = vld [vmem:[%s272 + $0x54] sm:$0xf]
      %v1732 = vld [vmem:[%s272 + $0x58] sm:$0xf]
      %v1733 = vld [vmem:[%s272 + $0x5c] sm:$0xf]
      %v1734 = vld [vmem:[%s272 + $0x60] sm:$0xf]
      %v1735 = vld [vmem:[%s272 + $0x64] sm:$0xf]
      %v1736 = vld [vmem:[%s272 + $0x68] sm:$0xf]
      %v1737 = vld [vmem:[%s272 + $0x6c] sm:$0xf]
      %v1738 = vld [vmem:[%s272 + $0x70] sm:$0xf]
      %v1739 = vld [vmem:[%s272 + $0x74] sm:$0xf]
      %v1740 = vld [vmem:[%s272 + $0x78] sm:$0xf]
      %v1741 = vld [vmem:[%s272 + $0x7c] sm:$0xf]
      %v1742 = vld [vmem:[%s272 + $0x80] sm:$0xf]
      %v1743 = vld [vmem:[%s272 + $0x84] sm:$0xf]
      %v1744 = vld [vmem:[%s272 + $0x88] sm:$0xf]
      %v1745 = vld [vmem:[%s272 + $0x8c] sm:$0xf]
      %v1746 = vld [vmem:[%s272 + $0x90] sm:$0xf]
      %v1747 = vld [vmem:[%s272 + $0x94] sm:$0xf]
      %v1748 = vld [vmem:[%s272 + $0x98] sm:$0xf]
      %v1749 = vld [vmem:[%s674] sm:$0xf]
      %v1750 = vld [vmem:[%s674 + $0x4] sm:$0x3]
      %v1769 = vunpack.c.l.b16 %v1731
      %v1770 = vunpack.c.l.b16 %v1732
      %v1771 = vunpack.c.l.b16 %v1733
      %v1772 = vunpack.c.l.b16 %v1734
      %v1773 = vunpack.c.l.b16 %v1735
      %v1774 = vunpack.c.l.b16 %v1736
      %v1775 = vunpack.c.l.b16 %v1737
      %v1776 = vunpack.c.l.b16 %v1738
      %v1777 = vunpack.c.l.b16 %v1739
      %v1778 = vunpack.c.l.b16 %v1740
      %v1779 = vunpack.c.l.b16 %v1741
      %v1780 = vunpack.c.l.b16 %v1742
      %v1781 = vunpack.c.l.b16 %v1743
      %v1782 = vunpack.c.l.b16 %v1744
      %v1783 = vunpack.c.l.b16 %v1745
      %v1784 = vunpack.c.l.b16 %v1746
      %v1785 = vunpack.c.l.b16 %v1747
      %v1786 = vunpack.c.l.b16 %v1748
      %v1787 = vpack.c.b16 %v1770, %v1769
      %v1788 = vpack.c.b16 %v1772, %v1771
      %v1789 = vpack.c.b16 %v1774, %v1773
      %v1790 = vpack.c.b16 %v1776, %v1775
      %v1791 = vpack.c.b16 %v1778, %v1777
      %v1792 = vpack.c.b16 %v1780, %v1779
      %v1793 = vpack.c.b16 %v1782, %v1781
      %v1794 = vpack.c.b16 %v1784, %v1783
      %v1795 = vpack.c.b16 %v1786, %v1785
      %v1798 = vunpack.c.l.b16 %v1749
      %v1799 = vunpack.c.l.b16 %v1750
      %v1800 = vpack.c.b16 %v1799, %v1798
      %v1802 = vsel %vm501, %v1787, 0
      %v1805 = vsel %vm501, %v1788, 0
      %v1808 = vsel %vm501, %v1789, 0
      %v1811 = vsel %vm501, %v1790, 0
      %v1814 = vsel %vm501, %v1791, 0
      %v1817 = vsel %vm501, %v1792, 0
      %v1820 = vsel %vm501, %v1793, 0
      %v1823 = vsel %vm501, %v1794, 0
      %v1826 = vsel %vm501, %v1795, 0
      %v1829 = vsel %vm529, %v1800, 0
      %1831 = vmatprep.subr.bf16.mxu0 0
      %1832 = vmatpush1.bf16.msra.mxu0 %v1829
      %1833 = vmatprep.subr.bf16.mxu0 0
      %1834 = vmatpush1.bf16.msra.mxu0 0
      %1835 = vmatprep.subr.bf16.mxu0 0
      %1836 = vmatpush1.bf16.msra.mxu0 0
      %1837 = vmatprep.subr.bf16.mxu0 0
      %1838 = vmatpush1.bf16.msra.mxu0 0
      %1839 = vmatprep.subr.bf16.mxu0 0
      %1840 = vmatpush1.bf16.msra.mxu0 0
      %1841 = vmatprep.subr.bf16.mxu0 0
      %1842 = vmatpush1.bf16.msra.mxu0 0
      %1843 = vmatprep.subr.bf16.mxu0 0
      %1844 = vmatpush1.bf16.msra.mxu0 0
      %1845 = vmatprep.subr.bf16.mxu0 0
      %1846 = vmatpush1.bf16.msra.mxu0 0
      %1847 = vmatprep.subr.bf16.mxu0 0
      %1848 = vmatpush1.bf16.msra.mxu0 0
      %1849 = vmatprep.subr.bf16.mxu0 0
      %1850 = vmatpush1.bf16.msra.mxu0 0
      %1851 = vmatprep.subr.bf16.mxu0 0
      %1852 = vmatpush1.bf16.msra.mxu0 0
      %1853 = vmatprep.subr.bf16.mxu0 0
      %1854 = vmatpush1.bf16.msra.mxu0 0
      %1855 = vmatprep.subr.bf16.mxu0 0
      %1856 = vmatpush1.bf16.msra.mxu0 0
      %1857 = vmatprep.subr.bf16.mxu0 0
      %1858 = vmatpush1.bf16.msra.mxu0 0
      %1859 = vmatprep.subr.bf16.mxu0 0
      %1860 = vmatpush1.bf16.msra.mxu0 0
      %1861 = vmatprep.subr.bf16.mxu0 0
      %1862 = vmatpush1.bf16.msra.mxu0 0
      %1863 = vmatprep.mubr.bf16.mxu0 0
      %1864 = vmatmul.mubr.bf16.gmra.mrb[0].mxu0 %v1802
      %v1865 = vpop.f32.mrb[0].mxu0
      %v1866 = vadd.f32 0.0, %v1865
      %v1867 = vpop.f32.mrb[0].mxu0
      %v1868 = vpop.f32.mrb[0].mxu0
      %v1869 = vadd.f32 0.0, %v1868
      %v1870 = vpop.f32.mrb[0].mxu0
      %1871 = vmatprep.mubr.bf16.mxu0 0
      %1872 = vmatmul.mubr.bf16.gmra.mrb[0].mxu0 %v1805
      %v1873 = vpop.f32.mrb[0].mxu0
      %v1874 = vadd.f32 0.0, %v1873
      %v1875 = vpop.f32.mrb[0].mxu0
      %v1876 = vpop.f32.mrb[0].mxu0
      %v1877 = vadd.f32 0.0, %v1876
      %v1878 = vpop.f32.mrb[0].mxu0
      %1879 = vmatprep.mubr.bf16.mxu0 0
      %1880 = vmatmul.mubr.bf16.gmra.mrb[0].mxu0 %v1808
      %v1881 = vpop.f32.mrb[0].mxu0
      %v1882 = vadd.f32 0.0, %v1881
      %v1883 = vpop.f32.mrb[0].mxu0
      %v1884 = vpop.f32.mrb[0].mxu0
      %v1885 = vadd.f32 0.0, %v1884
      %v1886 = vpop.f32.mrb[0].mxu0
      %1887 = vmatprep.mubr.bf16.mxu0 0
      %1888 = vmatmul.mubr.bf16.gmra.mrb[0].mxu0 %v1811
      %v1889 = vpop.f32.mrb[0].mxu0
      %v1890 = vadd.f32 0.0, %v1889
      %v1891 = vpop.f32.mrb[0].mxu0
      %v1892 = vpop.f32.mrb[0].mxu0
      %v1893 = vadd.f32 0.0, %v1892
      %v1894 = vpop.f32.mrb[0].mxu0
      %1895 = vmatprep.mubr.bf16.mxu0 0
      %1896 = vmatmul.mubr.bf16.gmra.mrb[0].mxu0 %v1814
      %v1897 = vpop.f32.mrb[0].mxu0
      %v1898 = vadd.f32 0.0, %v1897
      %v1899 = vpop.f32.mrb[0].mxu0
      %v1900 = vpop.f32.mrb[0].mxu0
      %v1901 = vadd.f32 0.0, %v1900
      %v1902 = vpop.f32.mrb[0].mxu0
      %1903 = vmatprep.mubr.bf16.mxu0 0
      %1904 = vmatmul.mubr.bf16.gmra.mrb[0].mxu0 %v1817
      %v1905 = vpop.f32.mrb[0].mxu0
      %v1906 = vadd.f32 0.0, %v1905
      %v1907 = vpop.f32.mrb[0].mxu0
      %v1908 = vpop.f32.mrb[0].mxu0
      %v1909 = vadd.f32 0.0, %v1908
      %v1910 = vpop.f32.mrb[0].mxu0
      %1911 = vmatprep.mubr.bf16.mxu0 0
      %1912 = vmatmul.mubr.bf16.gmra.mrb[0].mxu0 %v1820
      %v1913 = vpop.f32.mrb[0].mxu0
      %v1914 = vadd.f32 0.0, %v1913
      %v1915 = vpop.f32.mrb[0].mxu0
      %v1916 = vpop.f32.mrb[0].mxu0
      %v1917 = vadd.f32 0.0, %v1916
      %v1918 = vpop.f32.mrb[0].mxu0
      %1919 = vmatprep.mubr.bf16.mxu0 0
      %1920 = vmatmul.mubr.bf16.gmra.mrb[0].mxu0 %v1823
      %v1921 = vpop.f32.mrb[0].mxu0
      %v1922 = vadd.f32 0.0, %v1921
      %v1923 = vpop.f32.mrb[0].mxu0
      %v1924 = vpop.f32.mrb[0].mxu0
      %v1925 = vadd.f32 0.0, %v1924
      %v1926 = vpop.f32.mrb[0].mxu0
      %1927 = vmatprep.mubr.bf16.mxu0 0
      %1928 = vmatmul.mubr.bf16.gmra.mrb[0].mxu0 %v1826
      %v1929 = vpop.f32.mrb[0].mxu0
      %v1930 = vadd.f32 0.0, %v1929
      %v1931 = vpop.f32.mrb[0].mxu0
      %v1932 = vpop.f32.mrb[0].mxu0
      %v1933 = vadd.f32 0.0, %v1932
      %v1934 = vpop.f32.mrb[0].mxu0
      %1935 = vdwg.mxu0
      %v1936 = vadd.f32 %v1713, %v1866
      %v1937 = vadd.f32 %v1714, %v1869
      %v1938 = vadd.f32 %v1715, %v1874
      %v1939 = vadd.f32 %v1716, %v1877
      %v1940 = vadd.f32 %v1717, %v1882
      %v1941 = vadd.f32 %v1718, %v1885
      %v1942 = vadd.f32 %v1719, %v1890
      %v1943 = vadd.f32 %v1720, %v1893
      %v1944 = vadd.f32 %v1721, %v1898
      %v1945 = vadd.f32 %v1722, %v1901
      %v1946 = vadd.f32 %v1723, %v1906
      %v1947 = vadd.f32 %v1724, %v1909
      %v1948 = vadd.f32 %v1725, %v1914
      %v1949 = vadd.f32 %v1726, %v1917
      %v1950 = vadd.f32 %v1727, %v1922
      %v1951 = vadd.f32 %v1728, %v1925
      %v1952 = vadd.f32 %v1729, %v1930
      %v1953 = vadd.f32 %v1730, %v1933
      %v1954 = vld [vmem:[%s272 + $0x60] sm:$0xf]
      %v1955 = vld [vmem:[%s272 + $0x64] sm:$0xf]
      %v1956 = vld [vmem:[%s272 + $0x68] sm:$0xf]
      %v1957 = vld [vmem:[%s272 + $0x6c] sm:$0xf]
      %v1958 = vld [vmem:[%s272 + $0x70] sm:$0xf]
      %v1959 = vld [vmem:[%s272 + $0x74] sm:$0xf]
      %v1960 = vld [vmem:[%s272 + $0x78] sm:$0xf]
      %v1961 = vld [vmem:[%s272 + $0x7c] sm:$0xf]
      %v1962 = vld [vmem:[%s272 + $0x80] sm:$0xf]
      %v1963 = vld [vmem:[%s272 + $0x84] sm:$0xf]
      %v1964 = vld [vmem:[%s272 + $0x88] sm:$0xf]
      %v1965 = vld [vmem:[%s272 + $0x8c] sm:$0xf]
      %v1966 = vld [vmem:[%s272 + $0x90] sm:$0xf]
      %v1967 = vld [vmem:[%s272 + $0x94] sm:$0xf]
      %v1968 = vld [vmem:[%s272 + $0x98] sm:$0xf]
      %v1969 = vld [vmem:[%s272 + $0x9c] sm:$0xf]
      %v1970 = vld [vmem:[%s272 + $0xa0] sm:$0xf]
      %v1971 = vld [vmem:[%s272 + $0xa4] sm:$0xf]
      %v1972 = vld [vmem:[%s898] sm:$0xf]
      %v1973 = vld [vmem:[%s898 + $0x4] sm:$0x3]
      %v1992 = vunpack.c.l.b16 %v1954
      %v1993 = vunpack.c.l.b16 %v1955
      %v1994 = vunpack.c.l.b16 %v1956
      %v1995 = vunpack.c.l.b16 %v1957
      %v1996 = vunpack.c.l.b16 %v1958
      %v1997 = vunpack.c.l.b16 %v1959
      %v1998 = vunpack.c.l.b16 %v1960
      %v1999 = vunpack.c.l.b16 %v1961
      %v2000 = vunpack.c.l.b16 %v1962
      %v2001 = vunpack.c.l.b16 %v1963
      %v2002 = vunpack.c.l.b16 %v1964
      %v2003 = vunpack.c.l.b16 %v1965
      %v2004 = vunpack.c.l.b16 %v1966
      %v2005 = vunpack.c.l.b16 %v1967
      %v2006 = vunpack.c.l.b16 %v1968
      %v2007 = vunpack.c.l.b16 %v1969
      %v2008 = vunpack.c.l.b16 %v1970
      %v2009 = vunpack.c.l.b16 %v1971
      %v2010 = vpack.c.b16 %v1993, %v1992
      %v2011 = vpack.c.b16 %v1995, %v1994
      %v2012 = vpack.c.b16 %v1997, %v1996
      %v2013 = vpack.c.b16 %v1999, %v1998
      %v2014 = vpack.c.b16 %v2001, %v2000
      %v2015 = vpack.c.b16 %v2003, %v2002
      %v2016 = vpack.c.b16 %v2005, %v2004
      %v2017 = vpack.c.b16 %v2007, %v2006
      %v2018 = vpack.c.b16 %v2009, %v2008
      %v2021 = vunpack.c.l.b16 %v1972
      %v2022 = vunpack.c.l.b16 %v1973
      %v2023 = vpack.c.b16 %v2022, %v2021
      %v2025 = vsel %vm501, %v2010, 0
      %v2028 = vsel %vm501, %v2011, 0
      %v2031 = vsel %vm501, %v2012, 0
      %v2034 = vsel %vm501, %v2013, 0
      %v2037 = vsel %vm501, %v2014, 0
      %v2040 = vsel %vm501, %v2015, 0
      %v2043 = vsel %vm501, %v2016, 0
      %v2046 = vsel %vm501, %v2017, 0
      %v2049 = vsel %vm501, %v2018, 0
      %v2052 = vsel %vm529, %v2023, 0
      %2054 = vmatprep.subr.bf16.mxu0 0
      %2055 = vmatpush1.bf16.msra.mxu0 %v2052
      %2056 = vmatprep.subr.bf16.mxu0 0
      %2057 = vmatpush1.bf16.msra.mxu0 0
      %2058 = vmatprep.subr.bf16.mxu0 0
      %2059 = vmatpush1.bf16.msra.mxu0 0
      %2060 = vmatprep.subr.bf16.mxu0 0
      %2061 = vmatpush1.bf16.msra.mxu0 0
      %2062 = vmatprep.subr.bf16.mxu0 0
      %2063 = vmatpush1.bf16.msra.mxu0 0
      %2064 = vmatprep.subr.bf16.mxu0 0
      %2065 = vmatpush1.bf16.msra.mxu0 0
      %2066 = vmatprep.subr.bf16.mxu0 0
      %2067 = vmatpush1.bf16.msra.mxu0 0
      %2068 = vmatprep.subr.bf16.mxu0 0
      %2069 = vmatpush1.bf16.msra.mxu0 0
      %2070 = vmatprep.subr.bf16.mxu0 0
      %2071 = vmatpush1.bf16.msra.mxu0 0
      %2072 = vmatprep.subr.bf16.mxu0 0
      %2073 = vmatpush1.bf16.msra.mxu0 0
      %2074 = vmatprep.subr.bf16.mxu0 0
      %2075 = vmatpush1.bf16.msra.mxu0 0
      %2076 = vmatprep.subr.bf16.mxu0 0
      %2077 = vmatpush1.bf16.msra.mxu0 0
      %2078 = vmatprep.subr.bf16.mxu0 0
      %2079 = vmatpush1.bf16.msra.mxu0 0
      %2080 = vmatprep.subr.bf16.mxu0 0
      %2081 = vmatpush1.bf16.msra.mxu0 0
      %2082 = vmatprep.subr.bf16.mxu0 0
      %2083 = vmatpush1.bf16.msra.mxu0 0
      %2084 = vmatprep.subr.bf16.mxu0 0
      %2085 = vmatpush1.bf16.msra.mxu0 0
      %2086 = vmatprep.mubr.bf16.mxu0 0
      %2087 = vmatmul.mubr.bf16.gmra.mrb[0].mxu0 %v2025
      %v2088 = vpop.f32.mrb[0].mxu0
      %v2089 = vadd.f32 0.0, %v2088
      %v2090 = vpop.f32.mrb[0].mxu0
      %v2091 = vpop.f32.mrb[0].mxu0
      %v2092 = vadd.f32 0.0, %v2091
      %v2093 = vpop.f32.mrb[0].mxu0
      %2094 = vmatprep.mubr.bf16.mxu0 0
      %2095 = vmatmul.mubr.bf16.gmra.mrb[0].mxu0 %v2028
      %v2096 = vpop.f32.mrb[0].mxu0
      %v2097 = vadd.f32 0.0, %v2096
      %v2098 = vpop.f32.mrb[0].mxu0
      %v2099 = vpop.f32.mrb[0].mxu0
      %v2100 = vadd.f32 0.0, %v2099
      %v2101 = vpop.f32.mrb[0].mxu0
      %2102 = vmatprep.mubr.bf16.mxu0 0
      %2103 = vmatmul.mubr.bf16.gmra.mrb[0].mxu0 %v2031
      %v2104 = vpop.f32.mrb[0].mxu0
      %v2105 = vadd.f32 0.0, %v2104
      %v2106 = vpop.f32.mrb[0].mxu0
      %v2107 = vpop.f32.mrb[0].mxu0
      %v2108 = vadd.f32 0.0, %v2107
      %v2109 = vpop.f32.mrb[0].mxu0
      %2110 = vmatprep.mubr.bf16.mxu0 0
      %2111 = vmatmul.mubr.bf16.gmra.mrb[0].mxu0 %v2034
      %v2112 = vpop.f32.mrb[0].mxu0
      %v2113 = vadd.f32 0.0, %v2112
      %v2114 = vpop.f32.mrb[0].mxu0
      %v2115 = vpop.f32.mrb[0].mxu0
      %v2116 = vadd.f32 0.0, %v2115
      %v2117 = vpop.f32.mrb[0].mxu0
      %2118 = vmatprep.mubr.bf16.mxu0 0
      %2119 = vmatmul.mubr.bf16.gmra.mrb[0].mxu0 %v2037
      %v2120 = vpop.f32.mrb[0].mxu0
      %v2121 = vadd.f32 0.0, %v2120
      %v2122 = vpop.f32.mrb[0].mxu0
      %v2123 = vpop.f32.mrb[0].mxu0
      %v2124 = vadd.f32 0.0, %v2123
      %v2125 = vpop.f32.mrb[0].mxu0
      %2126 = vmatprep.mubr.bf16.mxu0 0
      %2127 = vmatmul.mubr.bf16.gmra.mrb[0].mxu0 %v2040
      %v2128 = vpop.f32.mrb[0].mxu0
      %v2129 = vadd.f32 0.0, %v2128
      %v2130 = vpop.f32.mrb[0].mxu0
      %v2131 = vpop.f32.mrb[0].mxu0
      %v2132 = vadd.f32 0.0, %v2131
      %v2133 = vpop.f32.mrb[0].mxu0
      %2134 = vmatprep.mubr.bf16.mxu0 0
      %2135 = vmatmul.mubr.bf16.gmra.mrb[0].mxu0 %v2043
      %v2136 = vpop.f32.mrb[0].mxu0
      %v2137 = vadd.f32 0.0, %v2136
      %v2138 = vpop.f32.mrb[0].mxu0
      %v2139 = vpop.f32.mrb[0].mxu0
      %v2140 = vadd.f32 0.0, %v2139
      %v2141 = vpop.f32.mrb[0].mxu0
      %2142 = vmatprep.mubr.bf16.mxu0 0
      %2143 = vmatmul.mubr.bf16.gmra.mrb[0].mxu0 %v2046
      %v2144 = vpop.f32.mrb[0].mxu0
      %v2145 = vadd.f32 0.0, %v2144
      %v2146 = vpop.f32.mrb[0].mxu0
      %v2147 = vpop.f32.mrb[0].mxu0
      %v2148 = vadd.f32 0.0, %v2147
      %v2149 = vpop.f32.mrb[0].mxu0
      %2150 = vmatprep.mubr.bf16.mxu0 0
      %2151 = vmatmul.mubr.bf16.gmra.mrb[0].mxu0 %v2049
      %v2152 = vpop.f32.mrb[0].mxu0
      %v2153 = vadd.f32 0.0, %v2152
      %v2154 = vpop.f32.mrb[0].mxu0
      %v2155 = vpop.f32.mrb[0].mxu0
      %v2156 = vadd.f32 0.0, %v2155
      %v2157 = vpop.f32.mrb[0].mxu0
      %2158 = vdwg.mxu0
      %v2159 = vadd.f32 %v1936, %v2089
      %v2160 = vadd.f32 %v1937, %v2092
      %v2161 = vadd.f32 %v1938, %v2097
      %v2162 = vadd.f32 %v1939, %v2100
      %v2163 = vadd.f32 %v1940, %v2105
      %v2164 = vadd.f32 %v1941, %v2108
      %v2165 = vadd.f32 %v1942, %v2113
      %v2166 = vadd.f32 %v1943, %v2116
      %v2167 = vadd.f32 %v1944, %v2121
      %v2168 = vadd.f32 %v1945, %v2124
      %v2169 = vadd.f32 %v1946, %v2129
      %v2170 = vadd.f32 %v1947, %v2132
      %v2171 = vadd.f32 %v1948, %v2137
      %v2172 = vadd.f32 %v1949, %v2140
      %v2173 = vadd.f32 %v1950, %v2145
      %v2174 = vadd.f32 %v1951, %v2148
      %v2175 = vadd.f32 %v1952, %v2153
      %v2176 = vadd.f32 %v1953, %v2156
      %v2177 = vmax.f32 %v2159, 0.0
      %v2178 = vmax.f32 %v2160, 0.0
      %v2179 = vmax.f32 %v2161, 0.0
      %v2180 = vmax.f32 %v2162, 0.0
      %v2181 = vmax.f32 %v2163, 0.0
      %v2182 = vmax.f32 %v2164, 0.0
      %v2183 = vmax.f32 %v2165, 0.0
      %v2184 = vmax.f32 %v2166, 0.0
      %v2185 = vmax.f32 %v2167, 0.0
      %v2186 = vmax.f32 %v2168, 0.0
      %v2187 = vmax.f32 %v2169, 0.0
      %v2188 = vmax.f32 %v2170, 0.0
      %v2189 = vmax.f32 %v2171, 0.0
      %v2190 = vmax.f32 %v2172, 0.0
      %v2191 = vmax.f32 %v2173, 0.0
      %v2192 = vmax.f32 %v2174, 0.0
      %v2193 = vmax.f32 %v2175, 0.0
      %v2194 = vmax.f32 %v2176, 0.0
      %v2195 = vld [vmem:[%s5 + $0x90] sm:$0xff]
      %v2196 = vld [vmem:[%s5 + $0x98] sm:$0xff]
      %v2197 = vld [vmem:[%s5 + $0xa0] sm:$0xff]
      %v2198 = vld [vmem:[%s5 + $0xa8] sm:$0xff]
      %v2199 = vld [vmem:[%s5 + $0xb0] sm:$0xff]
      %v2200 = vld [vmem:[%s5 + $0xb8] sm:$0xff]
      %v2201 = vld [vmem:[%s5 + $0xc0] sm:$0xff]
      %v2202 = vld [vmem:[%s5 + $0xc8] sm:$0xff]
      %v2203 = vld [vmem:[%s5 + $0xd0] sm:$0xff]
      %v2204 = vld [vmem:[%s5 + $0xd8] sm:$0xff]
      %v2205 = vld [vmem:[%s5 + $0xe0] sm:$0xff]
      %v2206 = vld [vmem:[%s5 + $0xe8] sm:$0xff]
      %v2207 = vld [vmem:[%s5 + $0xf0] sm:$0xff]
      %v2208 = vld [vmem:[%s5 + $0xf8] sm:$0xff]
      %v2209 = vld [vmem:[%s5 + $0x100] sm:$0xff]
      %v2210 = vld [vmem:[%s5 + $0x108] sm:$0xff]
      %v2211 = vld [vmem:[%s5 + $0x110] sm:$0xff]
      %v2212 = vld [vmem:[%s5 + $0x118] sm:$0xff]
      %v2213 = vmul.f32 %v2177, %v2195
      %v2214 = vmul.f32 %v2178, %v2196
      %v2215 = vmul.f32 %v2179, %v2197
      %v2216 = vmul.f32 %v2180, %v2198
      %v2217 = vmul.f32 %v2181, %v2199
      %v2218 = vmul.f32 %v2182, %v2200
      %v2219 = vmul.f32 %v2183, %v2201
      %v2220 = vmul.f32 %v2184, %v2202
      %v2221 = vmul.f32 %v2185, %v2203
      %v2222 = vmul.f32 %v2186, %v2204
      %v2223 = vmul.f32 %v2187, %v2205
      %v2224 = vmul.f32 %v2188, %v2206
      %v2225 = vmul.f32 %v2189, %v2207
      %v2226 = vmul.f32 %v2190, %v2208
      %v2227 = vmul.f32 %v2191, %v2209
      %v2228 = vmul.f32 %v2192, %v2210
      %v2229 = vmul.f32 %v2193, %v2211
      %v2230 = vmul.f32 %v2194, %v2212
      %v2231 = vld [vmem:[#allocation4 + $0x90] sm:$0xff]
      %v2232 = vld [vmem:[#allocation4 + $0x98] sm:$0xff]
      %v2233 = vld [vmem:[#allocation4 + $0xa0] sm:$0xff]
      %v2234 = vld [vmem:[#allocation4 + $0xa8] sm:$0xff]
      %v2235 = vld [vmem:[#allocation4 + $0xb0] sm:$0xff]
      %v2236 = vld [vmem:[#allocation4 + $0xb8] sm:$0xff]
      %v2237 = vld [vmem:[#allocation4 + $0xc0] sm:$0xff]
      %v2238 = vld [vmem:[#allocation4 + $0xc8] sm:$0xff]
      %v2239 = vld [vmem:[#allocation4 + $0xd0] sm:$0xff]
      %v2240 = vld [vmem:[#allocation4 + $0xd8] sm:$0xff]
      %v2241 = vld [vmem:[#allocation4 + $0xe0] sm:$0xff]
      %v2242 = vld [vmem:[#allocation4 + $0xe8] sm:$0xff]
      %v2243 = vld [vmem:[#allocation4 + $0xf0] sm:$0xff]
      %v2244 = vld [vmem:[#allocation4 + $0xf8] sm:$0xff]
      %v2245 = vld [vmem:[#allocation4 + $0x100] sm:$0xff]
      %v2246 = vld [vmem:[#allocation4 + $0x108] sm:$0xff]
      %v2247 = vld [vmem:[#allocation4 + $0x110] sm:$0xff]
      %v2248 = vld [vmem:[#allocation4 + $0x118] sm:$0xff]
      %2267 = vrot.lane.b32.xlu0 %v2231, 16
      %v2268 = vpop.permute.xlu0 %2267
      %2269 = vrot.lane.b32.xlu0 %v2232, 16
      %v2270 = vpop.permute.xlu0 %2269
      %2271 = vrot.lane.b32.xlu0 %v2233, 16
      %v2272 = vpop.permute.xlu0 %2271
      %2273 = vrot.lane.b32.xlu0 %v2234, 16
      %v2274 = vpop.permute.xlu0 %2273
      %2275 = vrot.lane.b32.xlu0 %v2235, 16
      %v2276 = vpop.permute.xlu0 %2275
      %2277 = vrot.lane.b32.xlu0 %v2236, 16
      %v2278 = vpop.permute.xlu0 %2277
      %2279 = vrot.lane.b32.xlu0 %v2237, 16
      %v2280 = vpop.permute.xlu0 %2279
      %2281 = vrot.lane.b32.xlu0 %v2238, 16
      %v2282 = vpop.permute.xlu0 %2281
      %2283 = vrot.lane.b32.xlu0 %v2239, 16
      %v2284 = vpop.permute.xlu0 %2283
      %2285 = vrot.lane.b32.xlu0 %v2240, 16
      %v2286 = vpop.permute.xlu0 %2285
      %2287 = vrot.lane.b32.xlu0 %v2241, 16
      %v2288 = vpop.permute.xlu0 %2287
      %2289 = vrot.lane.b32.xlu0 %v2242, 16
      %v2290 = vpop.permute.xlu0 %2289
      %2291 = vrot.lane.b32.xlu0 %v2243, 16
      %v2292 = vpop.permute.xlu0 %2291
      %2293 = vrot.lane.b32.xlu0 %v2244, 16
      %v2294 = vpop.permute.xlu0 %2293
      %2295 = vrot.lane.b32.xlu0 %v2245, 16
      %v2296 = vpop.permute.xlu0 %2295
      %2297 = vrot.lane.b32.xlu0 %v2246, 16
      %v2298 = vpop.permute.xlu0 %2297
      %2299 = vrot.lane.b32.xlu0 %v2247, 16
      %v2300 = vpop.permute.xlu0 %2299
      %2301 = vrot.lane.b32.xlu0 %v2248, 16
      %v2302 = vpop.permute.xlu0 %2301
      %v2321 = vsel %vm1248, %v2213, %v2268
      %v2322 = vsel %vm1248, %v2214, %v2270
      %v2323 = vsel %vm1248, %v2215, %v2272
      %v2324 = vsel %vm1248, %v2216, %v2274
      %v2325 = vsel %vm1248, %v2217, %v2276
      %v2326 = vsel %vm1248, %v2218, %v2278
      %v2327 = vsel %vm1248, %v2219, %v2280
      %v2328 = vsel %vm1248, %v2220, %v2282
      %v2329 = vsel %vm1248, %v2221, %v2284
      %v2330 = vsel %vm1248, %v2222, %v2286
      %v2331 = vsel %vm1248, %v2223, %v2288
      %v2332 = vsel %vm1248, %v2224, %v2290
      %v2333 = vsel %vm1248, %v2225, %v2292
      %v2334 = vsel %vm1248, %v2226, %v2294
      %v2335 = vsel %vm1248, %v2227, %v2296
      %v2336 = vsel %vm1248, %v2228, %v2298
      %v2337 = vsel %vm1248, %v2229, %v2300
      %v2338 = vsel %vm1248, %v2230, %v2302
      %v2339 = vpack.c.bf16 %v2322, %v2321
      %v2340 = vpack.c.bf16 %v2324, %v2323
      %v2341 = vpack.c.bf16 %v2326, %v2325
      %v2342 = vpack.c.bf16 %v2328, %v2327
      %v2343 = vpack.c.bf16 %v2330, %v2329
      %v2344 = vpack.c.bf16 %v2332, %v2331
      %v2345 = vpack.c.bf16 %v2334, %v2333
      %v2346 = vpack.c.bf16 %v2336, %v2335
      %v2347 = vpack.c.bf16 %v2338, %v2337
      %v2349 = vshrl.u32 %v2339, 16
      %v2351 = vrot.slane %v2349, 7
      %v2352 = vshll.u32 %v2339, 16
      %v2354 = vor.u32 %v2351, %v2352
      %v2356 = vshrl.u32 %v2340, 16
      %v2358 = vrot.slane %v2356, 7
      %v2359 = vshll.u32 %v2340, 16
      %v2361 = vor.u32 %v2358, %v2359
      %v2362 = vsel %vm1276, %v2351, %v2361
      %v2364 = vshrl.u32 %v2341, 16
      %v2366 = vrot.slane %v2364, 7
      %v2367 = vshll.u32 %v2341, 16
      %v2369 = vor.u32 %v2366, %v2367
      %v2370 = vsel %vm1276, %v2358, %v2369
      %v2372 = vshrl.u32 %v2342, 16
      %v2374 = vrot.slane %v2372, 7
      %v2375 = vshll.u32 %v2342, 16
      %v2377 = vor.u32 %v2374, %v2375
      %v2378 = vsel %vm1276, %v2366, %v2377
      %v2380 = vshrl.u32 %v2343, 16
      %v2382 = vrot.slane %v2380, 7
      %v2383 = vshll.u32 %v2343, 16
      %v2385 = vor.u32 %v2382, %v2383
      %v2386 = vsel %vm1276, %v2374, %v2385
      %v2388 = vshrl.u32 %v2344, 16
      %v2390 = vrot.slane %v2388, 7
      %v2391 = vshll.u32 %v2344, 16
      %v2393 = vor.u32 %v2390, %v2391
      %v2394 = vsel %vm1276, %v2382, %v2393
      %v2396 = vshrl.u32 %v2345, 16
      %v2398 = vrot.slane %v2396, 7
      %v2399 = vshll.u32 %v2345, 16
      %v2401 = vor.u32 %v2398, %v2399
      %v2402 = vsel %vm1276, %v2390, %v2401
      %v2404 = vshrl.u32 %v2346, 16
      %v2406 = vrot.slane %v2404, 7
      %v2407 = vshll.u32 %v2346, 16
      %v2409 = vor.u32 %v2406, %v2407
      %v2410 = vsel %vm1276, %v2398, %v2409
      %v2412 = vshrl.u32 %v2347, 16
      %v2414 = vrot.slane %v2412, 7
      %v2415 = vshll.u32 %v2347, 16
      %v2417 = vor.u32 %v2414, %v2415
      %v2418 = vsel %vm1276, %v2406, %v2417
      %v2429 = vld [vmem:[#allocation2 + $0x58] sm:$0xff]
      %v2430 = vsel %vm1360, %v2354, %v2429
      %2431 = vst [vmem:[#allocation2 + $0x58] sm:$0xff] %v2430
      %2432 = vst.msk [vmem:[#allocation2 + $0x60] sm:$0xff] %vm1364, %v2362
      %2433 = vst.msk [vmem:[#allocation2 + $0x68] sm:$0xff] %vm1364, %v2370
      %2434 = vst.msk [vmem:[#allocation2 + $0x70] sm:$0xff] %vm1364, %v2378
      %2435 = vst.msk [vmem:[#allocation2 + $0x78] sm:$0xff] %vm1364, %v2386
      %2436 = vst.msk [vmem:[#allocation2 + $0x80] sm:$0xff] %vm1364, %v2394
      %2437 = vst.msk [vmem:[#allocation2 + $0x88] sm:$0xff] %vm1364, %v2402
      %2438 = vst.msk [vmem:[#allocation2 + $0x90] sm:$0xff] %vm1364, %v2410
      %2439 = vst.msk [vmem:[#allocation2 + $0x98] sm:$0xff] %vm1364, %v2418
      %v2440 = vld [vmem:[#allocation2 + $0xa0] sm:$0x1]
      %v2441 = vsel %vm1374, %v2414, %v2440
      %2442 = vst [vmem:[#allocation2 + $0xa0] sm:$0x1] %v2441
      %2452 = vrot.lane.b32.xlu0 %v2339, 32
      %v2453 = vpop.permute.xlu0 %2452
      %2454 = vrot.lane.b32.xlu0 %v2340, 32
      %v2455 = vpop.permute.xlu0 %2454
      %2456 = vrot.lane.b32.xlu0 %v2341, 32
      %v2457 = vpop.permute.xlu0 %2456
      %2458 = vrot.lane.b32.xlu0 %v2342, 32
      %v2459 = vpop.permute.xlu0 %2458
      %2460 = vrot.lane.b32.xlu0 %v2343, 32
      %v2461 = vpop.permute.xlu0 %2460
      %2462 = vrot.lane.b32.xlu0 %v2344, 32
      %v2463 = vpop.permute.xlu0 %2462
      %2464 = vrot.lane.b32.xlu0 %v2345, 32
      %v2465 = vpop.permute.xlu0 %2464
      %2466 = vrot.lane.b32.xlu0 %v2346, 32
      %v2467 = vpop.permute.xlu0 %2466
      %2468 = vrot.lane.b32.xlu0 %v2347, 32
      %v2469 = vpop.permute.xlu0 %2468
      %2479 = vst.msk [vmem:[#allocation2 + $0x58] sm:$0xff] %vm1414, %v2453
      %2480 = vst.msk [vmem:[#allocation2 + $0x60] sm:$0xff] %vm1414, %v2455
      %2481 = vst.msk [vmem:[#allocation2 + $0x68] sm:$0xff] %vm1414, %v2457
      %2482 = vst.msk [vmem:[#allocation2 + $0x70] sm:$0xff] %vm1414, %v2459
      %2483 = vst.msk [vmem:[#allocation2 + $0x78] sm:$0xff] %vm1414, %v2461
      %2484 = vst.msk [vmem:[#allocation2 + $0x80] sm:$0xff] %vm1414, %v2463
      %2485 = vst.msk [vmem:[#allocation2 + $0x88] sm:$0xff] %vm1414, %v2465
      %2486 = vst.msk [vmem:[#allocation2 + $0x90] sm:$0xff] %vm1414, %v2467
      %2487 = vst.msk [vmem:[#allocation2 + $0x98] sm:$0xff] %vm1414, %v2469
      %v2488 = vrot.slane %v2352, 1
      %v2489 = vor.u32 %v2349, %v2488
      %v2490 = vrot.slane %v2359, 1
      %v2491 = vsel %vm1424, %v2489, %v2490
      %v2492 = vor.u32 %v2356, %v2490
      %v2493 = vrot.slane %v2367, 1
      %v2494 = vsel %vm1424, %v2492, %v2493
      %v2495 = vor.u32 %v2364, %v2493
      %v2496 = vrot.slane %v2375, 1
      %v2497 = vsel %vm1424, %v2495, %v2496
      %v2498 = vor.u32 %v2372, %v2496
      %v2499 = vrot.slane %v2383, 1
      %v2500 = vsel %vm1424, %v2498, %v2499
      %v2501 = vor.u32 %v2380, %v2499
      %v2502 = vrot.slane %v2391, 1
      %v2503 = vsel %vm1424, %v2501, %v2502
      %v2504 = vor.u32 %v2388, %v2502
      %v2505 = vrot.slane %v2399, 1
      %v2506 = vsel %vm1424, %v2504, %v2505
      %v2507 = vor.u32 %v2396, %v2505
      %v2508 = vrot.slane %v2407, 1
      %v2509 = vsel %vm1424, %v2507, %v2508
      %v2510 = vor.u32 %v2404, %v2508
      %v2511 = vrot.slane %v2415, 1
      %v2512 = vsel %vm1424, %v2510, %v2511
      %v2513 = vor.u32 %v2412, %v2511
      %2514 = vrot.lane.b32.xlu0 %v2488, 64
      %v2515 = vpop.permute.xlu0 %2514
      %2516 = vrot.lane.b32.xlu0 %v2491, 64
      %v2517 = vpop.permute.xlu0 %2516
      %2518 = vrot.lane.b32.xlu0 %v2494, 64
      %v2519 = vpop.permute.xlu0 %2518
      %2520 = vrot.lane.b32.xlu0 %v2497, 64
      %v2521 = vpop.permute.xlu0 %2520
      %2522 = vrot.lane.b32.xlu0 %v2500, 64
      %v2523 = vpop.permute.xlu0 %2522
      %2524 = vrot.lane.b32.xlu0 %v2503, 64
      %v2525 = vpop.permute.xlu0 %2524
      %2526 = vrot.lane.b32.xlu0 %v2506, 64
      %v2527 = vpop.permute.xlu0 %2526
      %2528 = vrot.lane.b32.xlu0 %v2509, 64
      %v2529 = vpop.permute.xlu0 %2528
      %2530 = vrot.lane.b32.xlu0 %v2512, 64
      %v2531 = vpop.permute.xlu0 %2530
      %2532 = vrot.lane.b32.xlu0 %v2513, 64
      %v2533 = vpop.permute.xlu0 %2532
      %v2544 = vld [vmem:[#allocation2 + $0x50] sm:$0x80]
      %v2545 = vsel %vm1483, %v2515, %v2544
      %2546 = vst [vmem:[#allocation2 + $0x50] sm:$0x80] %v2545
      %2547 = vst.msk [vmem:[#allocation2 + $0x58] sm:$0xff] %vm1487, %v2517
      %2548 = vst.msk [vmem:[#allocation2 + $0x60] sm:$0xff] %vm1487, %v2519
      %2549 = vst.msk [vmem:[#allocation2 + $0x68] sm:$0xff] %vm1487, %v2521
      %2550 = vst.msk [vmem:[#allocation2 + $0x70] sm:$0xff] %vm1487, %v2523
      %2551 = vst.msk [vmem:[#allocation2 + $0x78] sm:$0xff] %vm1487, %v2525
      %2552 = vst.msk [vmem:[#allocation2 + $0x80] sm:$0xff] %vm1487, %v2527
      %2553 = vst.msk [vmem:[#allocation2 + $0x88] sm:$0xff] %vm1487, %v2529
      %2554 = vst.msk [vmem:[#allocation2 + $0x90] sm:$0xff] %vm1487, %v2531
      %v2555 = vld [vmem:[#allocation2 + $0x98] sm:$0xff]
      %v2556 = vsel %vm1497, %v2533, %v2555
      %2557 = vst [vmem:[#allocation2 + $0x98] sm:$0xff] %v2556
      %v2558 = vld [vmem:[%s2] sm:$0x1]
      %v2560 = vlaneseq
      %v2561 = vshrl.u32 %v2560, 7
      %v2562 = vsub.s32 0, %v2561
      %v2563 = vrot.slane %v2558, %v2562
      %v2565 = vld [vmem:[%s272 + $0x90] sm:$0xf]
      %v2566 = vld [vmem:[%s272 + $0x94] sm:$0xf]
      %v2567 = vld [vmem:[%s272 + $0x98] sm:$0xf]
      %v2568 = vld [vmem:[%s272 + $0x9c] sm:$0xf]
      %v2569 = vld [vmem:[%s272 + $0xa0] sm:$0xf]
      %v2570 = vld [vmem:[%s272 + $0xa4] sm:$0xf]
      %v2571 = vld [vmem:[%s272 + $0xa8] sm:$0xf]
      %v2572 = vld [vmem:[%s272 + $0xac] sm:$0xf]
      %v2573 = vld [vmem:[%s272 + $0xb0] sm:$0xf]
      %v2574 = vld [vmem:[%s272 + $0xb4] sm:$0xf]
      %v2575 = vld [vmem:[%s272 + $0xb8] sm:$0xf]
      %v2576 = vld [vmem:[%s272 + $0xbc] sm:$0xf]
      %v2577 = vld [vmem:[%s272 + $0xc0] sm:$0xf]
      %v2578 = vld [vmem:[%s272 + $0xc4] sm:$0xf]
      %v2579 = vld [vmem:[%s272 + $0xc8] sm:$0xf]
      %v2580 = vld [vmem:[%s272 + $0xcc] sm:$0xf]
      %v2581 = vld [vmem:[%s272 + $0xd0] sm:$0xf]
      %v2582 = vld [vmem:[%s272 + $0xd4] sm:$0xf]
      %v2583 = vld [vmem:[%s1] sm:$0xf]
      %v2584 = vld [vmem:[%s1 + $0x4] sm:$0x3]
      %v2603 = vunpack.c.l.b16 %v2565
      %v2604 = vunpack.c.l.b16 %v2566
      %v2605 = vunpack.c.l.b16 %v2567
      %v2606 = vunpack.c.l.b16 %v2568
      %v2607 = vunpack.c.l.b16 %v2569
      %v2608 = vunpack.c.l.b16 %v2570
      %v2609 = vunpack.c.l.b16 %v2571
      %v2610 = vunpack.c.l.b16 %v2572
      %v2611 = vunpack.c.l.b16 %v2573
      %v2612 = vunpack.c.l.b16 %v2574
      %v2613 = vunpack.c.l.b16 %v2575
      %v2614 = vunpack.c.l.b16 %v2576
      %v2615 = vunpack.c.l.b16 %v2577
      %v2616 = vunpack.c.l.b16 %v2578
      %v2617 = vunpack.c.l.b16 %v2579
      %v2618 = vunpack.c.l.b16 %v2580
      %v2619 = vunpack.c.l.b16 %v2581
      %v2620 = vunpack.c.l.b16 %v2582
      %v2621 = vpack.c.b16 %v2604, %v2603
      %v2622 = vpack.c.b16 %v2606, %v2605
      %v2623 = vpack.c.b16 %v2608, %v2607
      %v2624 = vpack.c.b16 %v2610, %v2609
      %v2625 = vpack.c.b16 %v2612, %v2611
      %v2626 = vpack.c.b16 %v2614, %v2613
      %v2627 = vpack.c.b16 %v2616, %v2615
      %v2628 = vpack.c.b16 %v2618, %v2617
      %v2629 = vpack.c.b16 %v2620, %v2619
      %v2632 = vunpack.c.l.b16 %v2583
      %v2633 = vunpack.c.l.b16 %v2584
      %v2634 = vpack.c.b16 %v2633, %v2632
      %v2636 = vsel %vm501, %v2621, 0
      %v2639 = vsel %vm501, %v2622, 0
      %v2642 = vsel %vm501, %v2623, 0
      %v2645 = vsel %vm501, %v2624, 0
      %v2648 = vsel %vm501, %v2625, 0
      %v2651 = vsel %vm501, %v2626, 0
      %v2654 = vsel %vm501, %v2627, 0
      %v2657 = vsel %vm501, %v2628, 0
      %v2660 = vsel %vm501, %v2629, 0
      %v2663 = vsel %vm529, %v2634, 0
      %2665 = vmatprep.subr.bf16.mxu0 0
      %2666 = vmatpush1.bf16.msra.mxu0 %v2663
      %2667 = vmatprep.subr.bf16.mxu0 0
      %2668 = vmatpush1.bf16.msra.mxu0 0
      %2669 = vmatprep.subr.bf16.mxu0 0
      %2670 = vmatpush1.bf16.msra.mxu0 0
      %2671 = vmatprep.subr.bf16.mxu0 0
      %2672 = vmatpush1.bf16.msra.mxu0 0
      %2673 = vmatprep.subr.bf16.mxu0 0
      %2674 = vmatpush1.bf16.msra.mxu0 0
      %2675 = vmatprep.subr.bf16.mxu0 0
      %2676 = vmatpush1.bf16.msra.mxu0 0
      %2677 = vmatprep.subr.bf16.mxu0 0
      %2678 = vmatpush1.bf16.msra.mxu0 0
      %2679 = vmatprep.subr.bf16.mxu0 0
      %2680 = vmatpush1.bf16.msra.mxu0 0
      %2681 = vmatprep.subr.bf16.mxu0 0
      %2682 = vmatpush1.bf16.msra.mxu0 0
      %2683 = vmatprep.subr.bf16.mxu0 0
      %2684 = vmatpush1.bf16.msra.mxu0 0
      %2685 = vmatprep.subr.bf16.mxu0 0
      %2686 = vmatpush1.bf16.msra.mxu0 0
      %2687 = vmatprep.subr.bf16.mxu0 0
      %2688 = vmatpush1.bf16.msra.mxu0 0
      %2689 = vmatprep.subr.bf16.mxu0 0
      %2690 = vmatpush1.bf16.msra.mxu0 0
      %2691 = vmatprep.subr.bf16.mxu0 0
      %2692 = vmatpush1.bf16.msra.mxu0 0
      %2693 = vmatprep.subr.bf16.mxu0 0
      %2694 = vmatpush1.bf16.msra.mxu0 0
      %2695 = vmatprep.subr.bf16.mxu0 0
      %2696 = vmatpush1.bf16.msra.mxu0 0
      %2697 = vmatprep.mubr.bf16.mxu0 0
      %2698 = vmatmul.mubr.bf16.gmra.mrb[0].mxu0 %v2636
      %v2699 = vpop.f32.mrb[0].mxu0
      %v2700 = vadd.f32 0.0, %v2699
      %v2701 = vpop.f32.mrb[0].mxu0
      %v2702 = vpop.f32.mrb[0].mxu0
      %v2703 = vadd.f32 0.0, %v2702
      %v2704 = vpop.f32.mrb[0].mxu0
      %2705 = vmatprep.mubr.bf16.mxu0 0
      %2706 = vmatmul.mubr.bf16.gmra.mrb[0].mxu0 %v2639
      %v2707 = vpop.f32.mrb[0].mxu0
      %v2708 = vadd.f32 0.0, %v2707
      %v2709 = vpop.f32.mrb[0].mxu0
      %v2710 = vpop.f32.mrb[0].mxu0
      %v2711 = vadd.f32 0.0, %v2710
      %v2712 = vpop.f32.mrb[0].mxu0
      %2713 = vmatprep.mubr.bf16.mxu0 0
      %2714 = vmatmul.mubr.bf16.gmra.mrb[0].mxu0 %v2642
      %v2715 = vpop.f32.mrb[0].mxu0
      %v2716 = vadd.f32 0.0, %v2715
      %v2717 = vpop.f32.mrb[0].mxu0
      %v2718 = vpop.f32.mrb[0].mxu0
      %v2719 = vadd.f32 0.0, %v2718
      %v2720 = vpop.f32.mrb[0].mxu0
      %2721 = vmatprep.mubr.bf16.mxu0 0
      %2722 = vmatmul.mubr.bf16.gmra.mrb[0].mxu0 %v2645
      %v2723 = vpop.f32.mrb[0].mxu0
      %v2724 = vadd.f32 0.0, %v2723
      %v2725 = vpop.f32.mrb[0].mxu0
      %v2726 = vpop.f32.mrb[0].mxu0
      %v2727 = vadd.f32 0.0, %v2726
      %v2728 = vpop.f32.mrb[0].mxu0
      %2729 = vmatprep.mubr.bf16.mxu0 0
      %2730 = vmatmul.mubr.bf16.gmra.mrb[0].mxu0 %v2648
      %v2731 = vpop.f32.mrb[0].mxu0
      %v2732 = vadd.f32 0.0, %v2731
      %v2733 = vpop.f32.mrb[0].mxu0
      %v2734 = vpop.f32.mrb[0].mxu0
      %v2735 = vadd.f32 0.0, %v2734
      %v2736 = vpop.f32.mrb[0].mxu0
      %2737 = vmatprep.mubr.bf16.mxu0 0
      %2738 = vmatmul.mubr.bf16.gmra.mrb[0].mxu0 %v2651
      %v2739 = vpop.f32.mrb[0].mxu0
      %v2740 = vadd.f32 0.0, %v2739
      %v2741 = vpop.f32.mrb[0].mxu0
      %v2742 = vpop.f32.mrb[0].mxu0
      %v2743 = vadd.f32 0.0, %v2742
      %v2744 = vpop.f32.mrb[0].mxu0
      %2745 = vmatprep.mubr.bf16.mxu0 0
      %2746 = vmatmul.mubr.bf16.gmra.mrb[0].mxu0 %v2654
      %v2747 = vpop.f32.mrb[0].mxu0
      %v2748 = vadd.f32 0.0, %v2747
      %v2749 = vpop.f32.mrb[0].mxu0
      %v2750 = vpop.f32.mrb[0].mxu0
      %v2751 = vadd.f32 0.0, %v2750
      %v2752 = vpop.f32.mrb[0].mxu0
      %2753 = vmatprep.mubr.bf16.mxu0 0
      %2754 = vmatmul.mubr.bf16.gmra.mrb[0].mxu0 %v2657
      %v2755 = vpop.f32.mrb[0].mxu0
      %v2756 = vadd.f32 0.0, %v2755
      %v2757 = vpop.f32.mrb[0].mxu0
      %v2758 = vpop.f32.mrb[0].mxu0
      %v2759 = vadd.f32 0.0, %v2758
      %v2760 = vpop.f32.mrb[0].mxu0
      %2761 = vmatprep.mubr.bf16.mxu0 0
      %2762 = vmatmul.mubr.bf16.gmra.mrb[0].mxu0 %v2660
      %v2763 = vpop.f32.mrb[0].mxu0
      %v2764 = vadd.f32 0.0, %v2763
      %v2765 = vpop.f32.mrb[0].mxu0
      %v2766 = vpop.f32.mrb[0].mxu0
      %v2767 = vadd.f32 0.0, %v2766
      %v2768 = vpop.f32.mrb[0].mxu0
      %2769 = vdwg.mxu0
      %v2770 = vadd.f32 %v2563, %v2700
      %v2771 = vadd.f32 %v2563, %v2703
      %v2772 = vadd.f32 %v2563, %v2708
      %v2773 = vadd.f32 %v2563, %v2711
      %v2774 = vadd.f32 %v2563, %v2716
      %v2775 = vadd.f32 %v2563, %v2719
      %v2776 = vadd.f32 %v2563, %v2724
      %v2777 = vadd.f32 %v2563, %v2727
      %v2778 = vadd.f32 %v2563, %v2732
      %v2779 = vadd.f32 %v2563, %v2735
      %v2780 = vadd.f32 %v2563, %v2740
      %v2781 = vadd.f32 %v2563, %v2743
      %v2782 = vadd.f32 %v2563, %v2748
      %v2783 = vadd.f32 %v2563, %v2751
      %v2784 = vadd.f32 %v2563, %v2756
      %v2785 = vadd.f32 %v2563, %v2759
      %v2786 = vadd.f32 %v2563, %v2764
      %v2787 = vadd.f32 %v2563, %v2767
      %v2788 = vld [vmem:[%s272 + $0x9c] sm:$0xf]
      %v2789 = vld [vmem:[%s272 + $0xa0] sm:$0xf]
      %v2790 = vld [vmem:[%s272 + $0xa4] sm:$0xf]
      %v2791 = vld [vmem:[%s272 + $0xa8] sm:$0xf]
      %v2792 = vld [vmem:[%s272 + $0xac] sm:$0xf]
      %v2793 = vld [vmem:[%s272 + $0xb0] sm:$0xf]
      %v2794 = vld [vmem:[%s272 + $0xb4] sm:$0xf]
      %v2795 = vld [vmem:[%s272 + $0xb8] sm:$0xf]
      %v2796 = vld [vmem:[%s272 + $0xbc] sm:$0xf]
      %v2797 = vld [vmem:[%s272 + $0xc0] sm:$0xf]
      %v2798 = vld [vmem:[%s272 + $0xc4] sm:$0xf]
      %v2799 = vld [vmem:[%s272 + $0xc8] sm:$0xf]
      %v2800 = vld [vmem:[%s272 + $0xcc] sm:$0xf]
      %v2801 = vld [vmem:[%s272 + $0xd0] sm:$0xf]
      %v2802 = vld [vmem:[%s272 + $0xd4] sm:$0xf]
      %v2803 = vld [vmem:[%s272 + $0xd8] sm:$0xf]
      %v2804 = vld [vmem:[%s272 + $0xdc] sm:$0xf]
      %v2805 = vld [vmem:[%s272 + $0xe0] sm:$0xf]
      %v2806 = vld [vmem:[%s674] sm:$0xf]
      %v2807 = vld [vmem:[%s674 + $0x4] sm:$0x3]
      %v2826 = vunpack.c.l.b16 %v2788
      %v2827 = vunpack.c.l.b16 %v2789
      %v2828 = vunpack.c.l.b16 %v2790
      %v2829 = vunpack.c.l.b16 %v2791
      %v2830 = vunpack.c.l.b16 %v2792
      %v2831 = vunpack.c.l.b16 %v2793
      %v2832 = vunpack.c.l.b16 %v2794
      %v2833 = vunpack.c.l.b16 %v2795
      %v2834 = vunpack.c.l.b16 %v2796
      %v2835 = vunpack.c.l.b16 %v2797
      %v2836 = vunpack.c.l.b16 %v2798
      %v2837 = vunpack.c.l.b16 %v2799
      %v2838 = vunpack.c.l.b16 %v2800
      %v2839 = vunpack.c.l.b16 %v2801
      %v2840 = vunpack.c.l.b16 %v2802
      %v2841 = vunpack.c.l.b16 %v2803
      %v2842 = vunpack.c.l.b16 %v2804
      %v2843 = vunpack.c.l.b16 %v2805
      %v2844 = vpack.c.b16 %v2827, %v2826
      %v2845 = vpack.c.b16 %v2829, %v2828
      %v2846 = vpack.c.b16 %v2831, %v2830
      %v2847 = vpack.c.b16 %v2833, %v2832
      %v2848 = vpack.c.b16 %v2835, %v2834
      %v2849 = vpack.c.b16 %v2837, %v2836
      %v2850 = vpack.c.b16 %v2839, %v2838
      %v2851 = vpack.c.b16 %v2841, %v2840
      %v2852 = vpack.c.b16 %v2843, %v2842
      %v2855 = vunpack.c.l.b16 %v2806
      %v2856 = vunpack.c.l.b16 %v2807
      %v2857 = vpack.c.b16 %v2856, %v2855
      %v2859 = vsel %vm501, %v2844, 0
      %v2862 = vsel %vm501, %v2845, 0
      %v2865 = vsel %vm501, %v2846, 0
      %v2868 = vsel %vm501, %v2847, 0
      %v2871 = vsel %vm501, %v2848, 0
      %v2874 = vsel %vm501, %v2849, 0
      %v2877 = vsel %vm501, %v2850, 0
      %v2880 = vsel %vm501, %v2851, 0
      %v2883 = vsel %vm501, %v2852, 0
      %v2886 = vsel %vm529, %v2857, 0
      %2888 = vmatprep.subr.bf16.mxu0 0
      %2889 = vmatpush1.bf16.msra.mxu0 %v2886
      %2890 = vmatprep.subr.bf16.mxu0 0
      %2891 = vmatpush1.bf16.msra.mxu0 0
      %2892 = vmatprep.subr.bf16.mxu0 0
      %2893 = vmatpush1.bf16.msra.mxu0 0
      %2894 = vmatprep.subr.bf16.mxu0 0
      %2895 = vmatpush1.bf16.msra.mxu0 0
      %2896 = vmatprep.subr.bf16.mxu0 0
      %2897 = vmatpush1.bf16.msra.mxu0 0
      %2898 = vmatprep.subr.bf16.mxu0 0
      %2899 = vmatpush1.bf16.msra.mxu0 0
      %2900 = vmatprep.subr.bf16.mxu0 0
      %2901 = vmatpush1.bf16.msra.mxu0 0
      %2902 = vmatprep.subr.bf16.mxu0 0
      %2903 = vmatpush1.bf16.msra.mxu0 0
      %2904 = vmatprep.subr.bf16.mxu0 0
      %2905 = vmatpush1.bf16.msra.mxu0 0
      %2906 = vmatprep.subr.bf16.mxu0 0
      %2907 = vmatpush1.bf16.msra.mxu0 0
      %2908 = vmatprep.subr.bf16.mxu0 0
      %2909 = vmatpush1.bf16.msra.mxu0 0
      %2910 = vmatprep.subr.bf16.mxu0 0
      %2911 = vmatpush1.bf16.msra.mxu0 0
      %2912 = vmatprep.subr.bf16.mxu0 0
      %2913 = vmatpush1.bf16.msra.mxu0 0
      %2914 = vmatprep.subr.bf16.mxu0 0
      %2915 = vmatpush1.bf16.msra.mxu0 0
      %2916 = vmatprep.subr.bf16.mxu0 0
      %2917 = vmatpush1.bf16.msra.mxu0 0
      %2918 = vmatprep.subr.bf16.mxu0 0
      %2919 = vmatpush1.bf16.msra.mxu0 0
      %2920 = vmatprep.mubr.bf16.mxu0 0
      %2921 = vmatmul.mubr.bf16.gmra.mrb[0].mxu0 %v2859
      %v2922 = vpop.f32.mrb[0].mxu0
      %v2923 = vadd.f32 0.0, %v2922
      %v2924 = vpop.f32.mrb[0].mxu0
      %v2925 = vpop.f32.mrb[0].mxu0
      %v2926 = vadd.f32 0.0, %v2925
      %v2927 = vpop.f32.mrb[0].mxu0
      %2928 = vmatprep.mubr.bf16.mxu0 0
      %2929 = vmatmul.mubr.bf16.gmra.mrb[0].mxu0 %v2862
      %v2930 = vpop.f32.mrb[0].mxu0
      %v2931 = vadd.f32 0.0, %v2930
      %v2932 = vpop.f32.mrb[0].mxu0
      %v2933 = vpop.f32.mrb[0].mxu0
      %v2934 = vadd.f32 0.0, %v2933
      %v2935 = vpop.f32.mrb[0].mxu0
      %2936 = vmatprep.mubr.bf16.mxu0 0
      %2937 = vmatmul.mubr.bf16.gmra.mrb[0].mxu0 %v2865
      %v2938 = vpop.f32.mrb[0].mxu0
      %v2939 = vadd.f32 0.0, %v2938
      %v2940 = vpop.f32.mrb[0].mxu0
      %v2941 = vpop.f32.mrb[0].mxu0
      %v2942 = vadd.f32 0.0, %v2941
      %v2943 = vpop.f32.mrb[0].mxu0
      %2944 = vmatprep.mubr.bf16.mxu0 0
      %2945 = vmatmul.mubr.bf16.gmra.mrb[0].mxu0 %v2868
      %v2946 = vpop.f32.mrb[0].mxu0
      %v2947 = vadd.f32 0.0, %v2946
      %v2948 = vpop.f32.mrb[0].mxu0
      %v2949 = vpop.f32.mrb[0].mxu0
      %v2950 = vadd.f32 0.0, %v2949
      %v2951 = vpop.f32.mrb[0].mxu0
      %2952 = vmatprep.mubr.bf16.mxu0 0
      %2953 = vmatmul.mubr.bf16.gmra.mrb[0].mxu0 %v2871
      %v2954 = vpop.f32.mrb[0].mxu0
      %v2955 = vadd.f32 0.0, %v2954
      %v2956 = vpop.f32.mrb[0].mxu0
      %v2957 = vpop.f32.mrb[0].mxu0
      %v2958 = vadd.f32 0.0, %v2957
      %v2959 = vpop.f32.mrb[0].mxu0
      %2960 = vmatprep.mubr.bf16.mxu0 0
      %2961 = vmatmul.mubr.bf16.gmra.mrb[0].mxu0 %v2874
      %v2962 = vpop.f32.mrb[0].mxu0
      %v2963 = vadd.f32 0.0, %v2962
      %v2964 = vpop.f32.mrb[0].mxu0
      %v2965 = vpop.f32.mrb[0].mxu0
      %v2966 = vadd.f32 0.0, %v2965
      %v2967 = vpop.f32.mrb[0].mxu0
      %2968 = vmatprep.mubr.bf16.mxu0 0
      %2969 = vmatmul.mubr.bf16.gmra.mrb[0].mxu0 %v2877
      %v2970 = vpop.f32.mrb[0].mxu0
      %v2971 = vadd.f32 0.0, %v2970
      %v2972 = vpop.f32.mrb[0].mxu0
      %v2973 = vpop.f32.mrb[0].mxu0
      %v2974 = vadd.f32 0.0, %v2973
      %v2975 = vpop.f32.mrb[0].mxu0
      %2976 = vmatprep.mubr.bf16.mxu0 0
      %2977 = vmatmul.mubr.bf16.gmra.mrb[0].mxu0 %v2880
      %v2978 = vpop.f32.mrb[0].mxu0
      %v2979 = vadd.f32 0.0, %v2978
      %v2980 = vpop.f32.mrb[0].mxu0
      %v2981 = vpop.f32.mrb[0].mxu0
      %v2982 = vadd.f32 0.0, %v2981
      %v2983 = vpop.f32.mrb[0].mxu0
      %2984 = vmatprep.mubr.bf16.mxu0 0
      %2985 = vmatmul.mubr.bf16.gmra.mrb[0].mxu0 %v2883
      %v2986 = vpop.f32.mrb[0].mxu0
      %v2987 = vadd.f32 0.0, %v2986
      %v2988 = vpop.f32.mrb[0].mxu0
      %v2989 = vpop.f32.mrb[0].mxu0
      %v2990 = vadd.f32 0.0, %v2989
      %v2991 = vpop.f32.mrb[0].mxu0
      %2992 = vdwg.mxu0
      %v2993 = vadd.f32 %v2770, %v2923
      %v2994 = vadd.f32 %v2771, %v2926
      %v2995 = vadd.f32 %v2772, %v2931
      %v2996 = vadd.f32 %v2773, %v2934
      %v2997 = vadd.f32 %v2774, %v2939
      %v2998 = vadd.f32 %v2775, %v2942
      %v2999 = vadd.f32 %v2776, %v2947
      %v3000 = vadd.f32 %v2777, %v2950
      %v3001 = vadd.f32 %v2778, %v2955
      %v3002 = vadd.f32 %v2779, %v2958
      %v3003 = vadd.f32 %v2780, %v2963
      %v3004 = vadd.f32 %v2781, %v2966
      %v3005 = vadd.f32 %v2782, %v2971
      %v3006 = vadd.f32 %v2783, %v2974
      %v3007 = vadd.f32 %v2784, %v2979
      %v3008 = vadd.f32 %v2785, %v2982
      %v3009 = vadd.f32 %v2786, %v2987
      %v3010 = vadd.f32 %v2787, %v2990
      %v3011 = vld [vmem:[%s272 + $0xa8] sm:$0xf]
      %v3012 = vld [vmem:[%s272 + $0xac] sm:$0xf]
      %v3013 = vld [vmem:[%s272 + $0xb0] sm:$0xf]
      %v3014 = vld [vmem:[%s272 + $0xb4] sm:$0xf]
      %v3015 = vld [vmem:[%s272 + $0xb8] sm:$0xf]
      %v3016 = vld [vmem:[%s272 + $0xbc] sm:$0xf]
      %v3017 = vld [vmem:[%s272 + $0xc0] sm:$0xf]
      %v3018 = vld [vmem:[%s272 + $0xc4] sm:$0xf]
      %v3019 = vld [vmem:[%s272 + $0xc8] sm:$0xf]
      %v3020 = vld [vmem:[%s272 + $0xcc] sm:$0xf]
      %v3021 = vld [vmem:[%s272 + $0xd0] sm:$0xf]
      %v3022 = vld [vmem:[%s272 + $0xd4] sm:$0xf]
      %v3023 = vld [vmem:[%s272 + $0xd8] sm:$0xf]
      %v3024 = vld [vmem:[%s272 + $0xdc] sm:$0xf]
      %v3025 = vld [vmem:[%s272 + $0xe0] sm:$0xf]
      %v3026 = vld [vmem:[%s272 + $0xe4] sm:$0xf]
      %v3027 = vld [vmem:[%s272 + $0xe8] sm:$0xf]
      %v3028 = vld [vmem:[%s272 + $0xec] sm:$0xf]
      %v3029 = vld [vmem:[%s898] sm:$0xf]
      %v3030 = vld [vmem:[%s898 + $0x4] sm:$0x3]
      %v3049 = vunpack.c.l.b16 %v3011
      %v3050 = vunpack.c.l.b16 %v3012
      %v3051 = vunpack.c.l.b16 %v3013
      %v3052 = vunpack.c.l.b16 %v3014
      %v3053 = vunpack.c.l.b16 %v3015
      %v3054 = vunpack.c.l.b16 %v3016
      %v3055 = vunpack.c.l.b16 %v3017
      %v3056 = vunpack.c.l.b16 %v3018
      %v3057 = vunpack.c.l.b16 %v3019
      %v3058 = vunpack.c.l.b16 %v3020
      %v3059 = vunpack.c.l.b16 %v3021
      %v3060 = vunpack.c.l.b16 %v3022
      %v3061 = vunpack.c.l.b16 %v3023
      %v3062 = vunpack.c.l.b16 %v3024
      %v3063 = vunpack.c.l.b16 %v3025
      %v3064 = vunpack.c.l.b16 %v3026
      %v3065 = vunpack.c.l.b16 %v3027
      %v3066 = vunpack.c.l.b16 %v3028
      %v3067 = vpack.c.b16 %v3050, %v3049
      %v3068 = vpack.c.b16 %v3052, %v3051
      %v3069 = vpack.c.b16 %v3054, %v3053
      %v3070 = vpack.c.b16 %v3056, %v3055
      %v3071 = vpack.c.b16 %v3058, %v3057
      %v3072 = vpack.c.b16 %v3060, %v3059
      %v3073 = vpack.c.b16 %v3062, %v3061
      %v3074 = vpack.c.b16 %v3064, %v3063
      %v3075 = vpack.c.b16 %v3066, %v3065
      %v3078 = vunpack.c.l.b16 %v3029
      %v3079 = vunpack.c.l.b16 %v3030
      %v3080 = vpack.c.b16 %v3079, %v3078
      %v3082 = vsel %vm501, %v3067, 0
      %v3085 = vsel %vm501, %v3068, 0
      %v3088 = vsel %vm501, %v3069, 0
      %v3091 = vsel %vm501, %v3070, 0
      %v3094 = vsel %vm501, %v3071, 0
      %v3097 = vsel %vm501, %v3072, 0
      %v3100 = vsel %vm501, %v3073, 0
      %v3103 = vsel %vm501, %v3074, 0
      %v3106 = vsel %vm501, %v3075, 0
      %v3109 = vsel %vm529, %v3080, 0
      %3111 = vmatprep.subr.bf16.mxu0 0
      %3112 = vmatpush1.bf16.msra.mxu0 %v3109
      %3113 = vmatprep.subr.bf16.mxu0 0
      %3114 = vmatpush1.bf16.msra.mxu0 0
      %3115 = vmatprep.subr.bf16.mxu0 0
      %3116 = vmatpush1.bf16.msra.mxu0 0
      %3117 = vmatprep.subr.bf16.mxu0 0
      %3118 = vmatpush1.bf16.msra.mxu0 0
      %3119 = vmatprep.subr.bf16.mxu0 0
      %3120 = vmatpush1.bf16.msra.mxu0 0
      %3121 = vmatprep.subr.bf16.mxu0 0
      %3122 = vmatpush1.bf16.msra.mxu0 0
      %3123 = vmatprep.subr.bf16.mxu0 0
      %3124 = vmatpush1.bf16.msra.mxu0 0
      %3125 = vmatprep.subr.bf16.mxu0 0
      %3126 = vmatpush1.bf16.msra.mxu0 0
      %3127 = vmatprep.subr.bf16.mxu0 0
      %3128 = vmatpush1.bf16.msra.mxu0 0
      %3129 = vmatprep.subr.bf16.mxu0 0
      %3130 = vmatpush1.bf16.msra.mxu0 0
      %3131 = vmatprep.subr.bf16.mxu0 0
      %3132 = vmatpush1.bf16.msra.mxu0 0
      %3133 = vmatprep.subr.bf16.mxu0 0
      %3134 = vmatpush1.bf16.msra.mxu0 0
      %3135 = vmatprep.subr.bf16.mxu0 0
      %3136 = vmatpush1.bf16.msra.mxu0 0
      %3137 = vmatprep.subr.bf16.mxu0 0
      %3138 = vmatpush1.bf16.msra.mxu0 0
      %3139 = vmatprep.subr.bf16.mxu0 0
      %3140 = vmatpush1.bf16.msra.mxu0 0
      %3141 = vmatprep.subr.bf16.mxu0 0
      %3142 = vmatpush1.bf16.msra.mxu0 0
      %3143 = vmatprep.mubr.bf16.mxu0 0
      %3144 = vmatmul.mubr.bf16.gmra.mrb[0].mxu0 %v3082
      %v3145 = vpop.f32.mrb[0].mxu0
      %v3146 = vadd.f32 0.0, %v3145
      %v3147 = vpop.f32.mrb[0].mxu0
      %v3148 = vpop.f32.mrb[0].mxu0
      %v3149 = vadd.f32 0.0, %v3148
      %v3150 = vpop.f32.mrb[0].mxu0
      %3151 = vmatprep.mubr.bf16.mxu0 0
      %3152 = vmatmul.mubr.bf16.gmra.mrb[0].mxu0 %v3085
      %v3153 = vpop.f32.mrb[0].mxu0
      %v3154 = vadd.f32 0.0, %v3153
      %v3155 = vpop.f32.mrb[0].mxu0
      %v3156 = vpop.f32.mrb[0].mxu0
      %v3157 = vadd.f32 0.0, %v3156
      %v3158 = vpop.f32.mrb[0].mxu0
      %3159 = vmatprep.mubr.bf16.mxu0 0
      %3160 = vmatmul.mubr.bf16.gmra.mrb[0].mxu0 %v3088
      %v3161 = vpop.f32.mrb[0].mxu0
      %v3162 = vadd.f32 0.0, %v3161
      %v3163 = vpop.f32.mrb[0].mxu0
      %v3164 = vpop.f32.mrb[0].mxu0
      %v3165 = vadd.f32 0.0, %v3164
      %v3166 = vpop.f32.mrb[0].mxu0
      %3167 = vmatprep.mubr.bf16.mxu0 0
      %3168 = vmatmul.mubr.bf16.gmra.mrb[0].mxu0 %v3091
      %v3169 = vpop.f32.mrb[0].mxu0
      %v3170 = vadd.f32 0.0, %v3169
      %v3171 = vpop.f32.mrb[0].mxu0
      %v3172 = vpop.f32.mrb[0].mxu0
      %v3173 = vadd.f32 0.0, %v3172
      %v3174 = vpop.f32.mrb[0].mxu0
      %3175 = vmatprep.mubr.bf16.mxu0 0
      %3176 = vmatmul.mubr.bf16.gmra.mrb[0].mxu0 %v3094
      %v3177 = vpop.f32.mrb[0].mxu0
      %v3178 = vadd.f32 0.0, %v3177
      %v3179 = vpop.f32.mrb[0].mxu0
      %v3180 = vpop.f32.mrb[0].mxu0
      %v3181 = vadd.f32 0.0, %v3180
      %v3182 = vpop.f32.mrb[0].mxu0
      %3183 = vmatprep.mubr.bf16.mxu0 0
      %3184 = vmatmul.mubr.bf16.gmra.mrb[0].mxu0 %v3097
      %v3185 = vpop.f32.mrb[0].mxu0
      %v3186 = vadd.f32 0.0, %v3185
      %v3187 = vpop.f32.mrb[0].mxu0
      %v3188 = vpop.f32.mrb[0].mxu0
      %v3189 = vadd.f32 0.0, %v3188
      %v3190 = vpop.f32.mrb[0].mxu0
      %3191 = vmatprep.mubr.bf16.mxu0 0
      %3192 = vmatmul.mubr.bf16.gmra.mrb[0].mxu0 %v3100
      %v3193 = vpop.f32.mrb[0].mxu0
      %v3194 = vadd.f32 0.0, %v3193
      %v3195 = vpop.f32.mrb[0].mxu0
      %v3196 = vpop.f32.mrb[0].mxu0
      %v3197 = vadd.f32 0.0, %v3196
      %v3198 = vpop.f32.mrb[0].mxu0
      %3199 = vmatprep.mubr.bf16.mxu0 0
      %3200 = vmatmul.mubr.bf16.gmra.mrb[0].mxu0 %v3103
      %v3201 = vpop.f32.mrb[0].mxu0
      %v3202 = vadd.f32 0.0, %v3201
      %v3203 = vpop.f32.mrb[0].mxu0
      %v3204 = vpop.f32.mrb[0].mxu0
      %v3205 = vadd.f32 0.0, %v3204
      %v3206 = vpop.f32.mrb[0].mxu0
      %3207 = vmatprep.mubr.bf16.mxu0 0
      %3208 = vmatmul.mubr.bf16.gmra.mrb[0].mxu0 %v3106
      %v3209 = vpop.f32.mrb[0].mxu0
      %v3210 = vadd.f32 0.0, %v3209
      %v3211 = vpop.f32.mrb[0].mxu0
      %v3212 = vpop.f32.mrb[0].mxu0
      %v3213 = vadd.f32 0.0, %v3212
      %v3214 = vpop.f32.mrb[0].mxu0
      %3215 = vdwg.mxu0
      %v3216 = vadd.f32 %v2993, %v3146
      %v3217 = vadd.f32 %v2994, %v3149
      %v3218 = vadd.f32 %v2995, %v3154
      %v3219 = vadd.f32 %v2996, %v3157
      %v3220 = vadd.f32 %v2997, %v3162
      %v3221 = vadd.f32 %v2998, %v3165
      %v3222 = vadd.f32 %v2999, %v3170
      %v3223 = vadd.f32 %v3000, %v3173
      %v3224 = vadd.f32 %v3001, %v3178
      %v3225 = vadd.f32 %v3002, %v3181
      %v3226 = vadd.f32 %v3003, %v3186
      %v3227 = vadd.f32 %v3004, %v3189
      %v3228 = vadd.f32 %v3005, %v3194
      %v3229 = vadd.f32 %v3006, %v3197
      %v3230 = vadd.f32 %v3007, %v3202
      %v3231 = vadd.f32 %v3008, %v3205
      %v3232 = vadd.f32 %v3009, %v3210
      %v3233 = vadd.f32 %v3010, %v3213
      %v3234 = vmax.f32 %v3216, 0.0
      %v3235 = vmax.f32 %v3217, 0.0
      %v3236 = vmax.f32 %v3218, 0.0
      %v3237 = vmax.f32 %v3219, 0.0
      %v3238 = vmax.f32 %v3220, 0.0
      %v3239 = vmax.f32 %v3221, 0.0
      %v3240 = vmax.f32 %v3222, 0.0
      %v3241 = vmax.f32 %v3223, 0.0
      %v3242 = vmax.f32 %v3224, 0.0
      %v3243 = vmax.f32 %v3225, 0.0
      %v3244 = vmax.f32 %v3226, 0.0
      %v3245 = vmax.f32 %v3227, 0.0
      %v3246 = vmax.f32 %v3228, 0.0
      %v3247 = vmax.f32 %v3229, 0.0
      %v3248 = vmax.f32 %v3230, 0.0
      %v3249 = vmax.f32 %v3231, 0.0
      %v3250 = vmax.f32 %v3232, 0.0
      %v3251 = vmax.f32 %v3233, 0.0
      %v3252 = vld [vmem:[%s5 + $0x120] sm:$0xff]
      %v3253 = vld [vmem:[%s5 + $0x128] sm:$0xff]
      %v3254 = vld [vmem:[%s5 + $0x130] sm:$0xff]
      %v3255 = vld [vmem:[%s5 + $0x138] sm:$0xff]
      %v3256 = vld [vmem:[%s5 + $0x140] sm:$0xff]
      %v3257 = vld [vmem:[%s5 + $0x148] sm:$0xff]
      %v3258 = vld [vmem:[%s5 + $0x150] sm:$0xff]
      %v3259 = vld [vmem:[%s5 + $0x158] sm:$0xff]
      %v3260 = vld [vmem:[%s5 + $0x160] sm:$0xff]
      %v3261 = vld [vmem:[%s5 + $0x168] sm:$0xff]
      %v3262 = vld [vmem:[%s5 + $0x170] sm:$0xff]
      %v3263 = vld [vmem:[%s5 + $0x178] sm:$0xff]
      %v3264 = vld [vmem:[%s5 + $0x180] sm:$0xff]
      %v3265 = vld [vmem:[%s5 + $0x188] sm:$0xff]
      %v3266 = vld [vmem:[%s5 + $0x190] sm:$0xff]
      %v3267 = vld [vmem:[%s5 + $0x198] sm:$0xff]
      %v3268 = vld [vmem:[%s5 + $0x1a0] sm:$0xff]
      %v3269 = vld [vmem:[%s5 + $0x1a8] sm:$0xff]
      %v3270 = vmul.f32 %v3234, %v3252
      %v3271 = vmul.f32 %v3235, %v3253
      %v3272 = vmul.f32 %v3236, %v3254
      %v3273 = vmul.f32 %v3237, %v3255
      %v3274 = vmul.f32 %v3238, %v3256
      %v3275 = vmul.f32 %v3239, %v3257
      %v3276 = vmul.f32 %v3240, %v3258
      %v3277 = vmul.f32 %v3241, %v3259
      %v3278 = vmul.f32 %v3242, %v3260
      %v3279 = vmul.f32 %v3243, %v3261
      %v3280 = vmul.f32 %v3244, %v3262
      %v3281 = vmul.f32 %v3245, %v3263
      %v3282 = vmul.f32 %v3246, %v3264
      %v3283 = vmul.f32 %v3247, %v3265
      %v3284 = vmul.f32 %v3248, %v3266
      %v3285 = vmul.f32 %v3249, %v3267
      %v3286 = vmul.f32 %v3250, %v3268
      %v3287 = vmul.f32 %v3251, %v3269
      %v3288 = vld [vmem:[#allocation4 + $0x120] sm:$0xff]
      %v3289 = vld [vmem:[#allocation4 + $0x128] sm:$0xff]
      %v3290 = vld [vmem:[#allocation4 + $0x130] sm:$0xff]
      %v3291 = vld [vmem:[#allocation4 + $0x138] sm:$0xff]
      %v3292 = vld [vmem:[#allocation4 + $0x140] sm:$0xff]
      %v3293 = vld [vmem:[#allocation4 + $0x148] sm:$0xff]
      %v3294 = vld [vmem:[#allocation4 + $0x150] sm:$0xff]
      %v3295 = vld [vmem:[#allocation4 + $0x158] sm:$0xff]
      %v3296 = vld [vmem:[#allocation4 + $0x160] sm:$0xff]
      %v3297 = vld [vmem:[#allocation4 + $0x168] sm:$0xff]
      %v3298 = vld [vmem:[#allocation4 + $0x170] sm:$0xff]
      %v3299 = vld [vmem:[#allocation4 + $0x178] sm:$0xff]
      %v3300 = vld [vmem:[#allocation4 + $0x180] sm:$0xff]
      %v3301 = vld [vmem:[#allocation4 + $0x188] sm:$0xff]
      %v3302 = vld [vmem:[#allocation4 + $0x190] sm:$0xff]
      %v3303 = vld [vmem:[#allocation4 + $0x198] sm:$0xff]
      %v3304 = vld [vmem:[#allocation4 + $0x1a0] sm:$0xff]
      %v3305 = vld [vmem:[#allocation4 + $0x1a8] sm:$0xff]
      %3324 = vrot.lane.b32.xlu0 %v3288, 16
      %v3325 = vpop.permute.xlu0 %3324
      %3326 = vrot.lane.b32.xlu0 %v3289, 16
      %v3327 = vpop.permute.xlu0 %3326
      %3328 = vrot.lane.b32.xlu0 %v3290, 16
      %v3329 = vpop.permute.xlu0 %3328
      %3330 = vrot.lane.b32.xlu0 %v3291, 16
      %v3331 = vpop.permute.xlu0 %3330
      %3332 = vrot.lane.b32.xlu0 %v3292, 16
      %v3333 = vpop.permute.xlu0 %3332
      %3334 = vrot.lane.b32.xlu0 %v3293, 16
      %v3335 = vpop.permute.xlu0 %3334
      %3336 = vrot.lane.b32.xlu0 %v3294, 16
      %v3337 = vpop.permute.xlu0 %3336
      %3338 = vrot.lane.b32.xlu0 %v3295, 16
      %v3339 = vpop.permute.xlu0 %3338
      %3340 = vrot.lane.b32.xlu0 %v3296, 16
      %v3341 = vpop.permute.xlu0 %3340
      %3342 = vrot.lane.b32.xlu0 %v3297, 16
      %v3343 = vpop.permute.xlu0 %3342
      %3344 = vrot.lane.b32.xlu0 %v3298, 16
      %v3345 = vpop.permute.xlu0 %3344
      %3346 = vrot.lane.b32.xlu0 %v3299, 16
      %v3347 = vpop.permute.xlu0 %3346
      %3348 = vrot.lane.b32.xlu0 %v3300, 16
      %v3349 = vpop.permute.xlu0 %3348
      %3350 = vrot.lane.b32.xlu0 %v3301, 16
      %v3351 = vpop.permute.xlu0 %3350
      %3352 = vrot.lane.b32.xlu0 %v3302, 16
      %v3353 = vpop.permute.xlu0 %3352
      %3354 = vrot.lane.b32.xlu0 %v3303, 16
      %v3355 = vpop.permute.xlu0 %3354
      %3356 = vrot.lane.b32.xlu0 %v3304, 16
      %v3357 = vpop.permute.xlu0 %3356
      %3358 = vrot.lane.b32.xlu0 %v3305, 16
      %v3359 = vpop.permute.xlu0 %3358
      %v3378 = vsel %vm1248, %v3270, %v3325
      %v3379 = vsel %vm1248, %v3271, %v3327
      %v3380 = vsel %vm1248, %v3272, %v3329
      %v3381 = vsel %vm1248, %v3273, %v3331
      %v3382 = vsel %vm1248, %v3274, %v3333
      %v3383 = vsel %vm1248, %v3275, %v3335
      %v3384 = vsel %vm1248, %v3276, %v3337
      %v3385 = vsel %vm1248, %v3277, %v3339
      %v3386 = vsel %vm1248, %v3278, %v3341
      %v3387 = vsel %vm1248, %v3279, %v3343
      %v3388 = vsel %vm1248, %v3280, %v3345
      %v3389 = vsel %vm1248, %v3281, %v3347
      %v3390 = vsel %vm1248, %v3282, %v3349
      %v3391 = vsel %vm1248, %v3283, %v3351
      %v3392 = vsel %vm1248, %v3284, %v3353
      %v3393 = vsel %vm1248, %v3285, %v3355
      %v3394 = vsel %vm1248, %v3286, %v3357
      %v3395 = vsel %vm1248, %v3287, %v3359
      %v3396 = vpack.c.bf16 %v3379, %v3378
      %v3397 = vpack.c.bf16 %v3381, %v3380
      %v3398 = vpack.c.bf16 %v3383, %v3382
      %v3399 = vpack.c.bf16 %v3385, %v3384
      %v3400 = vpack.c.bf16 %v3387, %v3386
      %v3401 = vpack.c.bf16 %v3389, %v3388
      %v3402 = vpack.c.bf16 %v3391, %v3390
      %v3403 = vpack.c.bf16 %v3393, %v3392
      %v3404 = vpack.c.bf16 %v3395, %v3394
      %v3406 = vshrl.u32 %v3396, 16
      %v3408 = vrot.slane %v3406, 7
      %v3409 = vshll.u32 %v3396, 16
      %v3411 = vor.u32 %v3408, %v3409
      %v3413 = vshrl.u32 %v3397, 16
      %v3415 = vrot.slane %v3413, 7
      %v3416 = vshll.u32 %v3397, 16
      %v3418 = vor.u32 %v3415, %v3416
      %v3419 = vsel %vm1276, %v3408, %v3418
      %v3421 = vshrl.u32 %v3398, 16
      %v3423 = vrot.slane %v3421, 7
      %v3424 = vshll.u32 %v3398, 16
      %v3426 = vor.u32 %v3423, %v3424
      %v3427 = vsel %vm1276, %v3415, %v3426
      %v3429 = vshrl.u32 %v3399, 16
      %v3431 = vrot.slane %v3429, 7
      %v3432 = vshll.u32 %v3399, 16
      %v3434 = vor.u32 %v3431, %v3432
      %v3435 = vsel %vm1276, %v3423, %v3434
      %v3437 = vshrl.u32 %v3400, 16
      %v3439 = vrot.slane %v3437, 7
      %v3440 = vshll.u32 %v3400, 16
      %v3442 = vor.u32 %v3439, %v3440
      %v3443 = vsel %vm1276, %v3431, %v3442
      %v3445 = vshrl.u32 %v3401, 16
      %v3447 = vrot.slane %v3445, 7
      %v3448 = vshll.u32 %v3401, 16
      %v3450 = vor.u32 %v3447, %v3448
      %v3451 = vsel %vm1276, %v3439, %v3450
      %v3453 = vshrl.u32 %v3402, 16
      %v3455 = vrot.slane %v3453, 7
      %v3456 = vshll.u32 %v3402, 16
      %v3458 = vor.u32 %v3455, %v3456
      %v3459 = vsel %vm1276, %v3447, %v3458
      %v3461 = vshrl.u32 %v3403, 16
      %v3463 = vrot.slane %v3461, 7
      %v3464 = vshll.u32 %v3403, 16
      %v3466 = vor.u32 %v3463, %v3464
      %v3467 = vsel %vm1276, %v3455, %v3466
      %v3469 = vshrl.u32 %v3404, 16
      %v3471 = vrot.slane %v3469, 7
      %v3472 = vshll.u32 %v3404, 16
      %v3474 = vor.u32 %v3471, %v3472
      %v3475 = vsel %vm1276, %v3463, %v3474
      %v3486 = vld [vmem:[#allocation2 + $0xa0] sm:$0xff]
      %v3487 = vsel %vm1360, %v3411, %v3486
      %3488 = vst [vmem:[#allocation2 + $0xa0] sm:$0xff] %v3487
      %3489 = vst.msk [vmem:[#allocation2 + $0xa8] sm:$0xff] %vm1364, %v3419
      %3490 = vst.msk [vmem:[#allocation2 + $0xb0] sm:$0xff] %vm1364, %v3427
      %3491 = vst.msk [vmem:[#allocation2 + $0xb8] sm:$0xff] %vm1364, %v3435
      %3492 = vst.msk [vmem:[#allocation2 + $0xc0] sm:$0xff] %vm1364, %v3443
      %3493 = vst.msk [vmem:[#allocation2 + $0xc8] sm:$0xff] %vm1364, %v3451
      %3494 = vst.msk [vmem:[#allocation2 + $0xd0] sm:$0xff] %vm1364, %v3459
      %3495 = vst.msk [vmem:[#allocation2 + $0xd8] sm:$0xff] %vm1364, %v3467
      %3496 = vst.msk [vmem:[#allocation2 + $0xe0] sm:$0xff] %vm1364, %v3475
      %v3497 = vld [vmem:[#allocation2 + $0xe8] sm:$0x1]
      %v3498 = vsel %vm1374, %v3471, %v3497
      %3499 = vst [vmem:[#allocation2 + $0xe8] sm:$0x1] %v3498
      %3509 = vrot.lane.b32.xlu0 %v3396, 32
      %v3510 = vpop.permute.xlu0 %3509
      %3511 = vrot.lane.b32.xlu0 %v3397, 32
      %v3512 = vpop.permute.xlu0 %3511
      %3513 = vrot.lane.b32.xlu0 %v3398, 32
      %v3514 = vpop.permute.xlu0 %3513
      %3515 = vrot.lane.b32.xlu0 %v3399, 32
      %v3516 = vpop.permute.xlu0 %3515
      %3517 = vrot.lane.b32.xlu0 %v3400, 32
      %v3518 = vpop.permute.xlu0 %3517
      %3519 = vrot.lane.b32.xlu0 %v3401, 32
      %v3520 = vpop.permute.xlu0 %3519
      %3521 = vrot.lane.b32.xlu0 %v3402, 32
      %v3522 = vpop.permute.xlu0 %3521
      %3523 = vrot.lane.b32.xlu0 %v3403, 32
      %v3524 = vpop.permute.xlu0 %3523
      %3525 = vrot.lane.b32.xlu0 %v3404, 32
      %v3526 = vpop.permute.xlu0 %3525
      %3536 = vst.msk [vmem:[#allocation2 + $0xa0] sm:$0xff] %vm1414, %v3510
      %3537 = vst.msk [vmem:[#allocation2 + $0xa8] sm:$0xff] %vm1414, %v3512
      %3538 = vst.msk [vmem:[#allocation2 + $0xb0] sm:$0xff] %vm1414, %v3514
      %3539 = vst.msk [vmem:[#allocation2 + $0xb8] sm:$0xff] %vm1414, %v3516
      %3540 = vst.msk [vmem:[#allocation2 + $0xc0] sm:$0xff] %vm1414, %v3518
      %3541 = vst.msk [vmem:[#allocation2 + $0xc8] sm:$0xff] %vm1414, %v3520
      %3542 = vst.msk [vmem:[#allocation2 + $0xd0] sm:$0xff] %vm1414, %v3522
      %3543 = vst.msk [vmem:[#allocation2 + $0xd8] sm:$0xff] %vm1414, %v3524
      %3544 = vst.msk [vmem:[#allocation2 + $0xe0] sm:$0xff] %vm1414, %v3526
      %v3545 = vrot.slane %v3409, 1
      %v3546 = vor.u32 %v3406, %v3545
      %v3547 = vrot.slane %v3416, 1
      %v3548 = vsel %vm1424, %v3546, %v3547
      %v3549 = vor.u32 %v3413, %v3547
      %v3550 = vrot.slane %v3424, 1
      %v3551 = vsel %vm1424, %v3549, %v3550
      %v3552 = vor.u32 %v3421, %v3550
      %v3553 = vrot.slane %v3432, 1
      %v3554 = vsel %vm1424, %v3552, %v3553
      %v3555 = vor.u32 %v3429, %v3553
      %v3556 = vrot.slane %v3440, 1
      %v3557 = vsel %vm1424, %v3555, %v3556
      %v3558 = vor.u32 %v3437, %v3556
      %v3559 = vrot.slane %v3448, 1
      %v3560 = vsel %vm1424, %v3558, %v3559
      %v3561 = vor.u32 %v3445, %v3559
      %v3562 = vrot.slane %v3456, 1
      %v3563 = vsel %vm1424, %v3561, %v3562
      %v3564 = vor.u32 %v3453, %v3562
      %v3565 = vrot.slane %v3464, 1
      %v3566 = vsel %vm1424, %v3564, %v3565
      %v3567 = vor.u32 %v3461, %v3565
      %v3568 = vrot.slane %v3472, 1
      %v3569 = vsel %vm1424, %v3567, %v3568
      %v3570 = vor.u32 %v3469, %v3568
      %3571 = vrot.lane.b32.xlu0 %v3545, 64
      %v3572 = vpop.permute.xlu0 %3571
      %3573 = vrot.lane.b32.xlu0 %v3548, 64
      %v3574 = vpop.permute.xlu0 %3573
      %3575 = vrot.lane.b32.xlu0 %v3551, 64
      %v3576 = vpop.permute.xlu0 %3575
      %3577 = vrot.lane.b32.xlu0 %v3554, 64
      %v3578 = vpop.permute.xlu0 %3577
      %3579 = vrot.lane.b32.xlu0 %v3557, 64
      %v3580 = vpop.permute.xlu0 %3579
      %3581 = vrot.lane.b32.xlu0 %v3560, 64
      %v3582 = vpop.permute.xlu0 %3581
      %3583 = vrot.lane.b32.xlu0 %v3563, 64
      %v3584 = vpop.permute.xlu0 %3583
      %3585 = vrot.lane.b32.xlu0 %v3566, 64
      %v3586 = vpop.permute.xlu0 %3585
      %3587 = vrot.lane.b32.xlu0 %v3569, 64
      %v3588 = vpop.permute.xlu0 %3587
      %3589 = vrot.lane.b32.xlu0 %v3570, 64
      %v3590 = vpop.permute.xlu0 %3589
      %v3601 = vld [vmem:[#allocation2 + $0x98] sm:$0x80]
      %v3602 = vsel %vm1483, %v3572, %v3601
      %3603 = vst [vmem:[#allocation2 + $0x98] sm:$0x80] %v3602
      %3604 = vst.msk [vmem:[#allocation2 + $0xa0] sm:$0xff] %vm1487, %v3574
      %3605 = vst.msk [vmem:[#allocation2 + $0xa8] sm:$0xff] %vm1487, %v3576
      %3606 = vst.msk [vmem:[#allocation2 + $0xb0] sm:$0xff] %vm1487, %v3578
      %3607 = vst.msk [vmem:[#allocation2 + $0xb8] sm:$0xff] %vm1487, %v3580
      %3608 = vst.msk [vmem:[#allocation2 + $0xc0] sm:$0xff] %vm1487, %v3582
      %3609 = vst.msk [vmem:[#allocation2 + $0xc8] sm:$0xff] %vm1487, %v3584
      %3610 = vst.msk [vmem:[#allocation2 + $0xd0] sm:$0xff] %vm1487, %v3586
      %3611 = vst.msk [vmem:[#allocation2 + $0xd8] sm:$0xff] %vm1487, %v3588
      %v3612 = vld [vmem:[#allocation2 + $0xe0] sm:$0xff]
      %v3613 = vsel %vm1497, %v3590, %v3612
      %3614 = vst [vmem:[#allocation2 + $0xe0] sm:$0xff] %v3613
      %v3615 = vld [vmem:[%s4] sm:$0x1]
      %v3617 = vlaneseq
      %v3618 = vshrl.u32 %v3617, 7
      %v3619 = vsub.s32 0, %v3618
      %v3620 = vrot.slane %v3615, %v3619
      %v3622 = vld [vmem:[#allocation2] sm:$0xf0]
      %v3623 = vld [vmem:[#allocation2 + $0x8] sm:$0xff]
      %v3624 = vld [vmem:[#allocation2 + $0x10] sm:$0xff]
      %v3625 = vld [vmem:[#allocation2 + $0x18] sm:$0xff]
      %v3626 = vld [vmem:[#allocation2 + $0x20] sm:$0xff]
      %v3627 = vld [vmem:[#allocation2 + $0x28] sm:$0xff]
      %v3628 = vld [vmem:[#allocation2 + $0x30] sm:$0xff]
      %v3629 = vld [vmem:[#allocation2 + $0x38] sm:$0xff]
      %v3630 = vld [vmem:[#allocation2 + $0x40] sm:$0xff]
      %v3631 = vld [vmem:[#allocation2 + $0x48] sm:$0xf]
      %v3632 = vld [vmem:[%s3] sm:$0xf]
      %v3633 = vld [vmem:[%s3 + $0x4] sm:$0xf]
      %v3634 = vld [vmem:[%s3 + $0x8] sm:$0xf]
      %v3635 = vld [vmem:[%s3 + $0xc] sm:$0xf]
      %v3636 = vld [vmem:[%s3 + $0x10] sm:$0xf]
      %v3637 = vld [vmem:[%s3 + $0x14] sm:$0xf]
      %v3638 = vld [vmem:[%s3 + $0x18] sm:$0xf]
      %v3639 = vld [vmem:[%s3 + $0x1c] sm:$0xf]
      %v3640 = vld [vmem:[%s3 + $0x20] sm:$0xf]
      %v3641 = vld [vmem:[%s3 + $0x24] sm:$0xf]
      %v3642 = vld [vmem:[%s3 + $0x28] sm:$0xf]
      %v3643 = vld [vmem:[%s3 + $0x2c] sm:$0xf]
      %vm3654 = vcmask 1043456
      %v3655 = vrot.slane %v3622, 4
      %v3656 = vrot.slane %v3623, 4
      %v3657 = vsel %vm3654, %v3655, %v3656
      %v3658 = vrot.slane %v3624, 4
      %v3659 = vsel %vm3654, %v3656, %v3658
      %v3660 = vrot.slane %v3625, 4
      %v3661 = vsel %vm3654, %v3658, %v3660
      %v3662 = vrot.slane %v3626, 4
      %v3663 = vsel %vm3654, %v3660, %v3662
      %v3664 = vrot.slane %v3627, 4
      %v3665 = vsel %vm3654, %v3662, %v3664
      %v3666 = vrot.slane %v3628, 4
      %v3667 = vsel %vm3654, %v3664, %v3666
      %v3668 = vrot.slane %v3629, 4
      %v3669 = vsel %vm3654, %v3666, %v3668
      %v3670 = vrot.slane %v3630, 4
      %v3671 = vsel %vm3654, %v3668, %v3670
      %v3672 = vrot.slane %v3631, 4
      %v3673 = vsel %vm3654, %v3670, %v3672
      %v3686 = vunpack.c.l.b16 %v3632
      %v3687 = vunpack.c.l.b16 %v3633
      %v3688 = vunpack.c.l.b16 %v3634
      %v3689 = vunpack.c.l.b16 %v3635
      %v3690 = vunpack.c.l.b16 %v3636
      %v3691 = vunpack.c.l.b16 %v3637
      %v3692 = vunpack.c.l.b16 %v3638
      %v3693 = vunpack.c.l.b16 %v3639
      %v3694 = vunpack.c.l.b16 %v3640
      %v3695 = vunpack.c.l.b16 %v3641
      %v3696 = vunpack.c.l.b16 %v3642
      %v3697 = vunpack.c.l.b16 %v3643
      %v3698 = vpack.c.b16 %v3687, %v3686
      %v3699 = vpack.c.b16 %v3689, %v3688
      %v3700 = vpack.c.b16 %v3691, %v3690
      %v3701 = vpack.c.b16 %v3693, %v3692
      %v3702 = vpack.c.b16 %v3695, %v3694
      %v3703 = vpack.c.b16 %v3697, %v3696
      %vm3710 = vcmask 785408
      %v3712 = vsel %vm3710, %v3657, 0
      %v3715 = vsel %vm3710, %v3659, 0
      %v3718 = vsel %vm3710, %v3661, 0
      %v3721 = vsel %vm3710, %v3663, 0
      %v3724 = vsel %vm3710, %v3665, 0
      %v3727 = vsel %vm3710, %v3667, 0
      %v3730 = vsel %vm3710, %v3669, 0
      %v3733 = vsel %vm3710, %v3671, 0
      %v3736 = vsel %vm3710, %v3673, 0
      %3738 = vmatprep.subr.bf16.mxu0 0
      %3739 = vmatpush1.bf16.msra.mxu0 %v3698
      %3740 = vmatprep.subr.bf16.mxu0 0
      %3741 = vmatpush1.bf16.msra.mxu0 %v3699
      %3742 = vmatprep.subr.bf16.mxu0 0
      %3743 = vmatpush1.bf16.msra.mxu0 %v3700
      %3744 = vmatprep.subr.bf16.mxu0 0
      %3745 = vmatpush1.bf16.msra.mxu0 %v3701
      %3746 = vmatprep.subr.bf16.mxu0 0
      %3747 = vmatpush1.bf16.msra.mxu0 %v3702
      %3748 = vmatprep.subr.bf16.mxu0 0
      %3749 = vmatpush1.bf16.msra.mxu0 %v3703
      %3750 = vmatprep.subr.bf16.mxu0 0
      %3751 = vmatpush1.bf16.msra.mxu0 0
      %3752 = vmatprep.subr.bf16.mxu0 0
      %3753 = vmatpush1.bf16.msra.mxu0 0
      %3754 = vmatprep.subr.bf16.mxu0 0
      %3755 = vmatpush1.bf16.msra.mxu0 0
      %3756 = vmatprep.subr.bf16.mxu0 0
      %3757 = vmatpush1.bf16.msra.mxu0 0
      %3758 = vmatprep.subr.bf16.mxu0 0
      %3759 = vmatpush1.bf16.msra.mxu0 0
      %3760 = vmatprep.subr.bf16.mxu0 0
      %3761 = vmatpush1.bf16.msra.mxu0 0
      %3762 = vmatprep.subr.bf16.mxu0 0
      %3763 = vmatpush1.bf16.msra.mxu0 0
      %3764 = vmatprep.subr.bf16.mxu0 0
      %3765 = vmatpush1.bf16.msra.mxu0 0
      %3766 = vmatprep.subr.bf16.mxu0 0
      %3767 = vmatpush1.bf16.msra.mxu0 0
      %3768 = vmatprep.subr.bf16.mxu0 0
      %3769 = vmatpush1.bf16.msra.mxu0 0
      %3770 = vmatprep.mubr.bf16.mxu0 0
      %3771 = vmatmul.mubr.bf16.gmra.mrb[0].mxu0 %v3712
      %v3772 = vpop.f32.mrb[0].mxu0
      %v3773 = vadd.f32 0.0, %v3772
      %v3774 = vpop.f32.mrb[0].mxu0
      %v3775 = vpop.f32.mrb[0].mxu0
      %v3776 = vadd.f32 0.0, %v3775
      %v3777 = vpop.f32.mrb[0].mxu0
      %3778 = vmatprep.mubr.bf16.mxu0 0
      %3779 = vmatmul.mubr.bf16.gmra.mrb[0].mxu0 %v3715
      %v3780 = vpop.f32.mrb[0].mxu0
      %v3781 = vadd.f32 0.0, %v3780
      %v3782 = vpop.f32.mrb[0].mxu0
      %v3783 = vpop.f32.mrb[0].mxu0
      %v3784 = vadd.f32 0.0, %v3783
      %v3785 = vpop.f32.mrb[0].mxu0
      %3786 = vmatprep.mubr.bf16.mxu0 0
      %3787 = vmatmul.mubr.bf16.gmra.mrb[0].mxu0 %v3718
      %v3788 = vpop.f32.mrb[0].mxu0
      %v3789 = vadd.f32 0.0, %v3788
      %v3790 = vpop.f32.mrb[0].mxu0
      %v3791 = vpop.f32.mrb[0].mxu0
      %v3792 = vadd.f32 0.0, %v3791
      %v3793 = vpop.f32.mrb[0].mxu0
      %3794 = vmatprep.mubr.bf16.mxu0 0
      %3795 = vmatmul.mubr.bf16.gmra.mrb[0].mxu0 %v3721
      %v3796 = vpop.f32.mrb[0].mxu0
      %v3797 = vadd.f32 0.0, %v3796
      %v3798 = vpop.f32.mrb[0].mxu0
      %v3799 = vpop.f32.mrb[0].mxu0
      %v3800 = vadd.f32 0.0, %v3799
      %v3801 = vpop.f32.mrb[0].mxu0
      %3802 = vmatprep.mubr.bf16.mxu0 0
      %3803 = vmatmul.mubr.bf16.gmra.mrb[0].mxu0 %v3724
      %v3804 = vpop.f32.mrb[0].mxu0
      %v3805 = vadd.f32 0.0, %v3804
      %v3806 = vpop.f32.mrb[0].mxu0
      %v3807 = vpop.f32.mrb[0].mxu0
      %v3808 = vadd.f32 0.0, %v3807
      %v3809 = vpop.f32.mrb[0].mxu0
      %3810 = vmatprep.mubr.bf16.mxu0 0
      %3811 = vmatmul.mubr.bf16.gmra.mrb[0].mxu0 %v3727
      %v3812 = vpop.f32.mrb[0].mxu0
      %v3813 = vadd.f32 0.0, %v3812
      %v3814 = vpop.f32.mrb[0].mxu0
      %v3815 = vpop.f32.mrb[0].mxu0
      %v3816 = vadd.f32 0.0, %v3815
      %v3817 = vpop.f32.mrb[0].mxu0
      %3818 = vmatprep.mubr.bf16.mxu0 0
      %3819 = vmatmul.mubr.bf16.gmra.mrb[0].mxu0 %v3730
      %v3820 = vpop.f32.mrb[0].mxu0
      %v3821 = vadd.f32 0.0, %v3820
      %v3822 = vpop.f32.mrb[0].mxu0
      %v3823 = vpop.f32.mrb[0].mxu0
      %v3824 = vadd.f32 0.0, %v3823
      %v3825 = vpop.f32.mrb[0].mxu0
      %3826 = vmatprep.mubr.bf16.mxu0 0
      %3827 = vmatmul.mubr.bf16.gmra.mrb[0].mxu0 %v3733
      %v3828 = vpop.f32.mrb[0].mxu0
      %v3829 = vadd.f32 0.0, %v3828
      %v3830 = vpop.f32.mrb[0].mxu0
      %v3831 = vpop.f32.mrb[0].mxu0
      %v3832 = vadd.f32 0.0, %v3831
      %v3833 = vpop.f32.mrb[0].mxu0
      %3834 = vmatprep.mubr.bf16.mxu0 0
      %3835 = vmatmul.mubr.bf16.gmra.mrb[0].mxu0 %v3736
      %v3836 = vpop.f32.mrb[0].mxu0
      %v3837 = vadd.f32 0.0, %v3836
      %v3838 = vpop.f32.mrb[0].mxu0
      %v3839 = vpop.f32.mrb[0].mxu0
      %v3840 = vadd.f32 0.0, %v3839
      %v3841 = vpop.f32.mrb[0].mxu0
      %3842 = vdwg.mxu0
      %v3843 = vadd.f32 %v3620, %v3773
      %v3844 = vadd.f32 %v3620, %v3776
      %v3845 = vadd.f32 %v3620, %v3781
      %v3846 = vadd.f32 %v3620, %v3784
      %v3847 = vadd.f32 %v3620, %v3789
      %v3848 = vadd.f32 %v3620, %v3792
      %v3849 = vadd.f32 %v3620, %v3797
      %v3850 = vadd.f32 %v3620, %v3800
      %v3851 = vadd.f32 %v3620, %v3805
      %v3852 = vadd.f32 %v3620, %v3808
      %v3853 = vadd.f32 %v3620, %v3813
      %v3854 = vadd.f32 %v3620, %v3816
      %v3855 = vadd.f32 %v3620, %v3821
      %v3856 = vadd.f32 %v3620, %v3824
      %v3857 = vadd.f32 %v3620, %v3829
      %v3858 = vadd.f32 %v3620, %v3832
      %v3859 = vadd.f32 %v3620, %v3837
      %v3860 = vadd.f32 %v3620, %v3840
      %v3861 = vld [vmem:[#allocation2 + $0x10] sm:$0xff]
      %v3862 = vld [vmem:[#allocation2 + $0x18] sm:$0xff]
      %v3863 = vld [vmem:[#allocation2 + $0x20] sm:$0xff]
      %v3864 = vld [vmem:[#allocation2 + $0x28] sm:$0xff]
      %v3865 = vld [vmem:[#allocation2 + $0x30] sm:$0xff]
      %v3866 = vld [vmem:[#allocation2 + $0x38] sm:$0xff]
      %v3867 = vld [vmem:[#allocation2 + $0x40] sm:$0xff]
      %v3868 = vld [vmem:[#allocation2 + $0x48] sm:$0xff]
      %v3869 = vld [vmem:[#allocation2 + $0x50] sm:$0xff]
      %s3870 = scalar_lea.vmem %s3, 48
      %v3871 = vld [vmem:[%s3870] sm:$0xf]
      %v3872 = vld [vmem:[%s3870 + $0x4] sm:$0xf]
      %v3873 = vld [vmem:[%s3870 + $0x8] sm:$0xf]
      %v3874 = vld [vmem:[%s3870 + $0xc] sm:$0xf]
      %v3875 = vld [vmem:[%s3870 + $0x10] sm:$0xf]
      %v3876 = vld [vmem:[%s3870 + $0x14] sm:$0xf]
      %v3877 = vld [vmem:[%s3870 + $0x18] sm:$0xf]
      %v3878 = vld [vmem:[%s3870 + $0x1c] sm:$0xf]
      %v3879 = vld [vmem:[%s3870 + $0x20] sm:$0xf]
      %v3880 = vld [vmem:[%s3870 + $0x24] sm:$0xf]
      %v3881 = vld [vmem:[%s3870 + $0x28] sm:$0xf]
      %v3882 = vld [vmem:[%s3870 + $0x2c] sm:$0xf]
      %v3895 = vunpack.c.l.b16 %v3871
      %v3896 = vunpack.c.l.b16 %v3872
      %v3897 = vunpack.c.l.b16 %v3873
      %v3898 = vunpack.c.l.b16 %v3874
      %v3899 = vunpack.c.l.b16 %v3875
      %v3900 = vunpack.c.l.b16 %v3876
      %v3901 = vunpack.c.l.b16 %v3877
      %v3902 = vunpack.c.l.b16 %v3878
      %v3903 = vunpack.c.l.b16 %v3879
      %v3904 = vunpack.c.l.b16 %v3880
      %v3905 = vunpack.c.l.b16 %v3881
      %v3906 = vunpack.c.l.b16 %v3882
      %v3907 = vpack.c.b16 %v3896, %v3895
      %v3908 = vpack.c.b16 %v3898, %v3897
      %v3909 = vpack.c.b16 %v3900, %v3899
      %v3910 = vpack.c.b16 %v3902, %v3901
      %v3911 = vpack.c.b16 %v3904, %v3903
      %v3912 = vpack.c.b16 %v3906, %v3905
      %v3920 = vsel %vm3710, %v3861, 0
      %v3923 = vsel %vm3710, %v3862, 0
      %v3926 = vsel %vm3710, %v3863, 0
      %v3929 = vsel %vm3710, %v3864, 0
      %v3932 = vsel %vm3710, %v3865, 0
      %v3935 = vsel %vm3710, %v3866, 0
      %v3938 = vsel %vm3710, %v3867, 0
      %v3941 = vsel %vm3710, %v3868, 0
      %v3944 = vsel %vm3710, %v3869, 0
      %3946 = vmatprep.subr.bf16.mxu0 0
      %3947 = vmatpush1.bf16.msra.mxu0 %v3907
      %3948 = vmatprep.subr.bf16.mxu0 0
      %3949 = vmatpush1.bf16.msra.mxu0 %v3908
      %3950 = vmatprep.subr.bf16.mxu0 0
      %3951 = vmatpush1.bf16.msra.mxu0 %v3909
      %3952 = vmatprep.subr.bf16.mxu0 0
      %3953 = vmatpush1.bf16.msra.mxu0 %v3910
      %3954 = vmatprep.subr.bf16.mxu0 0
      %3955 = vmatpush1.bf16.msra.mxu0 %v3911
      %3956 = vmatprep.subr.bf16.mxu0 0
      %3957 = vmatpush1.bf16.msra.mxu0 %v3912
      %3958 = vmatprep.subr.bf16.mxu0 0
      %3959 = vmatpush1.bf16.msra.mxu0 0
      %3960 = vmatprep.subr.bf16.mxu0 0
      %3961 = vmatpush1.bf16.msra.mxu0 0
      %3962 = vmatprep.subr.bf16.mxu0 0
      %3963 = vmatpush1.bf16.msra.mxu0 0
      %3964 = vmatprep.subr.bf16.mxu0 0
      %3965 = vmatpush1.bf16.msra.mxu0 0
      %3966 = vmatprep.subr.bf16.mxu0 0
      %3967 = vmatpush1.bf16.msra.mxu0 0
      %3968 = vmatprep.subr.bf16.mxu0 0
      %3969 = vmatpush1.bf16.msra.mxu0 0
      %3970 = vmatprep.subr.bf16.mxu0 0
      %3971 = vmatpush1.bf16.msra.mxu0 0
      %3972 = vmatprep.subr.bf16.mxu0 0
      %3973 = vmatpush1.bf16.msra.mxu0 0
      %3974 = vmatprep.subr.bf16.mxu0 0
      %3975 = vmatpush1.bf16.msra.mxu0 0
      %3976 = vmatprep.subr.bf16.mxu0 0
      %3977 = vmatpush1.bf16.msra.mxu0 0
      %3978 = vmatprep.mubr.bf16.mxu0 0
      %3979 = vmatmul.mubr.bf16.gmra.mrb[0].mxu0 %v3920
      %v3980 = vpop.f32.mrb[0].mxu0
      %v3981 = vadd.f32 0.0, %v3980
      %v3982 = vpop.f32.mrb[0].mxu0
      %v3983 = vpop.f32.mrb[0].mxu0
      %v3984 = vadd.f32 0.0, %v3983
      %v3985 = vpop.f32.mrb[0].mxu0
      %3986 = vmatprep.mubr.bf16.mxu0 0
      %3987 = vmatmul.mubr.bf16.gmra.mrb[0].mxu0 %v3923
      %v3988 = vpop.f32.mrb[0].mxu0
      %v3989 = vadd.f32 0.0, %v3988
      %v3990 = vpop.f32.mrb[0].mxu0
      %v3991 = vpop.f32.mrb[0].mxu0
      %v3992 = vadd.f32 0.0, %v3991
      %v3993 = vpop.f32.mrb[0].mxu0
      %3994 = vmatprep.mubr.bf16.mxu0 0
      %3995 = vmatmul.mubr.bf16.gmra.mrb[0].mxu0 %v3926
      %v3996 = vpop.f32.mrb[0].mxu0
      %v3997 = vadd.f32 0.0, %v3996
      %v3998 = vpop.f32.mrb[0].mxu0
      %v3999 = vpop.f32.mrb[0].mxu0
      %v4000 = vadd.f32 0.0, %v3999
      %v4001 = vpop.f32.mrb[0].mxu0
      %4002 = vmatprep.mubr.bf16.mxu0 0
      %4003 = vmatmul.mubr.bf16.gmra.mrb[0].mxu0 %v3929
      %v4004 = vpop.f32.mrb[0].mxu0
      %v4005 = vadd.f32 0.0, %v4004
      %v4006 = vpop.f32.mrb[0].mxu0
      %v4007 = vpop.f32.mrb[0].mxu0
      %v4008 = vadd.f32 0.0, %v4007
      %v4009 = vpop.f32.mrb[0].mxu0
      %4010 = vmatprep.mubr.bf16.mxu0 0
      %4011 = vmatmul.mubr.bf16.gmra.mrb[0].mxu0 %v3932
      %v4012 = vpop.f32.mrb[0].mxu0
      %v4013 = vadd.f32 0.0, %v4012
      %v4014 = vpop.f32.mrb[0].mxu0
      %v4015 = vpop.f32.mrb[0].mxu0
      %v4016 = vadd.f32 0.0, %v4015
      %v4017 = vpop.f32.mrb[0].mxu0
      %4018 = vmatprep.mubr.bf16.mxu0 0
      %4019 = vmatmul.mubr.bf16.gmra.mrb[0].mxu0 %v3935
      %v4020 = vpop.f32.mrb[0].mxu0
      %v4021 = vadd.f32 0.0, %v4020
      %v4022 = vpop.f32.mrb[0].mxu0
      %v4023 = vpop.f32.mrb[0].mxu0
      %v4024 = vadd.f32 0.0, %v4023
      %v4025 = vpop.f32.mrb[0].mxu0
      %4026 = vmatprep.mubr.bf16.mxu0 0
      %4027 = vmatmul.mubr.bf16.gmra.mrb[0].mxu0 %v3938
      %v4028 = vpop.f32.mrb[0].mxu0
      %v4029 = vadd.f32 0.0, %v4028
      %v4030 = vpop.f32.mrb[0].mxu0
      %v4031 = vpop.f32.mrb[0].mxu0
      %v4032 = vadd.f32 0.0, %v4031
      %v4033 = vpop.f32.mrb[0].mxu0
      %4034 = vmatprep.mubr.bf16.mxu0 0
      %4035 = vmatmul.mubr.bf16.gmra.mrb[0].mxu0 %v3941
      %v4036 = vpop.f32.mrb[0].mxu0
      %v4037 = vadd.f32 0.0, %v4036
      %v4038 = vpop.f32.mrb[0].mxu0
      %v4039 = vpop.f32.mrb[0].mxu0
      %v4040 = vadd.f32 0.0, %v4039
      %v4041 = vpop.f32.mrb[0].mxu0
      %4042 = vmatprep.mubr.bf16.mxu0 0
      %4043 = vmatmul.mubr.bf16.gmra.mrb[0].mxu0 %v3944
      %v4044 = vpop.f32.mrb[0].mxu0
      %v4045 = vadd.f32 0.0, %v4044
      %v4046 = vpop.f32.mrb[0].mxu0
      %v4047 = vpop.f32.mrb[0].mxu0
      %v4048 = vadd.f32 0.0, %v4047
      %v4049 = vpop.f32.mrb[0].mxu0
      %4050 = vdwg.mxu0
      %v4051 = vadd.f32 %v3843, %v3981
      %v4052 = vadd.f32 %v3844, %v3984
      %v4053 = vadd.f32 %v3845, %v3989
      %v4054 = vadd.f32 %v3846, %v3992
      %v4055 = vadd.f32 %v3847, %v3997
      %v4056 = vadd.f32 %v3848, %v4000
      %v4057 = vadd.f32 %v3849, %v4005
      %v4058 = vadd.f32 %v3850, %v4008
      %v4059 = vadd.f32 %v3851, %v4013
      %v4060 = vadd.f32 %v3852, %v4016
      %v4061 = vadd.f32 %v3853, %v4021
      %v4062 = vadd.f32 %v3854, %v4024
      %v4063 = vadd.f32 %v3855, %v4029
      %v4064 = vadd.f32 %v3856, %v4032
      %v4065 = vadd.f32 %v3857, %v4037
      %v4066 = vadd.f32 %v3858, %v4040
      %v4067 = vadd.f32 %v3859, %v4045
      %v4068 = vadd.f32 %v3860, %v4048
      %v4069 = vld [vmem:[#allocation2 + $0x18] sm:$0xf0]
      %v4070 = vld [vmem:[#allocation2 + $0x20] sm:$0xff]
      %v4071 = vld [vmem:[#allocation2 + $0x28] sm:$0xff]
      %v4072 = vld [vmem:[#allocation2 + $0x30] sm:$0xff]
      %v4073 = vld [vmem:[#allocation2 + $0x38] sm:$0xff]
      %v4074 = vld [vmem:[#allocation2 + $0x40] sm:$0xff]
      %v4075 = vld [vmem:[#allocation2 + $0x48] sm:$0xff]
      %v4076 = vld [vmem:[#allocation2 + $0x50] sm:$0xff]
      %v4077 = vld [vmem:[#allocation2 + $0x58] sm:$0xff]
      %v4078 = vld [vmem:[#allocation2 + $0x60] sm:$0xf]
      %s4079 = scalar_lea.vmem %s3, 96
      %v4080 = vld [vmem:[%s4079] sm:$0xf]
      %v4081 = vld [vmem:[%s4079 + $0x4] sm:$0xf]
      %v4082 = vld [vmem:[%s4079 + $0x8] sm:$0xf]
      %v4083 = vld [vmem:[%s4079 + $0xc] sm:$0xf]
      %v4084 = vld [vmem:[%s4079 + $0x10] sm:$0xf]
      %v4085 = vld [vmem:[%s4079 + $0x14] sm:$0xf]
      %v4086 = vld [vmem:[%s4079 + $0x18] sm:$0xf]
      %v4087 = vld [vmem:[%s4079 + $0x1c] sm:$0xf]
      %v4088 = vld [vmem:[%s4079 + $0x20] sm:$0xf]
      %v4089 = vld [vmem:[%s4079 + $0x24] sm:$0xf]
      %v4090 = vld [vmem:[%s4079 + $0x28] sm:$0xf]
      %v4091 = vld [vmem:[%s4079 + $0x2c] sm:$0xf]
      %v4102 = vrot.slane %v4069, 4
      %v4103 = vrot.slane %v4070, 4
      %v4104 = vsel %vm3654, %v4102, %v4103
      %v4105 = vrot.slane %v4071, 4
      %v4106 = vsel %vm3654, %v4103, %v4105
      %v4107 = vrot.slane %v4072, 4
      %v4108 = vsel %vm3654, %v4105, %v4107
      %v4109 = vrot.slane %v4073, 4
      %v4110 = vsel %vm3654, %v4107, %v4109
      %v4111 = vrot.slane %v4074, 4
      %v4112 = vsel %vm3654, %v4109, %v4111
      %v4113 = vrot.slane %v4075, 4
      %v4114 = vsel %vm3654, %v4111, %v4113
      %v4115 = vrot.slane %v4076, 4
      %v4116 = vsel %vm3654, %v4113, %v4115
      %v4117 = vrot.slane %v4077, 4
      %v4118 = vsel %vm3654, %v4115, %v4117
      %v4119 = vrot.slane %v4078, 4
      %v4120 = vsel %vm3654, %v4117, %v4119
      %v4133 = vunpack.c.l.b16 %v4080
      %v4134 = vunpack.c.l.b16 %v4081
      %v4135 = vunpack.c.l.b16 %v4082
      %v4136 = vunpack.c.l.b16 %v4083
      %v4137 = vunpack.c.l.b16 %v4084
      %v4138 = vunpack.c.l.b16 %v4085
      %v4139 = vunpack.c.l.b16 %v4086
      %v4140 = vunpack.c.l.b16 %v4087
      %v4141 = vunpack.c.l.b16 %v4088
      %v4142 = vunpack.c.l.b16 %v4089
      %v4143 = vunpack.c.l.b16 %v4090
      %v4144 = vunpack.c.l.b16 %v4091
      %v4145 = vpack.c.b16 %v4134, %v4133
      %v4146 = vpack.c.b16 %v4136, %v4135
      %v4147 = vpack.c.b16 %v4138, %v4137
      %v4148 = vpack.c.b16 %v4140, %v4139
      %v4149 = vpack.c.b16 %v4142, %v4141
      %v4150 = vpack.c.b16 %v4144, %v4143
      %v4158 = vsel %vm3710, %v4104, 0
      %v4161 = vsel %vm3710, %v4106, 0
      %v4164 = vsel %vm3710, %v4108, 0
      %v4167 = vsel %vm3710, %v4110, 0
      %v4170 = vsel %vm3710, %v4112, 0
      %v4173 = vsel %vm3710, %v4114, 0
      %v4176 = vsel %vm3710, %v4116, 0
      %v4179 = vsel %vm3710, %v4118, 0
      %v4182 = vsel %vm3710, %v4120, 0
      %4184 = vmatprep.subr.bf16.mxu0 0
      %4185 = vmatpush1.bf16.msra.mxu0 %v4145
      %4186 = vmatprep.subr.bf16.mxu0 0
      %4187 = vmatpush1.bf16.msra.mxu0 %v4146
      %4188 = vmatprep.subr.bf16.mxu0 0
      %4189 = vmatpush1.bf16.msra.mxu0 %v4147
      %4190 = vmatprep.subr.bf16.mxu0 0
      %4191 = vmatpush1.bf16.msra.mxu0 %v4148
      %4192 = vmatprep.subr.bf16.mxu0 0
      %4193 = vmatpush1.bf16.msra.mxu0 %v4149
      %4194 = vmatprep.subr.bf16.mxu0 0
      %4195 = vmatpush1.bf16.msra.mxu0 %v4150
      %4196 = vmatprep.subr.bf16.mxu0 0
      %4197 = vmatpush1.bf16.msra.mxu0 0
      %4198 = vmatprep.subr.bf16.mxu0 0
      %4199 = vmatpush1.bf16.msra.mxu0 0
      %4200 = vmatprep.subr.bf16.mxu0 0
      %4201 = vmatpush1.bf16.msra.mxu0 0
      %4202 = vmatprep.subr.bf16.mxu0 0
      %4203 = vmatpush1.bf16.msra.mxu0 0
      %4204 = vmatprep.subr.bf16.mxu0 0
      %4205 = vmatpush1.bf16.msra.mxu0 0
      %4206 = vmatprep.subr.bf16.mxu0 0
      %4207 = vmatpush1.bf16.msra.mxu0 0
      %4208 = vmatprep.subr.bf16.mxu0 0
      %4209 = vmatpush1.bf16.msra.mxu0 0
      %4210 = vmatprep.subr.bf16.mxu0 0
      %4211 = vmatpush1.bf16.msra.mxu0 0
      %4212 = vmatprep.subr.bf16.mxu0 0
      %4213 = vmatpush1.bf16.msra.mxu0 0
      %4214 = vmatprep.subr.bf16.mxu0 0
      %4215 = vmatpush1.bf16.msra.mxu0 0
      %4216 = vmatprep.mubr.bf16.mxu0 0
      %4217 = vmatmul.mubr.bf16.gmra.mrb[0].mxu0 %v4158
      %v4218 = vpop.f32.mrb[0].mxu0
      %v4219 = vadd.f32 0.0, %v4218
      %v4220 = vpop.f32.mrb[0].mxu0
      %v4221 = vpop.f32.mrb[0].mxu0
      %v4222 = vadd.f32 0.0, %v4221
      %v4223 = vpop.f32.mrb[0].mxu0
      %4224 = vmatprep.mubr.bf16.mxu0 0
      %4225 = vmatmul.mubr.bf16.gmra.mrb[0].mxu0 %v4161
      %v4226 = vpop.f32.mrb[0].mxu0
      %v4227 = vadd.f32 0.0, %v4226
      %v4228 = vpop.f32.mrb[0].mxu0
      %v4229 = vpop.f32.mrb[0].mxu0
      %v4230 = vadd.f32 0.0, %v4229
      %v4231 = vpop.f32.mrb[0].mxu0
      %4232 = vmatprep.mubr.bf16.mxu0 0
      %4233 = vmatmul.mubr.bf16.gmra.mrb[0].mxu0 %v4164
      %v4234 = vpop.f32.mrb[0].mxu0
      %v4235 = vadd.f32 0.0, %v4234
      %v4236 = vpop.f32.mrb[0].mxu0
      %v4237 = vpop.f32.mrb[0].mxu0
      %v4238 = vadd.f32 0.0, %v4237
      %v4239 = vpop.f32.mrb[0].mxu0
      %4240 = vmatprep.mubr.bf16.mxu0 0
      %4241 = vmatmul.mubr.bf16.gmra.mrb[0].mxu0 %v4167
      %v4242 = vpop.f32.mrb[0].mxu0
      %v4243 = vadd.f32 0.0, %v4242
      %v4244 = vpop.f32.mrb[0].mxu0
      %v4245 = vpop.f32.mrb[0].mxu0
      %v4246 = vadd.f32 0.0, %v4245
      %v4247 = vpop.f32.mrb[0].mxu0
      %4248 = vmatprep.mubr.bf16.mxu0 0
      %4249 = vmatmul.mubr.bf16.gmra.mrb[0].mxu0 %v4170
      %v4250 = vpop.f32.mrb[0].mxu0
      %v4251 = vadd.f32 0.0, %v4250
      %v4252 = vpop.f32.mrb[0].mxu0
      %v4253 = vpop.f32.mrb[0].mxu0
      %v4254 = vadd.f32 0.0, %v4253
      %v4255 = vpop.f32.mrb[0].mxu0
      %4256 = vmatprep.mubr.bf16.mxu0 0
      %4257 = vmatmul.mubr.bf16.gmra.mrb[0].mxu0 %v4173
      %v4258 = vpop.f32.mrb[0].mxu0
      %v4259 = vadd.f32 0.0, %v4258
      %v4260 = vpop.f32.mrb[0].mxu0
      %v4261 = vpop.f32.mrb[0].mxu0
      %v4262 = vadd.f32 0.0, %v4261
      %v4263 = vpop.f32.mrb[0].mxu0
      %4264 = vmatprep.mubr.bf16.mxu0 0
      %4265 = vmatmul.mubr.bf16.gmra.mrb[0].mxu0 %v4176
      %v4266 = vpop.f32.mrb[0].mxu0
      %v4267 = vadd.f32 0.0, %v4266
      %v4268 = vpop.f32.mrb[0].mxu0
      %v4269 = vpop.f32.mrb[0].mxu0
      %v4270 = vadd.f32 0.0, %v4269
      %v4271 = vpop.f32.mrb[0].mxu0
      %4272 = vmatprep.mubr.bf16.mxu0 0
      %4273 = vmatmul.mubr.bf16.gmra.mrb[0].mxu0 %v4179
      %v4274 = vpop.f32.mrb[0].mxu0
      %v4275 = vadd.f32 0.0, %v4274
      %v4276 = vpop.f32.mrb[0].mxu0
      %v4277 = vpop.f32.mrb[0].mxu0
      %v4278 = vadd.f32 0.0, %v4277
      %v4279 = vpop.f32.mrb[0].mxu0
      %4280 = vmatprep.mubr.bf16.mxu0 0
      %4281 = vmatmul.mubr.bf16.gmra.mrb[0].mxu0 %v4182
      %v4282 = vpop.f32.mrb[0].mxu0
      %v4283 = vadd.f32 0.0, %v4282
      %v4284 = vpop.f32.mrb[0].mxu0
      %v4285 = vpop.f32.mrb[0].mxu0
      %v4286 = vadd.f32 0.0, %v4285
      %v4287 = vpop.f32.mrb[0].mxu0
      %4288 = vdwg.mxu0
      %v4289 = vadd.f32 %v4051, %v4219
      %v4290 = vadd.f32 %v4052, %v4222
      %v4291 = vadd.f32 %v4053, %v4227
      %v4292 = vadd.f32 %v4054, %v4230
      %v4293 = vadd.f32 %v4055, %v4235
      %v4294 = vadd.f32 %v4056, %v4238
      %v4295 = vadd.f32 %v4057, %v4243
      %v4296 = vadd.f32 %v4058, %v4246
      %v4297 = vadd.f32 %v4059, %v4251
      %v4298 = vadd.f32 %v4060, %v4254
      %v4299 = vadd.f32 %v4061, %v4259
      %v4300 = vadd.f32 %v4062, %v4262
      %v4301 = vadd.f32 %v4063, %v4267
      %v4302 = vadd.f32 %v4064, %v4270
      %v4303 = vadd.f32 %v4065, %v4275
      %v4304 = vadd.f32 %v4066, %v4278
      %v4305 = vadd.f32 %v4067, %v4283
      %v4306 = vadd.f32 %v4068, %v4286
      %v4307 = vxor.u32 %v4289, 2147483648
      %v4308 = vxor.u32 %v4290, 2147483648
      %v4309 = vxor.u32 %v4291, 2147483648
      %v4310 = vxor.u32 %v4292, 2147483648
      %v4311 = vxor.u32 %v4293, 2147483648
      %v4312 = vxor.u32 %v4294, 2147483648
      %v4313 = vxor.u32 %v4295, 2147483648
      %v4314 = vxor.u32 %v4296, 2147483648
      %v4315 = vxor.u32 %v4297, 2147483648
      %v4316 = vxor.u32 %v4298, 2147483648
      %v4317 = vxor.u32 %v4299, 2147483648
      %v4318 = vxor.u32 %v4300, 2147483648
      %v4319 = vxor.u32 %v4301, 2147483648
      %v4320 = vxor.u32 %v4302, 2147483648
      %v4321 = vxor.u32 %v4303, 2147483648
      %v4322 = vxor.u32 %v4304, 2147483648
      %v4323 = vxor.u32 %v4305, 2147483648
      %v4324 = vxor.u32 %v4306, 2147483648
      %v4325 = vmul.f32 %v4307, 1.442695
      %v4326 = vpow.pop %v4325
      %v4327 = vmul.f32 %v4308, 1.442695
      %v4328 = vpow.pop %v4327
      %v4329 = vmul.f32 %v4309, 1.442695
      %v4330 = vpow.pop %v4329
      %v4331 = vmul.f32 %v4310, 1.442695
      %v4332 = vpow.pop %v4331
      %v4333 = vmul.f32 %v4311, 1.442695
      %v4334 = vpow.pop %v4333
      %v4335 = vmul.f32 %v4312, 1.442695
      %v4336 = vpow.pop %v4335
      %v4337 = vmul.f32 %v4313, 1.442695
      %v4338 = vpow.pop %v4337
      %v4339 = vmul.f32 %v4314, 1.442695
      %v4340 = vpow.pop %v4339
      %v4341 = vmul.f32 %v4315, 1.442695
      %v4342 = vpow.pop %v4341
      %v4343 = vmul.f32 %v4316, 1.442695
      %v4344 = vpow.pop %v4343
      %v4345 = vmul.f32 %v4317, 1.442695
      %v4346 = vpow.pop %v4345
      %v4347 = vmul.f32 %v4318, 1.442695
      %v4348 = vpow.pop %v4347
      %v4349 = vmul.f32 %v4319, 1.442695
      %v4350 = vpow.pop %v4349
      %v4351 = vmul.f32 %v4320, 1.442695
      %v4352 = vpow.pop %v4351
      %v4353 = vmul.f32 %v4321, 1.442695
      %v4354 = vpow.pop %v4353
      %v4355 = vmul.f32 %v4322, 1.442695
      %v4356 = vpow.pop %v4355
      %v4357 = vmul.f32 %v4323, 1.442695
      %v4358 = vpow.pop %v4357
      %v4359 = vmul.f32 %v4324, 1.442695
      %v4360 = vpow.pop %v4359
      %v4361 = vadd.f32 %v4326, 1.0
      %v4362 = vadd.f32 %v4328, 1.0
      %v4363 = vadd.f32 %v4330, 1.0
      %v4364 = vadd.f32 %v4332, 1.0
      %v4365 = vadd.f32 %v4334, 1.0
      %v4366 = vadd.f32 %v4336, 1.0
      %v4367 = vadd.f32 %v4338, 1.0
      %v4368 = vadd.f32 %v4340, 1.0
      %v4369 = vadd.f32 %v4342, 1.0
      %v4370 = vadd.f32 %v4344, 1.0
      %v4371 = vadd.f32 %v4346, 1.0
      %v4372 = vadd.f32 %v4348, 1.0
      %v4373 = vadd.f32 %v4350, 1.0
      %v4374 = vadd.f32 %v4352, 1.0
      %v4375 = vadd.f32 %v4354, 1.0
      %v4376 = vadd.f32 %v4356, 1.0
      %v4377 = vadd.f32 %v4358, 1.0
      %v4378 = vadd.f32 %v4360, 1.0
      %v4379 = vrcp.pop %v4361
      %v4380 = vmul.f32 1.0, %v4379
      %v4381 = vrcp.pop %v4362
      %v4382 = vmul.f32 1.0, %v4381
      %v4383 = vrcp.pop %v4363
      %v4384 = vmul.f32 1.0, %v4383
      %v4385 = vrcp.pop %v4364
      %v4386 = vmul.f32 1.0, %v4385
      %v4387 = vrcp.pop %v4365
      %v4388 = vmul.f32 1.0, %v4387
      %v4389 = vrcp.pop %v4366
      %v4390 = vmul.f32 1.0, %v4389
      %v4391 = vrcp.pop %v4367
      %v4392 = vmul.f32 1.0, %v4391
      %v4393 = vrcp.pop %v4368
      %v4394 = vmul.f32 1.0, %v4393
      %v4395 = vrcp.pop %v4369
      %v4396 = vmul.f32 1.0, %v4395
      %v4397 = vrcp.pop %v4370
      %v4398 = vmul.f32 1.0, %v4397
      %v4399 = vrcp.pop %v4371
      %v4400 = vmul.f32 1.0, %v4399
      %v4401 = vrcp.pop %v4372
      %v4402 = vmul.f32 1.0, %v4401
      %v4403 = vrcp.pop %v4373
      %v4404 = vmul.f32 1.0, %v4403
      %v4405 = vrcp.pop %v4374
      %v4406 = vmul.f32 1.0, %v4405
      %v4407 = vrcp.pop %v4375
      %v4408 = vmul.f32 1.0, %v4407
      %v4409 = vrcp.pop %v4376
      %v4410 = vmul.f32 1.0, %v4409
      %v4411 = vrcp.pop %v4377
      %v4412 = vmul.f32 1.0, %v4411
      %v4413 = vrcp.pop %v4378
      %v4414 = vmul.f32 1.0, %v4413
      %v4415 = vtanh.pop %v4289
      %v4416 = vtanh.pop %v4290
      %v4417 = vtanh.pop %v4291
      %v4418 = vtanh.pop %v4292
      %v4419 = vtanh.pop %v4293
      %v4420 = vtanh.pop %v4294
      %v4421 = vtanh.pop %v4295
      %v4422 = vtanh.pop %v4296
      %v4423 = vtanh.pop %v4297
      %v4424 = vtanh.pop %v4298
      %v4425 = vtanh.pop %v4299
      %v4426 = vtanh.pop %v4300
      %v4427 = vtanh.pop %v4301
      %v4428 = vtanh.pop %v4302
      %v4429 = vtanh.pop %v4303
      %v4430 = vtanh.pop %v4304
      %v4431 = vtanh.pop %v4305
      %v4432 = vtanh.pop %v4306
      %v4433 = vld [vmem:[%s5] sm:$0xff]
      %v4434 = vld [vmem:[%s5 + $0x8] sm:$0xff]
      %v4435 = vld [vmem:[%s5 + $0x10] sm:$0xff]
      %v4436 = vld [vmem:[%s5 + $0x18] sm:$0xff]
      %v4437 = vld [vmem:[%s5 + $0x20] sm:$0xff]
      %v4438 = vld [vmem:[%s5 + $0x28] sm:$0xff]
      %v4439 = vld [vmem:[%s5 + $0x30] sm:$0xff]
      %v4440 = vld [vmem:[%s5 + $0x38] sm:$0xff]
      %v4441 = vld [vmem:[%s5 + $0x40] sm:$0xff]
      %v4442 = vld [vmem:[%s5 + $0x48] sm:$0xff]
      %v4443 = vld [vmem:[%s5 + $0x50] sm:$0xff]
      %v4444 = vld [vmem:[%s5 + $0x58] sm:$0xff]
      %v4445 = vld [vmem:[%s5 + $0x60] sm:$0xff]
      %v4446 = vld [vmem:[%s5 + $0x68] sm:$0xff]
      %v4447 = vld [vmem:[%s5 + $0x70] sm:$0xff]
      %v4448 = vld [vmem:[%s5 + $0x78] sm:$0xff]
      %v4449 = vld [vmem:[%s5 + $0x80] sm:$0xff]
      %v4450 = vld [vmem:[%s5 + $0x88] sm:$0xff]
      %v4451 = vld [vmem:[#allocation3] sm:$0xff]
      %v4452 = vld [vmem:[#allocation3 + $0x8] sm:$0xff]
      %v4453 = vld [vmem:[#allocation3 + $0x10] sm:$0xff]
      %v4454 = vld [vmem:[#allocation3 + $0x18] sm:$0xff]
      %v4455 = vld [vmem:[#allocation3 + $0x20] sm:$0xff]
      %v4456 = vld [vmem:[#allocation3 + $0x28] sm:$0xff]
      %v4457 = vld [vmem:[#allocation3 + $0x30] sm:$0xff]
      %v4458 = vld [vmem:[#allocation3 + $0x38] sm:$0xff]
      %v4459 = vld [vmem:[#allocation3 + $0x40] sm:$0xff]
      %v4460 = vld [vmem:[#allocation3 + $0x48] sm:$0xff]
      %v4461 = vld [vmem:[#allocation3 + $0x50] sm:$0xff]
      %v4462 = vld [vmem:[#allocation3 + $0x58] sm:$0xff]
      %v4463 = vld [vmem:[#allocation3 + $0x60] sm:$0xff]
      %v4464 = vld [vmem:[#allocation3 + $0x68] sm:$0xff]
      %v4465 = vld [vmem:[#allocation3 + $0x70] sm:$0xff]
      %v4466 = vld [vmem:[#allocation3 + $0x78] sm:$0xff]
      %v4467 = vld [vmem:[#allocation3 + $0x80] sm:$0xff]
      %v4468 = vld [vmem:[#allocation3 + $0x88] sm:$0xff]
      %4487 = vrot.lane.b32.xlu0 %v4451, 16
      %v4488 = vpop.permute.xlu0 %4487
      %4489 = vrot.lane.b32.xlu0 %v4452, 16
      %v4490 = vpop.permute.xlu0 %4489
      %4491 = vrot.lane.b32.xlu0 %v4453, 16
      %v4492 = vpop.permute.xlu0 %4491
      %4493 = vrot.lane.b32.xlu0 %v4454, 16
      %v4494 = vpop.permute.xlu0 %4493
      %4495 = vrot.lane.b32.xlu0 %v4455, 16
      %v4496 = vpop.permute.xlu0 %4495
      %4497 = vrot.lane.b32.xlu0 %v4456, 16
      %v4498 = vpop.permute.xlu0 %4497
      %4499 = vrot.lane.b32.xlu0 %v4457, 16
      %v4500 = vpop.permute.xlu0 %4499
      %4501 = vrot.lane.b32.xlu0 %v4458, 16
      %v4502 = vpop.permute.xlu0 %4501
      %4503 = vrot.lane.b32.xlu0 %v4459, 16
      %v4504 = vpop.permute.xlu0 %4503
      %4505 = vrot.lane.b32.xlu0 %v4460, 16
      %v4506 = vpop.permute.xlu0 %4505
      %4507 = vrot.lane.b32.xlu0 %v4461, 16
      %v4508 = vpop.permute.xlu0 %4507
      %4509 = vrot.lane.b32.xlu0 %v4462, 16
      %v4510 = vpop.permute.xlu0 %4509
      %4511 = vrot.lane.b32.xlu0 %v4463, 16
      %v4512 = vpop.permute.xlu0 %4511
      %4513 = vrot.lane.b32.xlu0 %v4464, 16
      %v4514 = vpop.permute.xlu0 %4513
      %4515 = vrot.lane.b32.xlu0 %v4465, 16
      %v4516 = vpop.permute.xlu0 %4515
      %4517 = vrot.lane.b32.xlu0 %v4466, 16
      %v4518 = vpop.permute.xlu0 %4517
      %4519 = vrot.lane.b32.xlu0 %v4467, 16
      %v4520 = vpop.permute.xlu0 %4519
      %4521 = vrot.lane.b32.xlu0 %v4468, 16
      %v4522 = vpop.permute.xlu0 %4521
      %v4541 = vmul.f32 %v4380, %v4488
      %v4542 = vmul.f32 %v4382, %v4490
      %v4543 = vmul.f32 %v4384, %v4492
      %v4544 = vmul.f32 %v4386, %v4494
      %v4545 = vmul.f32 %v4388, %v4496
      %v4546 = vmul.f32 %v4390, %v4498
      %v4547 = vmul.f32 %v4392, %v4500
      %v4548 = vmul.f32 %v4394, %v4502
      %v4549 = vmul.f32 %v4396, %v4504
      %v4550 = vmul.f32 %v4398, %v4506
      %v4551 = vmul.f32 %v4400, %v4508
      %v4552 = vmul.f32 %v4402, %v4510
      %v4553 = vmul.f32 %v4404, %v4512
      %v4554 = vmul.f32 %v4406, %v4514
      %v4555 = vmul.f32 %v4408, %v4516
      %v4556 = vmul.f32 %v4410, %v4518
      %v4557 = vmul.f32 %v4412, %v4520
      %v4558 = vmul.f32 %v4414, %v4522
      %4577 = vrot.lane.b32.xlu0 %v4415, 80
      %v4578 = vpop.permute.xlu0 %4577
      %4579 = vrot.lane.b32.xlu0 %v4416, 80
      %v4580 = vpop.permute.xlu0 %4579
      %4581 = vrot.lane.b32.xlu0 %v4417, 80
      %v4582 = vpop.permute.xlu0 %4581
      %4583 = vrot.lane.b32.xlu0 %v4418, 80
      %v4584 = vpop.permute.xlu0 %4583
      %4585 = vrot.lane.b32.xlu0 %v4419, 80
      %v4586 = vpop.permute.xlu0 %4585
      %4587 = vrot.lane.b32.xlu0 %v4420, 80
      %v4588 = vpop.permute.xlu0 %4587
      %4589 = vrot.lane.b32.xlu0 %v4421, 80
      %v4590 = vpop.permute.xlu0 %4589
      %4591 = vrot.lane.b32.xlu0 %v4422, 80
      %v4592 = vpop.permute.xlu0 %4591
      %4593 = vrot.lane.b32.xlu0 %v4423, 80
      %v4594 = vpop.permute.xlu0 %4593
      %4595 = vrot.lane.b32.xlu0 %v4424, 80
      %v4596 = vpop.permute.xlu0 %4595
      %4597 = vrot.lane.b32.xlu0 %v4425, 80
      %v4598 = vpop.permute.xlu0 %4597
      %4599 = vrot.lane.b32.xlu0 %v4426, 80
      %v4600 = vpop.permute.xlu0 %4599
      %4601 = vrot.lane.b32.xlu0 %v4427, 80
      %v4602 = vpop.permute.xlu0 %4601
      %4603 = vrot.lane.b32.xlu0 %v4428, 80
      %v4604 = vpop.permute.xlu0 %4603
      %4605 = vrot.lane.b32.xlu0 %v4429, 80
      %v4606 = vpop.permute.xlu0 %4605
      %4607 = vrot.lane.b32.xlu0 %v4430, 80
      %v4608 = vpop.permute.xlu0 %4607
      %4609 = vrot.lane.b32.xlu0 %v4431, 80
      %v4610 = vpop.permute.xlu0 %4609
      %4611 = vrot.lane.b32.xlu0 %v4432, 80
      %v4612 = vpop.permute.xlu0 %4611
      %v4631 = vmul.f32 %v4380, %v4578
      %v4632 = vmul.f32 %v4382, %v4580
      %v4633 = vmul.f32 %v4384, %v4582
      %v4634 = vmul.f32 %v4386, %v4584
      %v4635 = vmul.f32 %v4388, %v4586
      %v4636 = vmul.f32 %v4390, %v4588
      %v4637 = vmul.f32 %v4392, %v4590
      %v4638 = vmul.f32 %v4394, %v4592
      %v4639 = vmul.f32 %v4396, %v4594
      %v4640 = vmul.f32 %v4398, %v4596
      %v4641 = vmul.f32 %v4400, %v4598
      %v4642 = vmul.f32 %v4402, %v4600
      %v4643 = vmul.f32 %v4404, %v4602
      %v4644 = vmul.f32 %v4406, %v4604
      %v4645 = vmul.f32 %v4408, %v4606
      %v4646 = vmul.f32 %v4410, %v4608
      %v4647 = vmul.f32 %v4412, %v4610
      %v4648 = vmul.f32 %v4414, %v4612
      %4667 = vrot.lane.b32.xlu0 %v4631, 16
      %v4668 = vpop.permute.xlu0 %4667
      %4669 = vrot.lane.b32.xlu0 %v4632, 16
      %v4670 = vpop.permute.xlu0 %4669
      %4671 = vrot.lane.b32.xlu0 %v4633, 16
      %v4672 = vpop.permute.xlu0 %4671
      %4673 = vrot.lane.b32.xlu0 %v4634, 16
      %v4674 = vpop.permute.xlu0 %4673
      %4675 = vrot.lane.b32.xlu0 %v4635, 16
      %v4676 = vpop.permute.xlu0 %4675
      %4677 = vrot.lane.b32.xlu0 %v4636, 16
      %v4678 = vpop.permute.xlu0 %4677
      %4679 = vrot.lane.b32.xlu0 %v4637, 16
      %v4680 = vpop.permute.xlu0 %4679
      %4681 = vrot.lane.b32.xlu0 %v4638, 16
      %v4682 = vpop.permute.xlu0 %4681
      %4683 = vrot.lane.b32.xlu0 %v4639, 16
      %v4684 = vpop.permute.xlu0 %4683
      %4685 = vrot.lane.b32.xlu0 %v4640, 16
      %v4686 = vpop.permute.xlu0 %4685
      %4687 = vrot.lane.b32.xlu0 %v4641, 16
      %v4688 = vpop.permute.xlu0 %4687
      %4689 = vrot.lane.b32.xlu0 %v4642, 16
      %v4690 = vpop.permute.xlu0 %4689
      %4691 = vrot.lane.b32.xlu0 %v4643, 16
      %v4692 = vpop.permute.xlu0 %4691
      %4693 = vrot.lane.b32.xlu0 %v4644, 16
      %v4694 = vpop.permute.xlu0 %4693
      %4695 = vrot.lane.b32.xlu0 %v4645, 16
      %v4696 = vpop.permute.xlu0 %4695
      %4697 = vrot.lane.b32.xlu0 %v4646, 16
      %v4698 = vpop.permute.xlu0 %4697
      %4699 = vrot.lane.b32.xlu0 %v4647, 16
      %v4700 = vpop.permute.xlu0 %4699
      %4701 = vrot.lane.b32.xlu0 %v4648, 16
      %v4702 = vpop.permute.xlu0 %4701
      %v4721 = vadd.f32 %v4541, %v4668
      %v4722 = vadd.f32 %v4542, %v4670
      %v4723 = vadd.f32 %v4543, %v4672
      %v4724 = vadd.f32 %v4544, %v4674
      %v4725 = vadd.f32 %v4545, %v4676
      %v4726 = vadd.f32 %v4546, %v4678
      %v4727 = vadd.f32 %v4547, %v4680
      %v4728 = vadd.f32 %v4548, %v4682
      %v4729 = vadd.f32 %v4549, %v4684
      %v4730 = vadd.f32 %v4550, %v4686
      %v4731 = vadd.f32 %v4551, %v4688
      %v4732 = vadd.f32 %v4552, %v4690
      %v4733 = vadd.f32 %v4553, %v4692
      %v4734 = vadd.f32 %v4554, %v4694
      %v4735 = vadd.f32 %v4555, %v4696
      %v4736 = vadd.f32 %v4556, %v4698
      %v4737 = vadd.f32 %v4557, %v4700
      %v4738 = vadd.f32 %v4558, %v4702
      %v4739 = vtanh.pop %v4721
      %v4740 = vtanh.pop %v4722
      %v4741 = vtanh.pop %v4723
      %v4742 = vtanh.pop %v4724
      %v4743 = vtanh.pop %v4725
      %v4744 = vtanh.pop %v4726
      %v4745 = vtanh.pop %v4727
      %v4746 = vtanh.pop %v4728
      %v4747 = vtanh.pop %v4729
      %v4748 = vtanh.pop %v4730
      %v4749 = vtanh.pop %v4731
      %v4750 = vtanh.pop %v4732
      %v4751 = vtanh.pop %v4733
      %v4752 = vtanh.pop %v4734
      %v4753 = vtanh.pop %v4735
      %v4754 = vtanh.pop %v4736
      %v4755 = vtanh.pop %v4737
      %v4756 = vtanh.pop %v4738
      %4775 = vrot.lane.b32.xlu0 %v4739, 16
      %v4776 = vpop.permute.xlu0 %4775
      %4777 = vrot.lane.b32.xlu0 %v4740, 16
      %v4778 = vpop.permute.xlu0 %4777
      %4779 = vrot.lane.b32.xlu0 %v4741, 16
      %v4780 = vpop.permute.xlu0 %4779
      %4781 = vrot.lane.b32.xlu0 %v4742, 16
      %v4782 = vpop.permute.xlu0 %4781
      %4783 = vrot.lane.b32.xlu0 %v4743, 16
      %v4784 = vpop.permute.xlu0 %4783
      %4785 = vrot.lane.b32.xlu0 %v4744, 16
      %v4786 = vpop.permute.xlu0 %4785
      %4787 = vrot.lane.b32.xlu0 %v4745, 16
      %v4788 = vpop.permute.xlu0 %4787
      %4789 = vrot.lane.b32.xlu0 %v4746, 16
      %v4790 = vpop.permute.xlu0 %4789
      %4791 = vrot.lane.b32.xlu0 %v4747, 16
      %v4792 = vpop.permute.xlu0 %4791
      %4793 = vrot.lane.b32.xlu0 %v4748, 16
      %v4794 = vpop.permute.xlu0 %4793
      %4795 = vrot.lane.b32.xlu0 %v4749, 16
      %v4796 = vpop.permute.xlu0 %4795
      %4797 = vrot.lane.b32.xlu0 %v4750, 16
      %v4798 = vpop.permute.xlu0 %4797
      %4799 = vrot.lane.b32.xlu0 %v4751, 16
      %v4800 = vpop.permute.xlu0 %4799
      %4801 = vrot.lane.b32.xlu0 %v4752, 16
      %v4802 = vpop.permute.xlu0 %4801
      %4803 = vrot.lane.b32.xlu0 %v4753, 16
      %v4804 = vpop.permute.xlu0 %4803
      %4805 = vrot.lane.b32.xlu0 %v4754, 16
      %v4806 = vpop.permute.xlu0 %4805
      %4807 = vrot.lane.b32.xlu0 %v4755, 16
      %v4808 = vpop.permute.xlu0 %4807
      %4809 = vrot.lane.b32.xlu0 %v4756, 16
      %v4810 = vpop.permute.xlu0 %4809
      %v4829 = vmul.f32 %v4380, %v4776
      %v4830 = vmul.f32 %v4382, %v4778
      %v4831 = vmul.f32 %v4384, %v4780
      %v4832 = vmul.f32 %v4386, %v4782
      %v4833 = vmul.f32 %v4388, %v4784
      %v4834 = vmul.f32 %v4390, %v4786
      %v4835 = vmul.f32 %v4392, %v4788
      %v4836 = vmul.f32 %v4394, %v4790
      %v4837 = vmul.f32 %v4396, %v4792
      %v4838 = vmul.f32 %v4398, %v4794
      %v4839 = vmul.f32 %v4400, %v4796
      %v4840 = vmul.f32 %v4402, %v4798
      %v4841 = vmul.f32 %v4404, %v4800
      %v4842 = vmul.f32 %v4406, %v4802
      %v4843 = vmul.f32 %v4408, %v4804
      %v4844 = vmul.f32 %v4410, %v4806
      %v4845 = vmul.f32 %v4412, %v4808
      %v4846 = vmul.f32 %v4414, %v4810
      %4865 = vrot.lane.b32.xlu0 %v4433, 32
      %v4866 = vpop.permute.xlu0 %4865
      %4867 = vrot.lane.b32.xlu0 %v4434, 32
      %v4868 = vpop.permute.xlu0 %4867
      %4869 = vrot.lane.b32.xlu0 %v4435, 32
      %v4870 = vpop.permute.xlu0 %4869
      %4871 = vrot.lane.b32.xlu0 %v4436, 32
      %v4872 = vpop.permute.xlu0 %4871
      %4873 = vrot.lane.b32.xlu0 %v4437, 32
      %v4874 = vpop.permute.xlu0 %4873
      %4875 = vrot.lane.b32.xlu0 %v4438, 32
      %v4876 = vpop.permute.xlu0 %4875
      %4877 = vrot.lane.b32.xlu0 %v4439, 32
      %v4878 = vpop.permute.xlu0 %4877
      %4879 = vrot.lane.b32.xlu0 %v4440, 32
      %v4880 = vpop.permute.xlu0 %4879
      %4881 = vrot.lane.b32.xlu0 %v4441, 32
      %v4882 = vpop.permute.xlu0 %4881
      %4883 = vrot.lane.b32.xlu0 %v4442, 32
      %v4884 = vpop.permute.xlu0 %4883
      %4885 = vrot.lane.b32.xlu0 %v4443, 32
      %v4886 = vpop.permute.xlu0 %4885
      %4887 = vrot.lane.b32.xlu0 %v4444, 32
      %v4888 = vpop.permute.xlu0 %4887
      %4889 = vrot.lane.b32.xlu0 %v4445, 32
      %v4890 = vpop.permute.xlu0 %4889
      %4891 = vrot.lane.b32.xlu0 %v4446, 32
      %v4892 = vpop.permute.xlu0 %4891
      %4893 = vrot.lane.b32.xlu0 %v4447, 32
      %v4894 = vpop.permute.xlu0 %4893
      %4895 = vrot.lane.b32.xlu0 %v4448, 32
      %v4896 = vpop.permute.xlu0 %4895
      %4897 = vrot.lane.b32.xlu0 %v4449, 32
      %v4898 = vpop.permute.xlu0 %4897
      %4899 = vrot.lane.b32.xlu0 %v4450, 32
      %v4900 = vpop.permute.xlu0 %4899
      %v4919 = vmul.f32 %v4829, %v4866
      %v4920 = vmul.f32 %v4830, %v4868
      %v4921 = vmul.f32 %v4831, %v4870
      %v4922 = vmul.f32 %v4832, %v4872
      %v4923 = vmul.f32 %v4833, %v4874
      %v4924 = vmul.f32 %v4834, %v4876
      %v4925 = vmul.f32 %v4835, %v4878
      %v4926 = vmul.f32 %v4836, %v4880
      %v4927 = vmul.f32 %v4837, %v4882
      %v4928 = vmul.f32 %v4838, %v4884
      %v4929 = vmul.f32 %v4839, %v4886
      %v4930 = vmul.f32 %v4840, %v4888
      %v4931 = vmul.f32 %v4841, %v4890
      %v4932 = vmul.f32 %v4842, %v4892
      %v4933 = vmul.f32 %v4843, %v4894
      %v4934 = vmul.f32 %v4844, %v4896
      %v4935 = vmul.f32 %v4845, %v4898
      %v4936 = vmul.f32 %v4846, %v4900
      %4955 = vrot.lane.b32.xlu0 %v4721, 112
      %v4956 = vpop.permute.xlu0 %4955
      %4957 = vrot.lane.b32.xlu0 %v4722, 112
      %v4958 = vpop.permute.xlu0 %4957
      %4959 = vrot.lane.b32.xlu0 %v4723, 112
      %v4960 = vpop.permute.xlu0 %4959
      %4961 = vrot.lane.b32.xlu0 %v4724, 112
      %v4962 = vpop.permute.xlu0 %4961
      %4963 = vrot.lane.b32.xlu0 %v4725, 112
      %v4964 = vpop.permute.xlu0 %4963
      %4965 = vrot.lane.b32.xlu0 %v4726, 112
      %v4966 = vpop.permute.xlu0 %4965
      %4967 = vrot.lane.b32.xlu0 %v4727, 112
      %v4968 = vpop.permute.xlu0 %4967
      %4969 = vrot.lane.b32.xlu0 %v4728, 112
      %v4970 = vpop.permute.xlu0 %4969
      %4971 = vrot.lane.b32.xlu0 %v4729, 112
      %v4972 = vpop.permute.xlu0 %4971
      %4973 = vrot.lane.b32.xlu0 %v4730, 112
      %v4974 = vpop.permute.xlu0 %4973
      %4975 = vrot.lane.b32.xlu0 %v4731, 112
      %v4976 = vpop.permute.xlu0 %4975
      %4977 = vrot.lane.b32.xlu0 %v4732, 112
      %v4978 = vpop.permute.xlu0 %4977
      %4979 = vrot.lane.b32.xlu0 %v4733, 112
      %v4980 = vpop.permute.xlu0 %4979
      %4981 = vrot.lane.b32.xlu0 %v4734, 112
      %v4982 = vpop.permute.xlu0 %4981
      %4983 = vrot.lane.b32.xlu0 %v4735, 112
      %v4984 = vpop.permute.xlu0 %4983
      %4985 = vrot.lane.b32.xlu0 %v4736, 112
      %v4986 = vpop.permute.xlu0 %4985
      %4987 = vrot.lane.b32.xlu0 %v4737, 112
      %v4988 = vpop.permute.xlu0 %4987
      %4989 = vrot.lane.b32.xlu0 %v4738, 112
      %v4990 = vpop.permute.xlu0 %4989
      %5009 = vst.msk [vmem:[#allocation3] sm:$0xff] %vm1248, %v4956
      %5010 = vst.msk [vmem:[#allocation3 + $0x8] sm:$0xff] %vm1248, %v4958
      %5011 = vst.msk [vmem:[#allocation3 + $0x10] sm:$0xff] %vm1248, %v4960
      %5012 = vst.msk [vmem:[#allocation3 + $0x18] sm:$0xff] %vm1248, %v4962
      %5013 = vst.msk [vmem:[#allocation3 + $0x20] sm:$0xff] %vm1248, %v4964
      %5014 = vst.msk [vmem:[#allocation3 + $0x28] sm:$0xff] %vm1248, %v4966
      %5015 = vst.msk [vmem:[#allocation3 + $0x30] sm:$0xff] %vm1248, %v4968
      %5016 = vst.msk [vmem:[#allocation3 + $0x38] sm:$0xff] %vm1248, %v4970
      %5017 = vst.msk [vmem:[#allocation3 + $0x40] sm:$0xff] %vm1248, %v4972
      %5018 = vst.msk [vmem:[#allocation3 + $0x48] sm:$0xff] %vm1248, %v4974
      %5019 = vst.msk [vmem:[#allocation3 + $0x50] sm:$0xff] %vm1248, %v4976
      %5020 = vst.msk [vmem:[#allocation3 + $0x58] sm:$0xff] %vm1248, %v4978
      %5021 = vst.msk [vmem:[#allocation3 + $0x60] sm:$0xff] %vm1248, %v4980
      %5022 = vst.msk [vmem:[#allocation3 + $0x68] sm:$0xff] %vm1248, %v4982
      %5023 = vst.msk [vmem:[#allocation3 + $0x70] sm:$0xff] %vm1248, %v4984
      %5024 = vst.msk [vmem:[#allocation3 + $0x78] sm:$0xff] %vm1248, %v4986
      %5025 = vst.msk [vmem:[#allocation3 + $0x80] sm:$0xff] %vm1248, %v4988
      %5026 = vst.msk [vmem:[#allocation3 + $0x88] sm:$0xff] %vm1248, %v4990
      %5045 = vrot.lane.b32.xlu0 %v4919, 96
      %v5046 = vpop.permute.xlu0 %5045
      %5047 = vrot.lane.b32.xlu0 %v4920, 96
      %v5048 = vpop.permute.xlu0 %5047
      %5049 = vrot.lane.b32.xlu0 %v4921, 96
      %v5050 = vpop.permute.xlu0 %5049
      %5051 = vrot.lane.b32.xlu0 %v4922, 96
      %v5052 = vpop.permute.xlu0 %5051
      %5053 = vrot.lane.b32.xlu0 %v4923, 96
      %v5054 = vpop.permute.xlu0 %5053
      %5055 = vrot.lane.b32.xlu0 %v4924, 96
      %v5056 = vpop.permute.xlu0 %5055
      %5057 = vrot.lane.b32.xlu0 %v4925, 96
      %v5058 = vpop.permute.xlu0 %5057
      %5059 = vrot.lane.b32.xlu0 %v4926, 96
      %v5060 = vpop.permute.xlu0 %5059
      %5061 = vrot.lane.b32.xlu0 %v4927, 96
      %v5062 = vpop.permute.xlu0 %5061
      %5063 = vrot.lane.b32.xlu0 %v4928, 96
      %v5064 = vpop.permute.xlu0 %5063
      %5065 = vrot.lane.b32.xlu0 %v4929, 96
      %v5066 = vpop.permute.xlu0 %5065
      %5067 = vrot.lane.b32.xlu0 %v4930, 96
      %v5068 = vpop.permute.xlu0 %5067
      %5069 = vrot.lane.b32.xlu0 %v4931, 96
      %v5070 = vpop.permute.xlu0 %5069
      %5071 = vrot.lane.b32.xlu0 %v4932, 96
      %v5072 = vpop.permute.xlu0 %5071
      %5073 = vrot.lane.b32.xlu0 %v4933, 96
      %v5074 = vpop.permute.xlu0 %5073
      %5075 = vrot.lane.b32.xlu0 %v4934, 96
      %v5076 = vpop.permute.xlu0 %5075
      %5077 = vrot.lane.b32.xlu0 %v4935, 96
      %v5078 = vpop.permute.xlu0 %5077
      %5079 = vrot.lane.b32.xlu0 %v4936, 96
      %v5080 = vpop.permute.xlu0 %5079
      %5099 = vst.msk [vmem:[#allocation4] sm:$0xff] %vm1248, %v5046
      %5100 = vst.msk [vmem:[#allocation4 + $0x8] sm:$0xff] %vm1248, %v5048
      %5101 = vst.msk [vmem:[#allocation4 + $0x10] sm:$0xff] %vm1248, %v5050
      %5102 = vst.msk [vmem:[#allocation4 + $0x18] sm:$0xff] %vm1248, %v5052
      %5103 = vst.msk [vmem:[#allocation4 + $0x20] sm:$0xff] %vm1248, %v5054
      %5104 = vst.msk [vmem:[#allocation4 + $0x28] sm:$0xff] %vm1248, %v5056
      %5105 = vst.msk [vmem:[#allocation4 + $0x30] sm:$0xff] %vm1248, %v5058
      %5106 = vst.msk [vmem:[#allocation4 + $0x38] sm:$0xff] %vm1248, %v5060
      %5107 = vst.msk [vmem:[#allocation4 + $0x40] sm:$0xff] %vm1248, %v5062
      %5108 = vst.msk [vmem:[#allocation4 + $0x48] sm:$0xff] %vm1248, %v5064
      %5109 = vst.msk [vmem:[#allocation4 + $0x50] sm:$0xff] %vm1248, %v5066
      %5110 = vst.msk [vmem:[#allocation4 + $0x58] sm:$0xff] %vm1248, %v5068
      %5111 = vst.msk [vmem:[#allocation4 + $0x60] sm:$0xff] %vm1248, %v5070
      %5112 = vst.msk [vmem:[#allocation4 + $0x68] sm:$0xff] %vm1248, %v5072
      %5113 = vst.msk [vmem:[#allocation4 + $0x70] sm:$0xff] %vm1248, %v5074
      %5114 = vst.msk [vmem:[#allocation4 + $0x78] sm:$0xff] %vm1248, %v5076
      %5115 = vst.msk [vmem:[#allocation4 + $0x80] sm:$0xff] %vm1248, %v5078
      %5116 = vst.msk [vmem:[#allocation4 + $0x88] sm:$0xff] %vm1248, %v5080
      %p5117 = scmp.eq.s32.totalorder %s22, 5
      // Predicated region
      $region49: #{tpu_custom_call.1} parent=43 // pred_check
        %p5118 = pneg %p5117
      $region50: #{tpu_custom_call.1} parent=43 // pred_check_branch
        %5120 = sbr.rel (%p5118) target = $region52
      $region51: #{tpu_custom_call.1} parent=43 // pred_region
        %5121 = vst.msk [vmem:[%s277] sm:$0xff] %vm1248, %v5046
        %5122 = vst.msk [vmem:[%s277 + $0x8] sm:$0xff] %vm1248, %v5048
        %5123 = vst.msk [vmem:[%s277 + $0x10] sm:$0xff] %vm1248, %v5050
        %5124 = vst.msk [vmem:[%s277 + $0x18] sm:$0xff] %vm1248, %v5052
        %5125 = vst.msk [vmem:[%s277 + $0x20] sm:$0xff] %vm1248, %v5054
        %5126 = vst.msk [vmem:[%s277 + $0x28] sm:$0xff] %vm1248, %v5056
        %5127 = vst.msk [vmem:[%s277 + $0x30] sm:$0xff] %vm1248, %v5058
        %5128 = vst.msk [vmem:[%s277 + $0x38] sm:$0xff] %vm1248, %v5060
        %5129 = vst.msk [vmem:[%s277 + $0x40] sm:$0xff] %vm1248, %v5062
        %5130 = vst.msk [vmem:[%s277 + $0x48] sm:$0xff] %vm1248, %v5064
        %5131 = vst.msk [vmem:[%s277 + $0x50] sm:$0xff] %vm1248, %v5066
        %5132 = vst.msk [vmem:[%s277 + $0x58] sm:$0xff] %vm1248, %v5068
        %5133 = vst.msk [vmem:[%s277 + $0x60] sm:$0xff] %vm1248, %v5070
        %5134 = vst.msk [vmem:[%s277 + $0x68] sm:$0xff] %vm1248, %v5072
        %5135 = vst.msk [vmem:[%s277 + $0x70] sm:$0xff] %vm1248, %v5074
        %5136 = vst.msk [vmem:[%s277 + $0x78] sm:$0xff] %vm1248, %v5076
        %5137 = vst.msk [vmem:[%s277 + $0x80] sm:$0xff] %vm1248, %v5078
        %5138 = vst.msk [vmem:[%s277 + $0x88] sm:$0xff] %vm1248, %v5080
      $region52: #{tpu_custom_call.1} parent=43 // pred_fallthru
        _
      %v5139 = vld [vmem:[%s4] sm:$0x1]
      %v5141 = vlaneseq
      %v5142 = vshrl.u32 %v5141, 7
      %v5143 = vsub.s32 0, %v5142
      %v5144 = vrot.slane %v5139, %v5143
      %v5146 = vld [vmem:[#allocation2 + $0x48] sm:$0xf0]
      %v5147 = vld [vmem:[#allocation2 + $0x50] sm:$0xff]
      %v5148 = vld [vmem:[#allocation2 + $0x58] sm:$0xff]
      %v5149 = vld [vmem:[#allocation2 + $0x60] sm:$0xff]
      %v5150 = vld [vmem:[#allocation2 + $0x68] sm:$0xff]
      %v5151 = vld [vmem:[#allocation2 + $0x70] sm:$0xff]
      %v5152 = vld [vmem:[#allocation2 + $0x78] sm:$0xff]
      %v5153 = vld [vmem:[#allocation2 + $0x80] sm:$0xff]
      %v5154 = vld [vmem:[#allocation2 + $0x88] sm:$0xff]
      %v5155 = vld [vmem:[#allocation2 + $0x90] sm:$0xf]
      %v5156 = vld [vmem:[%s3] sm:$0xf]
      %v5157 = vld [vmem:[%s3 + $0x4] sm:$0xf]
      %v5158 = vld [vmem:[%s3 + $0x8] sm:$0xf]
      %v5159 = vld [vmem:[%s3 + $0xc] sm:$0xf]
      %v5160 = vld [vmem:[%s3 + $0x10] sm:$0xf]
      %v5161 = vld [vmem:[%s3 + $0x14] sm:$0xf]
      %v5162 = vld [vmem:[%s3 + $0x18] sm:$0xf]
      %v5163 = vld [vmem:[%s3 + $0x1c] sm:$0xf]
      %v5164 = vld [vmem:[%s3 + $0x20] sm:$0xf]
      %v5165 = vld [vmem:[%s3 + $0x24] sm:$0xf]
      %v5166 = vld [vmem:[%s3 + $0x28] sm:$0xf]
      %v5167 = vld [vmem:[%s3 + $0x2c] sm:$0xf]
      %v5178 = vrot.slane %v5146, 4
      %v5179 = vrot.slane %v5147, 4
      %v5180 = vsel %vm3654, %v5178, %v5179
      %v5181 = vrot.slane %v5148, 4
      %v5182 = vsel %vm3654, %v5179, %v5181
      %v5183 = vrot.slane %v5149, 4
      %v5184 = vsel %vm3654, %v5181, %v5183
      %v5185 = vrot.slane %v5150, 4
      %v5186 = vsel %vm3654, %v5183, %v5185
      %v5187 = vrot.slane %v5151, 4
      %v5188 = vsel %vm3654, %v5185, %v5187
      %v5189 = vrot.slane %v5152, 4
      %v5190 = vsel %vm3654, %v5187, %v5189
      %v5191 = vrot.slane %v5153, 4
      %v5192 = vsel %vm3654, %v5189, %v5191
      %v5193 = vrot.slane %v5154, 4
      %v5194 = vsel %vm3654, %v5191, %v5193
      %v5195 = vrot.slane %v5155, 4
      %v5196 = vsel %vm3654, %v5193, %v5195
      %v5209 = vunpack.c.l.b16 %v5156
      %v5210 = vunpack.c.l.b16 %v5157
      %v5211 = vunpack.c.l.b16 %v5158
      %v5212 = vunpack.c.l.b16 %v5159
      %v5213 = vunpack.c.l.b16 %v5160
      %v5214 = vunpack.c.l.b16 %v5161
      %v5215 = vunpack.c.l.b16 %v5162
      %v5216 = vunpack.c.l.b16 %v5163
      %v5217 = vunpack.c.l.b16 %v5164
      %v5218 = vunpack.c.l.b16 %v5165
      %v5219 = vunpack.c.l.b16 %v5166
      %v5220 = vunpack.c.l.b16 %v5167
      %v5221 = vpack.c.b16 %v5210, %v5209
      %v5222 = vpack.c.b16 %v5212, %v5211
      %v5223 = vpack.c.b16 %v5214, %v5213
      %v5224 = vpack.c.b16 %v5216, %v5215
      %v5225 = vpack.c.b16 %v5218, %v5217
      %v5226 = vpack.c.b16 %v5220, %v5219
      %v5234 = vsel %vm3710, %v5180, 0
      %v5237 = vsel %vm3710, %v5182, 0
      %v5240 = vsel %vm3710, %v5184, 0
      %v5243 = vsel %vm3710, %v5186, 0
      %v5246 = vsel %vm3710, %v5188, 0
      %v5249 = vsel %vm3710, %v5190, 0
      %v5252 = vsel %vm3710, %v5192, 0
      %v5255 = vsel %vm3710, %v5194, 0
      %v5258 = vsel %vm3710, %v5196, 0
      %5260 = vmatprep.subr.bf16.mxu0 0
      %5261 = vmatpush1.bf16.msra.mxu0 %v5221
      %5262 = vmatprep.subr.bf16.mxu0 0
      %5263 = vmatpush1.bf16.msra.mxu0 %v5222
      %5264 = vmatprep.subr.bf16.mxu0 0
      %5265 = vmatpush1.bf16.msra.mxu0 %v5223
      %5266 = vmatprep.subr.bf16.mxu0 0
      %5267 = vmatpush1.bf16.msra.mxu0 %v5224
      %5268 = vmatprep.subr.bf16.mxu0 0
      %5269 = vmatpush1.bf16.msra.mxu0 %v5225
      %5270 = vmatprep.subr.bf16.mxu0 0
      %5271 = vmatpush1.bf16.msra.mxu0 %v5226
      %5272 = vmatprep.subr.bf16.mxu0 0
      %5273 = vmatpush1.bf16.msra.mxu0 0
      %5274 = vmatprep.subr.bf16.mxu0 0
      %5275 = vmatpush1.bf16.msra.mxu0 0
      %5276 = vmatprep.subr.bf16.mxu0 0
      %5277 = vmatpush1.bf16.msra.mxu0 0
      %5278 = vmatprep.subr.bf16.mxu0 0
      %5279 = vmatpush1.bf16.msra.mxu0 0
      %5280 = vmatprep.subr.bf16.mxu0 0
      %5281 = vmatpush1.bf16.msra.mxu0 0
      %5282 = vmatprep.subr.bf16.mxu0 0
      %5283 = vmatpush1.bf16.msra.mxu0 0
      %5284 = vmatprep.subr.bf16.mxu0 0
      %5285 = vmatpush1.bf16.msra.mxu0 0
      %5286 = vmatprep.subr.bf16.mxu0 0
      %5287 = vmatpush1.bf16.msra.mxu0 0
      %5288 = vmatprep.subr.bf16.mxu0 0
      %5289 = vmatpush1.bf16.msra.mxu0 0
      %5290 = vmatprep.subr.bf16.mxu0 0
      %5291 = vmatpush1.bf16.msra.mxu0 0
      %5292 = vmatprep.mubr.bf16.mxu0 0
      %5293 = vmatmul.mubr.bf16.gmra.mrb[0].mxu0 %v5234
      %v5294 = vpop.f32.mrb[0].mxu0
      %v5295 = vadd.f32 0.0, %v5294
      %v5296 = vpop.f32.mrb[0].mxu0
      %v5297 = vpop.f32.mrb[0].mxu0
      %v5298 = vadd.f32 0.0, %v5297
      %v5299 = vpop.f32.mrb[0].mxu0
      %5300 = vmatprep.mubr.bf16.mxu0 0
      %5301 = vmatmul.mubr.bf16.gmra.mrb[0].mxu0 %v5237
      %v5302 = vpop.f32.mrb[0].mxu0
      %v5303 = vadd.f32 0.0, %v5302
      %v5304 = vpop.f32.mrb[0].mxu0
      %v5305 = vpop.f32.mrb[0].mxu0
      %v5306 = vadd.f32 0.0, %v5305
      %v5307 = vpop.f32.mrb[0].mxu0
      %5308 = vmatprep.mubr.bf16.mxu0 0
      %5309 = vmatmul.mubr.bf16.gmra.mrb[0].mxu0 %v5240
      %v5310 = vpop.f32.mrb[0].mxu0
      %v5311 = vadd.f32 0.0, %v5310
      %v5312 = vpop.f32.mrb[0].mxu0
      %v5313 = vpop.f32.mrb[0].mxu0
      %v5314 = vadd.f32 0.0, %v5313
      %v5315 = vpop.f32.mrb[0].mxu0
      %5316 = vmatprep.mubr.bf16.mxu0 0
      %5317 = vmatmul.mubr.bf16.gmra.mrb[0].mxu0 %v5243
      %v5318 = vpop.f32.mrb[0].mxu0
      %v5319 = vadd.f32 0.0, %v5318
      %v5320 = vpop.f32.mrb[0].mxu0
      %v5321 = vpop.f32.mrb[0].mxu0
      %v5322 = vadd.f32 0.0, %v5321
      %v5323 = vpop.f32.mrb[0].mxu0
      %5324 = vmatprep.mubr.bf16.mxu0 0
      %5325 = vmatmul.mubr.bf16.gmra.mrb[0].mxu0 %v5246
      %v5326 = vpop.f32.mrb[0].mxu0
      %v5327 = vadd.f32 0.0, %v5326
      %v5328 = vpop.f32.mrb[0].mxu0
      %v5329 = vpop.f32.mrb[0].mxu0
      %v5330 = vadd.f32 0.0, %v5329
      %v5331 = vpop.f32.mrb[0].mxu0
      %5332 = vmatprep.mubr.bf16.mxu0 0
      %5333 = vmatmul.mubr.bf16.gmra.mrb[0].mxu0 %v5249
      %v5334 = vpop.f32.mrb[0].mxu0
      %v5335 = vadd.f32 0.0, %v5334
      %v5336 = vpop.f32.mrb[0].mxu0
      %v5337 = vpop.f32.mrb[0].mxu0
      %v5338 = vadd.f32 0.0, %v5337
      %v5339 = vpop.f32.mrb[0].mxu0
      %5340 = vmatprep.mubr.bf16.mxu0 0
      %5341 = vmatmul.mubr.bf16.gmra.mrb[0].mxu0 %v5252
      %v5342 = vpop.f32.mrb[0].mxu0
      %v5343 = vadd.f32 0.0, %v5342
      %v5344 = vpop.f32.mrb[0].mxu0
      %v5345 = vpop.f32.mrb[0].mxu0
      %v5346 = vadd.f32 0.0, %v5345
      %v5347 = vpop.f32.mrb[0].mxu0
      %5348 = vmatprep.mubr.bf16.mxu0 0
      %5349 = vmatmul.mubr.bf16.gmra.mrb[0].mxu0 %v5255
      %v5350 = vpop.f32.mrb[0].mxu0
      %v5351 = vadd.f32 0.0, %v5350
      %v5352 = vpop.f32.mrb[0].mxu0
      %v5353 = vpop.f32.mrb[0].mxu0
      %v5354 = vadd.f32 0.0, %v5353
      %v5355 = vpop.f32.mrb[0].mxu0
      %5356 = vmatprep.mubr.bf16.mxu0 0
      %5357 = vmatmul.mubr.bf16.gmra.mrb[0].mxu0 %v5258
      %v5358 = vpop.f32.mrb[0].mxu0
      %v5359 = vadd.f32 0.0, %v5358
      %v5360 = vpop.f32.mrb[0].mxu0
      %v5361 = vpop.f32.mrb[0].mxu0
      %v5362 = vadd.f32 0.0, %v5361
      %v5363 = vpop.f32.mrb[0].mxu0
      %5364 = vdwg.mxu0
      %v5365 = vadd.f32 %v5144, %v5295
      %v5366 = vadd.f32 %v5144, %v5298
      %v5367 = vadd.f32 %v5144, %v5303
      %v5368 = vadd.f32 %v5144, %v5306
      %v5369 = vadd.f32 %v5144, %v5311
      %v5370 = vadd.f32 %v5144, %v5314
      %v5371 = vadd.f32 %v5144, %v5319
      %v5372 = vadd.f32 %v5144, %v5322
      %v5373 = vadd.f32 %v5144, %v5327
      %v5374 = vadd.f32 %v5144, %v5330
      %v5375 = vadd.f32 %v5144, %v5335
      %v5376 = vadd.f32 %v5144, %v5338
      %v5377 = vadd.f32 %v5144, %v5343
      %v5378 = vadd.f32 %v5144, %v5346
      %v5379 = vadd.f32 %v5144, %v5351
      %v5380 = vadd.f32 %v5144, %v5354
      %v5381 = vadd.f32 %v5144, %v5359
      %v5382 = vadd.f32 %v5144, %v5362
      %v5383 = vld [vmem:[#allocation2 + $0x58] sm:$0xff]
      %v5384 = vld [vmem:[#allocation2 + $0x60] sm:$0xff]
      %v5385 = vld [vmem:[#allocation2 + $0x68] sm:$0xff]
      %v5386 = vld [vmem:[#allocation2 + $0x70] sm:$0xff]
      %v5387 = vld [vmem:[#allocation2 + $0x78] sm:$0xff]
      %v5388 = vld [vmem:[#allocation2 + $0x80] sm:$0xff]
      %v5389 = vld [vmem:[#allocation2 + $0x88] sm:$0xff]
      %v5390 = vld [vmem:[#allocation2 + $0x90] sm:$0xff]
      %v5391 = vld [vmem:[#allocation2 + $0x98] sm:$0xff]
      %v5392 = vld [vmem:[%s3870] sm:$0xf]
      %v5393 = vld [vmem:[%s3870 + $0x4] sm:$0xf]
      %v5394 = vld [vmem:[%s3870 + $0x8] sm:$0xf]
      %v5395 = vld [vmem:[%s3870 + $0xc] sm:$0xf]
      %v5396 = vld [vmem:[%s3870 + $0x10] sm:$0xf]
      %v5397 = vld [vmem:[%s3870 + $0x14] sm:$0xf]
      %v5398 = vld [vmem:[%s3870 + $0x18] sm:$0xf]
      %v5399 = vld [vmem:[%s3870 + $0x1c] sm:$0xf]
      %v5400 = vld [vmem:[%s3870 + $0x20] sm:$0xf]
      %v5401 = vld [vmem:[%s3870 + $0x24] sm:$0xf]
      %v5402 = vld [vmem:[%s3870 + $0x28] sm:$0xf]
      %v5403 = vld [vmem:[%s3870 + $0x2c] sm:$0xf]
      %v5416 = vunpack.c.l.b16 %v5392
      %v5417 = vunpack.c.l.b16 %v5393
      %v5418 = vunpack.c.l.b16 %v5394
      %v5419 = vunpack.c.l.b16 %v5395
      %v5420 = vunpack.c.l.b16 %v5396
      %v5421 = vunpack.c.l.b16 %v5397
      %v5422 = vunpack.c.l.b16 %v5398
      %v5423 = vunpack.c.l.b16 %v5399
      %v5424 = vunpack.c.l.b16 %v5400
      %v5425 = vunpack.c.l.b16 %v5401
      %v5426 = vunpack.c.l.b16 %v5402
      %v5427 = vunpack.c.l.b16 %v5403
      %v5428 = vpack.c.b16 %v5417, %v5416
      %v5429 = vpack.c.b16 %v5419, %v5418
      %v5430 = vpack.c.b16 %v5421, %v5420
      %v5431 = vpack.c.b16 %v5423, %v5422
      %v5432 = vpack.c.b16 %v5425, %v5424
      %v5433 = vpack.c.b16 %v5427, %v5426
      %v5441 = vsel %vm3710, %v5383, 0
      %v5444 = vsel %vm3710, %v5384, 0
      %v5447 = vsel %vm3710, %v5385, 0
      %v5450 = vsel %vm3710, %v5386, 0
      %v5453 = vsel %vm3710, %v5387, 0
      %v5456 = vsel %vm3710, %v5388, 0
      %v5459 = vsel %vm3710, %v5389, 0
      %v5462 = vsel %vm3710, %v5390, 0
      %v5465 = vsel %vm3710, %v5391, 0
      %5467 = vmatprep.subr.bf16.mxu0 0
      %5468 = vmatpush1.bf16.msra.mxu0 %v5428
      %5469 = vmatprep.subr.bf16.mxu0 0
      %5470 = vmatpush1.bf16.msra.mxu0 %v5429
      %5471 = vmatprep.subr.bf16.mxu0 0
      %5472 = vmatpush1.bf16.msra.mxu0 %v5430
      %5473 = vmatprep.subr.bf16.mxu0 0
      %5474 = vmatpush1.bf16.msra.mxu0 %v5431
      %5475 = vmatprep.subr.bf16.mxu0 0
      %5476 = vmatpush1.bf16.msra.mxu0 %v5432
      %5477 = vmatprep.subr.bf16.mxu0 0
      %5478 = vmatpush1.bf16.msra.mxu0 %v5433
      %5479 = vmatprep.subr.bf16.mxu0 0
      %5480 = vmatpush1.bf16.msra.mxu0 0
      %5481 = vmatprep.subr.bf16.mxu0 0
      %5482 = vmatpush1.bf16.msra.mxu0 0
      %5483 = vmatprep.subr.bf16.mxu0 0
      %5484 = vmatpush1.bf16.msra.mxu0 0
      %5485 = vmatprep.subr.bf16.mxu0 0
      %5486 = vmatpush1.bf16.msra.mxu0 0
      %5487 = vmatprep.subr.bf16.mxu0 0
      %5488 = vmatpush1.bf16.msra.mxu0 0
      %5489 = vmatprep.subr.bf16.mxu0 0
      %5490 = vmatpush1.bf16.msra.mxu0 0
      %5491 = vmatprep.subr.bf16.mxu0 0
      %5492 = vmatpush1.bf16.msra.mxu0 0
      %5493 = vmatprep.subr.bf16.mxu0 0
      %5494 = vmatpush1.bf16.msra.mxu0 0
      %5495 = vmatprep.subr.bf16.mxu0 0
      %5496 = vmatpush1.bf16.msra.mxu0 0
      %5497 = vmatprep.subr.bf16.mxu0 0
      %5498 = vmatpush1.bf16.msra.mxu0 0
      %5499 = vmatprep.mubr.bf16.mxu0 0
      %5500 = vmatmul.mubr.bf16.gmra.mrb[0].mxu0 %v5441
      %v5501 = vpop.f32.mrb[0].mxu0
      %v5502 = vadd.f32 0.0, %v5501
      %v5503 = vpop.f32.mrb[0].mxu0
      %v5504 = vpop.f32.mrb[0].mxu0
      %v5505 = vadd.f32 0.0, %v5504
      %v5506 = vpop.f32.mrb[0].mxu0
      %5507 = vmatprep.mubr.bf16.mxu0 0
      %5508 = vmatmul.mubr.bf16.gmra.mrb[0].mxu0 %v5444
      %v5509 = vpop.f32.mrb[0].mxu0
      %v5510 = vadd.f32 0.0, %v5509
      %v5511 = vpop.f32.mrb[0].mxu0
      %v5512 = vpop.f32.mrb[0].mxu0
      %v5513 = vadd.f32 0.0, %v5512
      %v5514 = vpop.f32.mrb[0].mxu0
      %5515 = vmatprep.mubr.bf16.mxu0 0
      %5516 = vmatmul.mubr.bf16.gmra.mrb[0].mxu0 %v5447
      %v5517 = vpop.f32.mrb[0].mxu0
      %v5518 = vadd.f32 0.0, %v5517
      %v5519 = vpop.f32.mrb[0].mxu0
      %v5520 = vpop.f32.mrb[0].mxu0
      %v5521 = vadd.f32 0.0, %v5520
      %v5522 = vpop.f32.mrb[0].mxu0
      %5523 = vmatprep.mubr.bf16.mxu0 0
      %5524 = vmatmul.mubr.bf16.gmra.mrb[0].mxu0 %v5450
      %v5525 = vpop.f32.mrb[0].mxu0
      %v5526 = vadd.f32 0.0, %v5525
      %v5527 = vpop.f32.mrb[0].mxu0
      %v5528 = vpop.f32.mrb[0].mxu0
      %v5529 = vadd.f32 0.0, %v5528
      %v5530 = vpop.f32.mrb[0].mxu0
      %5531 = vmatprep.mubr.bf16.mxu0 0
      %5532 = vmatmul.mubr.bf16.gmra.mrb[0].mxu0 %v5453
      %v5533 = vpop.f32.mrb[0].mxu0
      %v5534 = vadd.f32 0.0, %v5533
      %v5535 = vpop.f32.mrb[0].mxu0
      %v5536 = vpop.f32.mrb[0].mxu0
      %v5537 = vadd.f32 0.0, %v5536
      %v5538 = vpop.f32.mrb[0].mxu0
      %5539 = vmatprep.mubr.bf16.mxu0 0
      %5540 = vmatmul.mubr.bf16.gmra.mrb[0].mxu0 %v5456
      %v5541 = vpop.f32.mrb[0].mxu0
      %v5542 = vadd.f32 0.0, %v5541
      %v5543 = vpop.f32.mrb[0].mxu0
      %v5544 = vpop.f32.mrb[0].mxu0
      %v5545 = vadd.f32 0.0, %v5544
      %v5546 = vpop.f32.mrb[0].mxu0
      %5547 = vmatprep.mubr.bf16.mxu0 0
      %5548 = vmatmul.mubr.bf16.gmra.mrb[0].mxu0 %v5459
      %v5549 = vpop.f32.mrb[0].mxu0
      %v5550 = vadd.f32 0.0, %v5549
      %v5551 = vpop.f32.mrb[0].mxu0
      %v5552 = vpop.f32.mrb[0].mxu0
      %v5553 = vadd.f32 0.0, %v5552
      %v5554 = vpop.f32.mrb[0].mxu0
      %5555 = vmatprep.mubr.bf16.mxu0 0
      %5556 = vmatmul.mubr.bf16.gmra.mrb[0].mxu0 %v5462
      %v5557 = vpop.f32.mrb[0].mxu0
      %v5558 = vadd.f32 0.0, %v5557
      %v5559 = vpop.f32.mrb[0].mxu0
      %v5560 = vpop.f32.mrb[0].mxu0
      %v5561 = vadd.f32 0.0, %v5560
      %v5562 = vpop.f32.mrb[0].mxu0
      %5563 = vmatprep.mubr.bf16.mxu0 0
      %5564 = vmatmul.mubr.bf16.gmra.mrb[0].mxu0 %v5465
      %v5565 = vpop.f32.mrb[0].mxu0
      %v5566 = vadd.f32 0.0, %v5565
      %v5567 = vpop.f32.mrb[0].mxu0
      %v5568 = vpop.f32.mrb[0].mxu0
      %v5569 = vadd.f32 0.0, %v5568
      %v5570 = vpop.f32.mrb[0].mxu0
      %5571 = vdwg.mxu0
      %v5572 = vadd.f32 %v5365, %v5502
      %v5573 = vadd.f32 %v5366, %v5505
      %v5574 = vadd.f32 %v5367, %v5510
      %v5575 = vadd.f32 %v5368, %v5513
      %v5576 = vadd.f32 %v5369, %v5518
      %v5577 = vadd.f32 %v5370, %v5521
      %v5578 = vadd.f32 %v5371, %v5526
      %v5579 = vadd.f32 %v5372, %v5529
      %v5580 = vadd.f32 %v5373, %v5534
      %v5581 = vadd.f32 %v5374, %v5537
      %v5582 = vadd.f32 %v5375, %v5542
      %v5583 = vadd.f32 %v5376, %v5545
      %v5584 = vadd.f32 %v5377, %v5550
      %v5585 = vadd.f32 %v5378, %v5553
      %v5586 = vadd.f32 %v5379, %v5558
      %v5587 = vadd.f32 %v5380, %v5561
      %v5588 = vadd.f32 %v5381, %v5566
      %v5589 = vadd.f32 %v5382, %v5569
      %v5590 = vld [vmem:[#allocation2 + $0x60] sm:$0xf0]
      %v5591 = vld [vmem:[#allocation2 + $0x68] sm:$0xff]
      %v5592 = vld [vmem:[#allocation2 + $0x70] sm:$0xff]
      %v5593 = vld [vmem:[#allocation2 + $0x78] sm:$0xff]
      %v5594 = vld [vmem:[#allocation2 + $0x80] sm:$0xff]
      %v5595 = vld [vmem:[#allocation2 + $0x88] sm:$0xff]
      %v5596 = vld [vmem:[#allocation2 + $0x90] sm:$0xff]
      %v5597 = vld [vmem:[#allocation2 + $0x98] sm:$0xff]
      %v5598 = vld [vmem:[#allocation2 + $0xa0] sm:$0xff]
      %v5599 = vld [vmem:[#allocation2 + $0xa8] sm:$0xf]
      %v5600 = vld [vmem:[%s4079] sm:$0xf]
      %v5601 = vld [vmem:[%s4079 + $0x4] sm:$0xf]
      %v5602 = vld [vmem:[%s4079 + $0x8] sm:$0xf]
      %v5603 = vld [vmem:[%s4079 + $0xc] sm:$0xf]
      %v5604 = vld [vmem:[%s4079 + $0x10] sm:$0xf]
      %v5605 = vld [vmem:[%s4079 + $0x14] sm:$0xf]
      %v5606 = vld [vmem:[%s4079 + $0x18] sm:$0xf]
      %v5607 = vld [vmem:[%s4079 + $0x1c] sm:$0xf]
      %v5608 = vld [vmem:[%s4079 + $0x20] sm:$0xf]
      %v5609 = vld [vmem:[%s4079 + $0x24] sm:$0xf]
      %v5610 = vld [vmem:[%s4079 + $0x28] sm:$0xf]
      %v5611 = vld [vmem:[%s4079 + $0x2c] sm:$0xf]
      %v5622 = vrot.slane %v5590, 4
      %v5623 = vrot.slane %v5591, 4
      %v5624 = vsel %vm3654, %v5622, %v5623
      %v5625 = vrot.slane %v5592, 4
      %v5626 = vsel %vm3654, %v5623, %v5625
      %v5627 = vrot.slane %v5593, 4
      %v5628 = vsel %vm3654, %v5625, %v5627
      %v5629 = vrot.slane %v5594, 4
      %v5630 = vsel %vm3654, %v5627, %v5629
      %v5631 = vrot.slane %v5595, 4
      %v5632 = vsel %vm3654, %v5629, %v5631
      %v5633 = vrot.slane %v5596, 4
      %v5634 = vsel %vm3654, %v5631, %v5633
      %v5635 = vrot.slane %v5597, 4
      %v5636 = vsel %vm3654, %v5633, %v5635
      %v5637 = vrot.slane %v5598, 4
      %v5638 = vsel %vm3654, %v5635, %v5637
      %v5639 = vrot.slane %v5599, 4
      %v5640 = vsel %vm3654, %v5637, %v5639
      %v5653 = vunpack.c.l.b16 %v5600
      %v5654 = vunpack.c.l.b16 %v5601
      %v5655 = vunpack.c.l.b16 %v5602
      %v5656 = vunpack.c.l.b16 %v5603
      %v5657 = vunpack.c.l.b16 %v5604
      %v5658 = vunpack.c.l.b16 %v5605
      %v5659 = vunpack.c.l.b16 %v5606
      %v5660 = vunpack.c.l.b16 %v5607
      %v5661 = vunpack.c.l.b16 %v5608
      %v5662 = vunpack.c.l.b16 %v5609
      %v5663 = vunpack.c.l.b16 %v5610
      %v5664 = vunpack.c.l.b16 %v5611
      %v5665 = vpack.c.b16 %v5654, %v5653
      %v5666 = vpack.c.b16 %v5656, %v5655
      %v5667 = vpack.c.b16 %v5658, %v5657
      %v5668 = vpack.c.b16 %v5660, %v5659
      %v5669 = vpack.c.b16 %v5662, %v5661
      %v5670 = vpack.c.b16 %v5664, %v5663
      %v5678 = vsel %vm3710, %v5624, 0
      %v5681 = vsel %vm3710, %v5626, 0
      %v5684 = vsel %vm3710, %v5628, 0
      %v5687 = vsel %vm3710, %v5630, 0
      %v5690 = vsel %vm3710, %v5632, 0
      %v5693 = vsel %vm3710, %v5634, 0
      %v5696 = vsel %vm3710, %v5636, 0
      %v5699 = vsel %vm3710, %v5638, 0
      %v5702 = vsel %vm3710, %v5640, 0
      %5704 = vmatprep.subr.bf16.mxu0 0
      %5705 = vmatpush1.bf16.msra.mxu0 %v5665
      %5706 = vmatprep.subr.bf16.mxu0 0
      %5707 = vmatpush1.bf16.msra.mxu0 %v5666
      %5708 = vmatprep.subr.bf16.mxu0 0
      %5709 = vmatpush1.bf16.msra.mxu0 %v5667
      %5710 = vmatprep.subr.bf16.mxu0 0
      %5711 = vmatpush1.bf16.msra.mxu0 %v5668
      %5712 = vmatprep.subr.bf16.mxu0 0
      %5713 = vmatpush1.bf16.msra.mxu0 %v5669
      %5714 = vmatprep.subr.bf16.mxu0 0
      %5715 = vmatpush1.bf16.msra.mxu0 %v5670
      %5716 = vmatprep.subr.bf16.mxu0 0
      %5717 = vmatpush1.bf16.msra.mxu0 0
      %5718 = vmatprep.subr.bf16.mxu0 0
      %5719 = vmatpush1.bf16.msra.mxu0 0
      %5720 = vmatprep.subr.bf16.mxu0 0
      %5721 = vmatpush1.bf16.msra.mxu0 0
      %5722 = vmatprep.subr.bf16.mxu0 0
      %5723 = vmatpush1.bf16.msra.mxu0 0
      %5724 = vmatprep.subr.bf16.mxu0 0
      %5725 = vmatpush1.bf16.msra.mxu0 0
      %5726 = vmatprep.subr.bf16.mxu0 0
      %5727 = vmatpush1.bf16.msra.mxu0 0
      %5728 = vmatprep.subr.bf16.mxu0 0
      %5729 = vmatpush1.bf16.msra.mxu0 0
      %5730 = vmatprep.subr.bf16.mxu0 0
      %5731 = vmatpush1.bf16.msra.mxu0 0
      %5732 = vmatprep.subr.bf16.mxu0 0
      %5733 = vmatpush1.bf16.msra.mxu0 0
      %5734 = vmatprep.subr.bf16.mxu0 0
      %5735 = vmatpush1.bf16.msra.mxu0 0
      %5736 = vmatprep.mubr.bf16.mxu0 0
      %5737 = vmatmul.mubr.bf16.gmra.mrb[0].mxu0 %v5678
      %v5738 = vpop.f32.mrb[0].mxu0
      %v5739 = vadd.f32 0.0, %v5738
      %v5740 = vpop.f32.mrb[0].mxu0
      %v5741 = vpop.f32.mrb[0].mxu0
      %v5742 = vadd.f32 0.0, %v5741
      %v5743 = vpop.f32.mrb[0].mxu0
      %5744 = vmatprep.mubr.bf16.mxu0 0
      %5745 = vmatmul.mubr.bf16.gmra.mrb[0].mxu0 %v5681
      %v5746 = vpop.f32.mrb[0].mxu0
      %v5747 = vadd.f32 0.0, %v5746
      %v5748 = vpop.f32.mrb[0].mxu0
      %v5749 = vpop.f32.mrb[0].mxu0
      %v5750 = vadd.f32 0.0, %v5749
      %v5751 = vpop.f32.mrb[0].mxu0
      %5752 = vmatprep.mubr.bf16.mxu0 0
      %5753 = vmatmul.mubr.bf16.gmra.mrb[0].mxu0 %v5684
      %v5754 = vpop.f32.mrb[0].mxu0
      %v5755 = vadd.f32 0.0, %v5754
      %v5756 = vpop.f32.mrb[0].mxu0
      %v5757 = vpop.f32.mrb[0].mxu0
      %v5758 = vadd.f32 0.0, %v5757
      %v5759 = vpop.f32.mrb[0].mxu0
      %5760 = vmatprep.mubr.bf16.mxu0 0
      %5761 = vmatmul.mubr.bf16.gmra.mrb[0].mxu0 %v5687
      %v5762 = vpop.f32.mrb[0].mxu0
      %v5763 = vadd.f32 0.0, %v5762
      %v5764 = vpop.f32.mrb[0].mxu0
      %v5765 = vpop.f32.mrb[0].mxu0
      %v5766 = vadd.f32 0.0, %v5765
      %v5767 = vpop.f32.mrb[0].mxu0
      %5768 = vmatprep.mubr.bf16.mxu0 0
      %5769 = vmatmul.mubr.bf16.gmra.mrb[0].mxu0 %v5690
      %v5770 = vpop.f32.mrb[0].mxu0
      %v5771 = vadd.f32 0.0, %v5770
      %v5772 = vpop.f32.mrb[0].mxu0
      %v5773 = vpop.f32.mrb[0].mxu0
      %v5774 = vadd.f32 0.0, %v5773
      %v5775 = vpop.f32.mrb[0].mxu0
      %5776 = vmatprep.mubr.bf16.mxu0 0
      %5777 = vmatmul.mubr.bf16.gmra.mrb[0].mxu0 %v5693
      %v5778 = vpop.f32.mrb[0].mxu0
      %v5779 = vadd.f32 0.0, %v5778
      %v5780 = vpop.f32.mrb[0].mxu0
      %v5781 = vpop.f32.mrb[0].mxu0
      %v5782 = vadd.f32 0.0, %v5781
      %v5783 = vpop.f32.mrb[0].mxu0
      %5784 = vmatprep.mubr.bf16.mxu0 0
      %5785 = vmatmul.mubr.bf16.gmra.mrb[0].mxu0 %v5696
      %v5786 = vpop.f32.mrb[0].mxu0
      %v5787 = vadd.f32 0.0, %v5786
      %v5788 = vpop.f32.mrb[0].mxu0
      %v5789 = vpop.f32.mrb[0].mxu0
      %v5790 = vadd.f32 0.0, %v5789
      %v5791 = vpop.f32.mrb[0].mxu0
      %5792 = vmatprep.mubr.bf16.mxu0 0
      %5793 = vmatmul.mubr.bf16.gmra.mrb[0].mxu0 %v5699
      %v5794 = vpop.f32.mrb[0].mxu0
      %v5795 = vadd.f32 0.0, %v5794
      %v5796 = vpop.f32.mrb[0].mxu0
      %v5797 = vpop.f32.mrb[0].mxu0
      %v5798 = vadd.f32 0.0, %v5797
      %v5799 = vpop.f32.mrb[0].mxu0
      %5800 = vmatprep.mubr.bf16.mxu0 0
      %5801 = vmatmul.mubr.bf16.gmra.mrb[0].mxu0 %v5702
      %v5802 = vpop.f32.mrb[0].mxu0
      %v5803 = vadd.f32 0.0, %v5802
      %v5804 = vpop.f32.mrb[0].mxu0
      %v5805 = vpop.f32.mrb[0].mxu0
      %v5806 = vadd.f32 0.0, %v5805
      %v5807 = vpop.f32.mrb[0].mxu0
      %5808 = vdwg.mxu0
      %v5809 = vadd.f32 %v5572, %v5739
      %v5810 = vadd.f32 %v5573, %v5742
      %v5811 = vadd.f32 %v5574, %v5747
      %v5812 = vadd.f32 %v5575, %v5750
      %v5813 = vadd.f32 %v5576, %v5755
      %v5814 = vadd.f32 %v5577, %v5758
      %v5815 = vadd.f32 %v5578, %v5763
      %v5816 = vadd.f32 %v5579, %v5766
      %v5817 = vadd.f32 %v5580, %v5771
      %v5818 = vadd.f32 %v5581, %v5774
      %v5819 = vadd.f32 %v5582, %v5779
      %v5820 = vadd.f32 %v5583, %v5782
      %v5821 = vadd.f32 %v5584, %v5787
      %v5822 = vadd.f32 %v5585, %v5790
      %v5823 = vadd.f32 %v5586, %v5795
      %v5824 = vadd.f32 %v5587, %v5798
      %v5825 = vadd.f32 %v5588, %v5803
      %v5826 = vadd.f32 %v5589, %v5806
      %v5827 = vxor.u32 %v5809, 2147483648
      %v5828 = vxor.u32 %v5810, 2147483648
      %v5829 = vxor.u32 %v5811, 2147483648
      %v5830 = vxor.u32 %v5812, 2147483648
      %v5831 = vxor.u32 %v5813, 2147483648
      %v5832 = vxor.u32 %v5814, 2147483648
      %v5833 = vxor.u32 %v5815, 2147483648
      %v5834 = vxor.u32 %v5816, 2147483648
      %v5835 = vxor.u32 %v5817, 2147483648
      %v5836 = vxor.u32 %v5818, 2147483648
      %v5837 = vxor.u32 %v5819, 2147483648
      %v5838 = vxor.u32 %v5820, 2147483648
      %v5839 = vxor.u32 %v5821, 2147483648
      %v5840 = vxor.u32 %v5822, 2147483648
      %v5841 = vxor.u32 %v5823, 2147483648
      %v5842 = vxor.u32 %v5824, 2147483648
      %v5843 = vxor.u32 %v5825, 2147483648
      %v5844 = vxor.u32 %v5826, 2147483648
      %v5845 = vmul.f32 %v5827, 1.442695
      %v5846 = vpow.pop %v5845
      %v5847 = vmul.f32 %v5828, 1.442695
      %v5848 = vpow.pop %v5847
      %v5849 = vmul.f32 %v5829, 1.442695
      %v5850 = vpow.pop %v5849
      %v5851 = vmul.f32 %v5830, 1.442695
      %v5852 = vpow.pop %v5851
      %v5853 = vmul.f32 %v5831, 1.442695
      %v5854 = vpow.pop %v5853
      %v5855 = vmul.f32 %v5832, 1.442695
      %v5856 = vpow.pop %v5855
      %v5857 = vmul.f32 %v5833, 1.442695
      %v5858 = vpow.pop %v5857
      %v5859 = vmul.f32 %v5834, 1.442695
      %v5860 = vpow.pop %v5859
      %v5861 = vmul.f32 %v5835, 1.442695
      %v5862 = vpow.pop %v5861
      %v5863 = vmul.f32 %v5836, 1.442695
      %v5864 = vpow.pop %v5863
      %v5865 = vmul.f32 %v5837, 1.442695
      %v5866 = vpow.pop %v5865
      %v5867 = vmul.f32 %v5838, 1.442695
      %v5868 = vpow.pop %v5867
      %v5869 = vmul.f32 %v5839, 1.442695
      %v5870 = vpow.pop %v5869
      %v5871 = vmul.f32 %v5840, 1.442695
      %v5872 = vpow.pop %v5871
      %v5873 = vmul.f32 %v5841, 1.442695
      %v5874 = vpow.pop %v5873
      %v5875 = vmul.f32 %v5842, 1.442695
      %v5876 = vpow.pop %v5875
      %v5877 = vmul.f32 %v5843, 1.442695
      %v5878 = vpow.pop %v5877
      %v5879 = vmul.f32 %v5844, 1.442695
      %v5880 = vpow.pop %v5879
      %v5881 = vadd.f32 %v5846, 1.0
      %v5882 = vadd.f32 %v5848, 1.0
      %v5883 = vadd.f32 %v5850, 1.0
      %v5884 = vadd.f32 %v5852, 1.0
      %v5885 = vadd.f32 %v5854, 1.0
      %v5886 = vadd.f32 %v5856, 1.0
      %v5887 = vadd.f32 %v5858, 1.0
      %v5888 = vadd.f32 %v5860, 1.0
      %v5889 = vadd.f32 %v5862, 1.0
      %v5890 = vadd.f32 %v5864, 1.0
      %v5891 = vadd.f32 %v5866, 1.0
      %v5892 = vadd.f32 %v5868, 1.0
      %v5893 = vadd.f32 %v5870, 1.0
      %v5894 = vadd.f32 %v5872, 1.0
      %v5895 = vadd.f32 %v5874, 1.0
      %v5896 = vadd.f32 %v5876, 1.0
      %v5897 = vadd.f32 %v5878, 1.0
      %v5898 = vadd.f32 %v5880, 1.0
      %v5899 = vrcp.pop %v5881
      %v5900 = vmul.f32 1.0, %v5899
      %v5901 = vrcp.pop %v5882
      %v5902 = vmul.f32 1.0, %v5901
      %v5903 = vrcp.pop %v5883
      %v5904 = vmul.f32 1.0, %v5903
      %v5905 = vrcp.pop %v5884
      %v5906 = vmul.f32 1.0, %v5905
      %v5907 = vrcp.pop %v5885
      %v5908 = vmul.f32 1.0, %v5907
      %v5909 = vrcp.pop %v5886
      %v5910 = vmul.f32 1.0, %v5909
      %v5911 = vrcp.pop %v5887
      %v5912 = vmul.f32 1.0, %v5911
      %v5913 = vrcp.pop %v5888
      %v5914 = vmul.f32 1.0, %v5913
      %v5915 = vrcp.pop %v5889
      %v5916 = vmul.f32 1.0, %v5915
      %v5917 = vrcp.pop %v5890
      %v5918 = vmul.f32 1.0, %v5917
      %v5919 = vrcp.pop %v5891
      %v5920 = vmul.f32 1.0, %v5919
      %v5921 = vrcp.pop %v5892
      %v5922 = vmul.f32 1.0, %v5921
      %v5923 = vrcp.pop %v5893
      %v5924 = vmul.f32 1.0, %v5923
      %v5925 = vrcp.pop %v5894
      %v5926 = vmul.f32 1.0, %v5925
      %v5927 = vrcp.pop %v5895
      %v5928 = vmul.f32 1.0, %v5927
      %v5929 = vrcp.pop %v5896
      %v5930 = vmul.f32 1.0, %v5929
      %v5931 = vrcp.pop %v5897
      %v5932 = vmul.f32 1.0, %v5931
      %v5933 = vrcp.pop %v5898
      %v5934 = vmul.f32 1.0, %v5933
      %v5935 = vtanh.pop %v5809
      %v5936 = vtanh.pop %v5810
      %v5937 = vtanh.pop %v5811
      %v5938 = vtanh.pop %v5812
      %v5939 = vtanh.pop %v5813
      %v5940 = vtanh.pop %v5814
      %v5941 = vtanh.pop %v5815
      %v5942 = vtanh.pop %v5816
      %v5943 = vtanh.pop %v5817
      %v5944 = vtanh.pop %v5818
      %v5945 = vtanh.pop %v5819
      %v5946 = vtanh.pop %v5820
      %v5947 = vtanh.pop %v5821
      %v5948 = vtanh.pop %v5822
      %v5949 = vtanh.pop %v5823
      %v5950 = vtanh.pop %v5824
      %v5951 = vtanh.pop %v5825
      %v5952 = vtanh.pop %v5826
      %v5953 = vld [vmem:[%s5 + $0x90] sm:$0xff]
      %v5954 = vld [vmem:[%s5 + $0x98] sm:$0xff]
      %v5955 = vld [vmem:[%s5 + $0xa0] sm:$0xff]
      %v5956 = vld [vmem:[%s5 + $0xa8] sm:$0xff]
      %v5957 = vld [vmem:[%s5 + $0xb0] sm:$0xff]
      %v5958 = vld [vmem:[%s5 + $0xb8] sm:$0xff]
      %v5959 = vld [vmem:[%s5 + $0xc0] sm:$0xff]
      %v5960 = vld [vmem:[%s5 + $0xc8] sm:$0xff]
      %v5961 = vld [vmem:[%s5 + $0xd0] sm:$0xff]
      %v5962 = vld [vmem:[%s5 + $0xd8] sm:$0xff]
      %v5963 = vld [vmem:[%s5 + $0xe0] sm:$0xff]
      %v5964 = vld [vmem:[%s5 + $0xe8] sm:$0xff]
      %v5965 = vld [vmem:[%s5 + $0xf0] sm:$0xff]
      %v5966 = vld [vmem:[%s5 + $0xf8] sm:$0xff]
      %v5967 = vld [vmem:[%s5 + $0x100] sm:$0xff]
      %v5968 = vld [vmem:[%s5 + $0x108] sm:$0xff]
      %v5969 = vld [vmem:[%s5 + $0x110] sm:$0xff]
      %v5970 = vld [vmem:[%s5 + $0x118] sm:$0xff]
      %v5971 = vld [vmem:[#allocation3 + $0x90] sm:$0xff]
      %v5972 = vld [vmem:[#allocation3 + $0x98] sm:$0xff]
      %v5973 = vld [vmem:[#allocation3 + $0xa0] sm:$0xff]
      %v5974 = vld [vmem:[#allocation3 + $0xa8] sm:$0xff]
      %v5975 = vld [vmem:[#allocation3 + $0xb0] sm:$0xff]
      %v5976 = vld [vmem:[#allocation3 + $0xb8] sm:$0xff]
      %v5977 = vld [vmem:[#allocation3 + $0xc0] sm:$0xff]
      %v5978 = vld [vmem:[#allocation3 + $0xc8] sm:$0xff]
      %v5979 = vld [vmem:[#allocation3 + $0xd0] sm:$0xff]
      %v5980 = vld [vmem:[#allocation3 + $0xd8] sm:$0xff]
      %v5981 = vld [vmem:[#allocation3 + $0xe0] sm:$0xff]
      %v5982 = vld [vmem:[#allocation3 + $0xe8] sm:$0xff]
      %v5983 = vld [vmem:[#allocation3 + $0xf0] sm:$0xff]
      %v5984 = vld [vmem:[#allocation3 + $0xf8] sm:$0xff]
      %v5985 = vld [vmem:[#allocation3 + $0x100] sm:$0xff]
      %v5986 = vld [vmem:[#allocation3 + $0x108] sm:$0xff]
      %v5987 = vld [vmem:[#allocation3 + $0x110] sm:$0xff]
      %v5988 = vld [vmem:[#allocation3 + $0x118] sm:$0xff]
      %6007 = vrot.lane.b32.xlu0 %v5971, 16
      %v6008 = vpop.permute.xlu0 %6007
      %6009 = vrot.lane.b32.xlu0 %v5972, 16
      %v6010 = vpop.permute.xlu0 %6009
      %6011 = vrot.lane.b32.xlu0 %v5973, 16
      %v6012 = vpop.permute.xlu0 %6011
      %6013 = vrot.lane.b32.xlu0 %v5974, 16
      %v6014 = vpop.permute.xlu0 %6013
      %6015 = vrot.lane.b32.xlu0 %v5975, 16
      %v6016 = vpop.permute.xlu0 %6015
      %6017 = vrot.lane.b32.xlu0 %v5976, 16
      %v6018 = vpop.permute.xlu0 %6017
      %6019 = vrot.lane.b32.xlu0 %v5977, 16
      %v6020 = vpop.permute.xlu0 %6019
      %6021 = vrot.lane.b32.xlu0 %v5978, 16
      %v6022 = vpop.permute.xlu0 %6021
      %6023 = vrot.lane.b32.xlu0 %v5979, 16
      %v6024 = vpop.permute.xlu0 %6023
      %6025 = vrot.lane.b32.xlu0 %v5980, 16
      %v6026 = vpop.permute.xlu0 %6025
      %6027 = vrot.lane.b32.xlu0 %v5981, 16
      %v6028 = vpop.permute.xlu0 %6027
      %6029 = vrot.lane.b32.xlu0 %v5982, 16
      %v6030 = vpop.permute.xlu0 %6029
      %6031 = vrot.lane.b32.xlu0 %v5983, 16
      %v6032 = vpop.permute.xlu0 %6031
      %6033 = vrot.lane.b32.xlu0 %v5984, 16
      %v6034 = vpop.permute.xlu0 %6033
      %6035 = vrot.lane.b32.xlu0 %v5985, 16
      %v6036 = vpop.permute.xlu0 %6035
      %6037 = vrot.lane.b32.xlu0 %v5986, 16
      %v6038 = vpop.permute.xlu0 %6037
      %6039 = vrot.lane.b32.xlu0 %v5987, 16
      %v6040 = vpop.permute.xlu0 %6039
      %6041 = vrot.lane.b32.xlu0 %v5988, 16
      %v6042 = vpop.permute.xlu0 %6041
      %v6061 = vmul.f32 %v5900, %v6008
      %v6062 = vmul.f32 %v5902, %v6010
      %v6063 = vmul.f32 %v5904, %v6012
      %v6064 = vmul.f32 %v5906, %v6014
      %v6065 = vmul.f32 %v5908, %v6016
      %v6066 = vmul.f32 %v5910, %v6018
      %v6067 = vmul.f32 %v5912, %v6020
      %v6068 = vmul.f32 %v5914, %v6022
      %v6069 = vmul.f32 %v5916, %v6024
      %v6070 = vmul.f32 %v5918, %v6026
      %v6071 = vmul.f32 %v5920, %v6028
      %v6072 = vmul.f32 %v5922, %v6030
      %v6073 = vmul.f32 %v5924, %v6032
      %v6074 = vmul.f32 %v5926, %v6034
      %v6075 = vmul.f32 %v5928, %v6036
      %v6076 = vmul.f32 %v5930, %v6038
      %v6077 = vmul.f32 %v5932, %v6040
      %v6078 = vmul.f32 %v5934, %v6042
      %6097 = vrot.lane.b32.xlu0 %v5935, 80
      %v6098 = vpop.permute.xlu0 %6097
      %6099 = vrot.lane.b32.xlu0 %v5936, 80
      %v6100 = vpop.permute.xlu0 %6099
      %6101 = vrot.lane.b32.xlu0 %v5937, 80
      %v6102 = vpop.permute.xlu0 %6101
      %6103 = vrot.lane.b32.xlu0 %v5938, 80
      %v6104 = vpop.permute.xlu0 %6103
      %6105 = vrot.lane.b32.xlu0 %v5939, 80
      %v6106 = vpop.permute.xlu0 %6105
      %6107 = vrot.lane.b32.xlu0 %v5940, 80
      %v6108 = vpop.permute.xlu0 %6107
      %6109 = vrot.lane.b32.xlu0 %v5941, 80
      %v6110 = vpop.permute.xlu0 %6109
      %6111 = vrot.lane.b32.xlu0 %v5942, 80
      %v6112 = vpop.permute.xlu0 %6111
      %6113 = vrot.lane.b32.xlu0 %v5943, 80
      %v6114 = vpop.permute.xlu0 %6113
      %6115 = vrot.lane.b32.xlu0 %v5944, 80
      %v6116 = vpop.permute.xlu0 %6115
      %6117 = vrot.lane.b32.xlu0 %v5945, 80
      %v6118 = vpop.permute.xlu0 %6117
      %6119 = vrot.lane.b32.xlu0 %v5946, 80
      %v6120 = vpop.permute.xlu0 %6119
      %6121 = vrot.lane.b32.xlu0 %v5947, 80
      %v6122 = vpop.permute.xlu0 %6121
      %6123 = vrot.lane.b32.xlu0 %v5948, 80
      %v6124 = vpop.permute.xlu0 %6123
      %6125 = vrot.lane.b32.xlu0 %v5949, 80
      %v6126 = vpop.permute.xlu0 %6125
      %6127 = vrot.lane.b32.xlu0 %v5950, 80
      %v6128 = vpop.permute.xlu0 %6127
      %6129 = vrot.lane.b32.xlu0 %v5951, 80
      %v6130 = vpop.permute.xlu0 %6129
      %6131 = vrot.lane.b32.xlu0 %v5952, 80
      %v6132 = vpop.permute.xlu0 %6131
      %v6151 = vmul.f32 %v5900, %v6098
      %v6152 = vmul.f32 %v5902, %v6100
      %v6153 = vmul.f32 %v5904, %v6102
      %v6154 = vmul.f32 %v5906, %v6104
      %v6155 = vmul.f32 %v5908, %v6106
      %v6156 = vmul.f32 %v5910, %v6108
      %v6157 = vmul.f32 %v5912, %v6110
      %v6158 = vmul.f32 %v5914, %v6112
      %v6159 = vmul.f32 %v5916, %v6114
      %v6160 = vmul.f32 %v5918, %v6116
      %v6161 = vmul.f32 %v5920, %v6118
      %v6162 = vmul.f32 %v5922, %v6120
      %v6163 = vmul.f32 %v5924, %v6122
      %v6164 = vmul.f32 %v5926, %v6124
      %v6165 = vmul.f32 %v5928, %v6126
      %v6166 = vmul.f32 %v5930, %v6128
      %v6167 = vmul.f32 %v5932, %v6130
      %v6168 = vmul.f32 %v5934, %v6132
      %6187 = vrot.lane.b32.xlu0 %v6151, 16
      %v6188 = vpop.permute.xlu0 %6187
      %6189 = vrot.lane.b32.xlu0 %v6152, 16
      %v6190 = vpop.permute.xlu0 %6189
      %6191 = vrot.lane.b32.xlu0 %v6153, 16
      %v6192 = vpop.permute.xlu0 %6191
      %6193 = vrot.lane.b32.xlu0 %v6154, 16
      %v6194 = vpop.permute.xlu0 %6193
      %6195 = vrot.lane.b32.xlu0 %v6155, 16
      %v6196 = vpop.permute.xlu0 %6195
      %6197 = vrot.lane.b32.xlu0 %v6156, 16
      %v6198 = vpop.permute.xlu0 %6197
      %6199 = vrot.lane.b32.xlu0 %v6157, 16
      %v6200 = vpop.permute.xlu0 %6199
      %6201 = vrot.lane.b32.xlu0 %v6158, 16
      %v6202 = vpop.permute.xlu0 %6201
      %6203 = vrot.lane.b32.xlu0 %v6159, 16
      %v6204 = vpop.permute.xlu0 %6203
      %6205 = vrot.lane.b32.xlu0 %v6160, 16
      %v6206 = vpop.permute.xlu0 %6205
      %6207 = vrot.lane.b32.xlu0 %v6161, 16
      %v6208 = vpop.permute.xlu0 %6207
      %6209 = vrot.lane.b32.xlu0 %v6162, 16
      %v6210 = vpop.permute.xlu0 %6209
      %6211 = vrot.lane.b32.xlu0 %v6163, 16
      %v6212 = vpop.permute.xlu0 %6211
      %6213 = vrot.lane.b32.xlu0 %v6164, 16
      %v6214 = vpop.permute.xlu0 %6213
      %6215 = vrot.lane.b32.xlu0 %v6165, 16
      %v6216 = vpop.permute.xlu0 %6215
      %6217 = vrot.lane.b32.xlu0 %v6166, 16
      %v6218 = vpop.permute.xlu0 %6217
      %6219 = vrot.lane.b32.xlu0 %v6167, 16
      %v6220 = vpop.permute.xlu0 %6219
      %6221 = vrot.lane.b32.xlu0 %v6168, 16
      %v6222 = vpop.permute.xlu0 %6221
      %v6241 = vadd.f32 %v6061, %v6188
      %v6242 = vadd.f32 %v6062, %v6190
      %v6243 = vadd.f32 %v6063, %v6192
      %v6244 = vadd.f32 %v6064, %v6194
      %v6245 = vadd.f32 %v6065, %v6196
      %v6246 = vadd.f32 %v6066, %v6198
      %v6247 = vadd.f32 %v6067, %v6200
      %v6248 = vadd.f32 %v6068, %v6202
      %v6249 = vadd.f32 %v6069, %v6204
      %v6250 = vadd.f32 %v6070, %v6206
      %v6251 = vadd.f32 %v6071, %v6208
      %v6252 = vadd.f32 %v6072, %v6210
      %v6253 = vadd.f32 %v6073, %v6212
      %v6254 = vadd.f32 %v6074, %v6214
      %v6255 = vadd.f32 %v6075, %v6216
      %v6256 = vadd.f32 %v6076, %v6218
      %v6257 = vadd.f32 %v6077, %v6220
      %v6258 = vadd.f32 %v6078, %v6222
      %v6259 = vtanh.pop %v6241
      %v6260 = vtanh.pop %v6242
      %v6261 = vtanh.pop %v6243
      %v6262 = vtanh.pop %v6244
      %v6263 = vtanh.pop %v6245
      %v6264 = vtanh.pop %v6246
      %v6265 = vtanh.pop %v6247
      %v6266 = vtanh.pop %v6248
      %v6267 = vtanh.pop %v6249
      %v6268 = vtanh.pop %v6250
      %v6269 = vtanh.pop %v6251
      %v6270 = vtanh.pop %v6252
      %v6271 = vtanh.pop %v6253
      %v6272 = vtanh.pop %v6254
      %v6273 = vtanh.pop %v6255
      %v6274 = vtanh.pop %v6256
      %v6275 = vtanh.pop %v6257
      %v6276 = vtanh.pop %v6258
      %6295 = vrot.lane.b32.xlu0 %v6259, 16
      %v6296 = vpop.permute.xlu0 %6295
      %6297 = vrot.lane.b32.xlu0 %v6260, 16
      %v6298 = vpop.permute.xlu0 %6297
      %6299 = vrot.lane.b32.xlu0 %v6261, 16
      %v6300 = vpop.permute.xlu0 %6299
      %6301 = vrot.lane.b32.xlu0 %v6262, 16
      %v6302 = vpop.permute.xlu0 %6301
      %6303 = vrot.lane.b32.xlu0 %v6263, 16
      %v6304 = vpop.permute.xlu0 %6303
      %6305 = vrot.lane.b32.xlu0 %v6264, 16
      %v6306 = vpop.permute.xlu0 %6305
      %6307 = vrot.lane.b32.xlu0 %v6265, 16
      %v6308 = vpop.permute.xlu0 %6307
      %6309 = vrot.lane.b32.xlu0 %v6266, 16
      %v6310 = vpop.permute.xlu0 %6309
      %6311 = vrot.lane.b32.xlu0 %v6267, 16
      %v6312 = vpop.permute.xlu0 %6311
      %6313 = vrot.lane.b32.xlu0 %v6268, 16
      %v6314 = vpop.permute.xlu0 %6313
      %6315 = vrot.lane.b32.xlu0 %v6269, 16
      %v6316 = vpop.permute.xlu0 %6315
      %6317 = vrot.lane.b32.xlu0 %v6270, 16
      %v6318 = vpop.permute.xlu0 %6317
      %6319 = vrot.lane.b32.xlu0 %v6271, 16
      %v6320 = vpop.permute.xlu0 %6319
      %6321 = vrot.lane.b32.xlu0 %v6272, 16
      %v6322 = vpop.permute.xlu0 %6321
      %6323 = vrot.lane.b32.xlu0 %v6273, 16
      %v6324 = vpop.permute.xlu0 %6323
      %6325 = vrot.lane.b32.xlu0 %v6274, 16
      %v6326 = vpop.permute.xlu0 %6325
      %6327 = vrot.lane.b32.xlu0 %v6275, 16
      %v6328 = vpop.permute.xlu0 %6327
      %6329 = vrot.lane.b32.xlu0 %v6276, 16
      %v6330 = vpop.permute.xlu0 %6329
      %v6349 = vmul.f32 %v5900, %v6296
      %v6350 = vmul.f32 %v5902, %v6298
      %v6351 = vmul.f32 %v5904, %v6300
      %v6352 = vmul.f32 %v5906, %v6302
      %v6353 = vmul.f32 %v5908, %v6304
      %v6354 = vmul.f32 %v5910, %v6306
      %v6355 = vmul.f32 %v5912, %v6308
      %v6356 = vmul.f32 %v5914, %v6310
      %v6357 = vmul.f32 %v5916, %v6312
      %v6358 = vmul.f32 %v5918, %v6314
      %v6359 = vmul.f32 %v5920, %v6316
      %v6360 = vmul.f32 %v5922, %v6318
      %v6361 = vmul.f32 %v5924, %v6320
      %v6362 = vmul.f32 %v5926, %v6322
      %v6363 = vmul.f32 %v5928, %v6324
      %v6364 = vmul.f32 %v5930, %v6326
      %v6365 = vmul.f32 %v5932, %v6328
      %v6366 = vmul.f32 %v5934, %v6330
      %6385 = vrot.lane.b32.xlu0 %v5953, 32
      %v6386 = vpop.permute.xlu0 %6385
      %6387 = vrot.lane.b32.xlu0 %v5954, 32
      %v6388 = vpop.permute.xlu0 %6387
      %6389 = vrot.lane.b32.xlu0 %v5955, 32
      %v6390 = vpop.permute.xlu0 %6389
      %6391 = vrot.lane.b32.xlu0 %v5956, 32
      %v6392 = vpop.permute.xlu0 %6391
      %6393 = vrot.lane.b32.xlu0 %v5957, 32
      %v6394 = vpop.permute.xlu0 %6393
      %6395 = vrot.lane.b32.xlu0 %v5958, 32
      %v6396 = vpop.permute.xlu0 %6395
      %6397 = vrot.lane.b32.xlu0 %v5959, 32
      %v6398 = vpop.permute.xlu0 %6397
      %6399 = vrot.lane.b32.xlu0 %v5960, 32
      %v6400 = vpop.permute.xlu0 %6399
      %6401 = vrot.lane.b32.xlu0 %v5961, 32
      %v6402 = vpop.permute.xlu0 %6401
      %6403 = vrot.lane.b32.xlu0 %v5962, 32
      %v6404 = vpop.permute.xlu0 %6403
      %6405 = vrot.lane.b32.xlu0 %v5963, 32
      %v6406 = vpop.permute.xlu0 %6405
      %6407 = vrot.lane.b32.xlu0 %v5964, 32
      %v6408 = vpop.permute.xlu0 %6407
      %6409 = vrot.lane.b32.xlu0 %v5965, 32
      %v6410 = vpop.permute.xlu0 %6409
      %6411 = vrot.lane.b32.xlu0 %v5966, 32
      %v6412 = vpop.permute.xlu0 %6411
      %6413 = vrot.lane.b32.xlu0 %v5967, 32
      %v6414 = vpop.permute.xlu0 %6413
      %6415 = vrot.lane.b32.xlu0 %v5968, 32
      %v6416 = vpop.permute.xlu0 %6415
      %6417 = vrot.lane.b32.xlu0 %v5969, 32
      %v6418 = vpop.permute.xlu0 %6417
      %6419 = vrot.lane.b32.xlu0 %v5970, 32
      %v6420 = vpop.permute.xlu0 %6419
      %v6439 = vmul.f32 %v6349, %v6386
      %v6440 = vmul.f32 %v6350, %v6388
      %v6441 = vmul.f32 %v6351, %v6390
      %v6442 = vmul.f32 %v6352, %v6392
      %v6443 = vmul.f32 %v6353, %v6394
      %v6444 = vmul.f32 %v6354, %v6396
      %v6445 = vmul.f32 %v6355, %v6398
      %v6446 = vmul.f32 %v6356, %v6400
      %v6447 = vmul.f32 %v6357, %v6402
      %v6448 = vmul.f32 %v6358, %v6404
      %v6449 = vmul.f32 %v6359, %v6406
      %v6450 = vmul.f32 %v6360, %v6408
      %v6451 = vmul.f32 %v6361, %v6410
      %v6452 = vmul.f32 %v6362, %v6412
      %v6453 = vmul.f32 %v6363, %v6414
      %v6454 = vmul.f32 %v6364, %v6416
      %v6455 = vmul.f32 %v6365, %v6418
      %v6456 = vmul.f32 %v6366, %v6420
      %6475 = vrot.lane.b32.xlu0 %v6241, 112
      %v6476 = vpop.permute.xlu0 %6475
      %6477 = vrot.lane.b32.xlu0 %v6242, 112
      %v6478 = vpop.permute.xlu0 %6477
      %6479 = vrot.lane.b32.xlu0 %v6243, 112
      %v6480 = vpop.permute.xlu0 %6479
      %6481 = vrot.lane.b32.xlu0 %v6244, 112
      %v6482 = vpop.permute.xlu0 %6481
      %6483 = vrot.lane.b32.xlu0 %v6245, 112
      %v6484 = vpop.permute.xlu0 %6483
      %6485 = vrot.lane.b32.xlu0 %v6246, 112
      %v6486 = vpop.permute.xlu0 %6485
      %6487 = vrot.lane.b32.xlu0 %v6247, 112
      %v6488 = vpop.permute.xlu0 %6487
      %6489 = vrot.lane.b32.xlu0 %v6248, 112
      %v6490 = vpop.permute.xlu0 %6489
      %6491 = vrot.lane.b32.xlu0 %v6249, 112
      %v6492 = vpop.permute.xlu0 %6491
      %6493 = vrot.lane.b32.xlu0 %v6250, 112
      %v6494 = vpop.permute.xlu0 %6493
      %6495 = vrot.lane.b32.xlu0 %v6251, 112
      %v6496 = vpop.permute.xlu0 %6495
      %6497 = vrot.lane.b32.xlu0 %v6252, 112
      %v6498 = vpop.permute.xlu0 %6497
      %6499 = vrot.lane.b32.xlu0 %v6253, 112
      %v6500 = vpop.permute.xlu0 %6499
      %6501 = vrot.lane.b32.xlu0 %v6254, 112
      %v6502 = vpop.permute.xlu0 %6501
      %6503 = vrot.lane.b32.xlu0 %v6255, 112
      %v6504 = vpop.permute.xlu0 %6503
      %6505 = vrot.lane.b32.xlu0 %v6256, 112
      %v6506 = vpop.permute.xlu0 %6505
      %6507 = vrot.lane.b32.xlu0 %v6257, 112
      %v6508 = vpop.permute.xlu0 %6507
      %6509 = vrot.lane.b32.xlu0 %v6258, 112
      %v6510 = vpop.permute.xlu0 %6509
      %6529 = vst.msk [vmem:[#allocation3 + $0x90] sm:$0xff] %vm1248, %v6476
      %6530 = vst.msk [vmem:[#allocation3 + $0x98] sm:$0xff] %vm1248, %v6478
      %6531 = vst.msk [vmem:[#allocation3 + $0xa0] sm:$0xff] %vm1248, %v6480
      %6532 = vst.msk [vmem:[#allocation3 + $0xa8] sm:$0xff] %vm1248, %v6482
      %6533 = vst.msk [vmem:[#allocation3 + $0xb0] sm:$0xff] %vm1248, %v6484
      %6534 = vst.msk [vmem:[#allocation3 + $0xb8] sm:$0xff] %vm1248, %v6486
      %6535 = vst.msk [vmem:[#allocation3 + $0xc0] sm:$0xff] %vm1248, %v6488
      %6536 = vst.msk [vmem:[#allocation3 + $0xc8] sm:$0xff] %vm1248, %v6490
      %6537 = vst.msk [vmem:[#allocation3 + $0xd0] sm:$0xff] %vm1248, %v6492
      %6538 = vst.msk [vmem:[#allocation3 + $0xd8] sm:$0xff] %vm1248, %v6494
      %6539 = vst.msk [vmem:[#allocation3 + $0xe0] sm:$0xff] %vm1248, %v6496
      %6540 = vst.msk [vmem:[#allocation3 + $0xe8] sm:$0xff] %vm1248, %v6498
      %6541 = vst.msk [vmem:[#allocation3 + $0xf0] sm:$0xff] %vm1248, %v6500
      %6542 = vst.msk [vmem:[#allocation3 + $0xf8] sm:$0xff] %vm1248, %v6502
      %6543 = vst.msk [vmem:[#allocation3 + $0x100] sm:$0xff] %vm1248, %v6504
      %6544 = vst.msk [vmem:[#allocation3 + $0x108] sm:$0xff] %vm1248, %v6506
      %6545 = vst.msk [vmem:[#allocation3 + $0x110] sm:$0xff] %vm1248, %v6508
      %6546 = vst.msk [vmem:[#allocation3 + $0x118] sm:$0xff] %vm1248, %v6510
      %6565 = vrot.lane.b32.xlu0 %v6439, 96
      %v6566 = vpop.permute.xlu0 %6565
      %6567 = vrot.lane.b32.xlu0 %v6440, 96
      %v6568 = vpop.permute.xlu0 %6567
      %6569 = vrot.lane.b32.xlu0 %v6441, 96
      %v6570 = vpop.permute.xlu0 %6569
      %6571 = vrot.lane.b32.xlu0 %v6442, 96
      %v6572 = vpop.permute.xlu0 %6571
      %6573 = vrot.lane.b32.xlu0 %v6443, 96
      %v6574 = vpop.permute.xlu0 %6573
      %6575 = vrot.lane.b32.xlu0 %v6444, 96
      %v6576 = vpop.permute.xlu0 %6575
      %6577 = vrot.lane.b32.xlu0 %v6445, 96
      %v6578 = vpop.permute.xlu0 %6577
      %6579 = vrot.lane.b32.xlu0 %v6446, 96
      %v6580 = vpop.permute.xlu0 %6579
      %6581 = vrot.lane.b32.xlu0 %v6447, 96
      %v6582 = vpop.permute.xlu0 %6581
      %6583 = vrot.lane.b32.xlu0 %v6448, 96
      %v6584 = vpop.permute.xlu0 %6583
      %6585 = vrot.lane.b32.xlu0 %v6449, 96
      %v6586 = vpop.permute.xlu0 %6585
      %6587 = vrot.lane.b32.xlu0 %v6450, 96
      %v6588 = vpop.permute.xlu0 %6587
      %6589 = vrot.lane.b32.xlu0 %v6451, 96
      %v6590 = vpop.permute.xlu0 %6589
      %6591 = vrot.lane.b32.xlu0 %v6452, 96
      %v6592 = vpop.permute.xlu0 %6591
      %6593 = vrot.lane.b32.xlu0 %v6453, 96
      %v6594 = vpop.permute.xlu0 %6593
      %6595 = vrot.lane.b32.xlu0 %v6454, 96
      %v6596 = vpop.permute.xlu0 %6595
      %6597 = vrot.lane.b32.xlu0 %v6455, 96
      %v6598 = vpop.permute.xlu0 %6597
      %6599 = vrot.lane.b32.xlu0 %v6456, 96
      %v6600 = vpop.permute.xlu0 %6599
      %6619 = vst.msk [vmem:[#allocation4 + $0x90] sm:$0xff] %vm1248, %v6566
      %6620 = vst.msk [vmem:[#allocation4 + $0x98] sm:$0xff] %vm1248, %v6568
      %6621 = vst.msk [vmem:[#allocation4 + $0xa0] sm:$0xff] %vm1248, %v6570
      %6622 = vst.msk [vmem:[#allocation4 + $0xa8] sm:$0xff] %vm1248, %v6572
      %6623 = vst.msk [vmem:[#allocation4 + $0xb0] sm:$0xff] %vm1248, %v6574
      %6624 = vst.msk [vmem:[#allocation4 + $0xb8] sm:$0xff] %vm1248, %v6576
      %6625 = vst.msk [vmem:[#allocation4 + $0xc0] sm:$0xff] %vm1248, %v6578
      %6626 = vst.msk [vmem:[#allocation4 + $0xc8] sm:$0xff] %vm1248, %v6580
      %6627 = vst.msk [vmem:[#allocation4 + $0xd0] sm:$0xff] %vm1248, %v6582
      %6628 = vst.msk [vmem:[#allocation4 + $0xd8] sm:$0xff] %vm1248, %v6584
      %6629 = vst.msk [vmem:[#allocation4 + $0xe0] sm:$0xff] %vm1248, %v6586
      %6630 = vst.msk [vmem:[#allocation4 + $0xe8] sm:$0xff] %vm1248, %v6588
      %6631 = vst.msk [vmem:[#allocation4 + $0xf0] sm:$0xff] %vm1248, %v6590
      %6632 = vst.msk [vmem:[#allocation4 + $0xf8] sm:$0xff] %vm1248, %v6592
      %6633 = vst.msk [vmem:[#allocation4 + $0x100] sm:$0xff] %vm1248, %v6594
      %6634 = vst.msk [vmem:[#allocation4 + $0x108] sm:$0xff] %vm1248, %v6596
      %6635 = vst.msk [vmem:[#allocation4 + $0x110] sm:$0xff] %vm1248, %v6598
      %6636 = vst.msk [vmem:[#allocation4 + $0x118] sm:$0xff] %vm1248, %v6600
      // Predicated region
      $region53: #{tpu_custom_call.1} parent=43 // pred_check
        %p6637 = pneg %p5117
      $region54: #{tpu_custom_call.1} parent=43 // pred_check_branch
        %6639 = sbr.rel (%p6637) target = $region56
      $region55: #{tpu_custom_call.1} parent=43 // pred_region
        %6640 = vst.msk [vmem:[%s277 + $0x90] sm:$0xff] %vm1248, %v6566
        %6641 = vst.msk [vmem:[%s277 + $0x98] sm:$0xff] %vm1248, %v6568
        %6642 = vst.msk [vmem:[%s277 + $0xa0] sm:$0xff] %vm1248, %v6570
        %6643 = vst.msk [vmem:[%s277 + $0xa8] sm:$0xff] %vm1248, %v6572
        %6644 = vst.msk [vmem:[%s277 + $0xb0] sm:$0xff] %vm1248, %v6574
        %6645 = vst.msk [vmem:[%s277 + $0xb8] sm:$0xff] %vm1248, %v6576
        %6646 = vst.msk [vmem:[%s277 + $0xc0] sm:$0xff] %vm1248, %v6578
        %6647 = vst.msk [vmem:[%s277 + $0xc8] sm:$0xff] %vm1248, %v6580
        %6648 = vst.msk [vmem:[%s277 + $0xd0] sm:$0xff] %vm1248, %v6582
        %6649 = vst.msk [vmem:[%s277 + $0xd8] sm:$0xff] %vm1248, %v6584
        %6650 = vst.msk [vmem:[%s277 + $0xe0] sm:$0xff] %vm1248, %v6586
        %6651 = vst.msk [vmem:[%s277 + $0xe8] sm:$0xff] %vm1248, %v6588
        %6652 = vst.msk [vmem:[%s277 + $0xf0] sm:$0xff] %vm1248, %v6590
        %6653 = vst.msk [vmem:[%s277 + $0xf8] sm:$0xff] %vm1248, %v6592
        %6654 = vst.msk [vmem:[%s277 + $0x100] sm:$0xff] %vm1248, %v6594
        %6655 = vst.msk [vmem:[%s277 + $0x108] sm:$0xff] %vm1248, %v6596
        %6656 = vst.msk [vmem:[%s277 + $0x110] sm:$0xff] %vm1248, %v6598
        %6657 = vst.msk [vmem:[%s277 + $0x118] sm:$0xff] %vm1248, %v6600
      $region56: #{tpu_custom_call.1} parent=43 // pred_fallthru
        _
      %v6658 = vld [vmem:[%s4] sm:$0x1]
      %v6660 = vlaneseq
      %v6661 = vshrl.u32 %v6660, 7
      %v6662 = vsub.s32 0, %v6661
      %v6663 = vrot.slane %v6658, %v6662
      %v6665 = vld [vmem:[#allocation2 + $0x90] sm:$0xf0]
      %v6666 = vld [vmem:[#allocation2 + $0x98] sm:$0xff]
      %v6667 = vld [vmem:[#allocation2 + $0xa0] sm:$0xff]
      %v6668 = vld [vmem:[#allocation2 + $0xa8] sm:$0xff]
      %v6669 = vld [vmem:[#allocation2 + $0xb0] sm:$0xff]
      %v6670 = vld [vmem:[#allocation2 + $0xb8] sm:$0xff]
      %v6671 = vld [vmem:[#allocation2 + $0xc0] sm:$0xff]
      %v6672 = vld [vmem:[#allocation2 + $0xc8] sm:$0xff]
      %v6673 = vld [vmem:[#allocation2 + $0xd0] sm:$0xff]
      %v6674 = vld [vmem:[#allocation2 + $0xd8] sm:$0xf]
      %v6675 = vld [vmem:[%s3] sm:$0xf]
      %v6676 = vld [vmem:[%s3 + $0x4] sm:$0xf]
      %v6677 = vld [vmem:[%s3 + $0x8] sm:$0xf]
      %v6678 = vld [vmem:[%s3 + $0xc] sm:$0xf]
      %v6679 = vld [vmem:[%s3 + $0x10] sm:$0xf]
      %v6680 = vld [vmem:[%s3 + $0x14] sm:$0xf]
      %v6681 = vld [vmem:[%s3 + $0x18] sm:$0xf]
      %v6682 = vld [vmem:[%s3 + $0x1c] sm:$0xf]
      %v6683 = vld [vmem:[%s3 + $0x20] sm:$0xf]
      %v6684 = vld [vmem:[%s3 + $0x24] sm:$0xf]
      %v6685 = vld [vmem:[%s3 + $0x28] sm:$0xf]
      %v6686 = vld [vmem:[%s3 + $0x2c] sm:$0xf]
      %v6697 = vrot.slane %v6665, 4
      %v6698 = vrot.slane %v6666, 4
      %v6699 = vsel %vm3654, %v6697, %v6698
      %v6700 = vrot.slane %v6667, 4
      %v6701 = vsel %vm3654, %v6698, %v6700
      %v6702 = vrot.slane %v6668, 4
      %v6703 = vsel %vm3654, %v6700, %v6702
      %v6704 = vrot.slane %v6669, 4
      %v6705 = vsel %vm3654, %v6702, %v6704
      %v6706 = vrot.slane %v6670, 4
      %v6707 = vsel %vm3654, %v6704, %v6706
      %v6708 = vrot.slane %v6671, 4
      %v6709 = vsel %vm3654, %v6706, %v6708
      %v6710 = vrot.slane %v6672, 4
      %v6711 = vsel %vm3654, %v6708, %v6710
      %v6712 = vrot.slane %v6673, 4
      %v6713 = vsel %vm3654, %v6710, %v6712
      %v6714 = vrot.slane %v6674, 4
      %v6715 = vsel %vm3654, %v6712, %v6714
      %v6728 = vunpack.c.l.b16 %v6675
      %v6729 = vunpack.c.l.b16 %v6676
      %v6730 = vunpack.c.l.b16 %v6677
      %v6731 = vunpack.c.l.b16 %v6678
      %v6732 = vunpack.c.l.b16 %v6679
      %v6733 = vunpack.c.l.b16 %v6680
      %v6734 = vunpack.c.l.b16 %v6681
      %v6735 = vunpack.c.l.b16 %v6682
      %v6736 = vunpack.c.l.b16 %v6683
      %v6737 = vunpack.c.l.b16 %v6684
      %v6738 = vunpack.c.l.b16 %v6685
      %v6739 = vunpack.c.l.b16 %v6686
      %v6740 = vpack.c.b16 %v6729, %v6728
      %v6741 = vpack.c.b16 %v6731, %v6730
      %v6742 = vpack.c.b16 %v6733, %v6732
      %v6743 = vpack.c.b16 %v6735, %v6734
      %v6744 = vpack.c.b16 %v6737, %v6736
      %v6745 = vpack.c.b16 %v6739, %v6738
      %v6753 = vsel %vm3710, %v6699, 0
      %v6756 = vsel %vm3710, %v6701, 0
      %v6759 = vsel %vm3710, %v6703, 0
      %v6762 = vsel %vm3710, %v6705, 0
      %v6765 = vsel %vm3710, %v6707, 0
      %v6768 = vsel %vm3710, %v6709, 0
      %v6771 = vsel %vm3710, %v6711, 0
      %v6774 = vsel %vm3710, %v6713, 0
      %v6777 = vsel %vm3710, %v6715, 0
      %6779 = vmatprep.subr.bf16.mxu0 0
      %6780 = vmatpush1.bf16.msra.mxu0 %v6740
      %6781 = vmatprep.subr.bf16.mxu0 0
      %6782 = vmatpush1.bf16.msra.mxu0 %v6741
      %6783 = vmatprep.subr.bf16.mxu0 0
      %6784 = vmatpush1.bf16.msra.mxu0 %v6742
      %6785 = vmatprep.subr.bf16.mxu0 0
      %6786 = vmatpush1.bf16.msra.mxu0 %v6743
      %6787 = vmatprep.subr.bf16.mxu0 0
      %6788 = vmatpush1.bf16.msra.mxu0 %v6744
      %6789 = vmatprep.subr.bf16.mxu0 0
      %6790 = vmatpush1.bf16.msra.mxu0 %v6745
      %6791 = vmatprep.subr.bf16.mxu0 0
      %6792 = vmatpush1.bf16.msra.mxu0 0
      %6793 = vmatprep.subr.bf16.mxu0 0
      %6794 = vmatpush1.bf16.msra.mxu0 0
      %6795 = vmatprep.subr.bf16.mxu0 0
      %6796 = vmatpush1.bf16.msra.mxu0 0
      %6797 = vmatprep.subr.bf16.mxu0 0
      %6798 = vmatpush1.bf16.msra.mxu0 0
      %6799 = vmatprep.subr.bf16.mxu0 0
      %6800 = vmatpush1.bf16.msra.mxu0 0
      %6801 = vmatprep.subr.bf16.mxu0 0
      %6802 = vmatpush1.bf16.msra.mxu0 0
      %6803 = vmatprep.subr.bf16.mxu0 0
      %6804 = vmatpush1.bf16.msra.mxu0 0
      %6805 = vmatprep.subr.bf16.mxu0 0
      %6806 = vmatpush1.bf16.msra.mxu0 0
      %6807 = vmatprep.subr.bf16.mxu0 0
      %6808 = vmatpush1.bf16.msra.mxu0 0
      %6809 = vmatprep.subr.bf16.mxu0 0
      %6810 = vmatpush1.bf16.msra.mxu0 0
      %6811 = vmatprep.mubr.bf16.mxu0 0
      %6812 = vmatmul.mubr.bf16.gmra.mrb[0].mxu0 %v6753
      %v6813 = vpop.f32.mrb[0].mxu0
      %v6814 = vadd.f32 0.0, %v6813
      %v6815 = vpop.f32.mrb[0].mxu0
      %v6816 = vpop.f32.mrb[0].mxu0
      %v6817 = vadd.f32 0.0, %v6816
      %v6818 = vpop.f32.mrb[0].mxu0
      %6819 = vmatprep.mubr.bf16.mxu0 0
      %6820 = vmatmul.mubr.bf16.gmra.mrb[0].mxu0 %v6756
      %v6821 = vpop.f32.mrb[0].mxu0
      %v6822 = vadd.f32 0.0, %v6821
      %v6823 = vpop.f32.mrb[0].mxu0
      %v6824 = vpop.f32.mrb[0].mxu0
      %v6825 = vadd.f32 0.0, %v6824
      %v6826 = vpop.f32.mrb[0].mxu0
      %6827 = vmatprep.mubr.bf16.mxu0 0
      %6828 = vmatmul.mubr.bf16.gmra.mrb[0].mxu0 %v6759
      %v6829 = vpop.f32.mrb[0].mxu0
      %v6830 = vadd.f32 0.0, %v6829
      %v6831 = vpop.f32.mrb[0].mxu0
      %v6832 = vpop.f32.mrb[0].mxu0
      %v6833 = vadd.f32 0.0, %v6832
      %v6834 = vpop.f32.mrb[0].mxu0
      %6835 = vmatprep.mubr.bf16.mxu0 0
      %6836 = vmatmul.mubr.bf16.gmra.mrb[0].mxu0 %v6762
      %v6837 = vpop.f32.mrb[0].mxu0
      %v6838 = vadd.f32 0.0, %v6837
      %v6839 = vpop.f32.mrb[0].mxu0
      %v6840 = vpop.f32.mrb[0].mxu0
      %v6841 = vadd.f32 0.0, %v6840
      %v6842 = vpop.f32.mrb[0].mxu0
      %6843 = vmatprep.mubr.bf16.mxu0 0
      %6844 = vmatmul.mubr.bf16.gmra.mrb[0].mxu0 %v6765
      %v6845 = vpop.f32.mrb[0].mxu0
      %v6846 = vadd.f32 0.0, %v6845
      %v6847 = vpop.f32.mrb[0].mxu0
      %v6848 = vpop.f32.mrb[0].mxu0
      %v6849 = vadd.f32 0.0, %v6848
      %v6850 = vpop.f32.mrb[0].mxu0
      %6851 = vmatprep.mubr.bf16.mxu0 0
      %6852 = vmatmul.mubr.bf16.gmra.mrb[0].mxu0 %v6768
      %v6853 = vpop.f32.mrb[0].mxu0
      %v6854 = vadd.f32 0.0, %v6853
      %v6855 = vpop.f32.mrb[0].mxu0
      %v6856 = vpop.f32.mrb[0].mxu0
      %v6857 = vadd.f32 0.0, %v6856
      %v6858 = vpop.f32.mrb[0].mxu0
      %6859 = vmatprep.mubr.bf16.mxu0 0
      %6860 = vmatmul.mubr.bf16.gmra.mrb[0].mxu0 %v6771
      %v6861 = vpop.f32.mrb[0].mxu0
      %v6862 = vadd.f32 0.0, %v6861
      %v6863 = vpop.f32.mrb[0].mxu0
      %v6864 = vpop.f32.mrb[0].mxu0
      %v6865 = vadd.f32 0.0, %v6864
      %v6866 = vpop.f32.mrb[0].mxu0
      %6867 = vmatprep.mubr.bf16.mxu0 0
      %6868 = vmatmul.mubr.bf16.gmra.mrb[0].mxu0 %v6774
      %v6869 = vpop.f32.mrb[0].mxu0
      %v6870 = vadd.f32 0.0, %v6869
      %v6871 = vpop.f32.mrb[0].mxu0
      %v6872 = vpop.f32.mrb[0].mxu0
      %v6873 = vadd.f32 0.0, %v6872
      %v6874 = vpop.f32.mrb[0].mxu0
      %6875 = vmatprep.mubr.bf16.mxu0 0
      %6876 = vmatmul.mubr.bf16.gmra.mrb[0].mxu0 %v6777
      %v6877 = vpop.f32.mrb[0].mxu0
      %v6878 = vadd.f32 0.0, %v6877
      %v6879 = vpop.f32.mrb[0].mxu0
      %v6880 = vpop.f32.mrb[0].mxu0
      %v6881 = vadd.f32 0.0, %v6880
      %v6882 = vpop.f32.mrb[0].mxu0
      %6883 = vdwg.mxu0
      %v6884 = vadd.f32 %v6663, %v6814
      %v6885 = vadd.f32 %v6663, %v6817
      %v6886 = vadd.f32 %v6663, %v6822
      %v6887 = vadd.f32 %v6663, %v6825
      %v6888 = vadd.f32 %v6663, %v6830
      %v6889 = vadd.f32 %v6663, %v6833
      %v6890 = vadd.f32 %v6663, %v6838
      %v6891 = vadd.f32 %v6663, %v6841
      %v6892 = vadd.f32 %v6663, %v6846
      %v6893 = vadd.f32 %v6663, %v6849
      %v6894 = vadd.f32 %v6663, %v6854
      %v6895 = vadd.f32 %v6663, %v6857
      %v6896 = vadd.f32 %v6663, %v6862
      %v6897 = vadd.f32 %v6663, %v6865
      %v6898 = vadd.f32 %v6663, %v6870
      %v6899 = vadd.f32 %v6663, %v6873
      %v6900 = vadd.f32 %v6663, %v6878
      %v6901 = vadd.f32 %v6663, %v6881
      %v6902 = vld [vmem:[#allocation2 + $0xa0] sm:$0xff]
      %v6903 = vld [vmem:[#allocation2 + $0xa8] sm:$0xff]
      %v6904 = vld [vmem:[#allocation2 + $0xb0] sm:$0xff]
      %v6905 = vld [vmem:[#allocation2 + $0xb8] sm:$0xff]
      %v6906 = vld [vmem:[#allocation2 + $0xc0] sm:$0xff]
      %v6907 = vld [vmem:[#allocation2 + $0xc8] sm:$0xff]
      %v6908 = vld [vmem:[#allocation2 + $0xd0] sm:$0xff]
      %v6909 = vld [vmem:[#allocation2 + $0xd8] sm:$0xff]
      %v6910 = vld [vmem:[#allocation2 + $0xe0] sm:$0xff]
      %v6911 = vld [vmem:[%s3870] sm:$0xf]
      %v6912 = vld [vmem:[%s3870 + $0x4] sm:$0xf]
      %v6913 = vld [vmem:[%s3870 + $0x8] sm:$0xf]
      %v6914 = vld [vmem:[%s3870 + $0xc] sm:$0xf]
      %v6915 = vld [vmem:[%s3870 + $0x10] sm:$0xf]
      %v6916 = vld [vmem:[%s3870 + $0x14] sm:$0xf]
      %v6917 = vld [vmem:[%s3870 + $0x18] sm:$0xf]
      %v6918 = vld [vmem:[%s3870 + $0x1c] sm:$0xf]
      %v6919 = vld [vmem:[%s3870 + $0x20] sm:$0xf]
      %v6920 = vld [vmem:[%s3870 + $0x24] sm:$0xf]
      %v6921 = vld [vmem:[%s3870 + $0x28] sm:$0xf]
      %v6922 = vld [vmem:[%s3870 + $0x2c] sm:$0xf]
      %v6935 = vunpack.c.l.b16 %v6911
      %v6936 = vunpack.c.l.b16 %v6912
      %v6937 = vunpack.c.l.b16 %v6913
      %v6938 = vunpack.c.l.b16 %v6914
      %v6939 = vunpack.c.l.b16 %v6915
      %v6940 = vunpack.c.l.b16 %v6916
      %v6941 = vunpack.c.l.b16 %v6917
      %v6942 = vunpack.c.l.b16 %v6918
      %v6943 = vunpack.c.l.b16 %v6919
      %v6944 = vunpack.c.l.b16 %v6920
      %v6945 = vunpack.c.l.b16 %v6921
      %v6946 = vunpack.c.l.b16 %v6922
      %v6947 = vpack.c.b16 %v6936, %v6935
      %v6948 = vpack.c.b16 %v6938, %v6937
      %v6949 = vpack.c.b16 %v6940, %v6939
      %v6950 = vpack.c.b16 %v6942, %v6941
      %v6951 = vpack.c.b16 %v6944, %v6943
      %v6952 = vpack.c.b16 %v6946, %v6945
      %v6960 = vsel %vm3710, %v6902, 0
      %v6963 = vsel %vm3710, %v6903, 0
      %v6966 = vsel %vm3710, %v6904, 0
      %v6969 = vsel %vm3710, %v6905, 0
      %v6972 = vsel %vm3710, %v6906, 0
      %v6975 = vsel %vm3710, %v6907, 0
      %v6978 = vsel %vm3710, %v6908, 0
      %v6981 = vsel %vm3710, %v6909, 0
      %v6984 = vsel %vm3710, %v6910, 0
      %6986 = vmatprep.subr.bf16.mxu0 0
      %6987 = vmatpush1.bf16.msra.mxu0 %v6947
      %6988 = vmatprep.subr.bf16.mxu0 0
      %6989 = vmatpush1.bf16.msra.mxu0 %v6948
      %6990 = vmatprep.subr.bf16.mxu0 0
      %6991 = vmatpush1.bf16.msra.mxu0 %v6949
      %6992 = vmatprep.subr.bf16.mxu0 0
      %6993 = vmatpush1.bf16.msra.mxu0 %v6950
      %6994 = vmatprep.subr.bf16.mxu0 0
      %6995 = vmatpush1.bf16.msra.mxu0 %v6951
      %6996 = vmatprep.subr.bf16.mxu0 0
      %6997 = vmatpush1.bf16.msra.mxu0 %v6952
      %6998 = vmatprep.subr.bf16.mxu0 0
      %6999 = vmatpush1.bf16.msra.mxu0 0
      %7000 = vmatprep.subr.bf16.mxu0 0
      %7001 = vmatpush1.bf16.msra.mxu0 0
      %7002 = vmatprep.subr.bf16.mxu0 0
      %7003 = vmatpush1.bf16.msra.mxu0 0
      %7004 = vmatprep.subr.bf16.mxu0 0
      %7005 = vmatpush1.bf16.msra.mxu0 0
      %7006 = vmatprep.subr.bf16.mxu0 0
      %7007 = vmatpush1.bf16.msra.mxu0 0
      %7008 = vmatprep.subr.bf16.mxu0 0
      %7009 = vmatpush1.bf16.msra.mxu0 0
      %7010 = vmatprep.subr.bf16.mxu0 0
      %7011 = vmatpush1.bf16.msra.mxu0 0
      %7012 = vmatprep.subr.bf16.mxu0 0
      %7013 = vmatpush1.bf16.msra.mxu0 0
      %7014 = vmatprep.subr.bf16.mxu0 0
      %7015 = vmatpush1.bf16.msra.mxu0 0
      %7016 = vmatprep.subr.bf16.mxu0 0
      %7017 = vmatpush1.bf16.msra.mxu0 0
      %7018 = vmatprep.mubr.bf16.mxu0 0
      %7019 = vmatmul.mubr.bf16.gmra.mrb[0].mxu0 %v6960
      %v7020 = vpop.f32.mrb[0].mxu0
      %v7021 = vadd.f32 0.0, %v7020
      %v7022 = vpop.f32.mrb[0].mxu0
      %v7023 = vpop.f32.mrb[0].mxu0
      %v7024 = vadd.f32 0.0, %v7023
      %v7025 = vpop.f32.mrb[0].mxu0
      %7026 = vmatprep.mubr.bf16.mxu0 0
      %7027 = vmatmul.mubr.bf16.gmra.mrb[0].mxu0 %v6963
      %v7028 = vpop.f32.mrb[0].mxu0
      %v7029 = vadd.f32 0.0, %v7028
      %v7030 = vpop.f32.mrb[0].mxu0
      %v7031 = vpop.f32.mrb[0].mxu0
      %v7032 = vadd.f32 0.0, %v7031
      %v7033 = vpop.f32.mrb[0].mxu0
      %7034 = vmatprep.mubr.bf16.mxu0 0
      %7035 = vmatmul.mubr.bf16.gmra.mrb[0].mxu0 %v6966
      %v7036 = vpop.f32.mrb[0].mxu0
      %v7037 = vadd.f32 0.0, %v7036
      %v7038 = vpop.f32.mrb[0].mxu0
      %v7039 = vpop.f32.mrb[0].mxu0
      %v7040 = vadd.f32 0.0, %v7039
      %v7041 = vpop.f32.mrb[0].mxu0
      %7042 = vmatprep.mubr.bf16.mxu0 0
      %7043 = vmatmul.mubr.bf16.gmra.mrb[0].mxu0 %v6969
      %v7044 = vpop.f32.mrb[0].mxu0
      %v7045 = vadd.f32 0.0, %v7044
      %v7046 = vpop.f32.mrb[0].mxu0
      %v7047 = vpop.f32.mrb[0].mxu0
      %v7048 = vadd.f32 0.0, %v7047
      %v7049 = vpop.f32.mrb[0].mxu0
      %7050 = vmatprep.mubr.bf16.mxu0 0
      %7051 = vmatmul.mubr.bf16.gmra.mrb[0].mxu0 %v6972
      %v7052 = vpop.f32.mrb[0].mxu0
      %v7053 = vadd.f32 0.0, %v7052
      %v7054 = vpop.f32.mrb[0].mxu0
      %v7055 = vpop.f32.mrb[0].mxu0
      %v7056 = vadd.f32 0.0, %v7055
      %v7057 = vpop.f32.mrb[0].mxu0
      %7058 = vmatprep.mubr.bf16.mxu0 0
      %7059 = vmatmul.mubr.bf16.gmra.mrb[0].mxu0 %v6975
      %v7060 = vpop.f32.mrb[0].mxu0
      %v7061 = vadd.f32 0.0, %v7060
      %v7062 = vpop.f32.mrb[0].mxu0
      %v7063 = vpop.f32.mrb[0].mxu0
      %v7064 = vadd.f32 0.0, %v7063
      %v7065 = vpop.f32.mrb[0].mxu0
      %7066 = vmatprep.mubr.bf16.mxu0 0
      %7067 = vmatmul.mubr.bf16.gmra.mrb[0].mxu0 %v6978
      %v7068 = vpop.f32.mrb[0].mxu0
      %v7069 = vadd.f32 0.0, %v7068
      %v7070 = vpop.f32.mrb[0].mxu0
      %v7071 = vpop.f32.mrb[0].mxu0
      %v7072 = vadd.f32 0.0, %v7071
      %v7073 = vpop.f32.mrb[0].mxu0
      %7074 = vmatprep.mubr.bf16.mxu0 0
      %7075 = vmatmul.mubr.bf16.gmra.mrb[0].mxu0 %v6981
      %v7076 = vpop.f32.mrb[0].mxu0
      %v7077 = vadd.f32 0.0, %v7076
      %v7078 = vpop.f32.mrb[0].mxu0
      %v7079 = vpop.f32.mrb[0].mxu0
      %v7080 = vadd.f32 0.0, %v7079
      %v7081 = vpop.f32.mrb[0].mxu0
      %7082 = vmatprep.mubr.bf16.mxu0 0
      %7083 = vmatmul.mubr.bf16.gmra.mrb[0].mxu0 %v6984
      %v7084 = vpop.f32.mrb[0].mxu0
      %v7085 = vadd.f32 0.0, %v7084
      %v7086 = vpop.f32.mrb[0].mxu0
      %v7087 = vpop.f32.mrb[0].mxu0
      %v7088 = vadd.f32 0.0, %v7087
      %v7089 = vpop.f32.mrb[0].mxu0
      %7090 = vdwg.mxu0
      %v7091 = vadd.f32 %v6884, %v7021
      %v7092 = vadd.f32 %v6885, %v7024
      %v7093 = vadd.f32 %v6886, %v7029
      %v7094 = vadd.f32 %v6887, %v7032
      %v7095 = vadd.f32 %v6888, %v7037
      %v7096 = vadd.f32 %v6889, %v7040
      %v7097 = vadd.f32 %v6890, %v7045
      %v7098 = vadd.f32 %v6891, %v7048
      %v7099 = vadd.f32 %v6892, %v7053
      %v7100 = vadd.f32 %v6893, %v7056
      %v7101 = vadd.f32 %v6894, %v7061
      %v7102 = vadd.f32 %v6895, %v7064
      %v7103 = vadd.f32 %v6896, %v7069
      %v7104 = vadd.f32 %v6897, %v7072
      %v7105 = vadd.f32 %v6898, %v7077
      %v7106 = vadd.f32 %v6899, %v7080
      %v7107 = vadd.f32 %v6900, %v7085
      %v7108 = vadd.f32 %v6901, %v7088
      %v7109 = vld [vmem:[#allocation2 + $0xa8] sm:$0xf0]
      %v7110 = vld [vmem:[#allocation2 + $0xb0] sm:$0xff]
      %v7111 = vld [vmem:[#allocation2 + $0xb8] sm:$0xff]
      %v7112 = vld [vmem:[#allocation2 + $0xc0] sm:$0xff]
      %v7113 = vld [vmem:[#allocation2 + $0xc8] sm:$0xff]
      %v7114 = vld [vmem:[#allocation2 + $0xd0] sm:$0xff]
      %v7115 = vld [vmem:[#allocation2 + $0xd8] sm:$0xff]
      %v7116 = vld [vmem:[#allocation2 + $0xe0] sm:$0xff]
      %v7117 = vld [vmem:[#allocation2 + $0xe8] sm:$0xff]
      %v7118 = vld [vmem:[#allocation2 + $0xf0] sm:$0xf]
      %v7119 = vld [vmem:[%s4079] sm:$0xf]
      %v7120 = vld [vmem:[%s4079 + $0x4] sm:$0xf]
      %v7121 = vld [vmem:[%s4079 + $0x8] sm:$0xf]
      %v7122 = vld [vmem:[%s4079 + $0xc] sm:$0xf]
      %v7123 = vld [vmem:[%s4079 + $0x10] sm:$0xf]
      %v7124 = vld [vmem:[%s4079 + $0x14] sm:$0xf]
      %v7125 = vld [vmem:[%s4079 + $0x18] sm:$0xf]
      %v7126 = vld [vmem:[%s4079 + $0x1c] sm:$0xf]
      %v7127 = vld [vmem:[%s4079 + $0x20] sm:$0xf]
      %v7128 = vld [vmem:[%s4079 + $0x24] sm:$0xf]
      %v7129 = vld [vmem:[%s4079 + $0x28] sm:$0xf]
      %v7130 = vld [vmem:[%s4079 + $0x2c] sm:$0xf]
      %v7141 = vrot.slane %v7109, 4
      %v7142 = vrot.slane %v7110, 4
      %v7143 = vsel %vm3654, %v7141, %v7142
      %v7144 = vrot.slane %v7111, 4
      %v7145 = vsel %vm3654, %v7142, %v7144
      %v7146 = vrot.slane %v7112, 4
      %v7147 = vsel %vm3654, %v7144, %v7146
      %v7148 = vrot.slane %v7113, 4
      %v7149 = vsel %vm3654, %v7146, %v7148
      %v7150 = vrot.slane %v7114, 4
      %v7151 = vsel %vm3654, %v7148, %v7150
      %v7152 = vrot.slane %v7115, 4
      %v7153 = vsel %vm3654, %v7150, %v7152
      %v7154 = vrot.slane %v7116, 4
      %v7155 = vsel %vm3654, %v7152, %v7154
      %v7156 = vrot.slane %v7117, 4
      %v7157 = vsel %vm3654, %v7154, %v7156
      %v7158 = vrot.slane %v7118, 4
      %v7159 = vsel %vm3654, %v7156, %v7158
      %v7172 = vunpack.c.l.b16 %v7119
      %v7173 = vunpack.c.l.b16 %v7120
      %v7174 = vunpack.c.l.b16 %v7121
      %v7175 = vunpack.c.l.b16 %v7122
      %v7176 = vunpack.c.l.b16 %v7123
      %v7177 = vunpack.c.l.b16 %v7124
      %v7178 = vunpack.c.l.b16 %v7125
      %v7179 = vunpack.c.l.b16 %v7126
      %v7180 = vunpack.c.l.b16 %v7127
      %v7181 = vunpack.c.l.b16 %v7128
      %v7182 = vunpack.c.l.b16 %v7129
      %v7183 = vunpack.c.l.b16 %v7130
      %v7184 = vpack.c.b16 %v7173, %v7172
      %v7185 = vpack.c.b16 %v7175, %v7174
      %v7186 = vpack.c.b16 %v7177, %v7176
      %v7187 = vpack.c.b16 %v7179, %v7178
      %v7188 = vpack.c.b16 %v7181, %v7180
      %v7189 = vpack.c.b16 %v7183, %v7182
      %v7197 = vsel %vm3710, %v7143, 0
      %v7200 = vsel %vm3710, %v7145, 0
      %v7203 = vsel %vm3710, %v7147, 0
      %v7206 = vsel %vm3710, %v7149, 0
      %v7209 = vsel %vm3710, %v7151, 0
      %v7212 = vsel %vm3710, %v7153, 0
      %v7215 = vsel %vm3710, %v7155, 0
      %v7218 = vsel %vm3710, %v7157, 0
      %v7221 = vsel %vm3710, %v7159, 0
      %7223 = vmatprep.subr.bf16.mxu0 0
      %7224 = vmatpush1.bf16.msra.mxu0 %v7184
      %7225 = vmatprep.subr.bf16.mxu0 0
      %7226 = vmatpush1.bf16.msra.mxu0 %v7185
      %7227 = vmatprep.subr.bf16.mxu0 0
      %7228 = vmatpush1.bf16.msra.mxu0 %v7186
      %7229 = vmatprep.subr.bf16.mxu0 0
      %7230 = vmatpush1.bf16.msra.mxu0 %v7187
      %7231 = vmatprep.subr.bf16.mxu0 0
      %7232 = vmatpush1.bf16.msra.mxu0 %v7188
      %7233 = vmatprep.subr.bf16.mxu0 0
      %7234 = vmatpush1.bf16.msra.mxu0 %v7189
      %7235 = vmatprep.subr.bf16.mxu0 0
      %7236 = vmatpush1.bf16.msra.mxu0 0
      %7237 = vmatprep.subr.bf16.mxu0 0
      %7238 = vmatpush1.bf16.msra.mxu0 0
      %7239 = vmatprep.subr.bf16.mxu0 0
      %7240 = vmatpush1.bf16.msra.mxu0 0
      %7241 = vmatprep.subr.bf16.mxu0 0
      %7242 = vmatpush1.bf16.msra.mxu0 0
      %7243 = vmatprep.subr.bf16.mxu0 0
      %7244 = vmatpush1.bf16.msra.mxu0 0
      %7245 = vmatprep.subr.bf16.mxu0 0
      %7246 = vmatpush1.bf16.msra.mxu0 0
      %7247 = vmatprep.subr.bf16.mxu0 0
      %7248 = vmatpush1.bf16.msra.mxu0 0
      %7249 = vmatprep.subr.bf16.mxu0 0
      %7250 = vmatpush1.bf16.msra.mxu0 0
      %7251 = vmatprep.subr.bf16.mxu0 0
      %7252 = vmatpush1.bf16.msra.mxu0 0
      %7253 = vmatprep.subr.bf16.mxu0 0
      %7254 = vmatpush1.bf16.msra.mxu0 0
      %7255 = vmatprep.mubr.bf16.mxu0 0
      %7256 = vmatmul.mubr.bf16.gmra.mrb[0].mxu0 %v7197
      %v7257 = vpop.f32.mrb[0].mxu0
      %v7258 = vadd.f32 0.0, %v7257
      %v7259 = vpop.f32.mrb[0].mxu0
      %v7260 = vpop.f32.mrb[0].mxu0
      %v7261 = vadd.f32 0.0, %v7260
      %v7262 = vpop.f32.mrb[0].mxu0
      %7263 = vmatprep.mubr.bf16.mxu0 0
      %7264 = vmatmul.mubr.bf16.gmra.mrb[0].mxu0 %v7200
      %v7265 = vpop.f32.mrb[0].mxu0
      %v7266 = vadd.f32 0.0, %v7265
      %v7267 = vpop.f32.mrb[0].mxu0
      %v7268 = vpop.f32.mrb[0].mxu0
      %v7269 = vadd.f32 0.0, %v7268
      %v7270 = vpop.f32.mrb[0].mxu0
      %7271 = vmatprep.mubr.bf16.mxu0 0
      %7272 = vmatmul.mubr.bf16.gmra.mrb[0].mxu0 %v7203
      %v7273 = vpop.f32.mrb[0].mxu0
      %v7274 = vadd.f32 0.0, %v7273
      %v7275 = vpop.f32.mrb[0].mxu0
      %v7276 = vpop.f32.mrb[0].mxu0
      %v7277 = vadd.f32 0.0, %v7276
      %v7278 = vpop.f32.mrb[0].mxu0
      %7279 = vmatprep.mubr.bf16.mxu0 0
      %7280 = vmatmul.mubr.bf16.gmra.mrb[0].mxu0 %v7206
      %v7281 = vpop.f32.mrb[0].mxu0
      %v7282 = vadd.f32 0.0, %v7281
      %v7283 = vpop.f32.mrb[0].mxu0
      %v7284 = vpop.f32.mrb[0].mxu0
      %v7285 = vadd.f32 0.0, %v7284
      %v7286 = vpop.f32.mrb[0].mxu0
      %7287 = vmatprep.mubr.bf16.mxu0 0
      %7288 = vmatmul.mubr.bf16.gmra.mrb[0].mxu0 %v7209
      %v7289 = vpop.f32.mrb[0].mxu0
      %v7290 = vadd.f32 0.0, %v7289
      %v7291 = vpop.f32.mrb[0].mxu0
      %v7292 = vpop.f32.mrb[0].mxu0
      %v7293 = vadd.f32 0.0, %v7292
      %v7294 = vpop.f32.mrb[0].mxu0
      %7295 = vmatprep.mubr.bf16.mxu0 0
      %7296 = vmatmul.mubr.bf16.gmra.mrb[0].mxu0 %v7212
      %v7297 = vpop.f32.mrb[0].mxu0
      %v7298 = vadd.f32 0.0, %v7297
      %v7299 = vpop.f32.mrb[0].mxu0
      %v7300 = vpop.f32.mrb[0].mxu0
      %v7301 = vadd.f32 0.0, %v7300
      %v7302 = vpop.f32.mrb[0].mxu0
      %7303 = vmatprep.mubr.bf16.mxu0 0
      %7304 = vmatmul.mubr.bf16.gmra.mrb[0].mxu0 %v7215
      %v7305 = vpop.f32.mrb[0].mxu0
      %v7306 = vadd.f32 0.0, %v7305
      %v7307 = vpop.f32.mrb[0].mxu0
      %v7308 = vpop.f32.mrb[0].mxu0
      %v7309 = vadd.f32 0.0, %v7308
      %v7310 = vpop.f32.mrb[0].mxu0
      %7311 = vmatprep.mubr.bf16.mxu0 0
      %7312 = vmatmul.mubr.bf16.gmra.mrb[0].mxu0 %v7218
      %v7313 = vpop.f32.mrb[0].mxu0
      %v7314 = vadd.f32 0.0, %v7313
      %v7315 = vpop.f32.mrb[0].mxu0
      %v7316 = vpop.f32.mrb[0].mxu0
      %v7317 = vadd.f32 0.0, %v7316
      %v7318 = vpop.f32.mrb[0].mxu0
      %7319 = vmatprep.mubr.bf16.mxu0 0
      %7320 = vmatmul.mubr.bf16.gmra.mrb[0].mxu0 %v7221
      %v7321 = vpop.f32.mrb[0].mxu0
      %v7322 = vadd.f32 0.0, %v7321
      %v7323 = vpop.f32.mrb[0].mxu0
      %v7324 = vpop.f32.mrb[0].mxu0
      %v7325 = vadd.f32 0.0, %v7324
      %v7326 = vpop.f32.mrb[0].mxu0
      %7327 = vdwg.mxu0
      %v7328 = vadd.f32 %v7091, %v7258
      %v7329 = vadd.f32 %v7092, %v7261
      %v7330 = vadd.f32 %v7093, %v7266
      %v7331 = vadd.f32 %v7094, %v7269
      %v7332 = vadd.f32 %v7095, %v7274
      %v7333 = vadd.f32 %v7096, %v7277
      %v7334 = vadd.f32 %v7097, %v7282
      %v7335 = vadd.f32 %v7098, %v7285
      %v7336 = vadd.f32 %v7099, %v7290
      %v7337 = vadd.f32 %v7100, %v7293
      %v7338 = vadd.f32 %v7101, %v7298
      %v7339 = vadd.f32 %v7102, %v7301
      %v7340 = vadd.f32 %v7103, %v7306
      %v7341 = vadd.f32 %v7104, %v7309
      %v7342 = vadd.f32 %v7105, %v7314
      %v7343 = vadd.f32 %v7106, %v7317
      %v7344 = vadd.f32 %v7107, %v7322
      %v7345 = vadd.f32 %v7108, %v7325
      %v7346 = vxor.u32 %v7328, 2147483648
      %v7347 = vxor.u32 %v7329, 2147483648
      %v7348 = vxor.u32 %v7330, 2147483648
      %v7349 = vxor.u32 %v7331, 2147483648
      %v7350 = vxor.u32 %v7332, 2147483648
      %v7351 = vxor.u32 %v7333, 2147483648
      %v7352 = vxor.u32 %v7334, 2147483648
      %v7353 = vxor.u32 %v7335, 2147483648
      %v7354 = vxor.u32 %v7336, 2147483648
      %v7355 = vxor.u32 %v7337, 2147483648
      %v7356 = vxor.u32 %v7338, 2147483648
      %v7357 = vxor.u32 %v7339, 2147483648
      %v7358 = vxor.u32 %v7340, 2147483648
      %v7359 = vxor.u32 %v7341, 2147483648
      %v7360 = vxor.u32 %v7342, 2147483648
      %v7361 = vxor.u32 %v7343, 2147483648
      %v7362 = vxor.u32 %v7344, 2147483648
      %v7363 = vxor.u32 %v7345, 2147483648
      %v7364 = vmul.f32 %v7346, 1.442695
      %v7365 = vpow.pop %v7364
      %v7366 = vmul.f32 %v7347, 1.442695
      %v7367 = vpow.pop %v7366
      %v7368 = vmul.f32 %v7348, 1.442695
      %v7369 = vpow.pop %v7368
      %v7370 = vmul.f32 %v7349, 1.442695
      %v7371 = vpow.pop %v7370
      %v7372 = vmul.f32 %v7350, 1.442695
      %v7373 = vpow.pop %v7372
      %v7374 = vmul.f32 %v7351, 1.442695
      %v7375 = vpow.pop %v7374
      %v7376 = vmul.f32 %v7352, 1.442695
      %v7377 = vpow.pop %v7376
      %v7378 = vmul.f32 %v7353, 1.442695
      %v7379 = vpow.pop %v7378
      %v7380 = vmul.f32 %v7354, 1.442695
      %v7381 = vpow.pop %v7380
      %v7382 = vmul.f32 %v7355, 1.442695
      %v7383 = vpow.pop %v7382
      %v7384 = vmul.f32 %v7356, 1.442695
      %v7385 = vpow.pop %v7384
      %v7386 = vmul.f32 %v7357, 1.442695
      %v7387 = vpow.pop %v7386
      %v7388 = vmul.f32 %v7358, 1.442695
      %v7389 = vpow.pop %v7388
      %v7390 = vmul.f32 %v7359, 1.442695
      %v7391 = vpow.pop %v7390
      %v7392 = vmul.f32 %v7360, 1.442695
      %v7393 = vpow.pop %v7392
      %v7394 = vmul.f32 %v7361, 1.442695
      %v7395 = vpow.pop %v7394
      %v7396 = vmul.f32 %v7362, 1.442695
      %v7397 = vpow.pop %v7396
      %v7398 = vmul.f32 %v7363, 1.442695
      %v7399 = vpow.pop %v7398
      %v7400 = vadd.f32 %v7365, 1.0
      %v7401 = vadd.f32 %v7367, 1.0
      %v7402 = vadd.f32 %v7369, 1.0
      %v7403 = vadd.f32 %v7371, 1.0
      %v7404 = vadd.f32 %v7373, 1.0
      %v7405 = vadd.f32 %v7375, 1.0
      %v7406 = vadd.f32 %v7377, 1.0
      %v7407 = vadd.f32 %v7379, 1.0
      %v7408 = vadd.f32 %v7381, 1.0
      %v7409 = vadd.f32 %v7383, 1.0
      %v7410 = vadd.f32 %v7385, 1.0
      %v7411 = vadd.f32 %v7387, 1.0
      %v7412 = vadd.f32 %v7389, 1.0
      %v7413 = vadd.f32 %v7391, 1.0
      %v7414 = vadd.f32 %v7393, 1.0
      %v7415 = vadd.f32 %v7395, 1.0
      %v7416 = vadd.f32 %v7397, 1.0
      %v7417 = vadd.f32 %v7399, 1.0
      %v7418 = vrcp.pop %v7400
      %v7419 = vmul.f32 1.0, %v7418
      %v7420 = vrcp.pop %v7401
      %v7421 = vmul.f32 1.0, %v7420
      %v7422 = vrcp.pop %v7402
      %v7423 = vmul.f32 1.0, %v7422
      %v7424 = vrcp.pop %v7403
      %v7425 = vmul.f32 1.0, %v7424
      %v7426 = vrcp.pop %v7404
      %v7427 = vmul.f32 1.0, %v7426
      %v7428 = vrcp.pop %v7405
      %v7429 = vmul.f32 1.0, %v7428
      %v7430 = vrcp.pop %v7406
      %v7431 = vmul.f32 1.0, %v7430
      %v7432 = vrcp.pop %v7407
      %v7433 = vmul.f32 1.0, %v7432
      %v7434 = vrcp.pop %v7408
      %v7435 = vmul.f32 1.0, %v7434
      %v7436 = vrcp.pop %v7409
      %v7437 = vmul.f32 1.0, %v7436
      %v7438 = vrcp.pop %v7410
      %v7439 = vmul.f32 1.0, %v7438
      %v7440 = vrcp.pop %v7411
      %v7441 = vmul.f32 1.0, %v7440
      %v7442 = vrcp.pop %v7412
      %v7443 = vmul.f32 1.0, %v7442
      %v7444 = vrcp.pop %v7413
      %v7445 = vmul.f32 1.0, %v7444
      %v7446 = vrcp.pop %v7414
      %v7447 = vmul.f32 1.0, %v7446
      %v7448 = vrcp.pop %v7415
      %v7449 = vmul.f32 1.0, %v7448
      %v7450 = vrcp.pop %v7416
      %v7451 = vmul.f32 1.0, %v7450
      %v7452 = vrcp.pop %v7417
      %v7453 = vmul.f32 1.0, %v7452
      %v7454 = vtanh.pop %v7328
      %v7455 = vtanh.pop %v7329
      %v7456 = vtanh.pop %v7330
      %v7457 = vtanh.pop %v7331
      %v7458 = vtanh.pop %v7332
      %v7459 = vtanh.pop %v7333
      %v7460 = vtanh.pop %v7334
      %v7461 = vtanh.pop %v7335
      %v7462 = vtanh.pop %v7336
      %v7463 = vtanh.pop %v7337
      %v7464 = vtanh.pop %v7338
      %v7465 = vtanh.pop %v7339
      %v7466 = vtanh.pop %v7340
      %v7467 = vtanh.pop %v7341
      %v7468 = vtanh.pop %v7342
      %v7469 = vtanh.pop %v7343
      %v7470 = vtanh.pop %v7344
      %v7471 = vtanh.pop %v7345
      %v7472 = vld [vmem:[%s5 + $0x120] sm:$0xff]
      %v7473 = vld [vmem:[%s5 + $0x128] sm:$0xff]
      %v7474 = vld [vmem:[%s5 + $0x130] sm:$0xff]
      %v7475 = vld [vmem:[%s5 + $0x138] sm:$0xff]
      %v7476 = vld [vmem:[%s5 + $0x140] sm:$0xff]
      %v7477 = vld [vmem:[%s5 + $0x148] sm:$0xff]
      %v7478 = vld [vmem:[%s5 + $0x150] sm:$0xff]
      %v7479 = vld [vmem:[%s5 + $0x158] sm:$0xff]
      %v7480 = vld [vmem:[%s5 + $0x160] sm:$0xff]
      %v7481 = vld [vmem:[%s5 + $0x168] sm:$0xff]
      %v7482 = vld [vmem:[%s5 + $0x170] sm:$0xff]
      %v7483 = vld [vmem:[%s5 + $0x178] sm:$0xff]
      %v7484 = vld [vmem:[%s5 + $0x180] sm:$0xff]
      %v7485 = vld [vmem:[%s5 + $0x188] sm:$0xff]
      %v7486 = vld [vmem:[%s5 + $0x190] sm:$0xff]
      %v7487 = vld [vmem:[%s5 + $0x198] sm:$0xff]
      %v7488 = vld [vmem:[%s5 + $0x1a0] sm:$0xff]
      %v7489 = vld [vmem:[%s5 + $0x1a8] sm:$0xff]
      %v7490 = vld [vmem:[#allocation3 + $0x120] sm:$0xff]
      %v7491 = vld [vmem:[#allocation3 + $0x128] sm:$0xff]
      %v7492 = vld [vmem:[#allocation3 + $0x130] sm:$0xff]
      %v7493 = vld [vmem:[#allocation3 + $0x138] sm:$0xff]
      %v7494 = vld [vmem:[#allocation3 + $0x140] sm:$0xff]
      %v7495 = vld [vmem:[#allocation3 + $0x148] sm:$0xff]
      %v7496 = vld [vmem:[#allocation3 + $0x150] sm:$0xff]
      %v7497 = vld [vmem:[#allocation3 + $0x158] sm:$0xff]
      %v7498 = vld [vmem:[#allocation3 + $0x160] sm:$0xff]
      %v7499 = vld [vmem:[#allocation3 + $0x168] sm:$0xff]
      %v7500 = vld [vmem:[#allocation3 + $0x170] sm:$0xff]
      %v7501 = vld [vmem:[#allocation3 + $0x178] sm:$0xff]
      %v7502 = vld [vmem:[#allocation3 + $0x180] sm:$0xff]
      %v7503 = vld [vmem:[#allocation3 + $0x188] sm:$0xff]
      %v7504 = vld [vmem:[#allocation3 + $0x190] sm:$0xff]
      %v7505 = vld [vmem:[#allocation3 + $0x198] sm:$0xff]
      %v7506 = vld [vmem:[#allocation3 + $0x1a0] sm:$0xff]
      %v7507 = vld [vmem:[#allocation3 + $0x1a8] sm:$0xff]
      %7526 = vrot.lane.b32.xlu0 %v7490, 16
      %v7527 = vpop.permute.xlu0 %7526
      %7528 = vrot.lane.b32.xlu0 %v7491, 16
      %v7529 = vpop.permute.xlu0 %7528
      %7530 = vrot.lane.b32.xlu0 %v7492, 16
      %v7531 = vpop.permute.xlu0 %7530
      %7532 = vrot.lane.b32.xlu0 %v7493, 16
      %v7533 = vpop.permute.xlu0 %7532
      %7534 = vrot.lane.b32.xlu0 %v7494, 16
      %v7535 = vpop.permute.xlu0 %7534
      %7536 = vrot.lane.b32.xlu0 %v7495, 16
      %v7537 = vpop.permute.xlu0 %7536
      %7538 = vrot.lane.b32.xlu0 %v7496, 16
      %v7539 = vpop.permute.xlu0 %7538
      %7540 = vrot.lane.b32.xlu0 %v7497, 16
      %v7541 = vpop.permute.xlu0 %7540
      %7542 = vrot.lane.b32.xlu0 %v7498, 16
      %v7543 = vpop.permute.xlu0 %7542
      %7544 = vrot.lane.b32.xlu0 %v7499, 16
      %v7545 = vpop.permute.xlu0 %7544
      %7546 = vrot.lane.b32.xlu0 %v7500, 16
      %v7547 = vpop.permute.xlu0 %7546
      %7548 = vrot.lane.b32.xlu0 %v7501, 16
      %v7549 = vpop.permute.xlu0 %7548
      %7550 = vrot.lane.b32.xlu0 %v7502, 16
      %v7551 = vpop.permute.xlu0 %7550
      %7552 = vrot.lane.b32.xlu0 %v7503, 16
      %v7553 = vpop.permute.xlu0 %7552
      %7554 = vrot.lane.b32.xlu0 %v7504, 16
      %v7555 = vpop.permute.xlu0 %7554
      %7556 = vrot.lane.b32.xlu0 %v7505, 16
      %v7557 = vpop.permute.xlu0 %7556
      %7558 = vrot.lane.b32.xlu0 %v7506, 16
      %v7559 = vpop.permute.xlu0 %7558
      %7560 = vrot.lane.b32.xlu0 %v7507, 16
      %v7561 = vpop.permute.xlu0 %7560
      %v7580 = vmul.f32 %v7419, %v7527
      %v7581 = vmul.f32 %v7421, %v7529
      %v7582 = vmul.f32 %v7423, %v7531
      %v7583 = vmul.f32 %v7425, %v7533
      %v7584 = vmul.f32 %v7427, %v7535
      %v7585 = vmul.f32 %v7429, %v7537
      %v7586 = vmul.f32 %v7431, %v7539
      %v7587 = vmul.f32 %v7433, %v7541
      %v7588 = vmul.f32 %v7435, %v7543
      %v7589 = vmul.f32 %v7437, %v7545
      %v7590 = vmul.f32 %v7439, %v7547
      %v7591 = vmul.f32 %v7441, %v7549
      %v7592 = vmul.f32 %v7443, %v7551
      %v7593 = vmul.f32 %v7445, %v7553
      %v7594 = vmul.f32 %v7447, %v7555
      %v7595 = vmul.f32 %v7449, %v7557
      %v7596 = vmul.f32 %v7451, %v7559
      %v7597 = vmul.f32 %v7453, %v7561
      %7616 = vrot.lane.b32.xlu0 %v7454, 80
      %v7617 = vpop.permute.xlu0 %7616
      %7618 = vrot.lane.b32.xlu0 %v7455, 80
      %v7619 = vpop.permute.xlu0 %7618
      %7620 = vrot.lane.b32.xlu0 %v7456, 80
      %v7621 = vpop.permute.xlu0 %7620
      %7622 = vrot.lane.b32.xlu0 %v7457, 80
      %v7623 = vpop.permute.xlu0 %7622
      %7624 = vrot.lane.b32.xlu0 %v7458, 80
      %v7625 = vpop.permute.xlu0 %7624
      %7626 = vrot.lane.b32.xlu0 %v7459, 80
      %v7627 = vpop.permute.xlu0 %7626
      %7628 = vrot.lane.b32.xlu0 %v7460, 80
      %v7629 = vpop.permute.xlu0 %7628
      %7630 = vrot.lane.b32.xlu0 %v7461, 80
      %v7631 = vpop.permute.xlu0 %7630
      %7632 = vrot.lane.b32.xlu0 %v7462, 80
      %v7633 = vpop.permute.xlu0 %7632
      %7634 = vrot.lane.b32.xlu0 %v7463, 80
      %v7635 = vpop.permute.xlu0 %7634
      %7636 = vrot.lane.b32.xlu0 %v7464, 80
      %v7637 = vpop.permute.xlu0 %7636
      %7638 = vrot.lane.b32.xlu0 %v7465, 80
      %v7639 = vpop.permute.xlu0 %7638
      %7640 = vrot.lane.b32.xlu0 %v7466, 80
      %v7641 = vpop.permute.xlu0 %7640
      %7642 = vrot.lane.b32.xlu0 %v7467, 80
      %v7643 = vpop.permute.xlu0 %7642
      %7644 = vrot.lane.b32.xlu0 %v7468, 80
      %v7645 = vpop.permute.xlu0 %7644
      %7646 = vrot.lane.b32.xlu0 %v7469, 80
      %v7647 = vpop.permute.xlu0 %7646
      %7648 = vrot.lane.b32.xlu0 %v7470, 80
      %v7649 = vpop.permute.xlu0 %7648
      %7650 = vrot.lane.b32.xlu0 %v7471, 80
      %v7651 = vpop.permute.xlu0 %7650
      %v7670 = vmul.f32 %v7419, %v7617
      %v7671 = vmul.f32 %v7421, %v7619
      %v7672 = vmul.f32 %v7423, %v7621
      %v7673 = vmul.f32 %v7425, %v7623
      %v7674 = vmul.f32 %v7427, %v7625
      %v7675 = vmul.f32 %v7429, %v7627
      %v7676 = vmul.f32 %v7431, %v7629
      %v7677 = vmul.f32 %v7433, %v7631
      %v7678 = vmul.f32 %v7435, %v7633
      %v7679 = vmul.f32 %v7437, %v7635
      %v7680 = vmul.f32 %v7439, %v7637
      %v7681 = vmul.f32 %v7441, %v7639
      %v7682 = vmul.f32 %v7443, %v7641
      %v7683 = vmul.f32 %v7445, %v7643
      %v7684 = vmul.f32 %v7447, %v7645
      %v7685 = vmul.f32 %v7449, %v7647
      %v7686 = vmul.f32 %v7451, %v7649
      %v7687 = vmul.f32 %v7453, %v7651
      %7706 = vrot.lane.b32.xlu0 %v7670, 16
      %v7707 = vpop.permute.xlu0 %7706
      %7708 = vrot.lane.b32.xlu0 %v7671, 16
      %v7709 = vpop.permute.xlu0 %7708
      %7710 = vrot.lane.b32.xlu0 %v7672, 16
      %v7711 = vpop.permute.xlu0 %7710
      %7712 = vrot.lane.b32.xlu0 %v7673, 16
      %v7713 = vpop.permute.xlu0 %7712
      %7714 = vrot.lane.b32.xlu0 %v7674, 16
      %v7715 = vpop.permute.xlu0 %7714
      %7716 = vrot.lane.b32.xlu0 %v7675, 16
      %v7717 = vpop.permute.xlu0 %7716
      %7718 = vrot.lane.b32.xlu0 %v7676, 16
      %v7719 = vpop.permute.xlu0 %7718
      %7720 = vrot.lane.b32.xlu0 %v7677, 16
      %v7721 = vpop.permute.xlu0 %7720
      %7722 = vrot.lane.b32.xlu0 %v7678, 16
      %v7723 = vpop.permute.xlu0 %7722
      %7724 = vrot.lane.b32.xlu0 %v7679, 16
      %v7725 = vpop.permute.xlu0 %7724
      %7726 = vrot.lane.b32.xlu0 %v7680, 16
      %v7727 = vpop.permute.xlu0 %7726
      %7728 = vrot.lane.b32.xlu0 %v7681, 16
      %v7729 = vpop.permute.xlu0 %7728
      %7730 = vrot.lane.b32.xlu0 %v7682, 16
      %v7731 = vpop.permute.xlu0 %7730
      %7732 = vrot.lane.b32.xlu0 %v7683, 16
      %v7733 = vpop.permute.xlu0 %7732
      %7734 = vrot.lane.b32.xlu0 %v7684, 16
      %v7735 = vpop.permute.xlu0 %7734
      %7736 = vrot.lane.b32.xlu0 %v7685, 16
      %v7737 = vpop.permute.xlu0 %7736
      %7738 = vrot.lane.b32.xlu0 %v7686, 16
      %v7739 = vpop.permute.xlu0 %7738
      %7740 = vrot.lane.b32.xlu0 %v7687, 16
      %v7741 = vpop.permute.xlu0 %7740
      %v7760 = vadd.f32 %v7580, %v7707
      %v7761 = vadd.f32 %v7581, %v7709
      %v7762 = vadd.f32 %v7582, %v7711
      %v7763 = vadd.f32 %v7583, %v7713
      %v7764 = vadd.f32 %v7584, %v7715
      %v7765 = vadd.f32 %v7585, %v7717
      %v7766 = vadd.f32 %v7586, %v7719
      %v7767 = vadd.f32 %v7587, %v7721
      %v7768 = vadd.f32 %v7588, %v7723
      %v7769 = vadd.f32 %v7589, %v7725
      %v7770 = vadd.f32 %v7590, %v7727
      %v7771 = vadd.f32 %v7591, %v7729
      %v7772 = vadd.f32 %v7592, %v7731
      %v7773 = vadd.f32 %v7593, %v7733
      %v7774 = vadd.f32 %v7594, %v7735
      %v7775 = vadd.f32 %v7595, %v7737
      %v7776 = vadd.f32 %v7596, %v7739
      %v7777 = vadd.f32 %v7597, %v7741
      %v7778 = vtanh.pop %v7760
      %v7779 = vtanh.pop %v7761
      %v7780 = vtanh.pop %v7762
      %v7781 = vtanh.pop %v7763
      %v7782 = vtanh.pop %v7764
      %v7783 = vtanh.pop %v7765
      %v7784 = vtanh.pop %v7766
      %v7785 = vtanh.pop %v7767
      %v7786 = vtanh.pop %v7768
      %v7787 = vtanh.pop %v7769
      %v7788 = vtanh.pop %v7770
      %v7789 = vtanh.pop %v7771
      %v7790 = vtanh.pop %v7772
      %v7791 = vtanh.pop %v7773
      %v7792 = vtanh.pop %v7774
      %v7793 = vtanh.pop %v7775
      %v7794 = vtanh.pop %v7776
      %v7795 = vtanh.pop %v7777
      %7814 = vrot.lane.b32.xlu0 %v7778, 16
      %v7815 = vpop.permute.xlu0 %7814
      %7816 = vrot.lane.b32.xlu0 %v7779, 16
      %v7817 = vpop.permute.xlu0 %7816
      %7818 = vrot.lane.b32.xlu0 %v7780, 16
      %v7819 = vpop.permute.xlu0 %7818
      %7820 = vrot.lane.b32.xlu0 %v7781, 16
      %v7821 = vpop.permute.xlu0 %7820
      %7822 = vrot.lane.b32.xlu0 %v7782, 16
      %v7823 = vpop.permute.xlu0 %7822
      %7824 = vrot.lane.b32.xlu0 %v7783, 16
      %v7825 = vpop.permute.xlu0 %7824
      %7826 = vrot.lane.b32.xlu0 %v7784, 16
      %v7827 = vpop.permute.xlu0 %7826
      %7828 = vrot.lane.b32.xlu0 %v7785, 16
      %v7829 = vpop.permute.xlu0 %7828
      %7830 = vrot.lane.b32.xlu0 %v7786, 16
      %v7831 = vpop.permute.xlu0 %7830
      %7832 = vrot.lane.b32.xlu0 %v7787, 16
      %v7833 = vpop.permute.xlu0 %7832
      %7834 = vrot.lane.b32.xlu0 %v7788, 16
      %v7835 = vpop.permute.xlu0 %7834
      %7836 = vrot.lane.b32.xlu0 %v7789, 16
      %v7837 = vpop.permute.xlu0 %7836
      %7838 = vrot.lane.b32.xlu0 %v7790, 16
      %v7839 = vpop.permute.xlu0 %7838
      %7840 = vrot.lane.b32.xlu0 %v7791, 16
      %v7841 = vpop.permute.xlu0 %7840
      %7842 = vrot.lane.b32.xlu0 %v7792, 16
      %v7843 = vpop.permute.xlu0 %7842
      %7844 = vrot.lane.b32.xlu0 %v7793, 16
      %v7845 = vpop.permute.xlu0 %7844
      %7846 = vrot.lane.b32.xlu0 %v7794, 16
      %v7847 = vpop.permute.xlu0 %7846
      %7848 = vrot.lane.b32.xlu0 %v7795, 16
      %v7849 = vpop.permute.xlu0 %7848
      %v7868 = vmul.f32 %v7419, %v7815
      %v7869 = vmul.f32 %v7421, %v7817
      %v7870 = vmul.f32 %v7423, %v7819
      %v7871 = vmul.f32 %v7425, %v7821
      %v7872 = vmul.f32 %v7427, %v7823
      %v7873 = vmul.f32 %v7429, %v7825
      %v7874 = vmul.f32 %v7431, %v7827
      %v7875 = vmul.f32 %v7433, %v7829
      %v7876 = vmul.f32 %v7435, %v7831
      %v7877 = vmul.f32 %v7437, %v7833
      %v7878 = vmul.f32 %v7439, %v7835
      %v7879 = vmul.f32 %v7441, %v7837
      %v7880 = vmul.f32 %v7443, %v7839
      %v7881 = vmul.f32 %v7445, %v7841
      %v7882 = vmul.f32 %v7447, %v7843
      %v7883 = vmul.f32 %v7449, %v7845
      %v7884 = vmul.f32 %v7451, %v7847
      %v7885 = vmul.f32 %v7453, %v7849
      %7904 = vrot.lane.b32.xlu0 %v7472, 32
      %v7905 = vpop.permute.xlu0 %7904
      %7906 = vrot.lane.b32.xlu0 %v7473, 32
      %v7907 = vpop.permute.xlu0 %7906
      %7908 = vrot.lane.b32.xlu0 %v7474, 32
      %v7909 = vpop.permute.xlu0 %7908
      %7910 = vrot.lane.b32.xlu0 %v7475, 32
      %v7911 = vpop.permute.xlu0 %7910
      %7912 = vrot.lane.b32.xlu0 %v7476, 32
      %v7913 = vpop.permute.xlu0 %7912
      %7914 = vrot.lane.b32.xlu0 %v7477, 32
      %v7915 = vpop.permute.xlu0 %7914
      %7916 = vrot.lane.b32.xlu0 %v7478, 32
      %v7917 = vpop.permute.xlu0 %7916
      %7918 = vrot.lane.b32.xlu0 %v7479, 32
      %v7919 = vpop.permute.xlu0 %7918
      %7920 = vrot.lane.b32.xlu0 %v7480, 32
      %v7921 = vpop.permute.xlu0 %7920
      %7922 = vrot.lane.b32.xlu0 %v7481, 32
      %v7923 = vpop.permute.xlu0 %7922
      %7924 = vrot.lane.b32.xlu0 %v7482, 32
      %v7925 = vpop.permute.xlu0 %7924
      %7926 = vrot.lane.b32.xlu0 %v7483, 32
      %v7927 = vpop.permute.xlu0 %7926
      %7928 = vrot.lane.b32.xlu0 %v7484, 32
      %v7929 = vpop.permute.xlu0 %7928
      %7930 = vrot.lane.b32.xlu0 %v7485, 32
      %v7931 = vpop.permute.xlu0 %7930
      %7932 = vrot.lane.b32.xlu0 %v7486, 32
      %v7933 = vpop.permute.xlu0 %7932
      %7934 = vrot.lane.b32.xlu0 %v7487, 32
      %v7935 = vpop.permute.xlu0 %7934
      %7936 = vrot.lane.b32.xlu0 %v7488, 32
      %v7937 = vpop.permute.xlu0 %7936
      %7938 = vrot.lane.b32.xlu0 %v7489, 32
      %v7939 = vpop.permute.xlu0 %7938
      %v7958 = vmul.f32 %v7868, %v7905
      %v7959 = vmul.f32 %v7869, %v7907
      %v7960 = vmul.f32 %v7870, %v7909
      %v7961 = vmul.f32 %v7871, %v7911
      %v7962 = vmul.f32 %v7872, %v7913
      %v7963 = vmul.f32 %v7873, %v7915
      %v7964 = vmul.f32 %v7874, %v7917
      %v7965 = vmul.f32 %v7875, %v7919
      %v7966 = vmul.f32 %v7876, %v7921
      %v7967 = vmul.f32 %v7877, %v7923
      %v7968 = vmul.f32 %v7878, %v7925
      %v7969 = vmul.f32 %v7879, %v7927
      %v7970 = vmul.f32 %v7880, %v7929
      %v7971 = vmul.f32 %v7881, %v7931
      %v7972 = vmul.f32 %v7882, %v7933
      %v7973 = vmul.f32 %v7883, %v7935
      %v7974 = vmul.f32 %v7884, %v7937
      %v7975 = vmul.f32 %v7885, %v7939
      %7994 = vrot.lane.b32.xlu0 %v7760, 112
      %v7995 = vpop.permute.xlu0 %7994
      %7996 = vrot.lane.b32.xlu0 %v7761, 112
      %v7997 = vpop.permute.xlu0 %7996
      %7998 = vrot.lane.b32.xlu0 %v7762, 112
      %v7999 = vpop.permute.xlu0 %7998
      %8000 = vrot.lane.b32.xlu0 %v7763, 112
      %v8001 = vpop.permute.xlu0 %8000
      %8002 = vrot.lane.b32.xlu0 %v7764, 112
      %v8003 = vpop.permute.xlu0 %8002
      %8004 = vrot.lane.b32.xlu0 %v7765, 112
      %v8005 = vpop.permute.xlu0 %8004
      %8006 = vrot.lane.b32.xlu0 %v7766, 112
      %v8007 = vpop.permute.xlu0 %8006
      %8008 = vrot.lane.b32.xlu0 %v7767, 112
      %v8009 = vpop.permute.xlu0 %8008
      %8010 = vrot.lane.b32.xlu0 %v7768, 112
      %v8011 = vpop.permute.xlu0 %8010
      %8012 = vrot.lane.b32.xlu0 %v7769, 112
      %v8013 = vpop.permute.xlu0 %8012
      %8014 = vrot.lane.b32.xlu0 %v7770, 112
      %v8015 = vpop.permute.xlu0 %8014
      %8016 = vrot.lane.b32.xlu0 %v7771, 112
      %v8017 = vpop.permute.xlu0 %8016
      %8018 = vrot.lane.b32.xlu0 %v7772, 112
      %v8019 = vpop.permute.xlu0 %8018
      %8020 = vrot.lane.b32.xlu0 %v7773, 112
      %v8021 = vpop.permute.xlu0 %8020
      %8022 = vrot.lane.b32.xlu0 %v7774, 112
      %v8023 = vpop.permute.xlu0 %8022
      %8024 = vrot.lane.b32.xlu0 %v7775, 112
      %v8025 = vpop.permute.xlu0 %8024
      %8026 = vrot.lane.b32.xlu0 %v7776, 112
      %v8027 = vpop.permute.xlu0 %8026
      %8028 = vrot.lane.b32.xlu0 %v7777, 112
      %v8029 = vpop.permute.xlu0 %8028
      %8048 = vst.msk [vmem:[#allocation3 + $0x120] sm:$0xff] %vm1248, %v7995
      %8049 = vst.msk [vmem:[#allocation3 + $0x128] sm:$0xff] %vm1248, %v7997
      %8050 = vst.msk [vmem:[#allocation3 + $0x130] sm:$0xff] %vm1248, %v7999
      %8051 = vst.msk [vmem:[#allocation3 + $0x138] sm:$0xff] %vm1248, %v8001
      %8052 = vst.msk [vmem:[#allocation3 + $0x140] sm:$0xff] %vm1248, %v8003
      %8053 = vst.msk [vmem:[#allocation3 + $0x148] sm:$0xff] %vm1248, %v8005
      %8054 = vst.msk [vmem:[#allocation3 + $0x150] sm:$0xff] %vm1248, %v8007
      %8055 = vst.msk [vmem:[#allocation3 + $0x158] sm:$0xff] %vm1248, %v8009
      %8056 = vst.msk [vmem:[#allocation3 + $0x160] sm:$0xff] %vm1248, %v8011
      %8057 = vst.msk [vmem:[#allocation3 + $0x168] sm:$0xff] %vm1248, %v8013
      %8058 = vst.msk [vmem:[#allocation3 + $0x170] sm:$0xff] %vm1248, %v8015
      %8059 = vst.msk [vmem:[#allocation3 + $0x178] sm:$0xff] %vm1248, %v8017
      %8060 = vst.msk [vmem:[#allocation3 + $0x180] sm:$0xff] %vm1248, %v8019
      %8061 = vst.msk [vmem:[#allocation3 + $0x188] sm:$0xff] %vm1248, %v8021
      %8062 = vst.msk [vmem:[#allocation3 + $0x190] sm:$0xff] %vm1248, %v8023
      %8063 = vst.msk [vmem:[#allocation3 + $0x198] sm:$0xff] %vm1248, %v8025
      %8064 = vst.msk [vmem:[#allocation3 + $0x1a0] sm:$0xff] %vm1248, %v8027
      %8065 = vst.msk [vmem:[#allocation3 + $0x1a8] sm:$0xff] %vm1248, %v8029
      %8084 = vrot.lane.b32.xlu0 %v7958, 96
      %v8085 = vpop.permute.xlu0 %8084
      %8086 = vrot.lane.b32.xlu0 %v7959, 96
      %v8087 = vpop.permute.xlu0 %8086
      %8088 = vrot.lane.b32.xlu0 %v7960, 96
      %v8089 = vpop.permute.xlu0 %8088
      %8090 = vrot.lane.b32.xlu0 %v7961, 96
      %v8091 = vpop.permute.xlu0 %8090
      %8092 = vrot.lane.b32.xlu0 %v7962, 96
      %v8093 = vpop.permute.xlu0 %8092
      %8094 = vrot.lane.b32.xlu0 %v7963, 96
      %v8095 = vpop.permute.xlu0 %8094
      %8096 = vrot.lane.b32.xlu0 %v7964, 96
      %v8097 = vpop.permute.xlu0 %8096
      %8098 = vrot.lane.b32.xlu0 %v7965, 96
      %v8099 = vpop.permute.xlu0 %8098
      %8100 = vrot.lane.b32.xlu0 %v7966, 96
      %v8101 = vpop.permute.xlu0 %8100
      %8102 = vrot.lane.b32.xlu0 %v7967, 96
      %v8103 = vpop.permute.xlu0 %8102
      %8104 = vrot.lane.b32.xlu0 %v7968, 96
      %v8105 = vpop.permute.xlu0 %8104
      %8106 = vrot.lane.b32.xlu0 %v7969, 96
      %v8107 = vpop.permute.xlu0 %8106
      %8108 = vrot.lane.b32.xlu0 %v7970, 96
      %v8109 = vpop.permute.xlu0 %8108
      %8110 = vrot.lane.b32.xlu0 %v7971, 96
      %v8111 = vpop.permute.xlu0 %8110
      %8112 = vrot.lane.b32.xlu0 %v7972, 96
      %v8113 = vpop.permute.xlu0 %8112
      %8114 = vrot.lane.b32.xlu0 %v7973, 96
      %v8115 = vpop.permute.xlu0 %8114
      %8116 = vrot.lane.b32.xlu0 %v7974, 96
      %v8117 = vpop.permute.xlu0 %8116
      %8118 = vrot.lane.b32.xlu0 %v7975, 96
      %v8119 = vpop.permute.xlu0 %8118
      %8138 = vst.msk [vmem:[#allocation4 + $0x120] sm:$0xff] %vm1248, %v8085
      %8139 = vst.msk [vmem:[#allocation4 + $0x128] sm:$0xff] %vm1248, %v8087
      %8140 = vst.msk [vmem:[#allocation4 + $0x130] sm:$0xff] %vm1248, %v8089
      %8141 = vst.msk [vmem:[#allocation4 + $0x138] sm:$0xff] %vm1248, %v8091
      %8142 = vst.msk [vmem:[#allocation4 + $0x140] sm:$0xff] %vm1248, %v8093
      %8143 = vst.msk [vmem:[#allocation4 + $0x148] sm:$0xff] %vm1248, %v8095
      %8144 = vst.msk [vmem:[#allocation4 + $0x150] sm:$0xff] %vm1248, %v8097
      %8145 = vst.msk [vmem:[#allocation4 + $0x158] sm:$0xff] %vm1248, %v8099
      %8146 = vst.msk [vmem:[#allocation4 + $0x160] sm:$0xff] %vm1248, %v8101
      %8147 = vst.msk [vmem:[#allocation4 + $0x168] sm:$0xff] %vm1248, %v8103
      %8148 = vst.msk [vmem:[#allocation4 + $0x170] sm:$0xff] %vm1248, %v8105
      %8149 = vst.msk [vmem:[#allocation4 + $0x178] sm:$0xff] %vm1248, %v8107
      %8150 = vst.msk [vmem:[#allocation4 + $0x180] sm:$0xff] %vm1248, %v8109
      %8151 = vst.msk [vmem:[#allocation4 + $0x188] sm:$0xff] %vm1248, %v8111
      %8152 = vst.msk [vmem:[#allocation4 + $0x190] sm:$0xff] %vm1248, %v8113
      %8153 = vst.msk [vmem:[#allocation4 + $0x198] sm:$0xff] %vm1248, %v8115
      %8154 = vst.msk [vmem:[#allocation4 + $0x1a0] sm:$0xff] %vm1248, %v8117
      %8155 = vst.msk [vmem:[#allocation4 + $0x1a8] sm:$0xff] %vm1248, %v8119
      // Predicated region
      $region57: #{tpu_custom_call.1} parent=43 // pred_check
        %p8156 = pneg %p5117
      $region58: #{tpu_custom_call.1} parent=43 // pred_check_branch
        %8158 = sbr.rel (%p8156) target = $region60
      $region59: #{tpu_custom_call.1} parent=43 // pred_region
        %8159 = vst.msk [vmem:[%s277 + $0x120] sm:$0xff] %vm1248, %v8085
        %8160 = vst.msk [vmem:[%s277 + $0x128] sm:$0xff] %vm1248, %v8087
        %8161 = vst.msk [vmem:[%s277 + $0x130] sm:$0xff] %vm1248, %v8089
        %8162 = vst.msk [vmem:[%s277 + $0x138] sm:$0xff] %vm1248, %v8091
        %8163 = vst.msk [vmem:[%s277 + $0x140] sm:$0xff] %vm1248, %v8093
        %8164 = vst.msk [vmem:[%s277 + $0x148] sm:$0xff] %vm1248, %v8095
        %8165 = vst.msk [vmem:[%s277 + $0x150] sm:$0xff] %vm1248, %v8097
        %8166 = vst.msk [vmem:[%s277 + $0x158] sm:$0xff] %vm1248, %v8099
        %8167 = vst.msk [vmem:[%s277 + $0x160] sm:$0xff] %vm1248, %v8101
        %8168 = vst.msk [vmem:[%s277 + $0x168] sm:$0xff] %vm1248, %v8103
        %8169 = vst.msk [vmem:[%s277 + $0x170] sm:$0xff] %vm1248, %v8105
        %8170 = vst.msk [vmem:[%s277 + $0x178] sm:$0xff] %vm1248, %v8107
        %8171 = vst.msk [vmem:[%s277 + $0x180] sm:$0xff] %vm1248, %v8109
        %8172 = vst.msk [vmem:[%s277 + $0x188] sm:$0xff] %vm1248, %v8111
        %8173 = vst.msk [vmem:[%s277 + $0x190] sm:$0xff] %vm1248, %v8113
        %8174 = vst.msk [vmem:[%s277 + $0x198] sm:$0xff] %vm1248, %v8115
        %8175 = vst.msk [vmem:[%s277 + $0x1a0] sm:$0xff] %vm1248, %v8117
        %8176 = vst.msk [vmem:[%s277 + $0x1a8] sm:$0xff] %vm1248, %v8119
      $region60: #{tpu_custom_call.1} parent=43 // pred_fallthru
        _
      %p8177 = scmp.lt.s32.totalorder %s21, 1
      %s8178 = scalar_select %p8177, %s21, 1
      %s8179 = smul.addr %s8178, 54
      %s8180 = smul.addr %s8179, 8
      %s8181 = scalar_lea.vmem %s6, %s8180
      // Predicated region
      $region61: #{tpu_custom_call.1} parent=43 // pred_check
        %p8182 = pneg %p180
      $region62: #{tpu_custom_call.1} parent=43 // pred_check_branch
        %8184 = sbr.rel (%p8182) target = $region64
      $region63: #{tpu_custom_call.1} parent=43 // pred_region
        _
      $region64: #{tpu_custom_call.1} parent=43 // pred_fallthru
        _
    $region44: #{tpu_custom_call.1} parent=5 // pred_fallthru
      _
    %p8185 = scmp.le.s32.totalorder 2, %s12
    // Predicated region
    $region65: #{tpu_custom_call.1} parent=5 // pred_check
      %p8186 = pneg %p8185
    $region66: #{tpu_custom_call.1} parent=5 // pred_check_branch
      %8188 = sbr.rel (%p8186) target = $region68
    $region67: #{tpu_custom_call.1} parent=5 // pred_region
      %s8189 = ssub.s32 %s12, 2
      // Predicated region
      $region69: #{tpu_custom_call.1} parent=67 // pred_check
        %p8190 = pneg %p186
      $region70: #{tpu_custom_call.1} parent=67 // pred_check_branch
        %8192 = sbr.rel (%p8190) target = $region72
      $region71: #{tpu_custom_call.1} parent=67 // pred_region
        %p8193 = scmp.lt.s32.totalorder %s23, 1
        %s8194 = scalar_select %p8193, %s23, 1
        %s8195 = smul.addr %s8194, 54
        %s8196 = smul.addr %s8195, 8
        %s8197 = scalar_lea.vmem %s6, %s8196
      $region72: #{tpu_custom_call.1} parent=67 // pred_fallthru
        _
    $region68: #{tpu_custom_call.1} parent=5 // pred_fallthru
      _
  $region6: #{tpu_custom_call.1} parent=0 // loop_footer
    %s16 = sadd.s32 1, %s12
  $region7: #{tpu_custom_call.1} parent=0 // loop_footer_branch
    %11 = sbr.rel target = $region3
  $region8: #{tpu_custom_call.1} parent=0 // loop_exit
    _

</llo_original>
